<compile_context>
chip_gen: v7x
topology: tpu7x:2x2x1
jax: 0.10.0
libtpu: 0.0.40
codegen_flags: <defaults>
</compile_context>

<pallas_src>
import jax
import jax.numpy as jnp
from jax.experimental import pallas as pl
from jax.experimental.pallas import tpu as pltpu

BN_EPS = 1e-5


# ------------------------------------------------------------------ kernels
def _conv_mm_kernel(x_ref, w_ref, scale_ref, bias_ref, o_ref, acc_ref):
    """Grid = (M//tm, Cout//tn, T, K//tk); reduction over (T, K)."""
    t = pl.program_id(2)
    k = pl.program_id(3)

    @pl.when(jnp.logical_and(t == 0, k == 0))
    def _():
        acc_ref[...] = jnp.zeros_like(acc_ref)

    # bf16 x bf16 -> f32 accumulation on the MXU.
    acc_ref[...] += jnp.dot(x_ref[...], w_ref[...],
                            preferred_element_type=jnp.float32)

    @pl.when(jnp.logical_and(t == pl.num_programs(2) - 1,
                             k == pl.num_programs(3) - 1))
    def _():
        y = acc_ref[...] * scale_ref[...] + bias_ref[...]
        o_ref[...] = jnp.maximum(y, 0.0).astype(o_ref.dtype)


def _avgpool_kernel(x_ref, o_ref):
    # x: (N, H*W, C) -> o: (N, 1, C); mean over the spatial axis.
    o_ref[...] = jnp.mean(x_ref[...], axis=1, keepdims=True).astype(o_ref.dtype)


# ----------------------------------------------------------------- helpers
def _pick_tile(dim, pref):
    """Largest power-of-two-ish tile <= pref that divides dim (or full dim)."""
    if dim <= pref:
        return dim
    t = pref
    while t > 8 and dim % t:
        t //= 2
    return t if dim % t == 0 else dim


def _fold_bn(gamma, beta, rmean, rvar):
    scale = gamma / jnp.sqrt(rvar + BN_EPS)
    bias = beta - rmean * scale
    return scale, bias


def _prep_conv1x1(x, w):
    # x: NHWC, w: (Cout, Cin, 1, 1) -> taps:(1, M, Cin), wt:(1, Cin, Cout)
    N, H, W, Cin = x.shape
    Cout = w.shape[0]
    taps = x.reshape(1, N * H * W, Cin)
    wt = w.reshape(Cout, Cin).T.reshape(1, Cin, Cout)
    return taps, wt, (N, H, W, Cout)


def _prep_conv3x3s2(x, w):
    # x: NHWC, w: (Cout, Cin, 3, 3), stride=2, padding=1
    # -> taps:(9, M, Cin) ordered (kh, kw), wt:(9, Cin, Cout)
    N, H, W, Cin = x.shape
    Cout = w.shape[0]
    xp = jnp.pad(x, ((0, 0), (1, 1), (1, 1), (0, 0)))
    Ho = (H - 1) // 2 + 1
    Wo = (W - 1) // 2 + 1
    taps = []
    for dh in range(3):
        for dw in range(3):
            taps.append(
                xp[:, dh:dh + 2 * Ho - 1:2, dw:dw + 2 * Wo - 1:2, :]
                .reshape(N * Ho * Wo, Cin))
    taps = jnp.stack(taps, axis=0)                               # (9, M, Cin)
    wt = jnp.transpose(w, (2, 3, 1, 0)).reshape(9, Cin, Cout)    # (kh,kw,cin,cout)
    return taps, wt, (N, Ho, Wo, Cout)


# ------------------------------------------------------------- pallas calls
def _conv_matmul_bn_relu(taps, wt, scale, bias, *,
                         tm_pref=256, tn_pref=256, tk_pref=256):
    """taps:(T, M, K) bf16, wt:(T, K, Cout) bf16, scale/bias:(Cout,) f32."""
    T, M, K = taps.shape
    Cout = wt.shape[2]
    tm = _pick_tile(M, tm_pref)
    tn = _pick_tile(Cout, tn_pref)
    tk = _pick_tile(K, tk_pref)
    grid = (M // tm, Cout // tn, T, K // tk)

    flops = 2 * M * Cout * K * T
    bytes_accessed = (taps.size * taps.dtype.itemsize
                      + wt.size * wt.dtype.itemsize
                      + M * Cout * 4)

    return pl.pallas_call(
        _conv_mm_kernel,
        out_shape=jax.ShapeDtypeStruct((M, Cout), jnp.float32),
        grid_spec=pltpu.PrefetchScalarGridSpec(
            num_scalar_prefetch=0,
            grid=grid,
            in_specs=[
                # activations tile: depends on (t, i, k)
                pl.BlockSpec((None, tm, tk), lambda i, j, t, k: (t, i, k)),
                # weight tile: independent of the M index i (reuse)
                pl.BlockSpec((None, tk, tn), lambda i, j, t, k: (t, k, j)),
                # folded BN scale / bias: only depend on the N tile j
                pl.BlockSpec((1, tn), lambda i, j, t, k: (0, j)),
                pl.BlockSpec((1, tn), lambda i, j, t, k: (0, j)),
            ],
            out_specs=pl.BlockSpec((tm, tn), lambda i, j, t, k: (i, j)),
            scratch_shapes=[pltpu.VMEM((tm, tn), jnp.float32)],
        ),
        compiler_params=pltpu.CompilerParams(
            dimension_semantics=("parallel", "parallel",
                                 "arbitrary", "arbitrary"),
            vmem_limit_bytes=32 * 1024 * 1024,
        ),
        cost_estimate=pl.CostEstimate(
            flops=flops, transcendentals=0, bytes_accessed=bytes_accessed),
    )(taps, wt, scale.reshape(1, Cout), bias.reshape(1, Cout))


def conv_bn_relu(x, w, gamma, beta, rmean, rvar, *, stride):
    prep = _prep_conv1x1 if stride == 1 else _prep_conv3x3s2
    taps, wt, (N, Ho, Wo, Cout) = prep(x, w)
    scale, bias = _fold_bn(gamma, beta, rmean, rvar)
    y = _conv_matmul_bn_relu(taps.astype(jnp.bfloat16),
                             wt.astype(jnp.bfloat16),
                             scale, bias)
    return y.reshape(N, Ho, Wo, Cout)


def global_avgpool(x_nhwc):
    N, H, W, C = x_nhwc.shape
    x3 = x_nhwc.reshape(N, H * W, C)
    out = pl.pallas_call(
        _avgpool_kernel,
        out_shape=jax.ShapeDtypeStruct((N, 1, C), jnp.float32),
        grid=(1,),
        in_specs=[pl.BlockSpec((N, H * W, C), lambda i: (0, 0, 0))],
        out_specs=pl.BlockSpec((N, 1, C), lambda i: (0, 0, 0)),
    )(x3)
    return out.reshape(N, 1, 1, C)


# ---------------------------------------------------------------- the model
def init_extra_layers_params(key, inp):
    # (cin, cout, kernel) in module order.
    specs = [
        (inp, 256, 1), (256, 512, 3),
        (512, 256, 1), (256, 512, 3),
        (512, 256, 1), (256, 512, 3),
    ]
    params = []
    for cin, cout, k in specs:
        key, k1, k2, k3, k4, k5 = jax.random.split(key, 6)
        fan_in = cin * k * k
        w = jax.random.normal(k1, (cout, cin, k, k), jnp.float32) / jnp.sqrt(fan_in)
        gamma = 1.0 + 0.1 * jax.random.normal(k2, (cout,), jnp.float32)
        beta = 0.1 * jax.random.normal(k3, (cout,), jnp.float32)
        rmean = 0.1 * jax.random.normal(k4, (cout,), jnp.float32)
        rvar = jnp.abs(jax.random.normal(k5, (cout,), jnp.float32)) + 0.5
        params.append((w, gamma, beta, rmean, rvar))
    return params


@jax.jit
def extra_layers_forward(x_nchw, params):
    """Returns [fm1, fm2, fm3, pooled] in NCHW, matching the PyTorch module."""
    x = jnp.transpose(x_nchw, (0, 2, 3, 1))  # NCHW -> NHWC (once, at boundary)
    feature_maps = []
    for i in range(3):
        x = conv_bn_relu(x, *params[2 * i], stride=1)       # 1x1, stride 1
        x = conv_bn_relu(x, *params[2 * i + 1], stride=2)   # 3x3, stride 2, pad 1
        # Transpose only at the output/API boundary (PyTorch NCHW contract).
        feature_maps.append(jnp.transpose(x, (0, 3, 1, 2)))
    pooled = global_avgpool(x)                               # (N, 1, 1, C) NHWC
    feature_maps.append(jnp.transpose(pooled, (0, 3, 1, 2)))  # (N, C, 1, 1)
    return feature_maps


# ------------------------------------------------------- pure-JAX reference
def _conv_bn_relu_ref(x, w, gamma, beta, rmean, rvar, *, stride):
    prep = _prep_conv1x1 if stride == 1 else _prep_conv3x3s2
    taps, wt, (N, Ho, Wo, Cout) = prep(x, w)
    scale, bias = _fold_bn(gamma, beta, rmean, rvar)
    acc = jnp.einsum('tmk,tkn->mn',
                     taps.astype(jnp.bfloat16), wt.astype(jnp.bfloat16),
                     preferred_element_type=jnp.float32)
    y = jnp.maximum(acc * scale[None, :] + bias[None, :], 0.0)
    return y.reshape(N, Ho, Wo, Cout)


@jax.jit
def extra_layers_forward_ref(x_nchw, params):
    x = jnp.transpose(x_nchw, (0, 2, 3, 1))
    feature_maps = []
    for i in range(3):
        x = _conv_bn_relu_ref(x, *params[2 * i], stride=1)
        x = _conv_bn_relu_ref(x, *params[2 * i + 1], stride=2)
        feature_maps.append(jnp.transpose(x, (0, 3, 1, 2)))
    pooled = jnp.mean(x, axis=(1, 2), keepdims=True)
    feature_maps.append(jnp.transpose(pooled, (0, 3, 1, 2)))
    return feature_maps


# --------------------------------------------------------------------- main
if __name__ == "__main__":
    key = jax.random.PRNGKey(0)
    kx, kp = jax.random.split(key)

    batch, inp, spatial = 2, 64, 16
    x = jax.random.normal(kx, (batch, inp, spatial, spatial), jnp.float32)
    params = init_extra_layers_params(kp, inp)

    fms = extra_layers_forward(x, params)
    fms = [jax.block_until_ready(f) for f in fms]

    expected = [
        (batch, 512, spatial // 2, spatial // 2),
        (batch, 512, spatial // 4, spatial // 4),
        (batch, 512, spatial // 8, spatial // 8),
        (batch, 512, 1, 1),
    ]
    assert [tuple(f.shape) for f in fms] == expected, \
        f"shape mismatch: {[f.shape for f in fms]} vs {expected}"
    assert all(bool(jnp.all(jnp.isfinite(f))) for f in fms)
    assert all(bool(jnp.all(f >= 0.0)) for f in fms[:3])  # ReLU outputs

    # Numerical check against a plain-JAX reference of the same math
    # (bf16 operands, f32 accumulation) -> only tiling/accumulation-order diffs.
    refs = extra_layers_forward_ref(x, params)
    refs = [jax.block_until_ready(r) for r in refs]
    for a, b in zip(fms, refs):
        denom = float(jnp.max(jnp.abs(b))) + 1e-6
        rel = float(jnp.max(jnp.abs(a - b))) / denom
        assert rel < 1e-2, f"mismatch vs reference: rel err {rel}"

    print("KERNEL_OK")
</pallas_src>

<mosaic_0001>
module attributes {stable_mosaic.version = 11 : i64} {
  func.func @_conv_mm_kernel(%arg0: i32, %arg1: i32, %arg2: i32, %arg3: i32, %arg4: memref<1x256x64xbf16, #tpu.memory_space<vmem>>, %arg5: memref<1x64x256xbf16, #tpu.memory_space<vmem>>, %arg6: memref<1x256xf32, #tpu.memory_space<vmem>>, %arg7: memref<1x256xf32, #tpu.memory_space<vmem>>, %arg8: memref<256x256xf32, #tpu.memory_space<vmem>>, %arg9: memref<256x256xf32, #tpu.memory_space<vmem>>) attributes {dimension_semantics = [#tpu.dimension_semantics<parallel>, #tpu.dimension_semantics<parallel>, #tpu.dimension_semantics<arbitrary>, #tpu.dimension_semantics<arbitrary>], iteration_bounds = array<i64: 2, 1, 1, 1>, scalar_prefetch = 0 : i64, scratch_operands = 1 : i64, tpu.core_type = #tpu.core_type<tc>, window_params = [{transform_indices = @transform_0, window_bounds = array<i64: 1, 256, 64>}, {transform_indices = @transform_1, window_bounds = array<i64: 1, 64, 256>}, {transform_indices = @transform_2, window_bounds = array<i64: 1, 256>}, {transform_indices = @transform_3, window_bounds = array<i64: 1, 256>}, {transform_indices = @transform_4, window_bounds = array<i64: 256, 256>}]} {
    %c0_i32 = arith.constant 0 : i32
    %0 = arith.cmpi eq, %arg2, %c0_i32 : i32
    %c0_i32_0 = arith.constant 0 : i32
    %1 = arith.cmpi eq, %arg3, %c0_i32_0 : i32
    %2 = arith.andi %0, %1 : i1
    %3 = arith.extui %2 : i1 to i32
    %c0_i32_1 = arith.constant 0 : i32
    %4 = arith.cmpi ne, %3, %c0_i32_1 : i32
    scf.if %4 {
      %cst_14 = arith.constant 0.000000e+00 : f32
      %18 = vector.broadcast %cst_14 : f32 to vector<256x256xf32>
      %c0_15 = arith.constant 0 : index
      %c0_16 = arith.constant 0 : index
      %19 = vector.load %arg9[%c0_15, %c0_16] : memref<256x256xf32, #tpu.memory_space<vmem>>, vector<256x256xf32>
      tpu.vector_store %arg9[%c0_15, %c0_16], %18 {strides = array<i32>} : memref<256x256xf32, #tpu.memory_space<vmem>>, vector<256x256xf32>,
    } else {
    }
    %c0 = arith.constant 0 : index
    %c0_2 = arith.constant 0 : index
    %5 = vector.load %arg9[%c0, %c0_2] : memref<256x256xf32, #tpu.memory_space<vmem>>, vector<256x256xf32>
    %c0_3 = arith.constant 0 : index
    %c0_4 = arith.constant 0 : index
    %c0_5 = arith.constant 0 : index
    %6 = vector.load %arg4[%c0_3, %c0_4, %c0_5] : memref<1x256x64xbf16, #tpu.memory_space<vmem>>, vector<1x256x64xbf16>
    %7 = vector.shape_cast %6 : vector<1x256x64xbf16> to vector<256x64xbf16>
    %c0_6 = arith.constant 0 : index
    %c0_7 = arith.constant 0 : index
    %c0_8 = arith.constant 0 : index
    %8 = vector.load %arg5[%c0_6, %c0_7, %c0_8] : memref<1x64x256xbf16, #tpu.memory_space<vmem>>, vector<1x64x256xbf16>
    %9 = vector.shape_cast %8 : vector<1x64x256xbf16> to vector<64x256xbf16>
    %cst = arith.constant dense<0.000000e+00> : vector<256x256xf32>
    %10 = tpu.matmul %7, %9, %cst {dimension_numbers = #tpu.dot_dimension_numbers<[1], [0], [0], [1], [0, 0, 1, 1], [], []>} : vector<256x64xbf16>, vector<64x256xbf16>, vector<256x256xf32> -> vector<256x256xf32>
    %11 = arith.addf %5, %10 : vector<256x256xf32>
    %c0_9 = arith.constant 0 : index
    %c0_10 = arith.constant 0 : index
    %12 = vector.load %arg9[%c0_9, %c0_10] : memref<256x256xf32, #tpu.memory_space<vmem>>, vector<256x256xf32>
    tpu.vector_store %arg9[%c0_9, %c0_10], %11 {strides = array<i32>} : memref<256x256xf32, #tpu.memory_space<vmem>>, vector<256x256xf32>,
    %c0_i32_11 = arith.constant 0 : i32
    %13 = arith.cmpi eq, %arg2, %c0_i32_11 : i32
    %c0_i32_12 = arith.constant 0 : i32
    %14 = arith.cmpi eq, %arg3, %c0_i32_12 : i32
    %15 = arith.andi %13, %14 : i1
    %16 = arith.extui %15 : i1 to i32
    %c0_i32_13 = arith.constant 0 : i32
    %17 = arith.cmpi ne, %16, %c0_i32_13 : i32
    scf.if %17 {
      %c0_14 = arith.constant 0 : index
      %c0_15 = arith.constant 0 : index
      %18 = vector.load %arg9[%c0_14, %c0_15] : memref<256x256xf32, #tpu.memory_space<vmem>>, vector<256x256xf32>
      %c0_16 = arith.constant 0 : index
      %c0_17 = arith.constant 0 : index
      %19 = vector.load %arg6[%c0_16, %c0_17] : memref<1x256xf32, #tpu.memory_space<vmem>>, vector<1x256xf32>
      %20 = vector.broadcast %19 : vector<1x256xf32> to vector<256x256xf32>
      %21 = arith.mulf %18, %20 : vector<256x256xf32>
      %c0_18 = arith.constant 0 : index
      %c0_19 = arith.constant 0 : index
      %22 = vector.load %arg7[%c0_18, %c0_19] : memref<1x256xf32, #tpu.memory_space<vmem>>, vector<1x256xf32>
      %23 = vector.broadcast %22 : vector<1x256xf32> to vector<256x256xf32>
      %24 = arith.addf %21, %23 : vector<256x256xf32>
      %cst_20 = arith.constant 0.000000e+00 : f32
      %25 = vector.broadcast %cst_20 : f32 to vector<256x256xf32>
      %26 = arith.maximumf %24, %25 : vector<256x256xf32>
      %c0_21 = arith.constant 0 : index
      %c0_22 = arith.constant 0 : index
      %27 = vector.load %arg8[%c0_21, %c0_22] : memref<256x256xf32, #tpu.memory_space<vmem>>, vector<256x256xf32>
      tpu.vector_store %arg8[%c0_21, %c0_22], %26 {strides = array<i32>} : memref<256x256xf32, #tpu.memory_space<vmem>>, vector<256x256xf32>,
    } else {
    }
    return
  }
  func.func @transform_0(%arg0: i32, %arg1: i32, %arg2: i32, %arg3: i32) -> (i32, i32, i32) {
    %c0_i32 = arith.constant 0 : i32
    return %arg2, %arg0, %arg3 : i32, i32, i32
  }
  func.func @transform_1(%arg0: i32, %arg1: i32, %arg2: i32, %arg3: i32) -> (i32, i32, i32) {
    %c0_i32 = arith.constant 0 : i32
    return %arg2, %arg3, %arg1 : i32, i32, i32
  }
  func.func @transform_2(%arg0: i32, %arg1: i32, %arg2: i32, %arg3: i32) -> (i32, i32) {
    %c0_i32 = arith.constant 0 : i32
    %c0_i32_0 = arith.constant 0 : i32
    return %c0_i32, %arg1 : i32, i32
  }
  func.func @transform_3(%arg0: i32, %arg1: i32, %arg2: i32, %arg3: i32) -> (i32, i32) {
    %c0_i32 = arith.constant 0 : i32
    %c0_i32_0 = arith.constant 0 : i32
    return %c0_i32, %arg1 : i32, i32
  }
  func.func @transform_4(%arg0: i32, %arg1: i32, %arg2: i32, %arg3: i32) -> (i32, i32) {
    %c0_i32 = arith.constant 0 : i32
    return %arg0, %arg1 : i32, i32
  }
}

module attributes {stable_mosaic.version = 11 : i64} {
  func.func @_conv_mm_kernel(%arg0: i32, %arg1: i32, %arg2: i32, %arg3: i32, %arg4: memref<1x128x256xbf16, #tpu.memory_space<vmem>>, %arg5: memref<1x256x256xbf16, #tpu.memory_space<vmem>>, %arg6: memref<1x256xf32, #tpu.memory_space<vmem>>, %arg7: memref<1x256xf32, #tpu.memory_space<vmem>>, %arg8: memref<128x256xf32, #tpu.memory_space<vmem>>, %arg9: memref<128x256xf32, #tpu.memory_space<vmem>>) attributes {dimension_semantics = [#tpu.dimension_semantics<parallel>, #tpu.dimension_semantics<parallel>, #tpu.dimension_semantics<arbitrary>, #tpu.dimension_semantics<arbitrary>], iteration_bounds = array<i64: 1, 2, 9, 1>, scalar_prefetch = 0 : i64, scratch_operands = 1 : i64, tpu.core_type = #tpu.core_type<tc>, window_params = [{transform_indices = @transform_0, window_bounds = array<i64: 1, 128, 256>}, {transform_indices = @transform_1, window_bounds = array<i64: 1, 256, 256>}, {transform_indices = @transform_2, window_bounds = array<i64: 1, 256>}, {transform_indices = @transform_3, window_bounds = array<i64: 1, 256>}, {transform_indices = @transform_4, window_bounds = array<i64: 128, 256>}]} {
    %c0_i32 = arith.constant 0 : i32
    %0 = arith.cmpi eq, %arg2, %c0_i32 : i32
    %c0_i32_0 = arith.constant 0 : i32
    %1 = arith.cmpi eq, %arg3, %c0_i32_0 : i32
    %2 = arith.andi %0, %1 : i1
    %3 = arith.extui %2 : i1 to i32
    %c0_i32_1 = arith.constant 0 : i32
    %4 = arith.cmpi ne, %3, %c0_i32_1 : i32
    scf.if %4 {
      %cst_13 = arith.constant 0.000000e+00 : f32
      %18 = vector.broadcast %cst_13 : f32 to vector<128x256xf32>
      %c0_14 = arith.constant 0 : index
      %c0_15 = arith.constant 0 : index
      %19 = vector.load %arg9[%c0_14, %c0_15] : memref<128x256xf32, #tpu.memory_space<vmem>>, vector<128x256xf32>
      tpu.vector_store %arg9[%c0_14, %c0_15], %18 {strides = array<i32>} : memref<128x256xf32, #tpu.memory_space<vmem>>, vector<128x256xf32>,
    } else {
    }
    %c0 = arith.constant 0 : index
    %c0_2 = arith.constant 0 : index
    %5 = vector.load %arg9[%c0, %c0_2] : memref<128x256xf32, #tpu.memory_space<vmem>>, vector<128x256xf32>
    %c0_3 = arith.constant 0 : index
    %c0_4 = arith.constant 0 : index
    %c0_5 = arith.constant 0 : index
    %6 = vector.load %arg4[%c0_3, %c0_4, %c0_5] : memref<1x128x256xbf16, #tpu.memory_space<vmem>>, vector<1x128x256xbf16>
    %7 = vector.shape_cast %6 : vector<1x128x256xbf16> to vector<128x256xbf16>
    %c0_6 = arith.constant 0 : index
    %c0_7 = arith.constant 0 : index
    %c0_8 = arith.constant 0 : index
    %8 = vector.load %arg5[%c0_6, %c0_7, %c0_8] : memref<1x256x256xbf16, #tpu.memory_space<vmem>>, vector<1x256x256xbf16>
    %9 = vector.shape_cast %8 : vector<1x256x256xbf16> to vector<256x256xbf16>
    %cst = arith.constant dense<0.000000e+00> : vector<128x256xf32>
    %10 = tpu.matmul %7, %9, %cst {dimension_numbers = #tpu.dot_dimension_numbers<[1], [0], [0], [1], [0, 0, 1, 1], [], []>} : vector<128x256xbf16>, vector<256x256xbf16>, vector<128x256xf32> -> vector<128x256xf32>
    %11 = arith.addf %5, %10 : vector<128x256xf32>
    %c0_9 = arith.constant 0 : index
    %c0_10 = arith.constant 0 : index
    %12 = vector.load %arg9[%c0_9, %c0_10] : memref<128x256xf32, #tpu.memory_space<vmem>>, vector<128x256xf32>
    tpu.vector_store %arg9[%c0_9, %c0_10], %11 {strides = array<i32>} : memref<128x256xf32, #tpu.memory_space<vmem>>, vector<128x256xf32>,
    %c8_i32 = arith.constant 8 : i32
    %13 = arith.cmpi eq, %arg2, %c8_i32 : i32
    %c0_i32_11 = arith.constant 0 : i32
    %14 = arith.cmpi eq, %arg3, %c0_i32_11 : i32
    %15 = arith.andi %13, %14 : i1
    %16 = arith.extui %15 : i1 to i32
    %c0_i32_12 = arith.constant 0 : i32
    %17 = arith.cmpi ne, %16, %c0_i32_12 : i32
    scf.if %17 {
      %c0_13 = arith.constant 0 : index
      %c0_14 = arith.constant 0 : index
      %18 = vector.load %arg9[%c0_13, %c0_14] : memref<128x256xf32, #tpu.memory_space<vmem>>, vector<128x256xf32>
      %c0_15 = arith.constant 0 : index
      %c0_16 = arith.constant 0 : index
      %19 = vector.load %arg6[%c0_15, %c0_16] : memref<1x256xf32, #tpu.memory_space<vmem>>, vector<1x256xf32>
      %20 = vector.broadcast %19 : vector<1x256xf32> to vector<128x256xf32>
      %21 = arith.mulf %18, %20 : vector<128x256xf32>
      %c0_17 = arith.constant 0 : index
      %c0_18 = arith.constant 0 : index
      %22 = vector.load %arg7[%c0_17, %c0_18] : memref<1x256xf32, #tpu.memory_space<vmem>>, vector<1x256xf32>
      %23 = vector.broadcast %22 : vector<1x256xf32> to vector<128x256xf32>
      %24 = arith.addf %21, %23 : vector<128x256xf32>
      %cst_19 = arith.constant 0.000000e+00 : f32
      %25 = vector.broadcast %cst_19 : f32 to vector<128x256xf32>
      %26 = arith.maximumf %24, %25 : vector<128x256xf32>
      %c0_20 = arith.constant 0 : index
      %c0_21 = arith.constant 0 : index
      %27 = vector.load %arg8[%c0_20, %c0_21] : memref<128x256xf32, #tpu.memory_space<vmem>>, vector<128x256xf32>
      tpu.vector_store %arg8[%c0_20, %c0_21], %26 {strides = array<i32>} : memref<128x256xf32, #tpu.memory_space<vmem>>, vector<128x256xf32>,
    } else {
    }
    return
  }
  func.func @transform_0(%arg0: i32, %arg1: i32, %arg2: i32, %arg3: i32) -> (i32, i32, i32) {
    %c0_i32 = arith.constant 0 : i32
    return %arg2, %arg0, %arg3 : i32, i32, i32
  }
  func.func @transform_1(%arg0: i32, %arg1: i32, %arg2: i32, %arg3: i32) -> (i32, i32, i32) {
    %c0_i32 = arith.constant 0 : i32
    return %arg2, %arg3, %arg1 : i32, i32, i32
  }
  func.func @transform_2(%arg0: i32, %arg1: i32, %arg2: i32, %arg3: i32) -> (i32, i32) {
    %c0_i32 = arith.constant 0 : i32
    %c0_i32_0 = arith.constant 0 : i32
    return %c0_i32, %arg1 : i32, i32
  }
  func.func @transform_3(%arg0: i32, %arg1: i32, %arg2: i32, %arg3: i32) -> (i32, i32) {
    %c0_i32 = arith.constant 0 : i32
    %c0_i32_0 = arith.constant 0 : i32
    return %c0_i32, %arg1 : i32, i32
  }
  func.func @transform_4(%arg0: i32, %arg1: i32, %arg2: i32, %arg3: i32) -> (i32, i32) {
    %c0_i32 = arith.constant 0 : i32
    return %arg0, %arg1 : i32, i32
  }
}

module attributes {stable_mosaic.version = 11 : i64} {
  func.func @_conv_mm_kernel(%arg0: i32, %arg1: i32, %arg2: i32, %arg3: i32, %arg4: memref<1x128x256xbf16, #tpu.memory_space<vmem>>, %arg5: memref<1x256x256xbf16, #tpu.memory_space<vmem>>, %arg6: memref<1x256xf32, #tpu.memory_space<vmem>>, %arg7: memref<1x256xf32, #tpu.memory_space<vmem>>, %arg8: memref<128x256xf32, #tpu.memory_space<vmem>>, %arg9: memref<128x256xf32, #tpu.memory_space<vmem>>) attributes {dimension_semantics = [#tpu.dimension_semantics<parallel>, #tpu.dimension_semantics<parallel>, #tpu.dimension_semantics<arbitrary>, #tpu.dimension_semantics<arbitrary>], iteration_bounds = array<i64: 1, 1, 1, 2>, scalar_prefetch = 0 : i64, scratch_operands = 1 : i64, tpu.core_type = #tpu.core_type<tc>, window_params = [{transform_indices = @transform_0, window_bounds = array<i64: 1, 128, 256>}, {transform_indices = @transform_1, window_bounds = array<i64: 1, 256, 256>}, {transform_indices = @transform_2, window_bounds = array<i64: 1, 256>}, {transform_indices = @transform_3, window_bounds = array<i64: 1, 256>}, {transform_indices = @transform_4, window_bounds = array<i64: 128, 256>}]} {
    %c0_i32 = arith.constant 0 : i32
    %0 = arith.cmpi eq, %arg2, %c0_i32 : i32
    %c0_i32_0 = arith.constant 0 : i32
    %1 = arith.cmpi eq, %arg3, %c0_i32_0 : i32
    %2 = arith.andi %0, %1 : i1
    %3 = arith.extui %2 : i1 to i32
    %c0_i32_1 = arith.constant 0 : i32
    %4 = arith.cmpi ne, %3, %c0_i32_1 : i32
    scf.if %4 {
      %cst_13 = arith.constant 0.000000e+00 : f32
      %18 = vector.broadcast %cst_13 : f32 to vector<128x256xf32>
      %c0_14 = arith.constant 0 : index
      %c0_15 = arith.constant 0 : index
      %19 = vector.load %arg9[%c0_14, %c0_15] : memref<128x256xf32, #tpu.memory_space<vmem>>, vector<128x256xf32>
      tpu.vector_store %arg9[%c0_14, %c0_15], %18 {strides = array<i32>} : memref<128x256xf32, #tpu.memory_space<vmem>>, vector<128x256xf32>,
    } else {
    }
    %c0 = arith.constant 0 : index
    %c0_2 = arith.constant 0 : index
    %5 = vector.load %arg9[%c0, %c0_2] : memref<128x256xf32, #tpu.memory_space<vmem>>, vector<128x256xf32>
    %c0_3 = arith.constant 0 : index
    %c0_4 = arith.constant 0 : index
    %c0_5 = arith.constant 0 : index
    %6 = vector.load %arg4[%c0_3, %c0_4, %c0_5] : memref<1x128x256xbf16, #tpu.memory_space<vmem>>, vector<1x128x256xbf16>
    %7 = vector.shape_cast %6 : vector<1x128x256xbf16> to vector<128x256xbf16>
    %c0_6 = arith.constant 0 : index
    %c0_7 = arith.constant 0 : index
    %c0_8 = arith.constant 0 : index
    %8 = vector.load %arg5[%c0_6, %c0_7, %c0_8] : memref<1x256x256xbf16, #tpu.memory_space<vmem>>, vector<1x256x256xbf16>
    %9 = vector.shape_cast %8 : vector<1x256x256xbf16> to vector<256x256xbf16>
    %cst = arith.constant dense<0.000000e+00> : vector<128x256xf32>
    %10 = tpu.matmul %7, %9, %cst {dimension_numbers = #tpu.dot_dimension_numbers<[1], [0], [0], [1], [0, 0, 1, 1], [], []>} : vector<128x256xbf16>, vector<256x256xbf16>, vector<128x256xf32> -> vector<128x256xf32>
    %11 = arith.addf %5, %10 : vector<128x256xf32>
    %c0_9 = arith.constant 0 : index
    %c0_10 = arith.constant 0 : index
    %12 = vector.load %arg9[%c0_9, %c0_10] : memref<128x256xf32, #tpu.memory_space<vmem>>, vector<128x256xf32>
    tpu.vector_store %arg9[%c0_9, %c0_10], %11 {strides = array<i32>} : memref<128x256xf32, #tpu.memory_space<vmem>>, vector<128x256xf32>,
    %c0_i32_11 = arith.constant 0 : i32
    %13 = arith.cmpi eq, %arg2, %c0_i32_11 : i32
    %c1_i32 = arith.constant 1 : i32
    %14 = arith.cmpi eq, %arg3, %c1_i32 : i32
    %15 = arith.andi %13, %14 : i1
    %16 = arith.extui %15 : i1 to i32
    %c0_i32_12 = arith.constant 0 : i32
    %17 = arith.cmpi ne, %16, %c0_i32_12 : i32
    scf.if %17 {
      %c0_13 = arith.constant 0 : index
      %c0_14 = arith.constant 0 : index
      %18 = vector.load %arg9[%c0_13, %c0_14] : memref<128x256xf32, #tpu.memory_space<vmem>>, vector<128x256xf32>
      %c0_15 = arith.constant 0 : index
      %c0_16 = arith.constant 0 : index
      %19 = vector.load %arg6[%c0_15, %c0_16] : memref<1x256xf32, #tpu.memory_space<vmem>>, vector<1x256xf32>
      %20 = vector.broadcast %19 : vector<1x256xf32> to vector<128x256xf32>
      %21 = arith.mulf %18, %20 : vector<128x256xf32>
      %c0_17 = arith.constant 0 : index
      %c0_18 = arith.constant 0 : index
      %22 = vector.load %arg7[%c0_17, %c0_18] : memref<1x256xf32, #tpu.memory_space<vmem>>, vector<1x256xf32>
      %23 = vector.broadcast %22 : vector<1x256xf32> to vector<128x256xf32>
      %24 = arith.addf %21, %23 : vector<128x256xf32>
      %cst_19 = arith.constant 0.000000e+00 : f32
      %25 = vector.broadcast %cst_19 : f32 to vector<128x256xf32>
      %26 = arith.maximumf %24, %25 : vector<128x256xf32>
      %c0_20 = arith.constant 0 : index
      %c0_21 = arith.constant 0 : index
      %27 = vector.load %arg8[%c0_20, %c0_21] : memref<128x256xf32, #tpu.memory_space<vmem>>, vector<128x256xf32>
      tpu.vector_store %arg8[%c0_20, %c0_21], %26 {strides = array<i32>} : memref<128x256xf32, #tpu.memory_space<vmem>>, vector<128x256xf32>,
    } else {
    }
    return
  }
  func.func @transform_0(%arg0: i32, %arg1: i32, %arg2: i32, %arg3: i32) -> (i32, i32, i32) {
    %c0_i32 = arith.constant 0 : i32
    return %arg2, %arg0, %arg3 : i32, i32, i32
  }
  func.func @transform_1(%arg0: i32, %arg1: i32, %arg2: i32, %arg3: i32) -> (i32, i32, i32) {
    %c0_i32 = arith.constant 0 : i32
    return %arg2, %arg3, %arg1 : i32, i32, i32
  }
  func.func @transform_2(%arg0: i32, %arg1: i32, %arg2: i32, %arg3: i32) -> (i32, i32) {
    %c0_i32 = arith.constant 0 : i32
    %c0_i32_0 = arith.constant 0 : i32
    return %c0_i32, %arg1 : i32, i32
  }
  func.func @transform_3(%arg0: i32, %arg1: i32, %arg2: i32, %arg3: i32) -> (i32, i32) {
    %c0_i32 = arith.constant 0 : i32
    %c0_i32_0 = arith.constant 0 : i32
    return %c0_i32, %arg1 : i32, i32
  }
  func.func @transform_4(%arg0: i32, %arg1: i32, %arg2: i32, %arg3: i32) -> (i32, i32) {
    %c0_i32 = arith.constant 0 : i32
    return %arg0, %arg1 : i32, i32
  }
}

module attributes {stable_mosaic.version = 11 : i64} {
  func.func @_conv_mm_kernel(%arg0: i32, %arg1: i32, %arg2: i32, %arg3: i32, %arg4: memref<1x32x256xbf16, #tpu.memory_space<vmem>>, %arg5: memref<1x256x256xbf16, #tpu.memory_space<vmem>>, %arg6: memref<1x256xf32, #tpu.memory_space<vmem>>, %arg7: memref<1x256xf32, #tpu.memory_space<vmem>>, %arg8: memref<32x256xf32, #tpu.memory_space<vmem>>, %arg9: memref<32x256xf32, #tpu.memory_space<vmem>>) attributes {dimension_semantics = [#tpu.dimension_semantics<parallel>, #tpu.dimension_semantics<parallel>, #tpu.dimension_semantics<arbitrary>, #tpu.dimension_semantics<arbitrary>], iteration_bounds = array<i64: 1, 2, 9, 1>, scalar_prefetch = 0 : i64, scratch_operands = 1 : i64, tpu.core_type = #tpu.core_type<tc>, window_params = [{transform_indices = @transform_0, window_bounds = array<i64: 1, 32, 256>}, {transform_indices = @transform_1, window_bounds = array<i64: 1, 256, 256>}, {transform_indices = @transform_2, window_bounds = array<i64: 1, 256>}, {transform_indices = @transform_3, window_bounds = array<i64: 1, 256>}, {transform_indices = @transform_4, window_bounds = array<i64: 32, 256>}]} {
    %c0_i32 = arith.constant 0 : i32
    %0 = arith.cmpi eq, %arg2, %c0_i32 : i32
    %c0_i32_0 = arith.constant 0 : i32
    %1 = arith.cmpi eq, %arg3, %c0_i32_0 : i32
    %2 = arith.andi %0, %1 : i1
    %3 = arith.extui %2 : i1 to i32
    %c0_i32_1 = arith.constant 0 : i32
    %4 = arith.cmpi ne, %3, %c0_i32_1 : i32
    scf.if %4 {
      %cst_13 = arith.constant 0.000000e+00 : f32
      %18 = vector.broadcast %cst_13 : f32 to vector<32x256xf32>
      %c0_14 = arith.constant 0 : index
      %c0_15 = arith.constant 0 : index
      %19 = vector.load %arg9[%c0_14, %c0_15] : memref<32x256xf32, #tpu.memory_space<vmem>>, vector<32x256xf32>
      tpu.vector_store %arg9[%c0_14, %c0_15], %18 {strides = array<i32>} : memref<32x256xf32, #tpu.memory_space<vmem>>, vector<32x256xf32>,
    } else {
    }
    %c0 = arith.constant 0 : index
    %c0_2 = arith.constant 0 : index
    %5 = vector.load %arg9[%c0, %c0_2] : memref<32x256xf32, #tpu.memory_space<vmem>>, vector<32x256xf32>
    %c0_3 = arith.constant 0 : index
    %c0_4 = arith.constant 0 : index
    %c0_5 = arith.constant 0 : index
    %6 = vector.load %arg4[%c0_3, %c0_4, %c0_5] : memref<1x32x256xbf16, #tpu.memory_space<vmem>>, vector<1x32x256xbf16>
    %7 = vector.shape_cast %6 : vector<1x32x256xbf16> to vector<32x256xbf16>
    %c0_6 = arith.constant 0 : index
    %c0_7 = arith.constant 0 : index
    %c0_8 = arith.constant 0 : index
    %8 = vector.load %arg5[%c0_6, %c0_7, %c0_8] : memref<1x256x256xbf16, #tpu.memory_space<vmem>>, vector<1x256x256xbf16>
    %9 = vector.shape_cast %8 : vector<1x256x256xbf16> to vector<256x256xbf16>
    %cst = arith.constant dense<0.000000e+00> : vector<32x256xf32>
    %10 = tpu.matmul %7, %9, %cst {dimension_numbers = #tpu.dot_dimension_numbers<[1], [0], [0], [1], [0, 0, 1, 1], [], []>} : vector<32x256xbf16>, vector<256x256xbf16>, vector<32x256xf32> -> vector<32x256xf32>
    %11 = arith.addf %5, %10 : vector<32x256xf32>
    %c0_9 = arith.constant 0 : index
    %c0_10 = arith.constant 0 : index
    %12 = vector.load %arg9[%c0_9, %c0_10] : memref<32x256xf32, #tpu.memory_space<vmem>>, vector<32x256xf32>
    tpu.vector_store %arg9[%c0_9, %c0_10], %11 {strides = array<i32>} : memref<32x256xf32, #tpu.memory_space<vmem>>, vector<32x256xf32>,
    %c8_i32 = arith.constant 8 : i32
    %13 = arith.cmpi eq, %arg2, %c8_i32 : i32
    %c0_i32_11 = arith.constant 0 : i32
    %14 = arith.cmpi eq, %arg3, %c0_i32_11 : i32
    %15 = arith.andi %13, %14 : i1
    %16 = arith.extui %15 : i1 to i32
    %c0_i32_12 = arith.constant 0 : i32
    %17 = arith.cmpi ne, %16, %c0_i32_12 : i32
    scf.if %17 {
      %c0_13 = arith.constant 0 : index
      %c0_14 = arith.constant 0 : index
      %18 = vector.load %arg9[%c0_13, %c0_14] : memref<32x256xf32, #tpu.memory_space<vmem>>, vector<32x256xf32>
      %c0_15 = arith.constant 0 : index
      %c0_16 = arith.constant 0 : index
      %19 = vector.load %arg6[%c0_15, %c0_16] : memref<1x256xf32, #tpu.memory_space<vmem>>, vector<1x256xf32>
      %20 = vector.broadcast %19 : vector<1x256xf32> to vector<32x256xf32>
      %21 = arith.mulf %18, %20 : vector<32x256xf32>
      %c0_17 = arith.constant 0 : index
      %c0_18 = arith.constant 0 : index
      %22 = vector.load %arg7[%c0_17, %c0_18] : memref<1x256xf32, #tpu.memory_space<vmem>>, vector<1x256xf32>
      %23 = vector.broadcast %22 : vector<1x256xf32> to vector<32x256xf32>
      %24 = arith.addf %21, %23 : vector<32x256xf32>
      %cst_19 = arith.constant 0.000000e+00 : f32
      %25 = vector.broadcast %cst_19 : f32 to vector<32x256xf32>
      %26 = arith.maximumf %24, %25 : vector<32x256xf32>
      %c0_20 = arith.constant 0 : index
      %c0_21 = arith.constant 0 : index
      %27 = vector.load %arg8[%c0_20, %c0_21] : memref<32x256xf32, #tpu.memory_space<vmem>>, vector<32x256xf32>
      tpu.vector_store %arg8[%c0_20, %c0_21], %26 {strides = array<i32>} : memref<32x256xf32, #tpu.memory_space<vmem>>, vector<32x256xf32>,
    } else {
    }
    return
  }
  func.func @transform_0(%arg0: i32, %arg1: i32, %arg2: i32, %arg3: i32) -> (i32, i32, i32) {
    %c0_i32 = arith.constant 0 : i32
    return %arg2, %arg0, %arg3 : i32, i32, i32
  }
  func.func @transform_1(%arg0: i32, %arg1: i32, %arg2: i32, %arg3: i32) -> (i32, i32, i32) {
    %c0_i32 = arith.constant 0 : i32
    return %arg2, %arg3, %arg1 : i32, i32, i32
  }
  func.func @transform_2(%arg0: i32, %arg1: i32, %arg2: i32, %arg3: i32) -> (i32, i32) {
    %c0_i32 = arith.constant 0 : i32
    %c0_i32_0 = arith.constant 0 : i32
    return %c0_i32, %arg1 : i32, i32
  }
  func.func @transform_3(%arg0: i32, %arg1: i32, %arg2: i32, %arg3: i32) -> (i32, i32) {
    %c0_i32 = arith.constant 0 : i32
    %c0_i32_0 = arith.constant 0 : i32
    return %c0_i32, %arg1 : i32, i32
  }
  func.func @transform_4(%arg0: i32, %arg1: i32, %arg2: i32, %arg3: i32) -> (i32, i32) {
    %c0_i32 = arith.constant 0 : i32
    return %arg0, %arg1 : i32, i32
  }
}

module attributes {stable_mosaic.version = 11 : i64} {
  func.func @_conv_mm_kernel(%arg0: i32, %arg1: i32, %arg2: i32, %arg3: i32, %arg4: memref<1x32x256xbf16, #tpu.memory_space<vmem>>, %arg5: memref<1x256x256xbf16, #tpu.memory_space<vmem>>, %arg6: memref<1x256xf32, #tpu.memory_space<vmem>>, %arg7: memref<1x256xf32, #tpu.memory_space<vmem>>, %arg8: memref<32x256xf32, #tpu.memory_space<vmem>>, %arg9: memref<32x256xf32, #tpu.memory_space<vmem>>) attributes {dimension_semantics = [#tpu.dimension_semantics<parallel>, #tpu.dimension_semantics<parallel>, #tpu.dimension_semantics<arbitrary>, #tpu.dimension_semantics<arbitrary>], iteration_bounds = array<i64: 1, 1, 1, 2>, scalar_prefetch = 0 : i64, scratch_operands = 1 : i64, tpu.core_type = #tpu.core_type<tc>, window_params = [{transform_indices = @transform_0, window_bounds = array<i64: 1, 32, 256>}, {transform_indices = @transform_1, window_bounds = array<i64: 1, 256, 256>}, {transform_indices = @transform_2, window_bounds = array<i64: 1, 256>}, {transform_indices = @transform_3, window_bounds = array<i64: 1, 256>}, {transform_indices = @transform_4, window_bounds = array<i64: 32, 256>}]} {
    %c0_i32 = arith.constant 0 : i32
    %0 = arith.cmpi eq, %arg2, %c0_i32 : i32
    %c0_i32_0 = arith.constant 0 : i32
    %1 = arith.cmpi eq, %arg3, %c0_i32_0 : i32
    %2 = arith.andi %0, %1 : i1
    %3 = arith.extui %2 : i1 to i32
    %c0_i32_1 = arith.constant 0 : i32
    %4 = arith.cmpi ne, %3, %c0_i32_1 : i32
    scf.if %4 {
      %cst_13 = arith.constant 0.000000e+00 : f32
      %18 = vector.broadcast %cst_13 : f32 to vector<32x256xf32>
      %c0_14 = arith.constant 0 : index
      %c0_15 = arith.constant 0 : index
      %19 = vector.load %arg9[%c0_14, %c0_15] : memref<32x256xf32, #tpu.memory_space<vmem>>, vector<32x256xf32>
      tpu.vector_store %arg9[%c0_14, %c0_15], %18 {strides = array<i32>} : memref<32x256xf32, #tpu.memory_space<vmem>>, vector<32x256xf32>,
    } else {
    }
    %c0 = arith.constant 0 : index
    %c0_2 = arith.constant 0 : index
    %5 = vector.load %arg9[%c0, %c0_2] : memref<32x256xf32, #tpu.memory_space<vmem>>, vector<32x256xf32>
    %c0_3 = arith.constant 0 : index
    %c0_4 = arith.constant 0 : index
    %c0_5 = arith.constant 0 : index
    %6 = vector.load %arg4[%c0_3, %c0_4, %c0_5] : memref<1x32x256xbf16, #tpu.memory_space<vmem>>, vector<1x32x256xbf16>
    %7 = vector.shape_cast %6 : vector<1x32x256xbf16> to vector<32x256xbf16>
    %c0_6 = arith.constant 0 : index
    %c0_7 = arith.constant 0 : index
    %c0_8 = arith.constant 0 : index
    %8 = vector.load %arg5[%c0_6, %c0_7, %c0_8] : memref<1x256x256xbf16, #tpu.memory_space<vmem>>, vector<1x256x256xbf16>
    %9 = vector.shape_cast %8 : vector<1x256x256xbf16> to vector<256x256xbf16>
    %cst = arith.constant dense<0.000000e+00> : vector<32x256xf32>
    %10 = tpu.matmul %7, %9, %cst {dimension_numbers = #tpu.dot_dimension_numbers<[1], [0], [0], [1], [0, 0, 1, 1], [], []>} : vector<32x256xbf16>, vector<256x256xbf16>, vector<32x256xf32> -> vector<32x256xf32>
    %11 = arith.addf %5, %10 : vector<32x256xf32>
    %c0_9 = arith.constant 0 : index
    %c0_10 = arith.constant 0 : index
    %12 = vector.load %arg9[%c0_9, %c0_10] : memref<32x256xf32, #tpu.memory_space<vmem>>, vector<32x256xf32>
    tpu.vector_store %arg9[%c0_9, %c0_10], %11 {strides = array<i32>} : memref<32x256xf32, #tpu.memory_space<vmem>>, vector<32x256xf32>,
    %c0_i32_11 = arith.constant 0 : i32
    %13 = arith.cmpi eq, %arg2, %c0_i32_11 : i32
    %c1_i32 = arith.constant 1 : i32
    %14 = arith.cmpi eq, %arg3, %c1_i32 : i32
    %15 = arith.andi %13, %14 : i1
    %16 = arith.extui %15 : i1 to i32
    %c0_i32_12 = arith.constant 0 : i32
    %17 = arith.cmpi ne, %16, %c0_i32_12 : i32
    scf.if %17 {
      %c0_13 = arith.constant 0 : index
      %c0_14 = arith.constant 0 : index
      %18 = vector.load %arg9[%c0_13, %c0_14] : memref<32x256xf32, #tpu.memory_space<vmem>>, vector<32x256xf32>
      %c0_15 = arith.constant 0 : index
      %c0_16 = arith.constant 0 : index
      %19 = vector.load %arg6[%c0_15, %c0_16] : memref<1x256xf32, #tpu.memory_space<vmem>>, vector<1x256xf32>
      %20 = vector.broadcast %19 : vector<1x256xf32> to vector<32x256xf32>
      %21 = arith.mulf %18, %20 : vector<32x256xf32>
      %c0_17 = arith.constant 0 : index
      %c0_18 = arith.constant 0 : index
      %22 = vector.load %arg7[%c0_17, %c0_18] : memref<1x256xf32, #tpu.memory_space<vmem>>, vector<1x256xf32>
      %23 = vector.broadcast %22 : vector<1x256xf32> to vector<32x256xf32>
      %24 = arith.addf %21, %23 : vector<32x256xf32>
      %cst_19 = arith.constant 0.000000e+00 : f32
      %25 = vector.broadcast %cst_19 : f32 to vector<32x256xf32>
      %26 = arith.maximumf %24, %25 : vector<32x256xf32>
      %c0_20 = arith.constant 0 : index
      %c0_21 = arith.constant 0 : index
      %27 = vector.load %arg8[%c0_20, %c0_21] : memref<32x256xf32, #tpu.memory_space<vmem>>, vector<32x256xf32>
      tpu.vector_store %arg8[%c0_20, %c0_21], %26 {strides = array<i32>} : memref<32x256xf32, #tpu.memory_space<vmem>>, vector<32x256xf32>,
    } else {
    }
    return
  }
  func.func @transform_0(%arg0: i32, %arg1: i32, %arg2: i32, %arg3: i32) -> (i32, i32, i32) {
    %c0_i32 = arith.constant 0 : i32
    return %arg2, %arg0, %arg3 : i32, i32, i32
  }
  func.func @transform_1(%arg0: i32, %arg1: i32, %arg2: i32, %arg3: i32) -> (i32, i32, i32) {
    %c0_i32 = arith.constant 0 : i32
    return %arg2, %arg3, %arg1 : i32, i32, i32
  }
  func.func @transform_2(%arg0: i32, %arg1: i32, %arg2: i32, %arg3: i32) -> (i32, i32) {
    %c0_i32 = arith.constant 0 : i32
    %c0_i32_0 = arith.constant 0 : i32
    return %c0_i32, %arg1 : i32, i32
  }
  func.func @transform_3(%arg0: i32, %arg1: i32, %arg2: i32, %arg3: i32) -> (i32, i32) {
    %c0_i32 = arith.constant 0 : i32
    %c0_i32_0 = arith.constant 0 : i32
    return %c0_i32, %arg1 : i32, i32
  }
  func.func @transform_4(%arg0: i32, %arg1: i32, %arg2: i32, %arg3: i32) -> (i32, i32) {
    %c0_i32 = arith.constant 0 : i32
    return %arg0, %arg1 : i32, i32
  }
}

module attributes {stable_mosaic.version = 11 : i64} {
  func.func @_avgpool_kernel(%arg0: i32, %arg1: memref<2x4x512xf32, #tpu.memory_space<vmem>>, %arg2: memref<2x1x512xf32, #tpu.memory_space<vmem>>) attributes {dimension_semantics = [#tpu.dimension_semantics<arbitrary>], iteration_bounds = array<i64: 1>, scalar_prefetch = 0 : i64, scratch_operands = 0 : i64, tpu.core_type = #tpu.core_type<tc>, window_params = [{pipeline_mode = #tpu.pipeline_mode<synchronous>, transform_indices = @transform_0, window_bounds = array<i64: 2, 4, 512>}, {pipeline_mode = #tpu.pipeline_mode<synchronous>, transform_indices = @transform_1, window_bounds = array<i64: 2, 1, 512>}]} {
    %c0 = arith.constant 0 : index
    %c0_0 = arith.constant 0 : index
    %c0_1 = arith.constant 0 : index
    %0 = vector.load %arg1[%c0, %c0_0, %c0_1] : memref<2x4x512xf32, #tpu.memory_space<vmem>>, vector<2x4x512xf32>
    %cst = arith.constant dense<0.000000e+00> : vector<2x512xf32>
    %1 = vector.multi_reduction <add>, %0, %cst [1] : vector<2x4x512xf32> to vector<2x512xf32>
    %2 = vector.shape_cast %1 : vector<2x512xf32> to vector<2x1x512xf32>
    %cst_2 = arith.constant 4.000000e+00 : f32
    %3 = vector.broadcast %cst_2 : f32 to vector<2x1x512xf32>
    %4 = arith.divf %2, %3 : vector<2x1x512xf32>
    %c0_3 = arith.constant 0 : index
    %c0_4 = arith.constant 0 : index
    %c0_5 = arith.constant 0 : index
    %5 = vector.load %arg2[%c0_3, %c0_4, %c0_5] : memref<2x1x512xf32, #tpu.memory_space<vmem>>, vector<2x1x512xf32>
    tpu.vector_store %arg2[%c0_3, %c0_4, %c0_5], %4 {strides = array<i32>} : memref<2x1x512xf32, #tpu.memory_space<vmem>>, vector<2x1x512xf32>,
    return
  }
  func.func @transform_0(%arg0: i32) -> (i32, i32, i32) {
    %c0_i32 = arith.constant 0 : i32
    %c0_i32_0 = arith.constant 0 : i32
    %c0_i32_1 = arith.constant 0 : i32
    %c0_i32_2 = arith.constant 0 : i32
    return %c0_i32, %c0_i32_0, %c0_i32_1 : i32, i32, i32
  }
  func.func @transform_1(%arg0: i32) -> (i32, i32, i32) {
    %c0_i32 = arith.constant 0 : i32
    %c0_i32_0 = arith.constant 0 : i32
    %c0_i32_1 = arith.constant 0 : i32
    %c0_i32_2 = arith.constant 0 : i32
    return %c0_i32, %c0_i32_0, %c0_i32_1 : i32, i32, i32
  }
}

module attributes {stable_mosaic.version = 11 : i64} {
  func.func @_conv_mm_kernel(%arg0: i32, %arg1: i32, %arg2: i32, %arg3: i32, %arg4: memref<1x8x256xbf16, #tpu.memory_space<vmem>>, %arg5: memref<1x256x256xbf16, #tpu.memory_space<vmem>>, %arg6: memref<1x256xf32, #tpu.memory_space<vmem>>, %arg7: memref<1x256xf32, #tpu.memory_space<vmem>>, %arg8: memref<8x256xf32, #tpu.memory_space<vmem>>, %arg9: memref<8x256xf32, #tpu.memory_space<vmem>>) attributes {dimension_semantics = [#tpu.dimension_semantics<parallel>, #tpu.dimension_semantics<parallel>, #tpu.dimension_semantics<arbitrary>, #tpu.dimension_semantics<arbitrary>], iteration_bounds = array<i64: 1, 2, 9, 1>, scalar_prefetch = 0 : i64, scratch_operands = 1 : i64, tpu.core_type = #tpu.core_type<tc>, window_params = [{transform_indices = @transform_0, window_bounds = array<i64: 1, 8, 256>}, {transform_indices = @transform_1, window_bounds = array<i64: 1, 256, 256>}, {transform_indices = @transform_2, window_bounds = array<i64: 1, 256>}, {transform_indices = @transform_3, window_bounds = array<i64: 1, 256>}, {transform_indices = @transform_4, window_bounds = array<i64: 8, 256>}]} {
    %c0_i32 = arith.constant 0 : i32
    %0 = arith.cmpi eq, %arg2, %c0_i32 : i32
    %c0_i32_0 = arith.constant 0 : i32
    %1 = arith.cmpi eq, %arg3, %c0_i32_0 : i32
    %2 = arith.andi %0, %1 : i1
    %3 = arith.extui %2 : i1 to i32
    %c0_i32_1 = arith.constant 0 : i32
    %4 = arith.cmpi ne, %3, %c0_i32_1 : i32
    scf.if %4 {
      %cst_13 = arith.constant 0.000000e+00 : f32
      %18 = vector.broadcast %cst_13 : f32 to vector<8x256xf32>
      %c0_14 = arith.constant 0 : index
      %c0_15 = arith.constant 0 : index
      %19 = vector.load %arg9[%c0_14, %c0_15] : memref<8x256xf32, #tpu.memory_space<vmem>>, vector<8x256xf32>
      tpu.vector_store %arg9[%c0_14, %c0_15], %18 {strides = array<i32>} : memref<8x256xf32, #tpu.memory_space<vmem>>, vector<8x256xf32>,
    } else {
    }
    %c0 = arith.constant 0 : index
    %c0_2 = arith.constant 0 : index
    %5 = vector.load %arg9[%c0, %c0_2] : memref<8x256xf32, #tpu.memory_space<vmem>>, vector<8x256xf32>
    %c0_3 = arith.constant 0 : index
    %c0_4 = arith.constant 0 : index
    %c0_5 = arith.constant 0 : index
    %6 = vector.load %arg4[%c0_3, %c0_4, %c0_5] : memref<1x8x256xbf16, #tpu.memory_space<vmem>>, vector<1x8x256xbf16>
    %7 = vector.shape_cast %6 : vector<1x8x256xbf16> to vector<8x256xbf16>
    %c0_6 = arith.constant 0 : index
    %c0_7 = arith.constant 0 : index
    %c0_8 = arith.constant 0 : index
    %8 = vector.load %arg5[%c0_6, %c0_7, %c0_8] : memref<1x256x256xbf16, #tpu.memory_space<vmem>>, vector<1x256x256xbf16>
    %9 = vector.shape_cast %8 : vector<1x256x256xbf16> to vector<256x256xbf16>
    %cst = arith.constant dense<0.000000e+00> : vector<8x256xf32>
    %10 = tpu.matmul %7, %9, %cst {dimension_numbers = #tpu.dot_dimension_numbers<[1], [0], [0], [1], [0, 0, 1, 1], [], []>} : vector<8x256xbf16>, vector<256x256xbf16>, vector<8x256xf32> -> vector<8x256xf32>
    %11 = arith.addf %5, %10 : vector<8x256xf32>
    %c0_9 = arith.constant 0 : index
    %c0_10 = arith.constant 0 : index
    %12 = vector.load %arg9[%c0_9, %c0_10] : memref<8x256xf32, #tpu.memory_space<vmem>>, vector<8x256xf32>
    tpu.vector_store %arg9[%c0_9, %c0_10], %11 {strides = array<i32>} : memref<8x256xf32, #tpu.memory_space<vmem>>, vector<8x256xf32>,
    %c8_i32 = arith.constant 8 : i32
    %13 = arith.cmpi eq, %arg2, %c8_i32 : i32
    %c0_i32_11 = arith.constant 0 : i32
    %14 = arith.cmpi eq, %arg3, %c0_i32_11 : i32
    %15 = arith.andi %13, %14 : i1
    %16 = arith.extui %15 : i1 to i32
    %c0_i32_12 = arith.constant 0 : i32
    %17 = arith.cmpi ne, %16, %c0_i32_12 : i32
    scf.if %17 {
      %c0_13 = arith.constant 0 : index
      %c0_14 = arith.constant 0 : index
      %18 = vector.load %arg9[%c0_13, %c0_14] : memref<8x256xf32, #tpu.memory_space<vmem>>, vector<8x256xf32>
      %c0_15 = arith.constant 0 : index
      %c0_16 = arith.constant 0 : index
      %19 = vector.load %arg6[%c0_15, %c0_16] : memref<1x256xf32, #tpu.memory_space<vmem>>, vector<1x256xf32>
      %20 = vector.broadcast %19 : vector<1x256xf32> to vector<8x256xf32>
      %21 = arith.mulf %18, %20 : vector<8x256xf32>
      %c0_17 = arith.constant 0 : index
      %c0_18 = arith.constant 0 : index
      %22 = vector.load %arg7[%c0_17, %c0_18] : memref<1x256xf32, #tpu.memory_space<vmem>>, vector<1x256xf32>
      %23 = vector.broadcast %22 : vector<1x256xf32> to vector<8x256xf32>
      %24 = arith.addf %21, %23 : vector<8x256xf32>
      %cst_19 = arith.constant 0.000000e+00 : f32
      %25 = vector.broadcast %cst_19 : f32 to vector<8x256xf32>
      %26 = arith.maximumf %24, %25 : vector<8x256xf32>
      %c0_20 = arith.constant 0 : index
      %c0_21 = arith.constant 0 : index
      %27 = vector.load %arg8[%c0_20, %c0_21] : memref<8x256xf32, #tpu.memory_space<vmem>>, vector<8x256xf32>
      tpu.vector_store %arg8[%c0_20, %c0_21], %26 {strides = array<i32>} : memref<8x256xf32, #tpu.memory_space<vmem>>, vector<8x256xf32>,
    } else {
    }
    return
  }
  func.func @transform_0(%arg0: i32, %arg1: i32, %arg2: i32, %arg3: i32) -> (i32, i32, i32) {
    %c0_i32 = arith.constant 0 : i32
    return %arg2, %arg0, %arg3 : i32, i32, i32
  }
  func.func @transform_1(%arg0: i32, %arg1: i32, %arg2: i32, %arg3: i32) -> (i32, i32, i32) {
    %c0_i32 = arith.constant 0 : i32
    return %arg2, %arg3, %arg1 : i32, i32, i32
  }
  func.func @transform_2(%arg0: i32, %arg1: i32, %arg2: i32, %arg3: i32) -> (i32, i32) {
    %c0_i32 = arith.constant 0 : i32
    %c0_i32_0 = arith.constant 0 : i32
    return %c0_i32, %arg1 : i32, i32
  }
  func.func @transform_3(%arg0: i32, %arg1: i32, %arg2: i32, %arg3: i32) -> (i32, i32) {
    %c0_i32 = arith.constant 0 : i32
    %c0_i32_0 = arith.constant 0 : i32
    return %c0_i32, %arg1 : i32, i32
  }
  func.func @transform_4(%arg0: i32, %arg1: i32, %arg2: i32, %arg3: i32) -> (i32, i32) {
    %c0_i32 = arith.constant 0 : i32
    return %arg0, %arg1 : i32, i32
  }
}

</mosaic_0001>

<llo_original>
// kernel: extra_layers_forward.7
$region0: #{extra_layers_forward.7}
  #allocation0 [shape = 'u32[]', space=smem, size = 0x4, offset = 0x4, fixed_abs, tag = 'smem constant byte address 0x4 - core index']
  #allocation1 [shape = 'u32[144,128]{1,0:T(1,128)}', space=vmem, size = 0x12000, scoped, tag = 'internal scratch']
  #allocation2 [shape = 'f32[256,256]{1,0:T(8,128)}', space=vmem, size = 0x40000, scoped, tag = 'scratch operand']
  %s0 = inlined_call_operand.vmem [shape: bf16[1,512,64], index: 0, kind: input, shape index: {}]
  %s1 = inlined_call_operand.vmem [shape: bf16[1,64,256], index: 1, kind: input, shape index: {}]
  %s2 = inlined_call_operand.vmem [shape: f32[1,256], index: 2, kind: input, shape index: {}]
  %s3 = inlined_call_operand.vmem [shape: f32[1,256], index: 3, kind: input, shape index: {}]
  %s4 = inlined_call_operand.vmem [shape: f32[512,256], index: 4, kind: output, shape index: {}]
  %s5 = sld [smem:[#allocation0]]
  $region57: #{extra_layers_forward.7} parent=0
    _
  %s7 = ssub.s32 1, %s5
  %s8 = scalar_select 0, %s7, %s5
  loop: start=0, step=1, limit=4
  $region2: #{extra_layers_forward.7} parent=0 // loop_pre_header
    _
  $region3: #{extra_layers_forward.7} parent=0 // loop_header
    %s10 = sphi 0, %s14
    %p11 = scmp.ge.s32.totalorder %s10, 4
    %s17 = sphi 0, %s43
    %s18 = sphi 0, %s39
    %s19 = sphi 0, %s35
    %s20 = sphi 0, %s31
    %s21 = sphi 0, %s17
    %s22 = sphi 0, %s18
    %s23 = sphi 0, %s19
    %s24 = sphi 0, %s20
    %s25 = sphi 0, %s21
    %s26 = sphi 0, %s22
    %s27 = sphi 0, %s23
    %s28 = sphi 0, %s24
    %s50 = sphi 0, %s52
    %s53 = sphi 0, %s50
    %s54 = sphi 0, %s53
    %s70 = sphi 0, %s54
    %s80 = sphi 0, %s82
    %s83 = sphi 0, %s80
    %s84 = sphi 0, %s83
    %s100 = sphi 0, %s84
    %s106 = sphi 0, %s108
    %s109 = sphi 0, %s106
    %s110 = sphi 0, %s109
    %s126 = sphi 0, %s110
    %s132 = sphi 0, %s134
    %s135 = sphi 0, %s132
    %s136 = sphi 0, %s135
    %s152 = sphi 0, %s136
    %s160 = sphi 0, %s162
    %s163 = sphi 0, %s160
    %s164 = sphi 0, %s163
    %s180 = sphi 0, %s164
  $region4: #{extra_layers_forward.7} parent=0 // loop_header_branch
    %13 = sbr.rel (%p11) target = $region8
  $region5: #{extra_layers_forward.7} parent=0 // loop_body
    %s15 = ssub.s32 %s10, 1
    %s16 = ssub.s32 %s10, 2
    %s29 = sadd.s32 1, %s20
    %p30 = scmp.ge.s32.totalorder %s29, 1
    %s31 = scalar_select %p30, 0, %s29
    %s32 = sadd.s32 1, %s19
    %s33 = scalar_select %p30, %s32, %s19
    %p34 = scmp.ge.s32.totalorder %s33, 1
    %s35 = scalar_select %p34, 0, %s33
    %s36 = sadd.s32 1, %s18
    %s37 = scalar_select %p34, %s36, %s18
    %p38 = scmp.ge.s32.totalorder %s37, 1
    %s39 = scalar_select %p38, 0, %s37
    %s40 = sadd.s32 1, %s17
    %s41 = scalar_select %p38, %s40, %s17
    %p42 = scmp.ge.s32.totalorder %s41, 2
    %s43 = scalar_select %p42, 0, %s41
    %s44 = ssub.s32 %s19, %s35
    %s45 = ssub.s32 %s17, %s43
    %s46 = sor.u32 %s44, %s45
    %s47 = ssub.s32 %s20, %s31
    %s48 = sor.u32 %s46, %s47
    %p49 = scmp.eq.s32.totalorder %s48, 0
    %s51 = sadd.s32 %s50, 1
    %s52 = scalar_select %p49, %s50, %s51
    %p55 = pneg %p49
    %p56 = scmp.eq.s32.totalorder %s10, 1
    %p57 = por %p55, %p56
    %p58 = scmp.ne.s32.totalorder %s50, %s53
    %p59 = scmp.eq.s32.totalorder %s10, 0
    %p60 = por %p58, %p59
    %p61 = scmp.ne.s32.totalorder %s50, %s53
    %p62 = scmp.eq.s32.totalorder %s15, 1
    %p63 = por %p61, %p62
    %p64 = scmp.ne.s32.totalorder %s53, %s54
    %p65 = scmp.eq.s32.totalorder %s15, 0
    %p66 = por %p64, %p65
    %p67 = scmp.ne.s32.totalorder %s53, %s54
    %p68 = scmp.eq.s32.totalorder %s16, 1
    %p69 = por %p67, %p68
    %p71 = scmp.ne.s32.totalorder %s54, %s70
    %p72 = scmp.eq.s32.totalorder %s16, 0
    %p73 = por %p71, %p72
    %s74 = ssub.s32 %s19, %s35
    %s75 = ssub.s32 %s20, %s31
    %s76 = sor.u32 %s74, %s75
    %s77 = ssub.s32 %s18, %s39
    %s78 = sor.u32 %s76, %s77
    %p79 = scmp.eq.s32.totalorder %s78, 0
    %s81 = sadd.s32 %s80, 1
    %s82 = scalar_select %p79, %s80, %s81
    %p85 = pneg %p79
    %p86 = scmp.eq.s32.totalorder %s10, 1
    %p87 = por %p85, %p86
    %p88 = scmp.ne.s32.totalorder %s80, %s83
    %p89 = scmp.eq.s32.totalorder %s10, 0
    %p90 = por %p88, %p89
    %p91 = scmp.ne.s32.totalorder %s80, %s83
    %p92 = scmp.eq.s32.totalorder %s15, 1
    %p93 = por %p91, %p92
    %p94 = scmp.ne.s32.totalorder %s83, %s84
    %p95 = scmp.eq.s32.totalorder %s15, 0
    %p96 = por %p94, %p95
    %p97 = scmp.ne.s32.totalorder %s83, %s84
    %p98 = scmp.eq.s32.totalorder %s16, 1
    %p99 = por %p97, %p98
    %p101 = scmp.ne.s32.totalorder %s84, %s100
    %p102 = scmp.eq.s32.totalorder %s16, 0
    %p103 = por %p101, %p102
    %s104 = ssub.s32 %s18, %s39
    %p105 = scmp.eq.s32.totalorder %s104, 0
    %s107 = sadd.s32 %s106, 1
    %s108 = scalar_select %p105, %s106, %s107
    %p111 = pneg %p105
    %p112 = scmp.eq.s32.totalorder %s10, 1
    %p113 = por %p111, %p112
    %p114 = scmp.ne.s32.totalorder %s106, %s109
    %p115 = scmp.eq.s32.totalorder %s10, 0
    %p116 = por %p114, %p115
    %p117 = scmp.ne.s32.totalorder %s106, %s109
    %p118 = scmp.eq.s32.totalorder %s15, 1
    %p119 = por %p117, %p118
    %p120 = scmp.ne.s32.totalorder %s109, %s110
    %p121 = scmp.eq.s32.totalorder %s15, 0
    %p122 = por %p120, %p121
    %p123 = scmp.ne.s32.totalorder %s109, %s110
    %p124 = scmp.eq.s32.totalorder %s16, 1
    %p125 = por %p123, %p124
    %p127 = scmp.ne.s32.totalorder %s110, %s126
    %p128 = scmp.eq.s32.totalorder %s16, 0
    %p129 = por %p127, %p128
    %s130 = ssub.s32 %s18, %s39
    %p131 = scmp.eq.s32.totalorder %s130, 0
    %s133 = sadd.s32 %s132, 1
    %s134 = scalar_select %p131, %s132, %s133
    %p137 = pneg %p131
    %p138 = scmp.eq.s32.totalorder %s10, 1
    %p139 = por %p137, %p138
    %p140 = scmp.ne.s32.totalorder %s132, %s135
    %p141 = scmp.eq.s32.totalorder %s10, 0
    %p142 = por %p140, %p141
    %p143 = scmp.ne.s32.totalorder %s132, %s135
    %p144 = scmp.eq.s32.totalorder %s15, 1
    %p145 = por %p143, %p144
    %p146 = scmp.ne.s32.totalorder %s135, %s136
    %p147 = scmp.eq.s32.totalorder %s15, 0
    %p148 = por %p146, %p147
    %p149 = scmp.ne.s32.totalorder %s135, %s136
    %p150 = scmp.eq.s32.totalorder %s16, 1
    %p151 = por %p149, %p150
    %p153 = scmp.ne.s32.totalorder %s136, %s152
    %p154 = scmp.eq.s32.totalorder %s16, 0
    %p155 = por %p153, %p154
    %s156 = ssub.s32 %s17, %s43
    %s157 = ssub.s32 %s18, %s39
    %s158 = sor.u32 %s156, %s157
    %p159 = scmp.eq.s32.totalorder %s158, 0
    %s161 = sadd.s32 %s160, 1
    %s162 = scalar_select %p159, %s160, %s161
    %p165 = pneg %p159
    %p166 = scmp.eq.s32.totalorder %s10, 1
    %p167 = por %p165, %p166
    %p168 = scmp.ne.s32.totalorder %s160, %s163
    %p169 = scmp.eq.s32.totalorder %s10, 0
    %p170 = por %p168, %p169
    %p171 = scmp.ne.s32.totalorder %s160, %s163
    %p172 = scmp.eq.s32.totalorder %s15, 1
    %p173 = por %p171, %p172
    %p174 = scmp.ne.s32.totalorder %s163, %s164
    %p175 = scmp.eq.s32.totalorder %s15, 0
    %p176 = por %p174, %p175
    %p177 = scmp.ne.s32.totalorder %s163, %s164
    %p178 = scmp.eq.s32.totalorder %s16, 1
    %p179 = por %p177, %p178
    %p181 = scmp.ne.s32.totalorder %s164, %s180
    %p182 = scmp.eq.s32.totalorder %s16, 0
    %p183 = por %p181, %p182
    %p184 = scmp.le.s32.totalorder 1, %s10
    %p185 = scmp.lt.s32.totalorder %s10, 3
    %p186 = pnand %p184, %p185
    %p187 = pneg %p186
    // Predicated region
    $region9: #{extra_layers_forward.7} parent=5 // pred_check
      _
    $region10: #{extra_layers_forward.7} parent=5 // pred_check_branch
      %189 = sbr.rel (%p186) target = $region12
    $region11: #{extra_layers_forward.7} parent=5 // pred_region
      %s190 = ssub.s32 %s10, 1
      // Predicated region
      $region13: #{extra_layers_forward.7} parent=11 // pred_check
        %p191 = pneg %p96
      $region14: #{extra_layers_forward.7} parent=11 // pred_check_branch
        %193 = sbr.rel (%p191) target = $region16
      $region15: #{extra_layers_forward.7} parent=11 // pred_region
        %s194 = smul.u32 8, %s24
        %s195 = smul.u32 2, %s22
        %p196 = scmp.lt.s32.totalorder %s23, 0
        %s197 = scalar_select %p196, %s23, 0
        %p198 = scmp.lt.s32.totalorder %s194, 7
        %s199 = scalar_select %p198, %s194, 7
        %p200 = scmp.lt.s32.totalorder %s195, 1
        %s201 = scalar_select %p200, %s195, 1
        %s202 = smul.addr %s199, 2
        %s203 = sadd.s32 %s201, %s202
        %s204 = smul.addr %s197, 16
        %s205 = sadd.s32 %s203, %s204
        %s206 = smul.addr %s205, 4
        %s207 = scalar_lea.vmem %s1, %s206
        %s208 = smul.u32 8, %s24
        %s209 = smul.u32 2, %s22
      $region16: #{extra_layers_forward.7} parent=11 // pred_fallthru
        _
      // Predicated region
      $region17: #{extra_layers_forward.7} parent=11 // pred_check
        %p210 = pneg %p122
      $region18: #{extra_layers_forward.7} parent=11 // pred_check_branch
        %212 = sbr.rel (%p210) target = $region20
      $region19: #{extra_layers_forward.7} parent=11 // pred_region
        %s213 = smul.u32 2, %s22
        %p214 = scmp.lt.s32.totalorder %s213, 1
        %s215 = scalar_select %p214, %s213, 1
        %s216 = scalar_lea.vmem %s2, %s215
        %s217 = smul.u32 2, %s22
      $region20: #{extra_layers_forward.7} parent=11 // pred_fallthru
        _
      // Predicated region
      $region21: #{extra_layers_forward.7} parent=11 // pred_check
        %p218 = pneg %p148
      $region22: #{extra_layers_forward.7} parent=11 // pred_check_branch
        %220 = sbr.rel (%p218) target = $region24
      $region23: #{extra_layers_forward.7} parent=11 // pred_region
        %s221 = smul.u32 2, %s22
        %p222 = scmp.lt.s32.totalorder %s221, 1
        %s223 = scalar_select %p222, %s221, 1
        %s224 = scalar_lea.vmem %s3, %s223
        %s225 = smul.u32 2, %s22
      $region24: #{extra_layers_forward.7} parent=11 // pred_fallthru
        _
    $region12: #{extra_layers_forward.7} parent=5 // pred_fallthru
      _
    %p226 = scmp.lt.s32.totalorder %s10, 2
    // Predicated region
    $region25: #{extra_layers_forward.7} parent=5 // pred_check
      %p227 = pneg %p226
    $region26: #{extra_layers_forward.7} parent=5 // pred_check_branch
      %229 = sbr.rel (%p227) target = $region28
    $region27: #{extra_layers_forward.7} parent=5 // pred_region
      // Predicated region
      $region29: #{extra_layers_forward.7} parent=27 // pred_check
        %p230 = pneg %p60
      $region30: #{extra_layers_forward.7} parent=27 // pred_check_branch
        %232 = sbr.rel (%p230) target = $region32
      $region31: #{extra_layers_forward.7} parent=27 // pred_region
        %s233 = smul.u32 32, %s17
        %p234 = scmp.lt.s32.totalorder %s19, 0
        %s235 = scalar_select %p234, %s19, 0
        %p236 = scmp.lt.s32.totalorder %s233, 63
        %s237 = scalar_select %p236, %s233, 63
        %p238 = scmp.lt.s32.totalorder %s20, 0
        %s239 = scalar_select %p238, %s20, 0
        %s240 = sadd.s32 %s239, %s237
        %s241 = smul.addr %s235, 64
        %s242 = sadd.s32 %s240, %s241
        %s243 = smul.addr %s242, 4
        %s244 = scalar_lea.vmem %s0, %s243
        %s245 = smul.u32 32, %s17
      $region32: #{extra_layers_forward.7} parent=27 // pred_fallthru
        _
    $region28: #{extra_layers_forward.7} parent=5 // pred_fallthru
      _
    %p246 = scmp.le.s32.totalorder 1, %s10
    %p247 = scmp.lt.s32.totalorder %s10, 3
    %p248 = pnand %p246, %p247
    %p249 = pneg %p248
    // Predicated region
    $region33: #{extra_layers_forward.7} parent=5 // pred_check
      _
    $region34: #{extra_layers_forward.7} parent=5 // pred_check_branch
      %251 = sbr.rel (%p248) target = $region36
    $region35: #{extra_layers_forward.7} parent=5 // pred_region
      %s252 = ssub.s32 %s10, 1
      %s253 = smul.u32 32, %s21
      %p254 = scmp.lt.s32.totalorder %s23, 0
      %s255 = scalar_select %p254, %s23, 0
      %p256 = scmp.lt.s32.totalorder %s253, 63
      %s257 = scalar_select %p256, %s253, 63
      %p258 = scmp.lt.s32.totalorder %s24, 0
      %s259 = scalar_select %p258, %s24, 0
      %s260 = sadd.s32 %s259, %s257
      %s261 = smul.addr %s255, 64
      %s262 = sadd.s32 %s260, %s261
      %s263 = smul.addr %s262, 4
      %s264 = scalar_lea.vmem %s0, %s263
      %p265 = pneg %p66
      %p266 = pneg %p63
      %s267 = smul.u32 8, %s24
      %s268 = smul.u32 2, %s22
      %p269 = scmp.lt.s32.totalorder %s23, 0
      %s270 = scalar_select %p269, %s23, 0
      %p271 = scmp.lt.s32.totalorder %s267, 7
      %s272 = scalar_select %p271, %s267, 7
      %p273 = scmp.lt.s32.totalorder %s268, 1
      %s274 = scalar_select %p273, %s268, 1
      %s275 = smul.addr %s272, 2
      %s276 = sadd.s32 %s274, %s275
      %s277 = smul.addr %s270, 16
      %s278 = sadd.s32 %s276, %s277
      %s279 = smul.addr %s278, 4
      %s280 = scalar_lea.vmem %s1, %s279
      %p281 = pneg %p96
      %p282 = pneg %p93
      %s283 = smul.u32 2, %s22
      %p284 = scmp.lt.s32.totalorder %s283, 1
      %s285 = scalar_select %p284, %s283, 1
      %s286 = scalar_lea.vmem %s2, %s285
      %p287 = pneg %p122
      %p288 = pneg %p119
      %s289 = smul.u32 2, %s22
      %p290 = scmp.lt.s32.totalorder %s289, 1
      %s291 = scalar_select %p290, %s289, 1
      %s292 = scalar_lea.vmem %s3, %s291
      %p293 = pneg %p148
      %p294 = pneg %p145
      %p295 = pneg %p176
      %p296 = pneg %p173
      %s297 = smul.u32 32, %s21
      %s298 = smul.u32 2, %s22
      %p299 = scmp.lt.s32.totalorder %s297, 63
      %s300 = scalar_select %p299, %s297, 63
      %p301 = scmp.lt.s32.totalorder %s298, 1
      %s302 = scalar_select %p301, %s298, 1
      %s303 = smul.addr %s300, 2
      %s304 = sadd.s32 %s302, %s303
      %s305 = smul.addr %s304, 8
      %s306 = scalar_lea.vmem %s4, %s305
      %s307 = smul.u32 32, %s21
      %p308 = scmp.lt.s32.totalorder %s23, 0
      %s309 = scalar_select %p308, %s23, 0
      %p310 = scmp.lt.s32.totalorder %s307, 63
      %s311 = scalar_select %p310, %s307, 63
      %p312 = scmp.lt.s32.totalorder %s24, 0
      %s313 = scalar_select %p312, %s24, 0
      %s314 = sadd.s32 %s313, %s311
      %s315 = smul.addr %s309, 64
      %s316 = sadd.s32 %s314, %s315
      %s317 = smul.addr %s316, 4
      %s318 = scalar_lea.vmem %s0, %s317
      %s319 = smul.u32 32, %s21
      %s320 = smul.u32 8, %s24
      %s321 = smul.u32 2, %s22
      %p322 = scmp.lt.s32.totalorder %s23, 0
      %s323 = scalar_select %p322, %s23, 0
      %p324 = scmp.lt.s32.totalorder %s320, 7
      %s325 = scalar_select %p324, %s320, 7
      %p326 = scmp.lt.s32.totalorder %s321, 1
      %s327 = scalar_select %p326, %s321, 1
      %s328 = smul.addr %s325, 2
      %s329 = sadd.s32 %s327, %s328
      %s330 = smul.addr %s323, 16
      %s331 = sadd.s32 %s329, %s330
      %s332 = smul.addr %s331, 4
      %s333 = scalar_lea.vmem %s1, %s332
      %s334 = smul.u32 8, %s24
      %s335 = smul.u32 2, %s22
      %s336 = smul.u32 2, %s22
      %p337 = scmp.lt.s32.totalorder %s336, 1
      %s338 = scalar_select %p337, %s336, 1
      %s339 = scalar_lea.vmem %s2, %s338
      %s340 = smul.u32 2, %s22
      %s341 = smul.u32 2, %s22
      %p342 = scmp.lt.s32.totalorder %s341, 1
      %s343 = scalar_select %p342, %s341, 1
      %s344 = scalar_lea.vmem %s3, %s343
      %s345 = smul.u32 2, %s22
      %s346 = smul.u32 32, %s21
      %s347 = smul.u32 2, %s22
      %p348 = scmp.lt.s32.totalorder %s346, 63
      %s349 = scalar_select %p348, %s346, 63
      %p350 = scmp.lt.s32.totalorder %s347, 1
      %s351 = scalar_select %p350, %s347, 1
      %s352 = smul.addr %s349, 2
      %s353 = sadd.s32 %s351, %s352
      %s354 = smul.addr %s353, 8
      %s355 = scalar_lea.vmem %s4, %s354
      %s356 = smul.u32 32, %s21
      %s357 = smul.u32 2, %s22
      %p359 = scmp.eq.s32.totalorder %s23, 0
      %p360 = scmp.eq.s32.totalorder %s24, 0
      %p361 = pnand %p359, %p360
      %p362 = pneg %p361
      // Predicated region
      $region37: #{extra_layers_forward.7} parent=35 // pred_check
        _
      $region38: #{extra_layers_forward.7} parent=35 // pred_check_branch
        %364 = sbr.rel (%p361) target = $region40
      $region39: #{extra_layers_forward.7} parent=35 // pred_region
        %365 = vst [vmem:[#allocation2] sm:$0xff] 0.0
        %366 = vst [vmem:[#allocation2 + $0x8] sm:$0xff] 0.0
        %367 = vst [vmem:[#allocation2 + $0x10] sm:$0xff] 0.0
        %368 = vst [vmem:[#allocation2 + $0x18] sm:$0xff] 0.0
        %369 = vst [vmem:[#allocation2 + $0x20] sm:$0xff] 0.0
        %370 = vst [vmem:[#allocation2 + $0x28] sm:$0xff] 0.0
        %371 = vst [vmem:[#allocation2 + $0x30] sm:$0xff] 0.0
        %372 = vst [vmem:[#allocation2 + $0x38] sm:$0xff] 0.0
        %373 = vst [vmem:[#allocation2 + $0x40] sm:$0xff] 0.0
        %374 = vst [vmem:[#allocation2 + $0x48] sm:$0xff] 0.0
        %375 = vst [vmem:[#allocation2 + $0x50] sm:$0xff] 0.0
        %376 = vst [vmem:[#allocation2 + $0x58] sm:$0xff] 0.0
        %377 = vst [vmem:[#allocation2 + $0x60] sm:$0xff] 0.0
        %378 = vst [vmem:[#allocation2 + $0x68] sm:$0xff] 0.0
        %379 = vst [vmem:[#allocation2 + $0x70] sm:$0xff] 0.0
        %380 = vst [vmem:[#allocation2 + $0x78] sm:$0xff] 0.0
        %381 = vst [vmem:[#allocation2 + $0x80] sm:$0xff] 0.0
        %382 = vst [vmem:[#allocation2 + $0x88] sm:$0xff] 0.0
        %383 = vst [vmem:[#allocation2 + $0x90] sm:$0xff] 0.0
        %384 = vst [vmem:[#allocation2 + $0x98] sm:$0xff] 0.0
        %385 = vst [vmem:[#allocation2 + $0xa0] sm:$0xff] 0.0
        %386 = vst [vmem:[#allocation2 + $0xa8] sm:$0xff] 0.0
        %387 = vst [vmem:[#allocation2 + $0xb0] sm:$0xff] 0.0
        %388 = vst [vmem:[#allocation2 + $0xb8] sm:$0xff] 0.0
        %389 = vst [vmem:[#allocation2 + $0xc0] sm:$0xff] 0.0
        %390 = vst [vmem:[#allocation2 + $0xc8] sm:$0xff] 0.0
        %391 = vst [vmem:[#allocation2 + $0xd0] sm:$0xff] 0.0
        %392 = vst [vmem:[#allocation2 + $0xd8] sm:$0xff] 0.0
        %393 = vst [vmem:[#allocation2 + $0xe0] sm:$0xff] 0.0
        %394 = vst [vmem:[#allocation2 + $0xe8] sm:$0xff] 0.0
        %395 = vst [vmem:[#allocation2 + $0xf0] sm:$0xff] 0.0
        %396 = vst [vmem:[#allocation2 + $0xf8] sm:$0xff] 0.0
        %397 = vst [vmem:[#allocation2 + $0x100] sm:$0xff] 0.0
        %398 = vst [vmem:[#allocation2 + $0x108] sm:$0xff] 0.0
        %399 = vst [vmem:[#allocation2 + $0x110] sm:$0xff] 0.0
        %400 = vst [vmem:[#allocation2 + $0x118] sm:$0xff] 0.0
        %401 = vst [vmem:[#allocation2 + $0x120] sm:$0xff] 0.0
        %402 = vst [vmem:[#allocation2 + $0x128] sm:$0xff] 0.0
        %403 = vst [vmem:[#allocation2 + $0x130] sm:$0xff] 0.0
        %404 = vst [vmem:[#allocation2 + $0x138] sm:$0xff] 0.0
        %405 = vst [vmem:[#allocation2 + $0x140] sm:$0xff] 0.0
        %406 = vst [vmem:[#allocation2 + $0x148] sm:$0xff] 0.0
        %407 = vst [vmem:[#allocation2 + $0x150] sm:$0xff] 0.0
        %408 = vst [vmem:[#allocation2 + $0x158] sm:$0xff] 0.0
        %409 = vst [vmem:[#allocation2 + $0x160] sm:$0xff] 0.0
        %410 = vst [vmem:[#allocation2 + $0x168] sm:$0xff] 0.0
        %411 = vst [vmem:[#allocation2 + $0x170] sm:$0xff] 0.0
        %412 = vst [vmem:[#allocation2 + $0x178] sm:$0xff] 0.0
        %413 = vst [vmem:[#allocation2 + $0x180] sm:$0xff] 0.0
        %414 = vst [vmem:[#allocation2 + $0x188] sm:$0xff] 0.0
        %415 = vst [vmem:[#allocation2 + $0x190] sm:$0xff] 0.0
        %416 = vst [vmem:[#allocation2 + $0x198] sm:$0xff] 0.0
        %417 = vst [vmem:[#allocation2 + $0x1a0] sm:$0xff] 0.0
        %418 = vst [vmem:[#allocation2 + $0x1a8] sm:$0xff] 0.0
        %419 = vst [vmem:[#allocation2 + $0x1b0] sm:$0xff] 0.0
        %420 = vst [vmem:[#allocation2 + $0x1b8] sm:$0xff] 0.0
        %421 = vst [vmem:[#allocation2 + $0x1c0] sm:$0xff] 0.0
        %422 = vst [vmem:[#allocation2 + $0x1c8] sm:$0xff] 0.0
        %423 = vst [vmem:[#allocation2 + $0x1d0] sm:$0xff] 0.0
        %424 = vst [vmem:[#allocation2 + $0x1d8] sm:$0xff] 0.0
        %425 = vst [vmem:[#allocation2 + $0x1e0] sm:$0xff] 0.0
        %426 = vst [vmem:[#allocation2 + $0x1e8] sm:$0xff] 0.0
        %427 = vst [vmem:[#allocation2 + $0x1f0] sm:$0xff] 0.0
        %428 = vst [vmem:[#allocation2 + $0x1f8] sm:$0xff] 0.0
      $region40: #{extra_layers_forward.7} parent=35 // pred_fallthru
        _
      %v429 = vld [vmem:[#allocation2] sm:$0xff]
      %v430 = vld [vmem:[#allocation2 + $0x8] sm:$0xff]
      %v431 = vld [vmem:[#allocation2 + $0x10] sm:$0xff]
      %v432 = vld [vmem:[#allocation2 + $0x18] sm:$0xff]
      %v433 = vld [vmem:[#allocation2 + $0x20] sm:$0xff]
      %v434 = vld [vmem:[#allocation2 + $0x28] sm:$0xff]
      %v435 = vld [vmem:[#allocation2 + $0x30] sm:$0xff]
      %v436 = vld [vmem:[#allocation2 + $0x38] sm:$0xff]
      %v437 = vld [vmem:[#allocation2 + $0x40] sm:$0xff]
      %v438 = vld [vmem:[#allocation2 + $0x48] sm:$0xff]
      %v439 = vld [vmem:[#allocation2 + $0x50] sm:$0xff]
      %v440 = vld [vmem:[#allocation2 + $0x58] sm:$0xff]
      %v441 = vld [vmem:[#allocation2 + $0x60] sm:$0xff]
      %v442 = vld [vmem:[#allocation2 + $0x68] sm:$0xff]
      %v443 = vld [vmem:[#allocation2 + $0x70] sm:$0xff]
      %v444 = vld [vmem:[#allocation2 + $0x78] sm:$0xff]
      %v445 = vld [vmem:[#allocation2 + $0x80] sm:$0xff]
      %v446 = vld [vmem:[#allocation2 + $0x88] sm:$0xff]
      %v447 = vld [vmem:[#allocation2 + $0x90] sm:$0xff]
      %v448 = vld [vmem:[#allocation2 + $0x98] sm:$0xff]
      %v449 = vld [vmem:[#allocation2 + $0xa0] sm:$0xff]
      %v450 = vld [vmem:[#allocation2 + $0xa8] sm:$0xff]
      %v451 = vld [vmem:[#allocation2 + $0xb0] sm:$0xff]
      %v452 = vld [vmem:[#allocation2 + $0xb8] sm:$0xff]
      %v453 = vld [vmem:[#allocation2 + $0xc0] sm:$0xff]
      %v454 = vld [vmem:[#allocation2 + $0xc8] sm:$0xff]
      %v455 = vld [vmem:[#allocation2 + $0xd0] sm:$0xff]
      %v456 = vld [vmem:[#allocation2 + $0xd8] sm:$0xff]
      %v457 = vld [vmem:[#allocation2 + $0xe0] sm:$0xff]
      %v458 = vld [vmem:[#allocation2 + $0xe8] sm:$0xff]
      %v459 = vld [vmem:[#allocation2 + $0xf0] sm:$0xff]
      %v460 = vld [vmem:[#allocation2 + $0xf8] sm:$0xff]
      %v461 = vld [vmem:[#allocation2 + $0x100] sm:$0xff]
      %v462 = vld [vmem:[#allocation2 + $0x108] sm:$0xff]
      %v463 = vld [vmem:[#allocation2 + $0x110] sm:$0xff]
      %v464 = vld [vmem:[#allocation2 + $0x118] sm:$0xff]
      %v465 = vld [vmem:[#allocation2 + $0x120] sm:$0xff]
      %v466 = vld [vmem:[#allocation2 + $0x128] sm:$0xff]
      %v467 = vld [vmem:[#allocation2 + $0x130] sm:$0xff]
      %v468 = vld [vmem:[#allocation2 + $0x138] sm:$0xff]
      %v469 = vld [vmem:[#allocation2 + $0x140] sm:$0xff]
      %v470 = vld [vmem:[#allocation2 + $0x148] sm:$0xff]
      %v471 = vld [vmem:[#allocation2 + $0x150] sm:$0xff]
      %v472 = vld [vmem:[#allocation2 + $0x158] sm:$0xff]
      %v473 = vld [vmem:[#allocation2 + $0x160] sm:$0xff]
      %v474 = vld [vmem:[#allocation2 + $0x168] sm:$0xff]
      %v475 = vld [vmem:[#allocation2 + $0x170] sm:$0xff]
      %v476 = vld [vmem:[#allocation2 + $0x178] sm:$0xff]
      %v477 = vld [vmem:[#allocation2 + $0x180] sm:$0xff]
      %v478 = vld [vmem:[#allocation2 + $0x188] sm:$0xff]
      %v479 = vld [vmem:[#allocation2 + $0x190] sm:$0xff]
      %v480 = vld [vmem:[#allocation2 + $0x198] sm:$0xff]
      %v481 = vld [vmem:[#allocation2 + $0x1a0] sm:$0xff]
      %v482 = vld [vmem:[#allocation2 + $0x1a8] sm:$0xff]
      %v483 = vld [vmem:[#allocation2 + $0x1b0] sm:$0xff]
      %v484 = vld [vmem:[#allocation2 + $0x1b8] sm:$0xff]
      %v485 = vld [vmem:[#allocation2 + $0x1c0] sm:$0xff]
      %v486 = vld [vmem:[#allocation2 + $0x1c8] sm:$0xff]
      %v487 = vld [vmem:[#allocation2 + $0x1d0] sm:$0xff]
      %v488 = vld [vmem:[#allocation2 + $0x1d8] sm:$0xff]
      %v489 = vld [vmem:[#allocation2 + $0x1e0] sm:$0xff]
      %v490 = vld [vmem:[#allocation2 + $0x1e8] sm:$0xff]
      %v491 = vld [vmem:[#allocation2 + $0x1f0] sm:$0xff]
      %v492 = vld [vmem:[#allocation2 + $0x1f8] sm:$0xff]
      %v493 = vld [vmem:[%s318] sm:$0xf]
      %v494 = vld [vmem:[%s318 + $0x4] sm:$0xf]
      %v495 = vld [vmem:[%s318 + $0x8] sm:$0xf]
      %v496 = vld [vmem:[%s318 + $0xc] sm:$0xf]
      %v497 = vld [vmem:[%s318 + $0x10] sm:$0xf]
      %v498 = vld [vmem:[%s318 + $0x14] sm:$0xf]
      %v499 = vld [vmem:[%s318 + $0x18] sm:$0xf]
      %v500 = vld [vmem:[%s318 + $0x1c] sm:$0xf]
      %v501 = vld [vmem:[%s318 + $0x20] sm:$0xf]
      %v502 = vld [vmem:[%s318 + $0x24] sm:$0xf]
      %v503 = vld [vmem:[%s318 + $0x28] sm:$0xf]
      %v504 = vld [vmem:[%s318 + $0x2c] sm:$0xf]
      %v505 = vld [vmem:[%s318 + $0x30] sm:$0xf]
      %v506 = vld [vmem:[%s318 + $0x34] sm:$0xf]
      %v507 = vld [vmem:[%s318 + $0x38] sm:$0xf]
      %v508 = vld [vmem:[%s318 + $0x3c] sm:$0xf]
      %v509 = vld [vmem:[%s318 + $0x40] sm:$0xf]
      %v510 = vld [vmem:[%s318 + $0x44] sm:$0xf]
      %v511 = vld [vmem:[%s318 + $0x48] sm:$0xf]
      %v512 = vld [vmem:[%s318 + $0x4c] sm:$0xf]
      %v513 = vld [vmem:[%s318 + $0x50] sm:$0xf]
      %v514 = vld [vmem:[%s318 + $0x54] sm:$0xf]
      %v515 = vld [vmem:[%s318 + $0x58] sm:$0xf]
      %v516 = vld [vmem:[%s318 + $0x5c] sm:$0xf]
      %v517 = vld [vmem:[%s318 + $0x60] sm:$0xf]
      %v518 = vld [vmem:[%s318 + $0x64] sm:$0xf]
      %v519 = vld [vmem:[%s318 + $0x68] sm:$0xf]
      %v520 = vld [vmem:[%s318 + $0x6c] sm:$0xf]
      %v521 = vld [vmem:[%s318 + $0x70] sm:$0xf]
      %v522 = vld [vmem:[%s318 + $0x74] sm:$0xf]
      %v523 = vld [vmem:[%s318 + $0x78] sm:$0xf]
      %v524 = vld [vmem:[%s318 + $0x7c] sm:$0xf]
      %v525 = vld [vmem:[%s333] sm:$0xff]
      %v526 = vld [vmem:[%s333 + $0x8] sm:$0xff]
      %v527 = vld [vmem:[%s333 + $0x10] sm:$0xff]
      %v528 = vld [vmem:[%s333 + $0x18] sm:$0xff]
      %v529 = vld [vmem:[%s333 + $0x20] sm:$0xff]
      %v530 = vld [vmem:[%s333 + $0x28] sm:$0xff]
      %v531 = vld [vmem:[%s333 + $0x30] sm:$0xff]
      %v532 = vld [vmem:[%s333 + $0x38] sm:$0xff]
      %v565 = vunpack.c.l.b16 %v493
      %v566 = vunpack.c.l.b16 %v494
      %v567 = vunpack.c.l.b16 %v495
      %v568 = vunpack.c.l.b16 %v496
      %v569 = vunpack.c.l.b16 %v497
      %v570 = vunpack.c.l.b16 %v498
      %v571 = vunpack.c.l.b16 %v499
      %v572 = vunpack.c.l.b16 %v500
      %v573 = vunpack.c.l.b16 %v501
      %v574 = vunpack.c.l.b16 %v502
      %v575 = vunpack.c.l.b16 %v503
      %v576 = vunpack.c.l.b16 %v504
      %v577 = vunpack.c.l.b16 %v505
      %v578 = vunpack.c.l.b16 %v506
      %v579 = vunpack.c.l.b16 %v507
      %v580 = vunpack.c.l.b16 %v508
      %v581 = vunpack.c.l.b16 %v509
      %v582 = vunpack.c.l.b16 %v510
      %v583 = vunpack.c.l.b16 %v511
      %v584 = vunpack.c.l.b16 %v512
      %v585 = vunpack.c.l.b16 %v513
      %v586 = vunpack.c.l.b16 %v514
      %v587 = vunpack.c.l.b16 %v515
      %v588 = vunpack.c.l.b16 %v516
      %v589 = vunpack.c.l.b16 %v517
      %v590 = vunpack.c.l.b16 %v518
      %v591 = vunpack.c.l.b16 %v519
      %v592 = vunpack.c.l.b16 %v520
      %v593 = vunpack.c.l.b16 %v521
      %v594 = vunpack.c.l.b16 %v522
      %v595 = vunpack.c.l.b16 %v523
      %v596 = vunpack.c.l.b16 %v524
      %v597 = vpack.c.b16 %v566, %v565
      %v598 = vpack.c.b16 %v568, %v567
      %v599 = vpack.c.b16 %v570, %v569
      %v600 = vpack.c.b16 %v572, %v571
      %v601 = vpack.c.b16 %v574, %v573
      %v602 = vpack.c.b16 %v576, %v575
      %v603 = vpack.c.b16 %v578, %v577
      %v604 = vpack.c.b16 %v580, %v579
      %v605 = vpack.c.b16 %v582, %v581
      %v606 = vpack.c.b16 %v584, %v583
      %v607 = vpack.c.b16 %v586, %v585
      %v608 = vpack.c.b16 %v588, %v587
      %v609 = vpack.c.b16 %v590, %v589
      %v610 = vpack.c.b16 %v592, %v591
      %v611 = vpack.c.b16 %v594, %v593
      %v612 = vpack.c.b16 %v596, %v595
      %v621 = vunpack.c.l.b16 %v525
      %v622 = vunpack.c.h.b16 %v525
      %v623 = vunpack.c.l.b16 %v526
      %v624 = vunpack.c.h.b16 %v526
      %v625 = vunpack.c.l.b16 %v527
      %v626 = vunpack.c.h.b16 %v527
      %v627 = vunpack.c.l.b16 %v528
      %v628 = vunpack.c.h.b16 %v528
      %v629 = vunpack.c.l.b16 %v529
      %v630 = vunpack.c.h.b16 %v529
      %v631 = vunpack.c.l.b16 %v530
      %v632 = vunpack.c.h.b16 %v530
      %v633 = vunpack.c.l.b16 %v531
      %v634 = vunpack.c.h.b16 %v531
      %v635 = vunpack.c.l.b16 %v532
      %v636 = vunpack.c.h.b16 %v532
      %v637 = vpack.c.b16 %v623, %v621
      %v638 = vpack.c.b16 %v624, %v622
      %v639 = vpack.c.b16 %v627, %v625
      %v640 = vpack.c.b16 %v628, %v626
      %v641 = vpack.c.b16 %v631, %v629
      %v642 = vpack.c.b16 %v632, %v630
      %v643 = vpack.c.b16 %v635, %v633
      %v644 = vpack.c.b16 %v636, %v634
      %vm653 = vcmask 523264
      %v655 = vsel %vm653, %v597, 0
      %v658 = vsel %vm653, %v598, 0
      %v661 = vsel %vm653, %v599, 0
      %v664 = vsel %vm653, %v600, 0
      %v667 = vsel %vm653, %v601, 0
      %v670 = vsel %vm653, %v602, 0
      %v673 = vsel %vm653, %v603, 0
      %v676 = vsel %vm653, %v604, 0
      %v679 = vsel %vm653, %v605, 0
      %v682 = vsel %vm653, %v606, 0
      %v685 = vsel %vm653, %v607, 0
      %v688 = vsel %vm653, %v608, 0
      %v691 = vsel %vm653, %v609, 0
      %v694 = vsel %vm653, %v610, 0
      %v697 = vsel %vm653, %v611, 0
      %v700 = vsel %vm653, %v612, 0
      %702 = vmatprep.subr.bf16.mxu0 %v638
      %703 = vmatpush1.bf16.msra.mxu0 %v637
      %704 = vmatprep.subr.bf16.mxu0 %v640
      %705 = vmatpush1.bf16.msra.mxu0 %v639
      %706 = vmatprep.subr.bf16.mxu0 %v642
      %707 = vmatpush1.bf16.msra.mxu0 %v641
      %708 = vmatprep.subr.bf16.mxu0 %v644
      %709 = vmatpush1.bf16.msra.mxu0 %v643
      %710 = vmatprep.subr.bf16.mxu0 0
      %711 = vmatpush1.bf16.msra.mxu0 0
      %712 = vmatprep.subr.bf16.mxu0 0
      %713 = vmatpush1.bf16.msra.mxu0 0
      %714 = vmatprep.subr.bf16.mxu0 0
      %715 = vmatpush1.bf16.msra.mxu0 0
      %716 = vmatprep.subr.bf16.mxu0 0
      %717 = vmatpush1.bf16.msra.mxu0 0
      %718 = vmatprep.subr.bf16.mxu0 0
      %719 = vmatpush1.bf16.msra.mxu0 0
      %720 = vmatprep.subr.bf16.mxu0 0
      %721 = vmatpush1.bf16.msra.mxu0 0
      %722 = vmatprep.subr.bf16.mxu0 0
      %723 = vmatpush1.bf16.msra.mxu0 0
      %724 = vmatprep.subr.bf16.mxu0 0
      %725 = vmatpush1.bf16.msra.mxu0 0
      %726 = vmatprep.subr.bf16.mxu0 0
      %727 = vmatpush1.bf16.msra.mxu0 0
      %728 = vmatprep.subr.bf16.mxu0 0
      %729 = vmatpush1.bf16.msra.mxu0 0
      %730 = vmatprep.subr.bf16.mxu0 0
      %731 = vmatpush1.bf16.msra.mxu0 0
      %732 = vmatprep.subr.bf16.mxu0 0
      %733 = vmatpush1.bf16.msra.mxu0 0
      %734 = vmatprep.mubr.bf16.mxu0 0
      %735 = vmatmul.mubr.bf16.gmra.mrb[0].mxu0 %v655
      %v736 = vpop.f32.mrb[0].mxu0
      %v737 = vadd.f32 0.0, %v736
      %v738 = vpop.f32.mrb[0].mxu0
      %v739 = vadd.f32 0.0, %v738
      %v740 = vpop.f32.mrb[0].mxu0
      %v741 = vadd.f32 0.0, %v740
      %v742 = vpop.f32.mrb[0].mxu0
      %v743 = vadd.f32 0.0, %v742
      %744 = vmatprep.mubr.bf16.mxu0 0
      %745 = vmatmul.mubr.bf16.gmra.mrb[0].mxu0 %v658
      %v746 = vpop.f32.mrb[0].mxu0
      %v747 = vadd.f32 0.0, %v746
      %v748 = vpop.f32.mrb[0].mxu0
      %v749 = vadd.f32 0.0, %v748
      %v750 = vpop.f32.mrb[0].mxu0
      %v751 = vadd.f32 0.0, %v750
      %v752 = vpop.f32.mrb[0].mxu0
      %v753 = vadd.f32 0.0, %v752
      %754 = vmatprep.mubr.bf16.mxu0 0
      %755 = vmatmul.mubr.bf16.gmra.mrb[0].mxu0 %v661
      %v756 = vpop.f32.mrb[0].mxu0
      %v757 = vadd.f32 0.0, %v756
      %v758 = vpop.f32.mrb[0].mxu0
      %v759 = vadd.f32 0.0, %v758
      %v760 = vpop.f32.mrb[0].mxu0
      %v761 = vadd.f32 0.0, %v760
      %v762 = vpop.f32.mrb[0].mxu0
      %v763 = vadd.f32 0.0, %v762
      %764 = vmatprep.mubr.bf16.mxu0 0
      %765 = vmatmul.mubr.bf16.gmra.mrb[0].mxu0 %v664
      %v766 = vpop.f32.mrb[0].mxu0
      %v767 = vadd.f32 0.0, %v766
      %v768 = vpop.f32.mrb[0].mxu0
      %v769 = vadd.f32 0.0, %v768
      %v770 = vpop.f32.mrb[0].mxu0
      %v771 = vadd.f32 0.0, %v770
      %v772 = vpop.f32.mrb[0].mxu0
      %v773 = vadd.f32 0.0, %v772
      %774 = vmatprep.mubr.bf16.mxu0 0
      %775 = vmatmul.mubr.bf16.gmra.mrb[0].mxu0 %v667
      %v776 = vpop.f32.mrb[0].mxu0
      %v777 = vadd.f32 0.0, %v776
      %v778 = vpop.f32.mrb[0].mxu0
      %v779 = vadd.f32 0.0, %v778
      %v780 = vpop.f32.mrb[0].mxu0
      %v781 = vadd.f32 0.0, %v780
      %v782 = vpop.f32.mrb[0].mxu0
      %v783 = vadd.f32 0.0, %v782
      %784 = vmatprep.mubr.bf16.mxu0 0
      %785 = vmatmul.mubr.bf16.gmra.mrb[0].mxu0 %v670
      %v786 = vpop.f32.mrb[0].mxu0
      %v787 = vadd.f32 0.0, %v786
      %v788 = vpop.f32.mrb[0].mxu0
      %v789 = vadd.f32 0.0, %v788
      %v790 = vpop.f32.mrb[0].mxu0
      %v791 = vadd.f32 0.0, %v790
      %v792 = vpop.f32.mrb[0].mxu0
      %v793 = vadd.f32 0.0, %v792
      %794 = vmatprep.mubr.bf16.mxu0 0
      %795 = vmatmul.mubr.bf16.gmra.mrb[0].mxu0 %v673
      %v796 = vpop.f32.mrb[0].mxu0
      %v797 = vadd.f32 0.0, %v796
      %v798 = vpop.f32.mrb[0].mxu0
      %v799 = vadd.f32 0.0, %v798
      %v800 = vpop.f32.mrb[0].mxu0
      %v801 = vadd.f32 0.0, %v800
      %v802 = vpop.f32.mrb[0].mxu0
      %v803 = vadd.f32 0.0, %v802
      %804 = vmatprep.mubr.bf16.mxu0 0
      %805 = vmatmul.mubr.bf16.gmra.mrb[0].mxu0 %v676
      %v806 = vpop.f32.mrb[0].mxu0
      %v807 = vadd.f32 0.0, %v806
      %v808 = vpop.f32.mrb[0].mxu0
      %v809 = vadd.f32 0.0, %v808
      %v810 = vpop.f32.mrb[0].mxu0
      %v811 = vadd.f32 0.0, %v810
      %v812 = vpop.f32.mrb[0].mxu0
      %v813 = vadd.f32 0.0, %v812
      %814 = vmatprep.mubr.bf16.mxu0 0
      %815 = vmatmul.mubr.bf16.gmra.mrb[0].mxu0 %v679
      %v816 = vpop.f32.mrb[0].mxu0
      %v817 = vadd.f32 0.0, %v816
      %v818 = vpop.f32.mrb[0].mxu0
      %v819 = vadd.f32 0.0, %v818
      %v820 = vpop.f32.mrb[0].mxu0
      %v821 = vadd.f32 0.0, %v820
      %v822 = vpop.f32.mrb[0].mxu0
      %v823 = vadd.f32 0.0, %v822
      %824 = vmatprep.mubr.bf16.mxu0 0
      %825 = vmatmul.mubr.bf16.gmra.mrb[0].mxu0 %v682
      %v826 = vpop.f32.mrb[0].mxu0
      %v827 = vadd.f32 0.0, %v826
      %v828 = vpop.f32.mrb[0].mxu0
      %v829 = vadd.f32 0.0, %v828
      %v830 = vpop.f32.mrb[0].mxu0
      %v831 = vadd.f32 0.0, %v830
      %v832 = vpop.f32.mrb[0].mxu0
      %v833 = vadd.f32 0.0, %v832
      %834 = vmatprep.mubr.bf16.mxu0 0
      %835 = vmatmul.mubr.bf16.gmra.mrb[0].mxu0 %v685
      %v836 = vpop.f32.mrb[0].mxu0
      %v837 = vadd.f32 0.0, %v836
      %v838 = vpop.f32.mrb[0].mxu0
      %v839 = vadd.f32 0.0, %v838
      %v840 = vpop.f32.mrb[0].mxu0
      %v841 = vadd.f32 0.0, %v840
      %v842 = vpop.f32.mrb[0].mxu0
      %v843 = vadd.f32 0.0, %v842
      %844 = vmatprep.mubr.bf16.mxu0 0
      %845 = vmatmul.mubr.bf16.gmra.mrb[0].mxu0 %v688
      %v846 = vpop.f32.mrb[0].mxu0
      %v847 = vadd.f32 0.0, %v846
      %v848 = vpop.f32.mrb[0].mxu0
      %v849 = vadd.f32 0.0, %v848
      %v850 = vpop.f32.mrb[0].mxu0
      %v851 = vadd.f32 0.0, %v850
      %v852 = vpop.f32.mrb[0].mxu0
      %v853 = vadd.f32 0.0, %v852
      %854 = vmatprep.mubr.bf16.mxu0 0
      %855 = vmatmul.mubr.bf16.gmra.mrb[0].mxu0 %v691
      %v856 = vpop.f32.mrb[0].mxu0
      %v857 = vadd.f32 0.0, %v856
      %v858 = vpop.f32.mrb[0].mxu0
      %v859 = vadd.f32 0.0, %v858
      %v860 = vpop.f32.mrb[0].mxu0
      %v861 = vadd.f32 0.0, %v860
      %v862 = vpop.f32.mrb[0].mxu0
      %v863 = vadd.f32 0.0, %v862
      %864 = vmatprep.mubr.bf16.mxu0 0
      %865 = vmatmul.mubr.bf16.gmra.mrb[0].mxu0 %v694
      %v866 = vpop.f32.mrb[0].mxu0
      %v867 = vadd.f32 0.0, %v866
      %v868 = vpop.f32.mrb[0].mxu0
      %v869 = vadd.f32 0.0, %v868
      %v870 = vpop.f32.mrb[0].mxu0
      %v871 = vadd.f32 0.0, %v870
      %v872 = vpop.f32.mrb[0].mxu0
      %v873 = vadd.f32 0.0, %v872
      %874 = vmatprep.mubr.bf16.mxu0 0
      %875 = vmatmul.mubr.bf16.gmra.mrb[0].mxu0 %v697
      %v876 = vpop.f32.mrb[0].mxu0
      %v877 = vadd.f32 0.0, %v876
      %v878 = vpop.f32.mrb[0].mxu0
      %v879 = vadd.f32 0.0, %v878
      %v880 = vpop.f32.mrb[0].mxu0
      %v881 = vadd.f32 0.0, %v880
      %v882 = vpop.f32.mrb[0].mxu0
      %v883 = vadd.f32 0.0, %v882
      %884 = vmatprep.mubr.bf16.mxu0 0
      %885 = vmatmul.mubr.bf16.gmra.mrb[0].mxu0 %v700
      %v886 = vpop.f32.mrb[0].mxu0
      %v887 = vadd.f32 0.0, %v886
      %v888 = vpop.f32.mrb[0].mxu0
      %v889 = vadd.f32 0.0, %v888
      %v890 = vpop.f32.mrb[0].mxu0
      %v891 = vadd.f32 0.0, %v890
      %v892 = vpop.f32.mrb[0].mxu0
      %v893 = vadd.f32 0.0, %v892
      %894 = vdwg.mxu0
      %v895 = vadd.f32 %v429, %v737
      %v896 = vadd.f32 %v430, %v739
      %v897 = vadd.f32 %v431, %v741
      %v898 = vadd.f32 %v432, %v743
      %v899 = vadd.f32 %v433, %v747
      %v900 = vadd.f32 %v434, %v749
      %v901 = vadd.f32 %v435, %v751
      %v902 = vadd.f32 %v436, %v753
      %v903 = vadd.f32 %v437, %v757
      %v904 = vadd.f32 %v438, %v759
      %v905 = vadd.f32 %v439, %v761
      %v906 = vadd.f32 %v440, %v763
      %v907 = vadd.f32 %v441, %v767
      %v908 = vadd.f32 %v442, %v769
      %v909 = vadd.f32 %v443, %v771
      %v910 = vadd.f32 %v444, %v773
      %v911 = vadd.f32 %v445, %v777
      %v912 = vadd.f32 %v446, %v779
      %v913 = vadd.f32 %v447, %v781
      %v914 = vadd.f32 %v448, %v783
      %v915 = vadd.f32 %v449, %v787
      %v916 = vadd.f32 %v450, %v789
      %v917 = vadd.f32 %v451, %v791
      %v918 = vadd.f32 %v452, %v793
      %v919 = vadd.f32 %v453, %v797
      %v920 = vadd.f32 %v454, %v799
      %v921 = vadd.f32 %v455, %v801
      %v922 = vadd.f32 %v456, %v803
      %v923 = vadd.f32 %v457, %v807
      %v924 = vadd.f32 %v458, %v809
      %v925 = vadd.f32 %v459, %v811
      %v926 = vadd.f32 %v460, %v813
      %v927 = vadd.f32 %v461, %v817
      %v928 = vadd.f32 %v462, %v819
      %v929 = vadd.f32 %v463, %v821
      %v930 = vadd.f32 %v464, %v823
      %v931 = vadd.f32 %v465, %v827
      %v932 = vadd.f32 %v466, %v829
      %v933 = vadd.f32 %v467, %v831
      %v934 = vadd.f32 %v468, %v833
      %v935 = vadd.f32 %v469, %v837
      %v936 = vadd.f32 %v470, %v839
      %v937 = vadd.f32 %v471, %v841
      %v938 = vadd.f32 %v472, %v843
      %v939 = vadd.f32 %v473, %v847
      %v940 = vadd.f32 %v474, %v849
      %v941 = vadd.f32 %v475, %v851
      %v942 = vadd.f32 %v476, %v853
      %v943 = vadd.f32 %v477, %v857
      %v944 = vadd.f32 %v478, %v859
      %v945 = vadd.f32 %v479, %v861
      %v946 = vadd.f32 %v480, %v863
      %v947 = vadd.f32 %v481, %v867
      %v948 = vadd.f32 %v482, %v869
      %v949 = vadd.f32 %v483, %v871
      %v950 = vadd.f32 %v484, %v873
      %v951 = vadd.f32 %v485, %v877
      %v952 = vadd.f32 %v486, %v879
      %v953 = vadd.f32 %v487, %v881
      %v954 = vadd.f32 %v488, %v883
      %v955 = vadd.f32 %v489, %v887
      %v956 = vadd.f32 %v490, %v889
      %v957 = vadd.f32 %v491, %v891
      %v958 = vadd.f32 %v492, %v893
      %959 = vst [vmem:[#allocation2] sm:$0xff] %v895
      %960 = vst [vmem:[#allocation2 + $0x8] sm:$0xff] %v896
      %961 = vst [vmem:[#allocation2 + $0x10] sm:$0xff] %v897
      %962 = vst [vmem:[#allocation2 + $0x18] sm:$0xff] %v898
      %963 = vst [vmem:[#allocation2 + $0x20] sm:$0xff] %v899
      %964 = vst [vmem:[#allocation2 + $0x28] sm:$0xff] %v900
      %965 = vst [vmem:[#allocation2 + $0x30] sm:$0xff] %v901
      %966 = vst [vmem:[#allocation2 + $0x38] sm:$0xff] %v902
      %967 = vst [vmem:[#allocation2 + $0x40] sm:$0xff] %v903
      %968 = vst [vmem:[#allocation2 + $0x48] sm:$0xff] %v904
      %969 = vst [vmem:[#allocation2 + $0x50] sm:$0xff] %v905
      %970 = vst [vmem:[#allocation2 + $0x58] sm:$0xff] %v906
      %971 = vst [vmem:[#allocation2 + $0x60] sm:$0xff] %v907
      %972 = vst [vmem:[#allocation2 + $0x68] sm:$0xff] %v908
      %973 = vst [vmem:[#allocation2 + $0x70] sm:$0xff] %v909
      %974 = vst [vmem:[#allocation2 + $0x78] sm:$0xff] %v910
      %975 = vst [vmem:[#allocation2 + $0x80] sm:$0xff] %v911
      %976 = vst [vmem:[#allocation2 + $0x88] sm:$0xff] %v912
      %977 = vst [vmem:[#allocation2 + $0x90] sm:$0xff] %v913
      %978 = vst [vmem:[#allocation2 + $0x98] sm:$0xff] %v914
      %979 = vst [vmem:[#allocation2 + $0xa0] sm:$0xff] %v915
      %980 = vst [vmem:[#allocation2 + $0xa8] sm:$0xff] %v916
      %981 = vst [vmem:[#allocation2 + $0xb0] sm:$0xff] %v917
      %982 = vst [vmem:[#allocation2 + $0xb8] sm:$0xff] %v918
      %983 = vst [vmem:[#allocation2 + $0xc0] sm:$0xff] %v919
      %984 = vst [vmem:[#allocation2 + $0xc8] sm:$0xff] %v920
      %985 = vst [vmem:[#allocation2 + $0xd0] sm:$0xff] %v921
      %986 = vst [vmem:[#allocation2 + $0xd8] sm:$0xff] %v922
      %987 = vst [vmem:[#allocation2 + $0xe0] sm:$0xff] %v923
      %988 = vst [vmem:[#allocation2 + $0xe8] sm:$0xff] %v924
      %989 = vst [vmem:[#allocation2 + $0xf0] sm:$0xff] %v925
      %990 = vst [vmem:[#allocation2 + $0xf8] sm:$0xff] %v926
      %991 = vst [vmem:[#allocation2 + $0x100] sm:$0xff] %v927
      %992 = vst [vmem:[#allocation2 + $0x108] sm:$0xff] %v928
      %993 = vst [vmem:[#allocation2 + $0x110] sm:$0xff] %v929
      %994 = vst [vmem:[#allocation2 + $0x118] sm:$0xff] %v930
      %995 = vst [vmem:[#allocation2 + $0x120] sm:$0xff] %v931
      %996 = vst [vmem:[#allocation2 + $0x128] sm:$0xff] %v932
      %997 = vst [vmem:[#allocation2 + $0x130] sm:$0xff] %v933
      %998 = vst [vmem:[#allocation2 + $0x138] sm:$0xff] %v934
      %999 = vst [vmem:[#allocation2 + $0x140] sm:$0xff] %v935
      %1000 = vst [vmem:[#allocation2 + $0x148] sm:$0xff] %v936
      %1001 = vst [vmem:[#allocation2 + $0x150] sm:$0xff] %v937
      %1002 = vst [vmem:[#allocation2 + $0x158] sm:$0xff] %v938
      %1003 = vst [vmem:[#allocation2 + $0x160] sm:$0xff] %v939
      %1004 = vst [vmem:[#allocation2 + $0x168] sm:$0xff] %v940
      %1005 = vst [vmem:[#allocation2 + $0x170] sm:$0xff] %v941
      %1006 = vst [vmem:[#allocation2 + $0x178] sm:$0xff] %v942
      %1007 = vst [vmem:[#allocation2 + $0x180] sm:$0xff] %v943
      %1008 = vst [vmem:[#allocation2 + $0x188] sm:$0xff] %v944
      %1009 = vst [vmem:[#allocation2 + $0x190] sm:$0xff] %v945
      %1010 = vst [vmem:[#allocation2 + $0x198] sm:$0xff] %v946
      %1011 = vst [vmem:[#allocation2 + $0x1a0] sm:$0xff] %v947
      %1012 = vst [vmem:[#allocation2 + $0x1a8] sm:$0xff] %v948
      %1013 = vst [vmem:[#allocation2 + $0x1b0] sm:$0xff] %v949
      %1014 = vst [vmem:[#allocation2 + $0x1b8] sm:$0xff] %v950
      %1015 = vst [vmem:[#allocation2 + $0x1c0] sm:$0xff] %v951
      %1016 = vst [vmem:[#allocation2 + $0x1c8] sm:$0xff] %v952
      %1017 = vst [vmem:[#allocation2 + $0x1d0] sm:$0xff] %v953
      %1018 = vst [vmem:[#allocation2 + $0x1d8] sm:$0xff] %v954
      %1019 = vst [vmem:[#allocation2 + $0x1e0] sm:$0xff] %v955
      %1020 = vst [vmem:[#allocation2 + $0x1e8] sm:$0xff] %v956
      %1021 = vst [vmem:[#allocation2 + $0x1f0] sm:$0xff] %v957
      %1022 = vst [vmem:[#allocation2 + $0x1f8] sm:$0xff] %v958
      // Predicated region
      $region41: #{extra_layers_forward.7} parent=35 // pred_check
        _
      $region42: #{extra_layers_forward.7} parent=35 // pred_check_branch
        %1024 = sbr.rel (%p361) target = $region44
      $region43: #{extra_layers_forward.7} parent=35 // pred_region
        %v1025 = vld [vmem:[#allocation2] sm:$0xff]
        %v1026 = vld [vmem:[#allocation2 + $0x8] sm:$0xff]
        %v1027 = vld [vmem:[#allocation2 + $0x10] sm:$0xff]
        %v1028 = vld [vmem:[#allocation2 + $0x18] sm:$0xff]
        %v1029 = vld [vmem:[#allocation2 + $0x20] sm:$0xff]
        %v1030 = vld [vmem:[#allocation2 + $0x28] sm:$0xff]
        %v1031 = vld [vmem:[#allocation2 + $0x30] sm:$0xff]
        %v1032 = vld [vmem:[#allocation2 + $0x38] sm:$0xff]
        %v1033 = vld [vmem:[#allocation2 + $0x40] sm:$0xff]
        %v1034 = vld [vmem:[#allocation2 + $0x48] sm:$0xff]
        %v1035 = vld [vmem:[#allocation2 + $0x50] sm:$0xff]
        %v1036 = vld [vmem:[#allocation2 + $0x58] sm:$0xff]
        %v1037 = vld [vmem:[#allocation2 + $0x60] sm:$0xff]
        %v1038 = vld [vmem:[#allocation2 + $0x68] sm:$0xff]
        %v1039 = vld [vmem:[#allocation2 + $0x70] sm:$0xff]
        %v1040 = vld [vmem:[#allocation2 + $0x78] sm:$0xff]
        %v1041 = vld [vmem:[#allocation2 + $0x80] sm:$0xff]
        %v1042 = vld [vmem:[#allocation2 + $0x88] sm:$0xff]
        %v1043 = vld [vmem:[#allocation2 + $0x90] sm:$0xff]
        %v1044 = vld [vmem:[#allocation2 + $0x98] sm:$0xff]
        %v1045 = vld [vmem:[#allocation2 + $0xa0] sm:$0xff]
        %v1046 = vld [vmem:[#allocation2 + $0xa8] sm:$0xff]
        %v1047 = vld [vmem:[#allocation2 + $0xb0] sm:$0xff]
        %v1048 = vld [vmem:[#allocation2 + $0xb8] sm:$0xff]
        %v1049 = vld [vmem:[#allocation2 + $0xc0] sm:$0xff]
        %v1050 = vld [vmem:[#allocation2 + $0xc8] sm:$0xff]
        %v1051 = vld [vmem:[#allocation2 + $0xd0] sm:$0xff]
        %v1052 = vld [vmem:[#allocation2 + $0xd8] sm:$0xff]
        %v1053 = vld [vmem:[#allocation2 + $0xe0] sm:$0xff]
        %v1054 = vld [vmem:[#allocation2 + $0xe8] sm:$0xff]
        %v1055 = vld [vmem:[#allocation2 + $0xf0] sm:$0xff]
        %v1056 = vld [vmem:[#allocation2 + $0xf8] sm:$0xff]
        %v1057 = vld [vmem:[#allocation2 + $0x100] sm:$0xff]
        %v1058 = vld [vmem:[#allocation2 + $0x108] sm:$0xff]
        %v1059 = vld [vmem:[#allocation2 + $0x110] sm:$0xff]
        %v1060 = vld [vmem:[#allocation2 + $0x118] sm:$0xff]
        %v1061 = vld [vmem:[#allocation2 + $0x120] sm:$0xff]
        %v1062 = vld [vmem:[#allocation2 + $0x128] sm:$0xff]
        %v1063 = vld [vmem:[#allocation2 + $0x130] sm:$0xff]
        %v1064 = vld [vmem:[#allocation2 + $0x138] sm:$0xff]
        %v1065 = vld [vmem:[#allocation2 + $0x140] sm:$0xff]
        %v1066 = vld [vmem:[#allocation2 + $0x148] sm:$0xff]
        %v1067 = vld [vmem:[#allocation2 + $0x150] sm:$0xff]
        %v1068 = vld [vmem:[#allocation2 + $0x158] sm:$0xff]
        %v1069 = vld [vmem:[#allocation2 + $0x160] sm:$0xff]
        %v1070 = vld [vmem:[#allocation2 + $0x168] sm:$0xff]
        %v1071 = vld [vmem:[#allocation2 + $0x170] sm:$0xff]
        %v1072 = vld [vmem:[#allocation2 + $0x178] sm:$0xff]
        %v1073 = vld [vmem:[#allocation2 + $0x180] sm:$0xff]
        %v1074 = vld [vmem:[#allocation2 + $0x188] sm:$0xff]
        %v1075 = vld [vmem:[#allocation2 + $0x190] sm:$0xff]
        %v1076 = vld [vmem:[#allocation2 + $0x198] sm:$0xff]
        %v1077 = vld [vmem:[#allocation2 + $0x1a0] sm:$0xff]
        %v1078 = vld [vmem:[#allocation2 + $0x1a8] sm:$0xff]
        %v1079 = vld [vmem:[#allocation2 + $0x1b0] sm:$0xff]
        %v1080 = vld [vmem:[#allocation2 + $0x1b8] sm:$0xff]
        %v1081 = vld [vmem:[#allocation2 + $0x1c0] sm:$0xff]
        %v1082 = vld [vmem:[#allocation2 + $0x1c8] sm:$0xff]
        %v1083 = vld [vmem:[#allocation2 + $0x1d0] sm:$0xff]
        %v1084 = vld [vmem:[#allocation2 + $0x1d8] sm:$0xff]
        %v1085 = vld [vmem:[#allocation2 + $0x1e0] sm:$0xff]
        %v1086 = vld [vmem:[#allocation2 + $0x1e8] sm:$0xff]
        %v1087 = vld [vmem:[#allocation2 + $0x1f0] sm:$0xff]
        %v1088 = vld [vmem:[#allocation2 + $0x1f8] sm:$0xff]
        %v1089 = vld [vmem:[%s339] sm:$0x3]
        %v1091 = vlaneseq
        %v1092 = vshrl.u32 %v1091, 7
        %v1093 = vsub.s32 0, %v1092
        %v1094 = vrot.slane %v1089, %v1093
        %v1095 = vlaneseq
        %v1096 = vshrl.u32 %v1095, 7
        %v1097 = vsub.s32 1, %v1096
        %v1098 = vrot.slane %v1089, %v1097
        %v1101 = vmul.f32 %v1025, %v1094
        %v1102 = vmul.f32 %v1026, %v1098
        %v1103 = vmul.f32 %v1027, %v1094
        %v1104 = vmul.f32 %v1028, %v1098
        %v1105 = vmul.f32 %v1029, %v1094
        %v1106 = vmul.f32 %v1030, %v1098
        %v1107 = vmul.f32 %v1031, %v1094
        %v1108 = vmul.f32 %v1032, %v1098
        %v1109 = vmul.f32 %v1033, %v1094
        %v1110 = vmul.f32 %v1034, %v1098
        %v1111 = vmul.f32 %v1035, %v1094
        %v1112 = vmul.f32 %v1036, %v1098
        %v1113 = vmul.f32 %v1037, %v1094
        %v1114 = vmul.f32 %v1038, %v1098
        %v1115 = vmul.f32 %v1039, %v1094
        %v1116 = vmul.f32 %v1040, %v1098
        %v1117 = vmul.f32 %v1041, %v1094
        %v1118 = vmul.f32 %v1042, %v1098
        %v1119 = vmul.f32 %v1043, %v1094
        %v1120 = vmul.f32 %v1044, %v1098
        %v1121 = vmul.f32 %v1045, %v1094
        %v1122 = vmul.f32 %v1046, %v1098
        %v1123 = vmul.f32 %v1047, %v1094
        %v1124 = vmul.f32 %v1048, %v1098
        %v1125 = vmul.f32 %v1049, %v1094
        %v1126 = vmul.f32 %v1050, %v1098
        %v1127 = vmul.f32 %v1051, %v1094
        %v1128 = vmul.f32 %v1052, %v1098
        %v1129 = vmul.f32 %v1053, %v1094
        %v1130 = vmul.f32 %v1054, %v1098
        %v1131 = vmul.f32 %v1055, %v1094
        %v1132 = vmul.f32 %v1056, %v1098
        %v1133 = vmul.f32 %v1057, %v1094
        %v1134 = vmul.f32 %v1058, %v1098
        %v1135 = vmul.f32 %v1059, %v1094
        %v1136 = vmul.f32 %v1060, %v1098
        %v1137 = vmul.f32 %v1061, %v1094
        %v1138 = vmul.f32 %v1062, %v1098
        %v1139 = vmul.f32 %v1063, %v1094
        %v1140 = vmul.f32 %v1064, %v1098
        %v1141 = vmul.f32 %v1065, %v1094
        %v1142 = vmul.f32 %v1066, %v1098
        %v1143 = vmul.f32 %v1067, %v1094
        %v1144 = vmul.f32 %v1068, %v1098
        %v1145 = vmul.f32 %v1069, %v1094
        %v1146 = vmul.f32 %v1070, %v1098
        %v1147 = vmul.f32 %v1071, %v1094
        %v1148 = vmul.f32 %v1072, %v1098
        %v1149 = vmul.f32 %v1073, %v1094
        %v1150 = vmul.f32 %v1074, %v1098
        %v1151 = vmul.f32 %v1075, %v1094
        %v1152 = vmul.f32 %v1076, %v1098
        %v1153 = vmul.f32 %v1077, %v1094
        %v1154 = vmul.f32 %v1078, %v1098
        %v1155 = vmul.f32 %v1079, %v1094
        %v1156 = vmul.f32 %v1080, %v1098
        %v1157 = vmul.f32 %v1081, %v1094
        %v1158 = vmul.f32 %v1082, %v1098
        %v1159 = vmul.f32 %v1083, %v1094
        %v1160 = vmul.f32 %v1084, %v1098
        %v1161 = vmul.f32 %v1085, %v1094
        %v1162 = vmul.f32 %v1086, %v1098
        %v1163 = vmul.f32 %v1087, %v1094
        %v1164 = vmul.f32 %v1088, %v1098
        %v1165 = vld [vmem:[%s344] sm:$0x3]
        %v1167 = vlaneseq
        %v1168 = vshrl.u32 %v1167, 7
        %v1169 = vsub.s32 0, %v1168
        %v1170 = vrot.slane %v1165, %v1169
        %v1171 = vlaneseq
        %v1172 = vshrl.u32 %v1171, 7
        %v1173 = vsub.s32 1, %v1172
        %v1174 = vrot.slane %v1165, %v1173
        %v1177 = vadd.f32 %v1101, %v1170
        %v1178 = vadd.f32 %v1102, %v1174
        %v1179 = vadd.f32 %v1103, %v1170
        %v1180 = vadd.f32 %v1104, %v1174
        %v1181 = vadd.f32 %v1105, %v1170
        %v1182 = vadd.f32 %v1106, %v1174
        %v1183 = vadd.f32 %v1107, %v1170
        %v1184 = vadd.f32 %v1108, %v1174
        %v1185 = vadd.f32 %v1109, %v1170
        %v1186 = vadd.f32 %v1110, %v1174
        %v1187 = vadd.f32 %v1111, %v1170
        %v1188 = vadd.f32 %v1112, %v1174
        %v1189 = vadd.f32 %v1113, %v1170
        %v1190 = vadd.f32 %v1114, %v1174
        %v1191 = vadd.f32 %v1115, %v1170
        %v1192 = vadd.f32 %v1116, %v1174
        %v1193 = vadd.f32 %v1117, %v1170
        %v1194 = vadd.f32 %v1118, %v1174
        %v1195 = vadd.f32 %v1119, %v1170
        %v1196 = vadd.f32 %v1120, %v1174
        %v1197 = vadd.f32 %v1121, %v1170
        %v1198 = vadd.f32 %v1122, %v1174
        %v1199 = vadd.f32 %v1123, %v1170
        %v1200 = vadd.f32 %v1124, %v1174
        %v1201 = vadd.f32 %v1125, %v1170
        %v1202 = vadd.f32 %v1126, %v1174
        %v1203 = vadd.f32 %v1127, %v1170
        %v1204 = vadd.f32 %v1128, %v1174
        %v1205 = vadd.f32 %v1129, %v1170
        %v1206 = vadd.f32 %v1130, %v1174
        %v1207 = vadd.f32 %v1131, %v1170
        %v1208 = vadd.f32 %v1132, %v1174
        %v1209 = vadd.f32 %v1133, %v1170
        %v1210 = vadd.f32 %v1134, %v1174
        %v1211 = vadd.f32 %v1135, %v1170
        %v1212 = vadd.f32 %v1136, %v1174
        %v1213 = vadd.f32 %v1137, %v1170
        %v1214 = vadd.f32 %v1138, %v1174
        %v1215 = vadd.f32 %v1139, %v1170
        %v1216 = vadd.f32 %v1140, %v1174
        %v1217 = vadd.f32 %v1141, %v1170
        %v1218 = vadd.f32 %v1142, %v1174
        %v1219 = vadd.f32 %v1143, %v1170
        %v1220 = vadd.f32 %v1144, %v1174
        %v1221 = vadd.f32 %v1145, %v1170
        %v1222 = vadd.f32 %v1146, %v1174
        %v1223 = vadd.f32 %v1147, %v1170
        %v1224 = vadd.f32 %v1148, %v1174
        %v1225 = vadd.f32 %v1149, %v1170
        %v1226 = vadd.f32 %v1150, %v1174
        %v1227 = vadd.f32 %v1151, %v1170
        %v1228 = vadd.f32 %v1152, %v1174
        %v1229 = vadd.f32 %v1153, %v1170
        %v1230 = vadd.f32 %v1154, %v1174
        %v1231 = vadd.f32 %v1155, %v1170
        %v1232 = vadd.f32 %v1156, %v1174
        %v1233 = vadd.f32 %v1157, %v1170
        %v1234 = vadd.f32 %v1158, %v1174
        %v1235 = vadd.f32 %v1159, %v1170
        %v1236 = vadd.f32 %v1160, %v1174
        %v1237 = vadd.f32 %v1161, %v1170
        %v1238 = vadd.f32 %v1162, %v1174
        %v1239 = vadd.f32 %v1163, %v1170
        %v1240 = vadd.f32 %v1164, %v1174
        %v1241 = vmax.f32 %v1177, 0.0
        %v1242 = vmax.f32 %v1178, 0.0
        %v1243 = vmax.f32 %v1179, 0.0
        %v1244 = vmax.f32 %v1180, 0.0
        %v1245 = vmax.f32 %v1181, 0.0
        %v1246 = vmax.f32 %v1182, 0.0
        %v1247 = vmax.f32 %v1183, 0.0
        %v1248 = vmax.f32 %v1184, 0.0
        %v1249 = vmax.f32 %v1185, 0.0
        %v1250 = vmax.f32 %v1186, 0.0
        %v1251 = vmax.f32 %v1187, 0.0
        %v1252 = vmax.f32 %v1188, 0.0
        %v1253 = vmax.f32 %v1189, 0.0
        %v1254 = vmax.f32 %v1190, 0.0
        %v1255 = vmax.f32 %v1191, 0.0
        %v1256 = vmax.f32 %v1192, 0.0
        %v1257 = vmax.f32 %v1193, 0.0
        %v1258 = vmax.f32 %v1194, 0.0
        %v1259 = vmax.f32 %v1195, 0.0
        %v1260 = vmax.f32 %v1196, 0.0
        %v1261 = vmax.f32 %v1197, 0.0
        %v1262 = vmax.f32 %v1198, 0.0
        %v1263 = vmax.f32 %v1199, 0.0
        %v1264 = vmax.f32 %v1200, 0.0
        %v1265 = vmax.f32 %v1201, 0.0
        %v1266 = vmax.f32 %v1202, 0.0
        %v1267 = vmax.f32 %v1203, 0.0
        %v1268 = vmax.f32 %v1204, 0.0
        %v1269 = vmax.f32 %v1205, 0.0
        %v1270 = vmax.f32 %v1206, 0.0
        %v1271 = vmax.f32 %v1207, 0.0
        %v1272 = vmax.f32 %v1208, 0.0
        %v1273 = vmax.f32 %v1209, 0.0
        %v1274 = vmax.f32 %v1210, 0.0
        %v1275 = vmax.f32 %v1211, 0.0
        %v1276 = vmax.f32 %v1212, 0.0
        %v1277 = vmax.f32 %v1213, 0.0
        %v1278 = vmax.f32 %v1214, 0.0
        %v1279 = vmax.f32 %v1215, 0.0
        %v1280 = vmax.f32 %v1216, 0.0
        %v1281 = vmax.f32 %v1217, 0.0
        %v1282 = vmax.f32 %v1218, 0.0
        %v1283 = vmax.f32 %v1219, 0.0
        %v1284 = vmax.f32 %v1220, 0.0
        %v1285 = vmax.f32 %v1221, 0.0
        %v1286 = vmax.f32 %v1222, 0.0
        %v1287 = vmax.f32 %v1223, 0.0
        %v1288 = vmax.f32 %v1224, 0.0
        %v1289 = vmax.f32 %v1225, 0.0
        %v1290 = vmax.f32 %v1226, 0.0
        %v1291 = vmax.f32 %v1227, 0.0
        %v1292 = vmax.f32 %v1228, 0.0
        %v1293 = vmax.f32 %v1229, 0.0
        %v1294 = vmax.f32 %v1230, 0.0
        %v1295 = vmax.f32 %v1231, 0.0
        %v1296 = vmax.f32 %v1232, 0.0
        %v1297 = vmax.f32 %v1233, 0.0
        %v1298 = vmax.f32 %v1234, 0.0
        %v1299 = vmax.f32 %v1235, 0.0
        %v1300 = vmax.f32 %v1236, 0.0
        %v1301 = vmax.f32 %v1237, 0.0
        %v1302 = vmax.f32 %v1238, 0.0
        %v1303 = vmax.f32 %v1239, 0.0
        %v1304 = vmax.f32 %v1240, 0.0
        %1305 = vst [vmem:[%s355] sm:$0xff] %v1241
        %1306 = vst [vmem:[%s355 + $0x8] sm:$0xff] %v1242
        %1307 = vst [vmem:[%s355 + $0x10] sm:$0xff] %v1243
        %1308 = vst [vmem:[%s355 + $0x18] sm:$0xff] %v1244
        %1309 = vst [vmem:[%s355 + $0x20] sm:$0xff] %v1245
        %1310 = vst [vmem:[%s355 + $0x28] sm:$0xff] %v1246
        %1311 = vst [vmem:[%s355 + $0x30] sm:$0xff] %v1247
        %1312 = vst [vmem:[%s355 + $0x38] sm:$0xff] %v1248
        %1313 = vst [vmem:[%s355 + $0x40] sm:$0xff] %v1249
        %1314 = vst [vmem:[%s355 + $0x48] sm:$0xff] %v1250
        %1315 = vst [vmem:[%s355 + $0x50] sm:$0xff] %v1251
        %1316 = vst [vmem:[%s355 + $0x58] sm:$0xff] %v1252
        %1317 = vst [vmem:[%s355 + $0x60] sm:$0xff] %v1253
        %1318 = vst [vmem:[%s355 + $0x68] sm:$0xff] %v1254
        %1319 = vst [vmem:[%s355 + $0x70] sm:$0xff] %v1255
        %1320 = vst [vmem:[%s355 + $0x78] sm:$0xff] %v1256
        %1321 = vst [vmem:[%s355 + $0x80] sm:$0xff] %v1257
        %1322 = vst [vmem:[%s355 + $0x88] sm:$0xff] %v1258
        %1323 = vst [vmem:[%s355 + $0x90] sm:$0xff] %v1259
        %1324 = vst [vmem:[%s355 + $0x98] sm:$0xff] %v1260
        %1325 = vst [vmem:[%s355 + $0xa0] sm:$0xff] %v1261
        %1326 = vst [vmem:[%s355 + $0xa8] sm:$0xff] %v1262
        %1327 = vst [vmem:[%s355 + $0xb0] sm:$0xff] %v1263
        %1328 = vst [vmem:[%s355 + $0xb8] sm:$0xff] %v1264
        %1329 = vst [vmem:[%s355 + $0xc0] sm:$0xff] %v1265
        %1330 = vst [vmem:[%s355 + $0xc8] sm:$0xff] %v1266
        %1331 = vst [vmem:[%s355 + $0xd0] sm:$0xff] %v1267
        %1332 = vst [vmem:[%s355 + $0xd8] sm:$0xff] %v1268
        %1333 = vst [vmem:[%s355 + $0xe0] sm:$0xff] %v1269
        %1334 = vst [vmem:[%s355 + $0xe8] sm:$0xff] %v1270
        %1335 = vst [vmem:[%s355 + $0xf0] sm:$0xff] %v1271
        %1336 = vst [vmem:[%s355 + $0xf8] sm:$0xff] %v1272
        %1337 = vst [vmem:[%s355 + $0x100] sm:$0xff] %v1273
        %1338 = vst [vmem:[%s355 + $0x108] sm:$0xff] %v1274
        %1339 = vst [vmem:[%s355 + $0x110] sm:$0xff] %v1275
        %1340 = vst [vmem:[%s355 + $0x118] sm:$0xff] %v1276
        %1341 = vst [vmem:[%s355 + $0x120] sm:$0xff] %v1277
        %1342 = vst [vmem:[%s355 + $0x128] sm:$0xff] %v1278
        %1343 = vst [vmem:[%s355 + $0x130] sm:$0xff] %v1279
        %1344 = vst [vmem:[%s355 + $0x138] sm:$0xff] %v1280
        %1345 = vst [vmem:[%s355 + $0x140] sm:$0xff] %v1281
        %1346 = vst [vmem:[%s355 + $0x148] sm:$0xff] %v1282
        %1347 = vst [vmem:[%s355 + $0x150] sm:$0xff] %v1283
        %1348 = vst [vmem:[%s355 + $0x158] sm:$0xff] %v1284
        %1349 = vst [vmem:[%s355 + $0x160] sm:$0xff] %v1285
        %1350 = vst [vmem:[%s355 + $0x168] sm:$0xff] %v1286
        %1351 = vst [vmem:[%s355 + $0x170] sm:$0xff] %v1287
        %1352 = vst [vmem:[%s355 + $0x178] sm:$0xff] %v1288
        %1353 = vst [vmem:[%s355 + $0x180] sm:$0xff] %v1289
        %1354 = vst [vmem:[%s355 + $0x188] sm:$0xff] %v1290
        %1355 = vst [vmem:[%s355 + $0x190] sm:$0xff] %v1291
        %1356 = vst [vmem:[%s355 + $0x198] sm:$0xff] %v1292
        %1357 = vst [vmem:[%s355 + $0x1a0] sm:$0xff] %v1293
        %1358 = vst [vmem:[%s355 + $0x1a8] sm:$0xff] %v1294
        %1359 = vst [vmem:[%s355 + $0x1b0] sm:$0xff] %v1295
        %1360 = vst [vmem:[%s355 + $0x1b8] sm:$0xff] %v1296
        %1361 = vst [vmem:[%s355 + $0x1c0] sm:$0xff] %v1297
        %1362 = vst [vmem:[%s355 + $0x1c8] sm:$0xff] %v1298
        %1363 = vst [vmem:[%s355 + $0x1d0] sm:$0xff] %v1299
        %1364 = vst [vmem:[%s355 + $0x1d8] sm:$0xff] %v1300
        %1365 = vst [vmem:[%s355 + $0x1e0] sm:$0xff] %v1301
        %1366 = vst [vmem:[%s355 + $0x1e8] sm:$0xff] %v1302
        %1367 = vst [vmem:[%s355 + $0x1f0] sm:$0xff] %v1303
        %1368 = vst [vmem:[%s355 + $0x1f8] sm:$0xff] %v1304
      $region44: #{extra_layers_forward.7} parent=35 // pred_fallthru
        _
      %s1369 = smul.u32 32, %s21
      %s1370 = smul.u32 2, %s22
      %p1371 = scmp.lt.s32.totalorder %s1369, 63
      %s1372 = scalar_select %p1371, %s1369, 63
      %p1373 = scmp.lt.s32.totalorder %s1370, 1
      %s1374 = scalar_select %p1373, %s1370, 1
      %s1375 = smul.addr %s1372, 2
      %s1376 = sadd.s32 %s1374, %s1375
      %s1377 = smul.addr %s1376, 8
      %s1378 = scalar_lea.vmem %s4, %s1377
      // Predicated region
      $region45: #{extra_layers_forward.7} parent=35 // pred_check
        %p1379 = pneg %p173
      $region46: #{extra_layers_forward.7} parent=35 // pred_check_branch
        %1381 = sbr.rel (%p1379) target = $region48
      $region47: #{extra_layers_forward.7} parent=35 // pred_region
        %s1382 = smul.u32 32, %s21
        %s1383 = smul.u32 2, %s22
      $region48: #{extra_layers_forward.7} parent=35 // pred_fallthru
        _
    $region36: #{extra_layers_forward.7} parent=5 // pred_fallthru
      _
    %p1384 = scmp.le.s32.totalorder 2, %s10
    // Predicated region
    $region49: #{extra_layers_forward.7} parent=5 // pred_check
      %p1385 = pneg %p1384
    $region50: #{extra_layers_forward.7} parent=5 // pred_check_branch
      %1387 = sbr.rel (%p1385) target = $region52
    $region51: #{extra_layers_forward.7} parent=5 // pred_region
      %s1388 = ssub.s32 %s10, 2
      // Predicated region
      $region53: #{extra_layers_forward.7} parent=51 // pred_check
        %p1389 = pneg %p179
      $region54: #{extra_layers_forward.7} parent=51 // pred_check_branch
        %1391 = sbr.rel (%p1389) target = $region56
      $region55: #{extra_layers_forward.7} parent=51 // pred_region
        %s1392 = smul.u32 32, %s25
        %s1393 = smul.u32 2, %s26
        %p1394 = scmp.lt.s32.totalorder %s1392, 63
        %s1395 = scalar_select %p1394, %s1392, 63
        %p1396 = scmp.lt.s32.totalorder %s1393, 1
        %s1397 = scalar_select %p1396, %s1393, 1
        %s1398 = smul.addr %s1395, 2
        %s1399 = sadd.s32 %s1397, %s1398
        %s1400 = smul.addr %s1399, 8
        %s1401 = scalar_lea.vmem %s4, %s1400
      $region56: #{extra_layers_forward.7} parent=51 // pred_fallthru
        _
    $region52: #{extra_layers_forward.7} parent=5 // pred_fallthru
      _
  $region6: #{extra_layers_forward.7} parent=0 // loop_footer
    %s14 = sadd.s32 1, %s10
  $region7: #{extra_layers_forward.7} parent=0 // loop_footer_branch
    %9 = sbr.rel target = $region3
  $region8: #{extra_layers_forward.7} parent=0 // loop_exit
    _

// kernel: extra_layers_forward.8
$region0: #{extra_layers_forward.8}
  #allocation0 [shape = 'u32[]', space=smem, size = 0x4, offset = 0x4, fixed_abs, tag = 'smem constant byte address 0x4 - core index']
  #allocation1 [shape = 'u32[144,128]{1,0:T(1,128)}', space=vmem, size = 0x12000, scoped, tag = 'internal scratch']
  #allocation2 [shape = 'f32[128,256]{1,0:T(8,128)}', space=vmem, size = 0x20000, scoped, tag = 'scratch operand']
  %s0 = inlined_call_operand.vmem [shape: bf16[9,128,256], index: 0, kind: input, shape index: {}]
  %s1 = inlined_call_operand.vmem [shape: bf16[9,256,512], index: 1, kind: input, shape index: {}]
  %s2 = inlined_call_operand.vmem [shape: f32[1,512], index: 2, kind: input, shape index: {}]
  %s3 = inlined_call_operand.vmem [shape: f32[1,512], index: 3, kind: input, shape index: {}]
  %s4 = inlined_call_operand.vmem [shape: f32[128,512], index: 4, kind: output, shape index: {}]
  %s5 = sld [smem:[#allocation0]]
  $region114: #{extra_layers_forward.8} parent=0
    _
  %s7 = ssub.s32 1, %s5
  %s8 = scalar_select 0, %s7, %s5
  $region1: #{extra_layers_forward.8} parent=0
    #allocation3 [shape = 'u8[262144]{0}', space=vmem, size = 0x40000, scoped, tag = 'input window, operand 1']
    #allocation4 [shape = 'u8[262144]{0}', space=vmem, size = 0x40000, scoped, tag = 'output window, operand 0']
    loop: start=0, step=1, limit=20
    $region2: #{extra_layers_forward.8} parent=1 // loop_pre_header
      _
    $region3: #{extra_layers_forward.8} parent=1 // loop_header
      %s10 = sphi 0, %s14
      %p11 = scmp.ge.s32.totalorder %s10, 20
      %s17 = sphi 0, %s43
      %s18 = sphi 0, %s39
      %s19 = sphi 0, %s35
      %s20 = sphi 0, %s31
      %s21 = sphi 0, %s17
      %s22 = sphi 0, %s18
      %s23 = sphi 0, %s19
      %s24 = sphi 0, %s20
      %s25 = sphi 0, %s21
      %s26 = sphi 0, %s22
      %s27 = sphi 0, %s23
      %s28 = sphi 0, %s24
      %s50 = sphi 0, %s52
      %s53 = sphi 0, %s50
      %s54 = sphi 0, %s53
      %s70 = sphi 0, %s54
      %s80 = sphi 0, %s82
      %s83 = sphi 0, %s80
      %s84 = sphi 0, %s83
      %s100 = sphi 0, %s84
      %s106 = sphi 0, %s108
      %s109 = sphi 0, %s106
      %s110 = sphi 0, %s109
      %s126 = sphi 0, %s110
      %s132 = sphi 0, %s134
      %s135 = sphi 0, %s132
      %s136 = sphi 0, %s135
      %s152 = sphi 0, %s136
      %s160 = sphi 0, %s162
      %s163 = sphi 0, %s160
      %s164 = sphi 0, %s163
      %s180 = sphi 0, %s164
    $region4: #{extra_layers_forward.8} parent=1 // loop_header_branch
      %13 = sbr.rel (%p11) target = $region8
    $region5: #{extra_layers_forward.8} parent=1 // loop_body
      %s15 = ssub.s32 %s10, 1
      %s16 = ssub.s32 %s10, 2
      %s29 = sadd.s32 1, %s20
      %p30 = scmp.ge.s32.totalorder %s29, 1
      %s31 = scalar_select %p30, 0, %s29
      %s32 = sadd.s32 1, %s19
      %s33 = scalar_select %p30, %s32, %s19
      %p34 = scmp.ge.s32.totalorder %s33, 9
      %s35 = scalar_select %p34, 0, %s33
      %s36 = sadd.s32 1, %s18
      %s37 = scalar_select %p34, %s36, %s18
      %p38 = scmp.ge.s32.totalorder %s37, 2
      %s39 = scalar_select %p38, 0, %s37
      %s40 = sadd.s32 1, %s17
      %s41 = scalar_select %p38, %s40, %s17
      %p42 = scmp.ge.s32.totalorder %s41, 1
      %s43 = scalar_select %p42, 0, %s41
      %s44 = ssub.s32 %s19, %s35
      %s45 = ssub.s32 %s17, %s43
      %s46 = sor.u32 %s44, %s45
      %s47 = ssub.s32 %s20, %s31
      %s48 = sor.u32 %s46, %s47
      %p49 = scmp.eq.s32.totalorder %s48, 0
      %s51 = sadd.s32 %s50, 1
      %s52 = scalar_select %p49, %s50, %s51
      %p55 = pneg %p49
      %p56 = scmp.eq.s32.totalorder %s10, 17
      %p57 = por %p55, %p56
      %p58 = scmp.ne.s32.totalorder %s50, %s53
      %p59 = scmp.eq.s32.totalorder %s10, 0
      %p60 = por %p58, %p59
      %p61 = scmp.ne.s32.totalorder %s50, %s53
      %p62 = scmp.eq.s32.totalorder %s15, 17
      %p63 = por %p61, %p62
      %p64 = scmp.ne.s32.totalorder %s53, %s54
      %p65 = scmp.eq.s32.totalorder %s15, 0
      %p66 = por %p64, %p65
      %p67 = scmp.ne.s32.totalorder %s53, %s54
      %p68 = scmp.eq.s32.totalorder %s16, 17
      %p69 = por %p67, %p68
      %p71 = scmp.ne.s32.totalorder %s54, %s70
      %p72 = scmp.eq.s32.totalorder %s16, 0
      %p73 = por %p71, %p72
      %s74 = ssub.s32 %s19, %s35
      %s75 = ssub.s32 %s20, %s31
      %s76 = sor.u32 %s74, %s75
      %s77 = ssub.s32 %s18, %s39
      %s78 = sor.u32 %s76, %s77
      %p79 = scmp.eq.s32.totalorder %s78, 0
      %s81 = sadd.s32 %s80, 1
      %s82 = scalar_select %p79, %s80, %s81
      %p85 = pneg %p79
      %p86 = scmp.eq.s32.totalorder %s10, 17
      %p87 = por %p85, %p86
      %p88 = scmp.ne.s32.totalorder %s80, %s83
      %p89 = scmp.eq.s32.totalorder %s10, 0
      %p90 = por %p88, %p89
      %p91 = scmp.ne.s32.totalorder %s80, %s83
      %p92 = scmp.eq.s32.totalorder %s15, 17
      %p93 = por %p91, %p92
      %p94 = scmp.ne.s32.totalorder %s83, %s84
      %p95 = scmp.eq.s32.totalorder %s15, 0
      %p96 = por %p94, %p95
      %p97 = scmp.ne.s32.totalorder %s83, %s84
      %p98 = scmp.eq.s32.totalorder %s16, 17
      %p99 = por %p97, %p98
      %p101 = scmp.ne.s32.totalorder %s84, %s100
      %p102 = scmp.eq.s32.totalorder %s16, 0
      %p103 = por %p101, %p102
      %s104 = ssub.s32 %s18, %s39
      %p105 = scmp.eq.s32.totalorder %s104, 0
      %s107 = sadd.s32 %s106, 1
      %s108 = scalar_select %p105, %s106, %s107
      %p111 = pneg %p105
      %p112 = scmp.eq.s32.totalorder %s10, 17
      %p113 = por %p111, %p112
      %p114 = scmp.ne.s32.totalorder %s106, %s109
      %p115 = scmp.eq.s32.totalorder %s10, 0
      %p116 = por %p114, %p115
      %p117 = scmp.ne.s32.totalorder %s106, %s109
      %p118 = scmp.eq.s32.totalorder %s15, 17
      %p119 = por %p117, %p118
      %p120 = scmp.ne.s32.totalorder %s109, %s110
      %p121 = scmp.eq.s32.totalorder %s15, 0
      %p122 = por %p120, %p121
      %p123 = scmp.ne.s32.totalorder %s109, %s110
      %p124 = scmp.eq.s32.totalorder %s16, 17
      %p125 = por %p123, %p124
      %p127 = scmp.ne.s32.totalorder %s110, %s126
      %p128 = scmp.eq.s32.totalorder %s16, 0
      %p129 = por %p127, %p128
      %s130 = ssub.s32 %s18, %s39
      %p131 = scmp.eq.s32.totalorder %s130, 0
      %s133 = sadd.s32 %s132, 1
      %s134 = scalar_select %p131, %s132, %s133
      %p137 = pneg %p131
      %p138 = scmp.eq.s32.totalorder %s10, 17
      %p139 = por %p137, %p138
      %p140 = scmp.ne.s32.totalorder %s132, %s135
      %p141 = scmp.eq.s32.totalorder %s10, 0
      %p142 = por %p140, %p141
      %p143 = scmp.ne.s32.totalorder %s132, %s135
      %p144 = scmp.eq.s32.totalorder %s15, 17
      %p145 = por %p143, %p144
      %p146 = scmp.ne.s32.totalorder %s135, %s136
      %p147 = scmp.eq.s32.totalorder %s15, 0
      %p148 = por %p146, %p147
      %p149 = scmp.ne.s32.totalorder %s135, %s136
      %p150 = scmp.eq.s32.totalorder %s16, 17
      %p151 = por %p149, %p150
      %p153 = scmp.ne.s32.totalorder %s136, %s152
      %p154 = scmp.eq.s32.totalorder %s16, 0
      %p155 = por %p153, %p154
      %s156 = ssub.s32 %s17, %s43
      %s157 = ssub.s32 %s18, %s39
      %s158 = sor.u32 %s156, %s157
      %p159 = scmp.eq.s32.totalorder %s158, 0
      %s161 = sadd.s32 %s160, 1
      %s162 = scalar_select %p159, %s160, %s161
      %p165 = pneg %p159
      %p166 = scmp.eq.s32.totalorder %s10, 17
      %p167 = por %p165, %p166
      %p168 = scmp.ne.s32.totalorder %s160, %s163
      %p169 = scmp.eq.s32.totalorder %s10, 0
      %p170 = por %p168, %p169
      %p171 = scmp.ne.s32.totalorder %s160, %s163
      %p172 = scmp.eq.s32.totalorder %s15, 17
      %p173 = por %p171, %p172
      %p174 = scmp.ne.s32.totalorder %s163, %s164
      %p175 = scmp.eq.s32.totalorder %s15, 0
      %p176 = por %p174, %p175
      %p177 = scmp.ne.s32.totalorder %s163, %s164
      %p178 = scmp.eq.s32.totalorder %s16, 17
      %p179 = por %p177, %p178
      %p181 = scmp.ne.s32.totalorder %s164, %s180
      %p182 = scmp.eq.s32.totalorder %s16, 0
      %p183 = por %p181, %p182
      %p184 = scmp.le.s32.totalorder 1, %s10
      %p185 = scmp.lt.s32.totalorder %s10, 19
      %p186 = pnand %p184, %p185
      %p187 = pneg %p186
      // Predicated region
      $region9: #{extra_layers_forward.8} parent=5 // pred_check
        _
      $region10: #{extra_layers_forward.8} parent=5 // pred_check_branch
        %189 = sbr.rel (%p186) target = $region12
      $region11: #{extra_layers_forward.8} parent=5 // pred_region
        %s190 = ssub.s32 %s10, 1
      $region12: #{extra_layers_forward.8} parent=5 // pred_fallthru
        _
      %p191 = scmp.lt.s32.totalorder %s10, 18
      // Predicated region
      $region13: #{extra_layers_forward.8} parent=5 // pred_check
        %p192 = pneg %p191
      $region14: #{extra_layers_forward.8} parent=5 // pred_check_branch
        %194 = sbr.rel (%p192) target = $region16
      $region15: #{extra_layers_forward.8} parent=5 // pred_region
        // Predicated region
        $region17: #{extra_layers_forward.8} parent=15 // pred_check
          %p195 = pneg %p60
        $region18: #{extra_layers_forward.8} parent=15 // pred_check_branch
          %197 = sbr.rel (%p195) target = $region20
        $region19: #{extra_layers_forward.8} parent=15 // pred_region
          %s198 = smul.u32 16, %s17
          %s199 = smul.u32 2, %s20
          %p200 = scmp.lt.s32.totalorder %s19, 8
          %s201 = scalar_select %p200, %s19, 8
          %p202 = scmp.lt.s32.totalorder %s198, 15
          %s203 = scalar_select %p202, %s198, 15
          %p204 = scmp.lt.s32.totalorder %s199, 1
          %s205 = scalar_select %p204, %s199, 1
          %s206 = smul.addr %s203, 2
          %s207 = sadd.s32 %s205, %s206
          %s208 = smul.addr %s201, 32
          %s209 = sadd.s32 %s207, %s208
          %s210 = smul.addr %s209, 4
          %s211 = scalar_lea.vmem %s0, %s210
          %s212 = smul.u32 16, %s17
          %s213 = smul.u32 2, %s20
        $region20: #{extra_layers_forward.8} parent=15 // pred_fallthru
          _
        // Predicated region
        $region21: #{extra_layers_forward.8} parent=15 // pred_check
          %p214 = pneg %p90
        $region22: #{extra_layers_forward.8} parent=15 // pred_check_branch
          %216 = sbr.rel (%p214) target = $region24
        $region23: #{extra_layers_forward.8} parent=15 // pred_region
          %s217 = sand.u32 %s80, 1
          %s218 = sand.u32 %s80, 1
          %s219 = smul.addr %s218, 256
          %s220 = scalar_lea.vmem [#allocation3], %s219
          %s221 = smul.u32 32, %s20
          %s222 = smul.u32 2, %s18
          %s223 = smul.addr %s221, 4
          %s224 = sadd.s32 %s222, %s223
          %s225 = smul.addr %s19, 128
          %s226 = sadd.s32 %s224, %s225
          %s227 = smul.addr %s226, 4
          %s228 = scalar_lea.vmem %s1, %s227
          // Predicated region
          $region25: #{extra_layers_forward.8} parent=23 // pred_check
            _
          $region26: #{extra_layers_forward.8} parent=23 // pred_check_branch
            %230 = sbr.rel (0) target = $region28
          $region27: #{extra_layers_forward.8} parent=23 // pred_region
            // Predicated region
            $region29: #{extra_layers_forward.8} parent=27 // pred_check
              _
            $region30: #{extra_layers_forward.8} parent=27 // pred_check_branch
              %232 = sbr.rel (0) target = $region32
            $region31: #{extra_layers_forward.8} parent=27 // pred_region
              // Predicated region
              $region44: #{extra_layers_forward.8} parent=31 // pred_check
                _
              $region45: #{extra_layers_forward.8} parent=31 // pred_check_branch
                %309 = sbr.rel (0) target = $region47
              $region46: #{extra_layers_forward.8} parent=31 // pred_region
                loop: start=0, step=1, limit=1
                $region48: #{extra_layers_forward.8} parent=46 // loop_pre_header
                  _
                $region49: #{extra_layers_forward.8} parent=46 // loop_header
                  %s311 = sphi 0, %s315
                  %p312 = scmp.ge.s32.totalorder %s311, 1
                  %s316 = sphi %s228, %s228
                  %s317 = sphi %s220, %s220
                $region50: #{extra_layers_forward.8} parent=46 // loop_header_branch
                  %314 = sbr.rel (%p312) target = $region54
                $region51: #{extra_layers_forward.8} parent=46 // loop_body
                  %v318 = vld [vmem:[%s316] sm:$0xff]
                  %319 = vst [vmem:[%s317] sm:$0xff] %v318
                  %v320 = vld [vmem:[%s316 + $0x10] sm:$0xff]
                  %321 = vst [vmem:[%s317 + $0x8] sm:$0xff] %v320
                  %v322 = vld [vmem:[%s316 + $0x20] sm:$0xff]
                  %323 = vst [vmem:[%s317 + $0x10] sm:$0xff] %v322
                  %v324 = vld [vmem:[%s316 + $0x30] sm:$0xff]
                  %325 = vst [vmem:[%s317 + $0x18] sm:$0xff] %v324
                  %v326 = vld [vmem:[%s316 + $0x40] sm:$0xff]
                  %327 = vst [vmem:[%s317 + $0x20] sm:$0xff] %v326
                  %v328 = vld [vmem:[%s316 + $0x50] sm:$0xff]
                  %329 = vst [vmem:[%s317 + $0x28] sm:$0xff] %v328
                  %v330 = vld [vmem:[%s316 + $0x60] sm:$0xff]
                  %331 = vst [vmem:[%s317 + $0x30] sm:$0xff] %v330
                  %v332 = vld [vmem:[%s316 + $0x70] sm:$0xff]
                  %333 = vst [vmem:[%s317 + $0x38] sm:$0xff] %v332
                  %v334 = vld [vmem:[%s316 + $0x80] sm:$0xff]
                  %335 = vst [vmem:[%s317 + $0x40] sm:$0xff] %v334
                  %v336 = vld [vmem:[%s316 + $0x90] sm:$0xff]
                  %337 = vst [vmem:[%s317 + $0x48] sm:$0xff] %v336
                  %v338 = vld [vmem:[%s316 + $0xa0] sm:$0xff]
                  %339 = vst [vmem:[%s317 + $0x50] sm:$0xff] %v338
                  %v340 = vld [vmem:[%s316 + $0xb0] sm:$0xff]
                  %341 = vst [vmem:[%s317 + $0x58] sm:$0xff] %v340
                  %v342 = vld [vmem:[%s316 + $0xc0] sm:$0xff]
                  %343 = vst [vmem:[%s317 + $0x60] sm:$0xff] %v342
                  %v344 = vld [vmem:[%s316 + $0xd0] sm:$0xff]
                  %345 = vst [vmem:[%s317 + $0x68] sm:$0xff] %v344
                  %v346 = vld [vmem:[%s316 + $0xe0] sm:$0xff]
                  %347 = vst [vmem:[%s317 + $0x70] sm:$0xff] %v346
                  %v348 = vld [vmem:[%s316 + $0xf0] sm:$0xff]
                  %349 = vst [vmem:[%s317 + $0x78] sm:$0xff] %v348
                  %v350 = vld [vmem:[%s316 + $0x100] sm:$0xff]
                  %351 = vst [vmem:[%s317 + $0x80] sm:$0xff] %v350
                  %v352 = vld [vmem:[%s316 + $0x110] sm:$0xff]
                  %353 = vst [vmem:[%s317 + $0x88] sm:$0xff] %v352
                  %v354 = vld [vmem:[%s316 + $0x120] sm:$0xff]
                  %355 = vst [vmem:[%s317 + $0x90] sm:$0xff] %v354
                  %v356 = vld [vmem:[%s316 + $0x130] sm:$0xff]
                  %357 = vst [vmem:[%s317 + $0x98] sm:$0xff] %v356
                  %v358 = vld [vmem:[%s316 + $0x140] sm:$0xff]
                  %359 = vst [vmem:[%s317 + $0xa0] sm:$0xff] %v358
                  %v360 = vld [vmem:[%s316 + $0x150] sm:$0xff]
                  %361 = vst [vmem:[%s317 + $0xa8] sm:$0xff] %v360
                  %v362 = vld [vmem:[%s316 + $0x160] sm:$0xff]
                  %363 = vst [vmem:[%s317 + $0xb0] sm:$0xff] %v362
                  %v364 = vld [vmem:[%s316 + $0x170] sm:$0xff]
                  %365 = vst [vmem:[%s317 + $0xb8] sm:$0xff] %v364
                  %v366 = vld [vmem:[%s316 + $0x180] sm:$0xff]
                  %367 = vst [vmem:[%s317 + $0xc0] sm:$0xff] %v366
                  %v368 = vld [vmem:[%s316 + $0x190] sm:$0xff]
                  %369 = vst [vmem:[%s317 + $0xc8] sm:$0xff] %v368
                  %v370 = vld [vmem:[%s316 + $0x1a0] sm:$0xff]
                  %371 = vst [vmem:[%s317 + $0xd0] sm:$0xff] %v370
                  %v372 = vld [vmem:[%s316 + $0x1b0] sm:$0xff]
                  %373 = vst [vmem:[%s317 + $0xd8] sm:$0xff] %v372
                  %v374 = vld [vmem:[%s316 + $0x1c0] sm:$0xff]
                  %375 = vst [vmem:[%s317 + $0xe0] sm:$0xff] %v374
                  %v376 = vld [vmem:[%s316 + $0x1d0] sm:$0xff]
                  %377 = vst [vmem:[%s317 + $0xe8] sm:$0xff] %v376
                  %v378 = vld [vmem:[%s316 + $0x1e0] sm:$0xff]
                  %379 = vst [vmem:[%s317 + $0xf0] sm:$0xff] %v378
                  %v380 = vld [vmem:[%s316 + $0x1f0] sm:$0xff]
                  %381 = vst [vmem:[%s317 + $0xf8] sm:$0xff] %v380
                $region52: #{extra_layers_forward.8} parent=46 // loop_footer
                  %s315 = sadd.s32 1, %s311
                $region53: #{extra_layers_forward.8} parent=46 // loop_footer_branch
                  %310 = sbr.rel target = $region49
                $region54: #{extra_layers_forward.8} parent=46 // loop_exit
                  _
              $region47: #{extra_layers_forward.8} parent=31 // pred_fallthru
                _
              // Predicated region
              $region55: #{extra_layers_forward.8} parent=31 // pred_check
                _
              $region56: #{extra_layers_forward.8} parent=31 // pred_check_branch
                %383 = sbr.rel target = $region58
              $region57: #{extra_layers_forward.8} parent=31 // pred_region
                _
              $region58: #{extra_layers_forward.8} parent=31 // pred_fallthru
                _
            $region32: #{extra_layers_forward.8} parent=27 // pred_fallthru
              _
            // Predicated region
            $region33: #{extra_layers_forward.8} parent=27 // pred_check
              _
            $region34: #{extra_layers_forward.8} parent=27 // pred_check_branch
              %234 = sbr.rel target = $region36
            $region35: #{extra_layers_forward.8} parent=27 // pred_region
              loop: start=0, step=1, limit=1
              $region37: #{extra_layers_forward.8} parent=35 // loop_pre_header
                _
              $region38: #{extra_layers_forward.8} parent=35 // loop_header
                %s237 = sphi 0, %s241
                %p238 = scmp.ge.s32.totalorder %s237, 1
                %s242 = sphi %s228, %s228
                %s243 = sphi %s220, %s220
              $region39: #{extra_layers_forward.8} parent=35 // loop_header_branch
                %240 = sbr.rel (%p238) target = $region43
              $region40: #{extra_layers_forward.8} parent=35 // loop_body
                %v244 = vld [vmem:[%s242] sm:$0xff]
                %245 = vst [vmem:[%s243] sm:$0xff] %v244
                %v246 = vld [vmem:[%s242 + $0x10] sm:$0xff]
                %247 = vst [vmem:[%s243 + $0x8] sm:$0xff] %v246
                %v248 = vld [vmem:[%s242 + $0x20] sm:$0xff]
                %249 = vst [vmem:[%s243 + $0x10] sm:$0xff] %v248
                %v250 = vld [vmem:[%s242 + $0x30] sm:$0xff]
                %251 = vst [vmem:[%s243 + $0x18] sm:$0xff] %v250
                %v252 = vld [vmem:[%s242 + $0x40] sm:$0xff]
                %253 = vst [vmem:[%s243 + $0x20] sm:$0xff] %v252
                %v254 = vld [vmem:[%s242 + $0x50] sm:$0xff]
                %255 = vst [vmem:[%s243 + $0x28] sm:$0xff] %v254
                %v256 = vld [vmem:[%s242 + $0x60] sm:$0xff]
                %257 = vst [vmem:[%s243 + $0x30] sm:$0xff] %v256
                %v258 = vld [vmem:[%s242 + $0x70] sm:$0xff]
                %259 = vst [vmem:[%s243 + $0x38] sm:$0xff] %v258
                %v260 = vld [vmem:[%s242 + $0x80] sm:$0xff]
                %261 = vst [vmem:[%s243 + $0x40] sm:$0xff] %v260
                %v262 = vld [vmem:[%s242 + $0x90] sm:$0xff]
                %263 = vst [vmem:[%s243 + $0x48] sm:$0xff] %v262
                %v264 = vld [vmem:[%s242 + $0xa0] sm:$0xff]
                %265 = vst [vmem:[%s243 + $0x50] sm:$0xff] %v264
                %v266 = vld [vmem:[%s242 + $0xb0] sm:$0xff]
                %267 = vst [vmem:[%s243 + $0x58] sm:$0xff] %v266
                %v268 = vld [vmem:[%s242 + $0xc0] sm:$0xff]
                %269 = vst [vmem:[%s243 + $0x60] sm:$0xff] %v268
                %v270 = vld [vmem:[%s242 + $0xd0] sm:$0xff]
                %271 = vst [vmem:[%s243 + $0x68] sm:$0xff] %v270
                %v272 = vld [vmem:[%s242 + $0xe0] sm:$0xff]
                %273 = vst [vmem:[%s243 + $0x70] sm:$0xff] %v272
                %v274 = vld [vmem:[%s242 + $0xf0] sm:$0xff]
                %275 = vst [vmem:[%s243 + $0x78] sm:$0xff] %v274
                %v276 = vld [vmem:[%s242 + $0x100] sm:$0xff]
                %277 = vst [vmem:[%s243 + $0x80] sm:$0xff] %v276
                %v278 = vld [vmem:[%s242 + $0x110] sm:$0xff]
                %279 = vst [vmem:[%s243 + $0x88] sm:$0xff] %v278
                %v280 = vld [vmem:[%s242 + $0x120] sm:$0xff]
                %281 = vst [vmem:[%s243 + $0x90] sm:$0xff] %v280
                %v282 = vld [vmem:[%s242 + $0x130] sm:$0xff]
                %283 = vst [vmem:[%s243 + $0x98] sm:$0xff] %v282
                %v284 = vld [vmem:[%s242 + $0x140] sm:$0xff]
                %285 = vst [vmem:[%s243 + $0xa0] sm:$0xff] %v284
                %v286 = vld [vmem:[%s242 + $0x150] sm:$0xff]
                %287 = vst [vmem:[%s243 + $0xa8] sm:$0xff] %v286
                %v288 = vld [vmem:[%s242 + $0x160] sm:$0xff]
                %289 = vst [vmem:[%s243 + $0xb0] sm:$0xff] %v288
                %v290 = vld [vmem:[%s242 + $0x170] sm:$0xff]
                %291 = vst [vmem:[%s243 + $0xb8] sm:$0xff] %v290
                %v292 = vld [vmem:[%s242 + $0x180] sm:$0xff]
                %293 = vst [vmem:[%s243 + $0xc0] sm:$0xff] %v292
                %v294 = vld [vmem:[%s242 + $0x190] sm:$0xff]
                %295 = vst [vmem:[%s243 + $0xc8] sm:$0xff] %v294
                %v296 = vld [vmem:[%s242 + $0x1a0] sm:$0xff]
                %297 = vst [vmem:[%s243 + $0xd0] sm:$0xff] %v296
                %v298 = vld [vmem:[%s242 + $0x1b0] sm:$0xff]
                %299 = vst [vmem:[%s243 + $0xd8] sm:$0xff] %v298
                %v300 = vld [vmem:[%s242 + $0x1c0] sm:$0xff]
                %301 = vst [vmem:[%s243 + $0xe0] sm:$0xff] %v300
                %v302 = vld [vmem:[%s242 + $0x1d0] sm:$0xff]
                %303 = vst [vmem:[%s243 + $0xe8] sm:$0xff] %v302
                %v304 = vld [vmem:[%s242 + $0x1e0] sm:$0xff]
                %305 = vst [vmem:[%s243 + $0xf0] sm:$0xff] %v304
                %v306 = vld [vmem:[%s242 + $0x1f0] sm:$0xff]
                %307 = vst [vmem:[%s243 + $0xf8] sm:$0xff] %v306
              $region41: #{extra_layers_forward.8} parent=35 // loop_footer
                %s241 = sadd.s32 1, %s237
              $region42: #{extra_layers_forward.8} parent=35 // loop_footer_branch
                %236 = sbr.rel target = $region38
              $region43: #{extra_layers_forward.8} parent=35 // loop_exit
                _
            $region36: #{extra_layers_forward.8} parent=27 // pred_fallthru
              _
          $region28: #{extra_layers_forward.8} parent=23 // pred_fallthru
            _
          %384 = vnop
        $region24: #{extra_layers_forward.8} parent=15 // pred_fallthru
          _
        // Predicated region
        $region59: #{extra_layers_forward.8} parent=15 // pred_check
          %p385 = pneg %p116
        $region60: #{extra_layers_forward.8} parent=15 // pred_check_branch
          %387 = sbr.rel (%p385) target = $region62
        $region61: #{extra_layers_forward.8} parent=15 // pred_region
          %s388 = smul.u32 2, %s18
          %p389 = scmp.lt.s32.totalorder %s388, 3
          %s390 = scalar_select %p389, %s388, 3
          %s391 = scalar_lea.vmem %s2, %s390
          %s392 = smul.u32 2, %s18
        $region62: #{extra_layers_forward.8} parent=15 // pred_fallthru
          _
        // Predicated region
        $region63: #{extra_layers_forward.8} parent=15 // pred_check
          %p393 = pneg %p142
        $region64: #{extra_layers_forward.8} parent=15 // pred_check_branch
          %395 = sbr.rel (%p393) target = $region66
        $region65: #{extra_layers_forward.8} parent=15 // pred_region
          %s396 = smul.u32 2, %s18
          %p397 = scmp.lt.s32.totalorder %s396, 3
          %s398 = scalar_select %p397, %s396, 3
          %s399 = scalar_lea.vmem %s3, %s398
          %s400 = smul.u32 2, %s18
        $region66: #{extra_layers_forward.8} parent=15 // pred_fallthru
          _
      $region16: #{extra_layers_forward.8} parent=5 // pred_fallthru
        _
      %p401 = scmp.le.s32.totalorder 1, %s10
      %p402 = scmp.lt.s32.totalorder %s10, 19
      %p403 = pnand %p401, %p402
      %p404 = pneg %p403
      // Predicated region
      $region67: #{extra_layers_forward.8} parent=5 // pred_check
        _
      $region68: #{extra_layers_forward.8} parent=5 // pred_check_branch
        %406 = sbr.rel (%p403) target = $region70
      $region69: #{extra_layers_forward.8} parent=5 // pred_region
        %s407 = ssub.s32 %s10, 1
        %s408 = sand.u32 %s83, 1
        %s409 = sand.u32 %s83, 1
        %s410 = smul.addr %s409, 256
        %s411 = scalar_lea.vmem [#allocation3], %s410
        // Predicated region
        $region71: #{extra_layers_forward.8} parent=69 // pred_check
          %p412 = pneg %p96
        $region72: #{extra_layers_forward.8} parent=69 // pred_check_branch
          %414 = sbr.rel (%p412) target = $region74
        $region73: #{extra_layers_forward.8} parent=69 // pred_region
          _
        $region74: #{extra_layers_forward.8} parent=69 // pred_fallthru
          _
        %s415 = smul.u32 16, %s21
        %s416 = smul.u32 2, %s24
        %p417 = scmp.lt.s32.totalorder %s23, 8
        %s418 = scalar_select %p417, %s23, 8
        %p419 = scmp.lt.s32.totalorder %s415, 15
        %s420 = scalar_select %p419, %s415, 15
        %p421 = scmp.lt.s32.totalorder %s416, 1
        %s422 = scalar_select %p421, %s416, 1
        %s423 = smul.addr %s420, 2
        %s424 = sadd.s32 %s422, %s423
        %s425 = smul.addr %s418, 32
        %s426 = sadd.s32 %s424, %s425
        %s427 = smul.addr %s426, 4
        %s428 = scalar_lea.vmem %s0, %s427
        %p429 = pneg %p66
        %p430 = pneg %p63
        %s431 = sand.u32 %s83, 1
        %s432 = sand.u32 %s83, 1
        %s433 = smul.addr %s432, 256
        %s434 = scalar_lea.vmem [#allocation3], %s433
        %p435 = pneg %p96
        %p436 = pneg %p93
        %s437 = smul.u32 2, %s22
        %p438 = scmp.lt.s32.totalorder %s437, 3
        %s439 = scalar_select %p438, %s437, 3
        %s440 = scalar_lea.vmem %s2, %s439
        %p441 = pneg %p122
        %p442 = pneg %p119
        %s443 = smul.u32 2, %s22
        %p444 = scmp.lt.s32.totalorder %s443, 3
        %s445 = scalar_select %p444, %s443, 3
        %s446 = scalar_lea.vmem %s3, %s445
        %p447 = pneg %p148
        %p448 = pneg %p145
        %p449 = pneg %p176
        %p450 = pneg %p173
        %s451 = sand.u32 %s163, 1
        %s452 = sand.u32 %s163, 1
        %s453 = smul.addr %s452, 256
        %s454 = scalar_lea.vmem [#allocation4], %s453
        %s455 = smul.u32 16, %s21
        %s456 = smul.u32 2, %s24
        %p457 = scmp.lt.s32.totalorder %s23, 8
        %s458 = scalar_select %p457, %s23, 8
        %p459 = scmp.lt.s32.totalorder %s455, 15
        %s460 = scalar_select %p459, %s455, 15
        %p461 = scmp.lt.s32.totalorder %s456, 1
        %s462 = scalar_select %p461, %s456, 1
        %s463 = smul.addr %s460, 2
        %s464 = sadd.s32 %s462, %s463
        %s465 = smul.addr %s458, 32
        %s466 = sadd.s32 %s464, %s465
        %s467 = smul.addr %s466, 4
        %s468 = scalar_lea.vmem %s0, %s467
        %s469 = smul.u32 16, %s21
        %s470 = smul.u32 2, %s24
        %s471 = smul.u32 32, %s24
        %s472 = smul.u32 2, %s22
        %s473 = smul.u32 2, %s22
        %p474 = scmp.lt.s32.totalorder %s473, 3
        %s475 = scalar_select %p474, %s473, 3
        %s476 = scalar_lea.vmem %s2, %s475
        %s477 = smul.u32 2, %s22
        %s478 = smul.u32 2, %s22
        %p479 = scmp.lt.s32.totalorder %s478, 3
        %s480 = scalar_select %p479, %s478, 3
        %s481 = scalar_lea.vmem %s3, %s480
        %s482 = smul.u32 2, %s22
        %s483 = smul.u32 16, %s21
        %s484 = smul.u32 2, %s22
        %p485 = scmp.eq.s32.totalorder %s23, 0
        %p486 = scmp.eq.s32.totalorder %s24, 0
        %p487 = pnand %p485, %p486
        %p488 = pneg %p487
        // Predicated region
        $region75: #{extra_layers_forward.8} parent=69 // pred_check
          _
        $region76: #{extra_layers_forward.8} parent=69 // pred_check_branch
          %490 = sbr.rel (%p487) target = $region78
        $region77: #{extra_layers_forward.8} parent=69 // pred_region
          %491 = vst [vmem:[#allocation2] sm:$0xff] 0.0
          %492 = vst [vmem:[#allocation2 + $0x8] sm:$0xff] 0.0
          %493 = vst [vmem:[#allocation2 + $0x10] sm:$0xff] 0.0
          %494 = vst [vmem:[#allocation2 + $0x18] sm:$0xff] 0.0
          %495 = vst [vmem:[#allocation2 + $0x20] sm:$0xff] 0.0
          %496 = vst [vmem:[#allocation2 + $0x28] sm:$0xff] 0.0
          %497 = vst [vmem:[#allocation2 + $0x30] sm:$0xff] 0.0
          %498 = vst [vmem:[#allocation2 + $0x38] sm:$0xff] 0.0
          %499 = vst [vmem:[#allocation2 + $0x40] sm:$0xff] 0.0
          %500 = vst [vmem:[#allocation2 + $0x48] sm:$0xff] 0.0
          %501 = vst [vmem:[#allocation2 + $0x50] sm:$0xff] 0.0
          %502 = vst [vmem:[#allocation2 + $0x58] sm:$0xff] 0.0
          %503 = vst [vmem:[#allocation2 + $0x60] sm:$0xff] 0.0
          %504 = vst [vmem:[#allocation2 + $0x68] sm:$0xff] 0.0
          %505 = vst [vmem:[#allocation2 + $0x70] sm:$0xff] 0.0
          %506 = vst [vmem:[#allocation2 + $0x78] sm:$0xff] 0.0
          %507 = vst [vmem:[#allocation2 + $0x80] sm:$0xff] 0.0
          %508 = vst [vmem:[#allocation2 + $0x88] sm:$0xff] 0.0
          %509 = vst [vmem:[#allocation2 + $0x90] sm:$0xff] 0.0
          %510 = vst [vmem:[#allocation2 + $0x98] sm:$0xff] 0.0
          %511 = vst [vmem:[#allocation2 + $0xa0] sm:$0xff] 0.0
          %512 = vst [vmem:[#allocation2 + $0xa8] sm:$0xff] 0.0
          %513 = vst [vmem:[#allocation2 + $0xb0] sm:$0xff] 0.0
          %514 = vst [vmem:[#allocation2 + $0xb8] sm:$0xff] 0.0
          %515 = vst [vmem:[#allocation2 + $0xc0] sm:$0xff] 0.0
          %516 = vst [vmem:[#allocation2 + $0xc8] sm:$0xff] 0.0
          %517 = vst [vmem:[#allocation2 + $0xd0] sm:$0xff] 0.0
          %518 = vst [vmem:[#allocation2 + $0xd8] sm:$0xff] 0.0
          %519 = vst [vmem:[#allocation2 + $0xe0] sm:$0xff] 0.0
          %520 = vst [vmem:[#allocation2 + $0xe8] sm:$0xff] 0.0
          %521 = vst [vmem:[#allocation2 + $0xf0] sm:$0xff] 0.0
          %522 = vst [vmem:[#allocation2 + $0xf8] sm:$0xff] 0.0
        $region78: #{extra_layers_forward.8} parent=69 // pred_fallthru
          _
        %v523 = vld [vmem:[#allocation2] sm:$0xff]
        %v524 = vld [vmem:[#allocation2 + $0x8] sm:$0xff]
        %v525 = vld [vmem:[#allocation2 + $0x10] sm:$0xff]
        %v526 = vld [vmem:[#allocation2 + $0x18] sm:$0xff]
        %v527 = vld [vmem:[#allocation2 + $0x20] sm:$0xff]
        %v528 = vld [vmem:[#allocation2 + $0x28] sm:$0xff]
        %v529 = vld [vmem:[#allocation2 + $0x30] sm:$0xff]
        %v530 = vld [vmem:[#allocation2 + $0x38] sm:$0xff]
        %v531 = vld [vmem:[#allocation2 + $0x40] sm:$0xff]
        %v532 = vld [vmem:[#allocation2 + $0x48] sm:$0xff]
        %v533 = vld [vmem:[#allocation2 + $0x50] sm:$0xff]
        %v534 = vld [vmem:[#allocation2 + $0x58] sm:$0xff]
        %v535 = vld [vmem:[#allocation2 + $0x60] sm:$0xff]
        %v536 = vld [vmem:[#allocation2 + $0x68] sm:$0xff]
        %v537 = vld [vmem:[#allocation2 + $0x70] sm:$0xff]
        %v538 = vld [vmem:[#allocation2 + $0x78] sm:$0xff]
        %v539 = vld [vmem:[#allocation2 + $0x80] sm:$0xff]
        %v540 = vld [vmem:[#allocation2 + $0x88] sm:$0xff]
        %v541 = vld [vmem:[#allocation2 + $0x90] sm:$0xff]
        %v542 = vld [vmem:[#allocation2 + $0x98] sm:$0xff]
        %v543 = vld [vmem:[#allocation2 + $0xa0] sm:$0xff]
        %v544 = vld [vmem:[#allocation2 + $0xa8] sm:$0xff]
        %v545 = vld [vmem:[#allocation2 + $0xb0] sm:$0xff]
        %v546 = vld [vmem:[#allocation2 + $0xb8] sm:$0xff]
        %v547 = vld [vmem:[#allocation2 + $0xc0] sm:$0xff]
        %v548 = vld [vmem:[#allocation2 + $0xc8] sm:$0xff]
        %v549 = vld [vmem:[#allocation2 + $0xd0] sm:$0xff]
        %v550 = vld [vmem:[#allocation2 + $0xd8] sm:$0xff]
        %v551 = vld [vmem:[#allocation2 + $0xe0] sm:$0xff]
        %v552 = vld [vmem:[#allocation2 + $0xe8] sm:$0xff]
        %v553 = vld [vmem:[#allocation2 + $0xf0] sm:$0xff]
        %v554 = vld [vmem:[#allocation2 + $0xf8] sm:$0xff]
        %v555 = vld [vmem:[%s468] sm:$0xff]
        %v556 = vld [vmem:[%s468 + $0x8] sm:$0xff]
        %v557 = vld [vmem:[%s468 + $0x10] sm:$0xff]
        %v558 = vld [vmem:[%s468 + $0x18] sm:$0xff]
        %v559 = vld [vmem:[%s468 + $0x20] sm:$0xff]
        %v560 = vld [vmem:[%s468 + $0x28] sm:$0xff]
        %v561 = vld [vmem:[%s468 + $0x30] sm:$0xff]
        %v562 = vld [vmem:[%s468 + $0x38] sm:$0xff]
        %v563 = vld [vmem:[%s468 + $0x40] sm:$0xff]
        %v564 = vld [vmem:[%s468 + $0x48] sm:$0xff]
        %v565 = vld [vmem:[%s468 + $0x50] sm:$0xff]
        %v566 = vld [vmem:[%s468 + $0x58] sm:$0xff]
        %v567 = vld [vmem:[%s468 + $0x60] sm:$0xff]
        %v568 = vld [vmem:[%s468 + $0x68] sm:$0xff]
        %v569 = vld [vmem:[%s468 + $0x70] sm:$0xff]
        %v570 = vld [vmem:[%s468 + $0x78] sm:$0xff]
        %v571 = vld [vmem:[%s411] sm:$0xff]
        %v572 = vld [vmem:[%s411 + $0x8] sm:$0xff]
        %v573 = vld [vmem:[%s411 + $0x10] sm:$0xff]
        %v574 = vld [vmem:[%s411 + $0x18] sm:$0xff]
        %v575 = vld [vmem:[%s411 + $0x20] sm:$0xff]
        %v576 = vld [vmem:[%s411 + $0x28] sm:$0xff]
        %v577 = vld [vmem:[%s411 + $0x30] sm:$0xff]
        %v578 = vld [vmem:[%s411 + $0x38] sm:$0xff]
        %v579 = vld [vmem:[%s411 + $0x40] sm:$0xff]
        %v580 = vld [vmem:[%s411 + $0x48] sm:$0xff]
        %v581 = vld [vmem:[%s411 + $0x50] sm:$0xff]
        %v582 = vld [vmem:[%s411 + $0x58] sm:$0xff]
        %v583 = vld [vmem:[%s411 + $0x60] sm:$0xff]
        %v584 = vld [vmem:[%s411 + $0x68] sm:$0xff]
        %v585 = vld [vmem:[%s411 + $0x70] sm:$0xff]
        %v586 = vld [vmem:[%s411 + $0x78] sm:$0xff]
        %v587 = vld [vmem:[%s411 + $0x80] sm:$0xff]
        %v588 = vld [vmem:[%s411 + $0x88] sm:$0xff]
        %v589 = vld [vmem:[%s411 + $0x90] sm:$0xff]
        %v590 = vld [vmem:[%s411 + $0x98] sm:$0xff]
        %v591 = vld [vmem:[%s411 + $0xa0] sm:$0xff]
        %v592 = vld [vmem:[%s411 + $0xa8] sm:$0xff]
        %v593 = vld [vmem:[%s411 + $0xb0] sm:$0xff]
        %v594 = vld [vmem:[%s411 + $0xb8] sm:$0xff]
        %v595 = vld [vmem:[%s411 + $0xc0] sm:$0xff]
        %v596 = vld [vmem:[%s411 + $0xc8] sm:$0xff]
        %v597 = vld [vmem:[%s411 + $0xd0] sm:$0xff]
        %v598 = vld [vmem:[%s411 + $0xd8] sm:$0xff]
        %v599 = vld [vmem:[%s411 + $0xe0] sm:$0xff]
        %v600 = vld [vmem:[%s411 + $0xe8] sm:$0xff]
        %v601 = vld [vmem:[%s411 + $0xf0] sm:$0xff]
        %v602 = vld [vmem:[%s411 + $0xf8] sm:$0xff]
        %v619 = vunpack.c.l.b16 %v555
        %v620 = vunpack.c.h.b16 %v555
        %v621 = vunpack.c.l.b16 %v556
        %v622 = vunpack.c.h.b16 %v556
        %v623 = vunpack.c.l.b16 %v557
        %v624 = vunpack.c.h.b16 %v557
        %v625 = vunpack.c.l.b16 %v558
        %v626 = vunpack.c.h.b16 %v558
        %v627 = vunpack.c.l.b16 %v559
        %v628 = vunpack.c.h.b16 %v559
        %v629 = vunpack.c.l.b16 %v560
        %v630 = vunpack.c.h.b16 %v560
        %v631 = vunpack.c.l.b16 %v561
        %v632 = vunpack.c.h.b16 %v561
        %v633 = vunpack.c.l.b16 %v562
        %v634 = vunpack.c.h.b16 %v562
        %v635 = vunpack.c.l.b16 %v563
        %v636 = vunpack.c.h.b16 %v563
        %v637 = vunpack.c.l.b16 %v564
        %v638 = vunpack.c.h.b16 %v564
        %v639 = vunpack.c.l.b16 %v565
        %v640 = vunpack.c.h.b16 %v565
        %v641 = vunpack.c.l.b16 %v566
        %v642 = vunpack.c.h.b16 %v566
        %v643 = vunpack.c.l.b16 %v567
        %v644 = vunpack.c.h.b16 %v567
        %v645 = vunpack.c.l.b16 %v568
        %v646 = vunpack.c.h.b16 %v568
        %v647 = vunpack.c.l.b16 %v569
        %v648 = vunpack.c.h.b16 %v569
        %v649 = vunpack.c.l.b16 %v570
        %v650 = vunpack.c.h.b16 %v570
        %v651 = vpack.c.b16 %v621, %v619
        %v652 = vpack.c.b16 %v622, %v620
        %v653 = vpack.c.b16 %v625, %v623
        %v654 = vpack.c.b16 %v626, %v624
        %v655 = vpack.c.b16 %v629, %v627
        %v656 = vpack.c.b16 %v630, %v628
        %v657 = vpack.c.b16 %v633, %v631
        %v658 = vpack.c.b16 %v634, %v632
        %v659 = vpack.c.b16 %v637, %v635
        %v660 = vpack.c.b16 %v638, %v636
        %v661 = vpack.c.b16 %v641, %v639
        %v662 = vpack.c.b16 %v642, %v640
        %v663 = vpack.c.b16 %v645, %v643
        %v664 = vpack.c.b16 %v646, %v644
        %v665 = vpack.c.b16 %v649, %v647
        %v666 = vpack.c.b16 %v650, %v648
        %v715 = vunpack.c.l.b16 %v571
        %v716 = vunpack.c.h.b16 %v571
        %v717 = vunpack.c.l.b16 %v572
        %v718 = vunpack.c.h.b16 %v572
        %v719 = vunpack.c.l.b16 %v573
        %v720 = vunpack.c.h.b16 %v573
        %v721 = vunpack.c.l.b16 %v574
        %v722 = vunpack.c.h.b16 %v574
        %v723 = vunpack.c.l.b16 %v575
        %v724 = vunpack.c.h.b16 %v575
        %v725 = vunpack.c.l.b16 %v576
        %v726 = vunpack.c.h.b16 %v576
        %v727 = vunpack.c.l.b16 %v577
        %v728 = vunpack.c.h.b16 %v577
        %v729 = vunpack.c.l.b16 %v578
        %v730 = vunpack.c.h.b16 %v578
        %v731 = vunpack.c.l.b16 %v579
        %v732 = vunpack.c.h.b16 %v579
        %v733 = vunpack.c.l.b16 %v580
        %v734 = vunpack.c.h.b16 %v580
        %v735 = vunpack.c.l.b16 %v581
        %v736 = vunpack.c.h.b16 %v581
        %v737 = vunpack.c.l.b16 %v582
        %v738 = vunpack.c.h.b16 %v582
        %v739 = vunpack.c.l.b16 %v583
        %v740 = vunpack.c.h.b16 %v583
        %v741 = vunpack.c.l.b16 %v584
        %v742 = vunpack.c.h.b16 %v584
        %v743 = vunpack.c.l.b16 %v585
        %v744 = vunpack.c.h.b16 %v585
        %v745 = vunpack.c.l.b16 %v586
        %v746 = vunpack.c.h.b16 %v586
        %v747 = vunpack.c.l.b16 %v587
        %v748 = vunpack.c.h.b16 %v587
        %v749 = vunpack.c.l.b16 %v588
        %v750 = vunpack.c.h.b16 %v588
        %v751 = vunpack.c.l.b16 %v589
        %v752 = vunpack.c.h.b16 %v589
        %v753 = vunpack.c.l.b16 %v590
        %v754 = vunpack.c.h.b16 %v590
        %v755 = vunpack.c.l.b16 %v591
        %v756 = vunpack.c.h.b16 %v591
        %v757 = vunpack.c.l.b16 %v592
        %v758 = vunpack.c.h.b16 %v592
        %v759 = vunpack.c.l.b16 %v593
        %v760 = vunpack.c.h.b16 %v593
        %v761 = vunpack.c.l.b16 %v594
        %v762 = vunpack.c.h.b16 %v594
        %v763 = vunpack.c.l.b16 %v595
        %v764 = vunpack.c.h.b16 %v595
        %v765 = vunpack.c.l.b16 %v596
        %v766 = vunpack.c.h.b16 %v596
        %v767 = vunpack.c.l.b16 %v597
        %v768 = vunpack.c.h.b16 %v597
        %v769 = vunpack.c.l.b16 %v598
        %v770 = vunpack.c.h.b16 %v598
        %v771 = vunpack.c.l.b16 %v599
        %v772 = vunpack.c.h.b16 %v599
        %v773 = vunpack.c.l.b16 %v600
        %v774 = vunpack.c.h.b16 %v600
        %v775 = vunpack.c.l.b16 %v601
        %v776 = vunpack.c.h.b16 %v601
        %v777 = vunpack.c.l.b16 %v602
        %v778 = vunpack.c.h.b16 %v602
        %v779 = vpack.c.b16 %v717, %v715
        %v780 = vpack.c.b16 %v718, %v716
        %v781 = vpack.c.b16 %v721, %v719
        %v782 = vpack.c.b16 %v722, %v720
        %v783 = vpack.c.b16 %v725, %v723
        %v784 = vpack.c.b16 %v726, %v724
        %v785 = vpack.c.b16 %v729, %v727
        %v786 = vpack.c.b16 %v730, %v728
        %v787 = vpack.c.b16 %v733, %v731
        %v788 = vpack.c.b16 %v734, %v732
        %v789 = vpack.c.b16 %v737, %v735
        %v790 = vpack.c.b16 %v738, %v736
        %v791 = vpack.c.b16 %v741, %v739
        %v792 = vpack.c.b16 %v742, %v740
        %v793 = vpack.c.b16 %v745, %v743
        %v794 = vpack.c.b16 %v746, %v744
        %v795 = vpack.c.b16 %v749, %v747
        %v796 = vpack.c.b16 %v750, %v748
        %v797 = vpack.c.b16 %v753, %v751
        %v798 = vpack.c.b16 %v754, %v752
        %v799 = vpack.c.b16 %v757, %v755
        %v800 = vpack.c.b16 %v758, %v756
        %v801 = vpack.c.b16 %v761, %v759
        %v802 = vpack.c.b16 %v762, %v760
        %v803 = vpack.c.b16 %v765, %v763
        %v804 = vpack.c.b16 %v766, %v764
        %v805 = vpack.c.b16 %v769, %v767
        %v806 = vpack.c.b16 %v770, %v768
        %v807 = vpack.c.b16 %v773, %v771
        %v808 = vpack.c.b16 %v774, %v772
        %v809 = vpack.c.b16 %v777, %v775
        %v810 = vpack.c.b16 %v778, %v776
        %843 = vmatprep.subr.bf16.mxu0 %v780
        %844 = vmatpush1.bf16.msra.mxu0 %v779
        %845 = vmatprep.subr.bf16.mxu0 %v782
        %846 = vmatpush1.bf16.msra.mxu0 %v781
        %847 = vmatprep.subr.bf16.mxu0 %v784
        %848 = vmatpush1.bf16.msra.mxu0 %v783
        %849 = vmatprep.subr.bf16.mxu0 %v786
        %850 = vmatpush1.bf16.msra.mxu0 %v785
        %851 = vmatprep.subr.bf16.mxu0 %v788
        %852 = vmatpush1.bf16.msra.mxu0 %v787
        %853 = vmatprep.subr.bf16.mxu0 %v790
        %854 = vmatpush1.bf16.msra.mxu0 %v789
        %855 = vmatprep.subr.bf16.mxu0 %v792
        %856 = vmatpush1.bf16.msra.mxu0 %v791
        %857 = vmatprep.subr.bf16.mxu0 %v794
        %858 = vmatpush1.bf16.msra.mxu0 %v793
        %859 = vmatprep.subr.bf16.mxu0 %v796
        %860 = vmatpush1.bf16.msra.mxu0 %v795
        %861 = vmatprep.subr.bf16.mxu0 %v798
        %862 = vmatpush1.bf16.msra.mxu0 %v797
        %863 = vmatprep.subr.bf16.mxu0 %v800
        %864 = vmatpush1.bf16.msra.mxu0 %v799
        %865 = vmatprep.subr.bf16.mxu0 %v802
        %866 = vmatpush1.bf16.msra.mxu0 %v801
        %867 = vmatprep.subr.bf16.mxu0 %v804
        %868 = vmatpush1.bf16.msra.mxu0 %v803
        %869 = vmatprep.subr.bf16.mxu0 %v806
        %870 = vmatpush1.bf16.msra.mxu0 %v805
        %871 = vmatprep.subr.bf16.mxu0 %v808
        %872 = vmatpush1.bf16.msra.mxu0 %v807
        %873 = vmatprep.subr.bf16.mxu0 %v810
        %874 = vmatpush1.bf16.msra.mxu0 %v809
        %875 = vmatprep.mubr.bf16.mxu0 %v652
        %876 = vmatmul.mubr.bf16.gmra.mrb[0].mxu0 %v651
        %v877 = vpop.f32.mrb[0].mxu0
        %v878 = vadd.f32 0.0, %v877
        %v879 = vpop.f32.mrb[0].mxu0
        %v880 = vadd.f32 0.0, %v879
        %v881 = vpop.f32.mrb[0].mxu0
        %v882 = vadd.f32 0.0, %v881
        %v883 = vpop.f32.mrb[0].mxu0
        %v884 = vadd.f32 0.0, %v883
        %885 = vmatprep.mubr.bf16.mxu0 %v654
        %886 = vmatmul.mubr.bf16.gmra.mrb[0].mxu0 %v653
        %v887 = vpop.f32.mrb[0].mxu0
        %v888 = vadd.f32 0.0, %v887
        %v889 = vpop.f32.mrb[0].mxu0
        %v890 = vadd.f32 0.0, %v889
        %v891 = vpop.f32.mrb[0].mxu0
        %v892 = vadd.f32 0.0, %v891
        %v893 = vpop.f32.mrb[0].mxu0
        %v894 = vadd.f32 0.0, %v893
        %895 = vmatprep.mubr.bf16.mxu0 %v656
        %896 = vmatmul.mubr.bf16.gmra.mrb[0].mxu0 %v655
        %v897 = vpop.f32.mrb[0].mxu0
        %v898 = vadd.f32 0.0, %v897
        %v899 = vpop.f32.mrb[0].mxu0
        %v900 = vadd.f32 0.0, %v899
        %v901 = vpop.f32.mrb[0].mxu0
        %v902 = vadd.f32 0.0, %v901
        %v903 = vpop.f32.mrb[0].mxu0
        %v904 = vadd.f32 0.0, %v903
        %905 = vmatprep.mubr.bf16.mxu0 %v658
        %906 = vmatmul.mubr.bf16.gmra.mrb[0].mxu0 %v657
        %v907 = vpop.f32.mrb[0].mxu0
        %v908 = vadd.f32 0.0, %v907
        %v909 = vpop.f32.mrb[0].mxu0
        %v910 = vadd.f32 0.0, %v909
        %v911 = vpop.f32.mrb[0].mxu0
        %v912 = vadd.f32 0.0, %v911
        %v913 = vpop.f32.mrb[0].mxu0
        %v914 = vadd.f32 0.0, %v913
        %915 = vmatprep.mubr.bf16.mxu0 %v660
        %916 = vmatmul.mubr.bf16.gmra.mrb[0].mxu0 %v659
        %v917 = vpop.f32.mrb[0].mxu0
        %v918 = vadd.f32 0.0, %v917
        %v919 = vpop.f32.mrb[0].mxu0
        %v920 = vadd.f32 0.0, %v919
        %v921 = vpop.f32.mrb[0].mxu0
        %v922 = vadd.f32 0.0, %v921
        %v923 = vpop.f32.mrb[0].mxu0
        %v924 = vadd.f32 0.0, %v923
        %925 = vmatprep.mubr.bf16.mxu0 %v662
        %926 = vmatmul.mubr.bf16.gmra.mrb[0].mxu0 %v661
        %v927 = vpop.f32.mrb[0].mxu0
        %v928 = vadd.f32 0.0, %v927
        %v929 = vpop.f32.mrb[0].mxu0
        %v930 = vadd.f32 0.0, %v929
        %v931 = vpop.f32.mrb[0].mxu0
        %v932 = vadd.f32 0.0, %v931
        %v933 = vpop.f32.mrb[0].mxu0
        %v934 = vadd.f32 0.0, %v933
        %935 = vmatprep.mubr.bf16.mxu0 %v664
        %936 = vmatmul.mubr.bf16.gmra.mrb[0].mxu0 %v663
        %v937 = vpop.f32.mrb[0].mxu0
        %v938 = vadd.f32 0.0, %v937
        %v939 = vpop.f32.mrb[0].mxu0
        %v940 = vadd.f32 0.0, %v939
        %v941 = vpop.f32.mrb[0].mxu0
        %v942 = vadd.f32 0.0, %v941
        %v943 = vpop.f32.mrb[0].mxu0
        %v944 = vadd.f32 0.0, %v943
        %945 = vmatprep.mubr.bf16.mxu0 %v666
        %946 = vmatmul.mubr.bf16.gmra.mrb[0].mxu0 %v665
        %v947 = vpop.f32.mrb[0].mxu0
        %v948 = vadd.f32 0.0, %v947
        %v949 = vpop.f32.mrb[0].mxu0
        %v950 = vadd.f32 0.0, %v949
        %v951 = vpop.f32.mrb[0].mxu0
        %v952 = vadd.f32 0.0, %v951
        %v953 = vpop.f32.mrb[0].mxu0
        %v954 = vadd.f32 0.0, %v953
        %955 = vdwg.mxu0
        %v956 = vadd.f32 %v523, %v878
        %v957 = vadd.f32 %v524, %v880
        %v958 = vadd.f32 %v525, %v882
        %v959 = vadd.f32 %v526, %v884
        %v960 = vadd.f32 %v527, %v888
        %v961 = vadd.f32 %v528, %v890
        %v962 = vadd.f32 %v529, %v892
        %v963 = vadd.f32 %v530, %v894
        %v964 = vadd.f32 %v531, %v898
        %v965 = vadd.f32 %v532, %v900
        %v966 = vadd.f32 %v533, %v902
        %v967 = vadd.f32 %v534, %v904
        %v968 = vadd.f32 %v535, %v908
        %v969 = vadd.f32 %v536, %v910
        %v970 = vadd.f32 %v537, %v912
        %v971 = vadd.f32 %v538, %v914
        %v972 = vadd.f32 %v539, %v918
        %v973 = vadd.f32 %v540, %v920
        %v974 = vadd.f32 %v541, %v922
        %v975 = vadd.f32 %v542, %v924
        %v976 = vadd.f32 %v543, %v928
        %v977 = vadd.f32 %v544, %v930
        %v978 = vadd.f32 %v545, %v932
        %v979 = vadd.f32 %v546, %v934
        %v980 = vadd.f32 %v547, %v938
        %v981 = vadd.f32 %v548, %v940
        %v982 = vadd.f32 %v549, %v942
        %v983 = vadd.f32 %v550, %v944
        %v984 = vadd.f32 %v551, %v948
        %v985 = vadd.f32 %v552, %v950
        %v986 = vadd.f32 %v553, %v952
        %v987 = vadd.f32 %v554, %v954
        %988 = vst [vmem:[#allocation2] sm:$0xff] %v956
        %989 = vst [vmem:[#allocation2 + $0x8] sm:$0xff] %v957
        %990 = vst [vmem:[#allocation2 + $0x10] sm:$0xff] %v958
        %991 = vst [vmem:[#allocation2 + $0x18] sm:$0xff] %v959
        %992 = vst [vmem:[#allocation2 + $0x20] sm:$0xff] %v960
        %993 = vst [vmem:[#allocation2 + $0x28] sm:$0xff] %v961
        %994 = vst [vmem:[#allocation2 + $0x30] sm:$0xff] %v962
        %995 = vst [vmem:[#allocation2 + $0x38] sm:$0xff] %v963
        %996 = vst [vmem:[#allocation2 + $0x40] sm:$0xff] %v964
        %997 = vst [vmem:[#allocation2 + $0x48] sm:$0xff] %v965
        %998 = vst [vmem:[#allocation2 + $0x50] sm:$0xff] %v966
        %999 = vst [vmem:[#allocation2 + $0x58] sm:$0xff] %v967
        %1000 = vst [vmem:[#allocation2 + $0x60] sm:$0xff] %v968
        %1001 = vst [vmem:[#allocation2 + $0x68] sm:$0xff] %v969
        %1002 = vst [vmem:[#allocation2 + $0x70] sm:$0xff] %v970
        %1003 = vst [vmem:[#allocation2 + $0x78] sm:$0xff] %v971
        %1004 = vst [vmem:[#allocation2 + $0x80] sm:$0xff] %v972
        %1005 = vst [vmem:[#allocation2 + $0x88] sm:$0xff] %v973
        %1006 = vst [vmem:[#allocation2 + $0x90] sm:$0xff] %v974
        %1007 = vst [vmem:[#allocation2 + $0x98] sm:$0xff] %v975
        %1008 = vst [vmem:[#allocation2 + $0xa0] sm:$0xff] %v976
        %1009 = vst [vmem:[#allocation2 + $0xa8] sm:$0xff] %v977
        %1010 = vst [vmem:[#allocation2 + $0xb0] sm:$0xff] %v978
        %1011 = vst [vmem:[#allocation2 + $0xb8] sm:$0xff] %v979
        %1012 = vst [vmem:[#allocation2 + $0xc0] sm:$0xff] %v980
        %1013 = vst [vmem:[#allocation2 + $0xc8] sm:$0xff] %v981
        %1014 = vst [vmem:[#allocation2 + $0xd0] sm:$0xff] %v982
        %1015 = vst [vmem:[#allocation2 + $0xd8] sm:$0xff] %v983
        %1016 = vst [vmem:[#allocation2 + $0xe0] sm:$0xff] %v984
        %1017 = vst [vmem:[#allocation2 + $0xe8] sm:$0xff] %v985
        %1018 = vst [vmem:[#allocation2 + $0xf0] sm:$0xff] %v986
        %1019 = vst [vmem:[#allocation2 + $0xf8] sm:$0xff] %v987
        %p1020 = scmp.eq.s32.totalorder %s23, 8
        %p1021 = pnand %p1020, %p486
        %p1022 = pneg %p1021
        // Predicated region
        $region79: #{extra_layers_forward.8} parent=69 // pred_check
          _
        $region80: #{extra_layers_forward.8} parent=69 // pred_check_branch
          %1024 = sbr.rel (%p1021) target = $region82
        $region81: #{extra_layers_forward.8} parent=69 // pred_region
          %v1025 = vld [vmem:[#allocation2] sm:$0xff]
          %v1026 = vld [vmem:[#allocation2 + $0x8] sm:$0xff]
          %v1027 = vld [vmem:[#allocation2 + $0x10] sm:$0xff]
          %v1028 = vld [vmem:[#allocation2 + $0x18] sm:$0xff]
          %v1029 = vld [vmem:[#allocation2 + $0x20] sm:$0xff]
          %v1030 = vld [vmem:[#allocation2 + $0x28] sm:$0xff]
          %v1031 = vld [vmem:[#allocation2 + $0x30] sm:$0xff]
          %v1032 = vld [vmem:[#allocation2 + $0x38] sm:$0xff]
          %v1033 = vld [vmem:[#allocation2 + $0x40] sm:$0xff]
          %v1034 = vld [vmem:[#allocation2 + $0x48] sm:$0xff]
          %v1035 = vld [vmem:[#allocation2 + $0x50] sm:$0xff]
          %v1036 = vld [vmem:[#allocation2 + $0x58] sm:$0xff]
          %v1037 = vld [vmem:[#allocation2 + $0x60] sm:$0xff]
          %v1038 = vld [vmem:[#allocation2 + $0x68] sm:$0xff]
          %v1039 = vld [vmem:[#allocation2 + $0x70] sm:$0xff]
          %v1040 = vld [vmem:[#allocation2 + $0x78] sm:$0xff]
          %v1041 = vld [vmem:[#allocation2 + $0x80] sm:$0xff]
          %v1042 = vld [vmem:[#allocation2 + $0x88] sm:$0xff]
          %v1043 = vld [vmem:[#allocation2 + $0x90] sm:$0xff]
          %v1044 = vld [vmem:[#allocation2 + $0x98] sm:$0xff]
          %v1045 = vld [vmem:[#allocation2 + $0xa0] sm:$0xff]
          %v1046 = vld [vmem:[#allocation2 + $0xa8] sm:$0xff]
          %v1047 = vld [vmem:[#allocation2 + $0xb0] sm:$0xff]
          %v1048 = vld [vmem:[#allocation2 + $0xb8] sm:$0xff]
          %v1049 = vld [vmem:[#allocation2 + $0xc0] sm:$0xff]
          %v1050 = vld [vmem:[#allocation2 + $0xc8] sm:$0xff]
          %v1051 = vld [vmem:[#allocation2 + $0xd0] sm:$0xff]
          %v1052 = vld [vmem:[#allocation2 + $0xd8] sm:$0xff]
          %v1053 = vld [vmem:[#allocation2 + $0xe0] sm:$0xff]
          %v1054 = vld [vmem:[#allocation2 + $0xe8] sm:$0xff]
          %v1055 = vld [vmem:[#allocation2 + $0xf0] sm:$0xff]
          %v1056 = vld [vmem:[#allocation2 + $0xf8] sm:$0xff]
          %v1057 = vld [vmem:[%s476] sm:$0x3]
          %v1059 = vlaneseq
          %v1060 = vshrl.u32 %v1059, 7
          %v1061 = vsub.s32 0, %v1060
          %v1062 = vrot.slane %v1057, %v1061
          %v1063 = vlaneseq
          %v1064 = vshrl.u32 %v1063, 7
          %v1065 = vsub.s32 1, %v1064
          %v1066 = vrot.slane %v1057, %v1065
          %v1069 = vmul.f32 %v1025, %v1062
          %v1070 = vmul.f32 %v1026, %v1066
          %v1071 = vmul.f32 %v1027, %v1062
          %v1072 = vmul.f32 %v1028, %v1066
          %v1073 = vmul.f32 %v1029, %v1062
          %v1074 = vmul.f32 %v1030, %v1066
          %v1075 = vmul.f32 %v1031, %v1062
          %v1076 = vmul.f32 %v1032, %v1066
          %v1077 = vmul.f32 %v1033, %v1062
          %v1078 = vmul.f32 %v1034, %v1066
          %v1079 = vmul.f32 %v1035, %v1062
          %v1080 = vmul.f32 %v1036, %v1066
          %v1081 = vmul.f32 %v1037, %v1062
          %v1082 = vmul.f32 %v1038, %v1066
          %v1083 = vmul.f32 %v1039, %v1062
          %v1084 = vmul.f32 %v1040, %v1066
          %v1085 = vmul.f32 %v1041, %v1062
          %v1086 = vmul.f32 %v1042, %v1066
          %v1087 = vmul.f32 %v1043, %v1062
          %v1088 = vmul.f32 %v1044, %v1066
          %v1089 = vmul.f32 %v1045, %v1062
          %v1090 = vmul.f32 %v1046, %v1066
          %v1091 = vmul.f32 %v1047, %v1062
          %v1092 = vmul.f32 %v1048, %v1066
          %v1093 = vmul.f32 %v1049, %v1062
          %v1094 = vmul.f32 %v1050, %v1066
          %v1095 = vmul.f32 %v1051, %v1062
          %v1096 = vmul.f32 %v1052, %v1066
          %v1097 = vmul.f32 %v1053, %v1062
          %v1098 = vmul.f32 %v1054, %v1066
          %v1099 = vmul.f32 %v1055, %v1062
          %v1100 = vmul.f32 %v1056, %v1066
          %v1101 = vld [vmem:[%s481] sm:$0x3]
          %v1103 = vlaneseq
          %v1104 = vshrl.u32 %v1103, 7
          %v1105 = vsub.s32 0, %v1104
          %v1106 = vrot.slane %v1101, %v1105
          %v1107 = vlaneseq
          %v1108 = vshrl.u32 %v1107, 7
          %v1109 = vsub.s32 1, %v1108
          %v1110 = vrot.slane %v1101, %v1109
          %v1113 = vadd.f32 %v1069, %v1106
          %v1114 = vadd.f32 %v1070, %v1110
          %v1115 = vadd.f32 %v1071, %v1106
          %v1116 = vadd.f32 %v1072, %v1110
          %v1117 = vadd.f32 %v1073, %v1106
          %v1118 = vadd.f32 %v1074, %v1110
          %v1119 = vadd.f32 %v1075, %v1106
          %v1120 = vadd.f32 %v1076, %v1110
          %v1121 = vadd.f32 %v1077, %v1106
          %v1122 = vadd.f32 %v1078, %v1110
          %v1123 = vadd.f32 %v1079, %v1106
          %v1124 = vadd.f32 %v1080, %v1110
          %v1125 = vadd.f32 %v1081, %v1106
          %v1126 = vadd.f32 %v1082, %v1110
          %v1127 = vadd.f32 %v1083, %v1106
          %v1128 = vadd.f32 %v1084, %v1110
          %v1129 = vadd.f32 %v1085, %v1106
          %v1130 = vadd.f32 %v1086, %v1110
          %v1131 = vadd.f32 %v1087, %v1106
          %v1132 = vadd.f32 %v1088, %v1110
          %v1133 = vadd.f32 %v1089, %v1106
          %v1134 = vadd.f32 %v1090, %v1110
          %v1135 = vadd.f32 %v1091, %v1106
          %v1136 = vadd.f32 %v1092, %v1110
          %v1137 = vadd.f32 %v1093, %v1106
          %v1138 = vadd.f32 %v1094, %v1110
          %v1139 = vadd.f32 %v1095, %v1106
          %v1140 = vadd.f32 %v1096, %v1110
          %v1141 = vadd.f32 %v1097, %v1106
          %v1142 = vadd.f32 %v1098, %v1110
          %v1143 = vadd.f32 %v1099, %v1106
          %v1144 = vadd.f32 %v1100, %v1110
          %v1145 = vmax.f32 %v1113, 0.0
          %v1146 = vmax.f32 %v1114, 0.0
          %v1147 = vmax.f32 %v1115, 0.0
          %v1148 = vmax.f32 %v1116, 0.0
          %v1149 = vmax.f32 %v1117, 0.0
          %v1150 = vmax.f32 %v1118, 0.0
          %v1151 = vmax.f32 %v1119, 0.0
          %v1152 = vmax.f32 %v1120, 0.0
          %v1153 = vmax.f32 %v1121, 0.0
          %v1154 = vmax.f32 %v1122, 0.0
          %v1155 = vmax.f32 %v1123, 0.0
          %v1156 = vmax.f32 %v1124, 0.0
          %v1157 = vmax.f32 %v1125, 0.0
          %v1158 = vmax.f32 %v1126, 0.0
          %v1159 = vmax.f32 %v1127, 0.0
          %v1160 = vmax.f32 %v1128, 0.0
          %v1161 = vmax.f32 %v1129, 0.0
          %v1162 = vmax.f32 %v1130, 0.0
          %v1163 = vmax.f32 %v1131, 0.0
          %v1164 = vmax.f32 %v1132, 0.0
          %v1165 = vmax.f32 %v1133, 0.0
          %v1166 = vmax.f32 %v1134, 0.0
          %v1167 = vmax.f32 %v1135, 0.0
          %v1168 = vmax.f32 %v1136, 0.0
          %v1169 = vmax.f32 %v1137, 0.0
          %v1170 = vmax.f32 %v1138, 0.0
          %v1171 = vmax.f32 %v1139, 0.0
          %v1172 = vmax.f32 %v1140, 0.0
          %v1173 = vmax.f32 %v1141, 0.0
          %v1174 = vmax.f32 %v1142, 0.0
          %v1175 = vmax.f32 %v1143, 0.0
          %v1176 = vmax.f32 %v1144, 0.0
          %1177 = vst [vmem:[%s454] sm:$0xff] %v1145
          %1178 = vst [vmem:[%s454 + $0x8] sm:$0xff] %v1146
          %1179 = vst [vmem:[%s454 + $0x10] sm:$0xff] %v1147
          %1180 = vst [vmem:[%s454 + $0x18] sm:$0xff] %v1148
          %1181 = vst [vmem:[%s454 + $0x20] sm:$0xff] %v1149
          %1182 = vst [vmem:[%s454 + $0x28] sm:$0xff] %v1150
          %1183 = vst [vmem:[%s454 + $0x30] sm:$0xff] %v1151
          %1184 = vst [vmem:[%s454 + $0x38] sm:$0xff] %v1152
          %1185 = vst [vmem:[%s454 + $0x40] sm:$0xff] %v1153
          %1186 = vst [vmem:[%s454 + $0x48] sm:$0xff] %v1154
          %1187 = vst [vmem:[%s454 + $0x50] sm:$0xff] %v1155
          %1188 = vst [vmem:[%s454 + $0x58] sm:$0xff] %v1156
          %1189 = vst [vmem:[%s454 + $0x60] sm:$0xff] %v1157
          %1190 = vst [vmem:[%s454 + $0x68] sm:$0xff] %v1158
          %1191 = vst [vmem:[%s454 + $0x70] sm:$0xff] %v1159
          %1192 = vst [vmem:[%s454 + $0x78] sm:$0xff] %v1160
          %1193 = vst [vmem:[%s454 + $0x80] sm:$0xff] %v1161
          %1194 = vst [vmem:[%s454 + $0x88] sm:$0xff] %v1162
          %1195 = vst [vmem:[%s454 + $0x90] sm:$0xff] %v1163
          %1196 = vst [vmem:[%s454 + $0x98] sm:$0xff] %v1164
          %1197 = vst [vmem:[%s454 + $0xa0] sm:$0xff] %v1165
          %1198 = vst [vmem:[%s454 + $0xa8] sm:$0xff] %v1166
          %1199 = vst [vmem:[%s454 + $0xb0] sm:$0xff] %v1167
          %1200 = vst [vmem:[%s454 + $0xb8] sm:$0xff] %v1168
          %1201 = vst [vmem:[%s454 + $0xc0] sm:$0xff] %v1169
          %1202 = vst [vmem:[%s454 + $0xc8] sm:$0xff] %v1170
          %1203 = vst [vmem:[%s454 + $0xd0] sm:$0xff] %v1171
          %1204 = vst [vmem:[%s454 + $0xd8] sm:$0xff] %v1172
          %1205 = vst [vmem:[%s454 + $0xe0] sm:$0xff] %v1173
          %1206 = vst [vmem:[%s454 + $0xe8] sm:$0xff] %v1174
          %1207 = vst [vmem:[%s454 + $0xf0] sm:$0xff] %v1175
          %1208 = vst [vmem:[%s454 + $0xf8] sm:$0xff] %v1176
        $region82: #{extra_layers_forward.8} parent=69 // pred_fallthru
          _
        %s1209 = sand.u32 %s163, 1
        %s1210 = sand.u32 %s163, 1
        %s1211 = smul.addr %s1210, 256
        %s1212 = scalar_lea.vmem [#allocation4], %s1211
        // Predicated region
        $region83: #{extra_layers_forward.8} parent=69 // pred_check
          %p1213 = pneg %p173
        $region84: #{extra_layers_forward.8} parent=69 // pred_check_branch
          %1215 = sbr.rel (%p1213) target = $region86
        $region85: #{extra_layers_forward.8} parent=69 // pred_region
          %s1216 = smul.u32 16, %s21
          %s1217 = smul.u32 2, %s22
          %s1218 = smul.addr %s1216, 4
          %s1219 = sadd.s32 %s1217, %s1218
          %s1220 = smul.addr %s1219, 8
          %s1221 = scalar_lea.vmem %s4, %s1220
          // Predicated region
          $region87: #{extra_layers_forward.8} parent=85 // pred_check
            _
          $region88: #{extra_layers_forward.8} parent=85 // pred_check_branch
            %1223 = sbr.rel (0) target = $region90
          $region89: #{extra_layers_forward.8} parent=85 // pred_region
            // Predicated region
            $region91: #{extra_layers_forward.8} parent=89 // pred_check
              _
            $region92: #{extra_layers_forward.8} parent=89 // pred_check_branch
              %1225 = sbr.rel (0) target = $region94
            $region93: #{extra_layers_forward.8} parent=89 // pred_region
              loop: start=0, step=1, limit=1
              $region95: #{extra_layers_forward.8} parent=93 // loop_pre_header
                _
              $region96: #{extra_layers_forward.8} parent=93 // loop_header
                %s1227 = sphi 0, %s1231
                %p1228 = scmp.ge.s32.totalorder %s1227, 1
                %s1232 = sphi %s1212, %s1212
                %s1233 = sphi %s1221, %s1221
              $region97: #{extra_layers_forward.8} parent=93 // loop_header_branch
                %1230 = sbr.rel (%p1228) target = $region101
              $region98: #{extra_layers_forward.8} parent=93 // loop_body
                %v1234 = vld [vmem:[%s1232] sm:$0xff]
                %1235 = vst [vmem:[%s1233] sm:$0xff] %v1234
                %v1236 = vld [vmem:[%s1232 + $0x8] sm:$0xff]
                %1237 = vst [vmem:[%s1233 + $0x8] sm:$0xff] %v1236
                %v1238 = vld [vmem:[%s1232 + $0x10] sm:$0xff]
                %1239 = vst [vmem:[%s1233 + $0x20] sm:$0xff] %v1238
                %v1240 = vld [vmem:[%s1232 + $0x18] sm:$0xff]
                %1241 = vst [vmem:[%s1233 + $0x28] sm:$0xff] %v1240
                %v1242 = vld [vmem:[%s1232 + $0x20] sm:$0xff]
                %1243 = vst [vmem:[%s1233 + $0x40] sm:$0xff] %v1242
                %v1244 = vld [vmem:[%s1232 + $0x28] sm:$0xff]
                %1245 = vst [vmem:[%s1233 + $0x48] sm:$0xff] %v1244
                %v1246 = vld [vmem:[%s1232 + $0x30] sm:$0xff]
                %1247 = vst [vmem:[%s1233 + $0x60] sm:$0xff] %v1246
                %v1248 = vld [vmem:[%s1232 + $0x38] sm:$0xff]
                %1249 = vst [vmem:[%s1233 + $0x68] sm:$0xff] %v1248
                %v1250 = vld [vmem:[%s1232 + $0x40] sm:$0xff]
                %1251 = vst [vmem:[%s1233 + $0x80] sm:$0xff] %v1250
                %v1252 = vld [vmem:[%s1232 + $0x48] sm:$0xff]
                %1253 = vst [vmem:[%s1233 + $0x88] sm:$0xff] %v1252
                %v1254 = vld [vmem:[%s1232 + $0x50] sm:$0xff]
                %1255 = vst [vmem:[%s1233 + $0xa0] sm:$0xff] %v1254
                %v1256 = vld [vmem:[%s1232 + $0x58] sm:$0xff]
                %1257 = vst [vmem:[%s1233 + $0xa8] sm:$0xff] %v1256
                %v1258 = vld [vmem:[%s1232 + $0x60] sm:$0xff]
                %1259 = vst [vmem:[%s1233 + $0xc0] sm:$0xff] %v1258
                %v1260 = vld [vmem:[%s1232 + $0x68] sm:$0xff]
                %1261 = vst [vmem:[%s1233 + $0xc8] sm:$0xff] %v1260
                %v1262 = vld [vmem:[%s1232 + $0x70] sm:$0xff]
                %1263 = vst [vmem:[%s1233 + $0xe0] sm:$0xff] %v1262
                %v1264 = vld [vmem:[%s1232 + $0x78] sm:$0xff]
                %1265 = vst [vmem:[%s1233 + $0xe8] sm:$0xff] %v1264
                %v1266 = vld [vmem:[%s1232 + $0x80] sm:$0xff]
                %1267 = vst [vmem:[%s1233 + $0x100] sm:$0xff] %v1266
                %v1268 = vld [vmem:[%s1232 + $0x88] sm:$0xff]
                %1269 = vst [vmem:[%s1233 + $0x108] sm:$0xff] %v1268
                %v1270 = vld [vmem:[%s1232 + $0x90] sm:$0xff]
                %1271 = vst [vmem:[%s1233 + $0x120] sm:$0xff] %v1270
                %v1272 = vld [vmem:[%s1232 + $0x98] sm:$0xff]
                %1273 = vst [vmem:[%s1233 + $0x128] sm:$0xff] %v1272
                %v1274 = vld [vmem:[%s1232 + $0xa0] sm:$0xff]
                %1275 = vst [vmem:[%s1233 + $0x140] sm:$0xff] %v1274
                %v1276 = vld [vmem:[%s1232 + $0xa8] sm:$0xff]
                %1277 = vst [vmem:[%s1233 + $0x148] sm:$0xff] %v1276
                %v1278 = vld [vmem:[%s1232 + $0xb0] sm:$0xff]
                %1279 = vst [vmem:[%s1233 + $0x160] sm:$0xff] %v1278
                %v1280 = vld [vmem:[%s1232 + $0xb8] sm:$0xff]
                %1281 = vst [vmem:[%s1233 + $0x168] sm:$0xff] %v1280
                %v1282 = vld [vmem:[%s1232 + $0xc0] sm:$0xff]
                %1283 = vst [vmem:[%s1233 + $0x180] sm:$0xff] %v1282
                %v1284 = vld [vmem:[%s1232 + $0xc8] sm:$0xff]
                %1285 = vst [vmem:[%s1233 + $0x188] sm:$0xff] %v1284
                %v1286 = vld [vmem:[%s1232 + $0xd0] sm:$0xff]
                %1287 = vst [vmem:[%s1233 + $0x1a0] sm:$0xff] %v1286
                %v1288 = vld [vmem:[%s1232 + $0xd8] sm:$0xff]
                %1289 = vst [vmem:[%s1233 + $0x1a8] sm:$0xff] %v1288
                %v1290 = vld [vmem:[%s1232 + $0xe0] sm:$0xff]
                %1291 = vst [vmem:[%s1233 + $0x1c0] sm:$0xff] %v1290
                %v1292 = vld [vmem:[%s1232 + $0xe8] sm:$0xff]
                %1293 = vst [vmem:[%s1233 + $0x1c8] sm:$0xff] %v1292
                %v1294 = vld [vmem:[%s1232 + $0xf0] sm:$0xff]
                %1295 = vst [vmem:[%s1233 + $0x1e0] sm:$0xff] %v1294
                %v1296 = vld [vmem:[%s1232 + $0xf8] sm:$0xff]
                %1297 = vst [vmem:[%s1233 + $0x1e8] sm:$0xff] %v1296
              $region99: #{extra_layers_forward.8} parent=93 // loop_footer
                %s1231 = sadd.s32 1, %s1227
              $region100: #{extra_layers_forward.8} parent=93 // loop_footer_branch
                %1226 = sbr.rel target = $region96
              $region101: #{extra_layers_forward.8} parent=93 // loop_exit
                _
            $region94: #{extra_layers_forward.8} parent=89 // pred_fallthru
              _
            // Predicated region
            $region102: #{extra_layers_forward.8} parent=89 // pred_check
              _
            $region103: #{extra_layers_forward.8} parent=89 // pred_check_branch
              %1299 = sbr.rel target = $region105
            $region104: #{extra_layers_forward.8} parent=89 // pred_region
              _
            $region105: #{extra_layers_forward.8} parent=89 // pred_fallthru
              _
          $region90: #{extra_layers_forward.8} parent=85 // pred_fallthru
            _
          %1300 = vnop
        $region86: #{extra_layers_forward.8} parent=69 // pred_fallthru
          _
      $region70: #{extra_layers_forward.8} parent=5 // pred_fallthru
        _
      %p1301 = scmp.le.s32.totalorder 2, %s10
      // Predicated region
      $region106: #{extra_layers_forward.8} parent=5 // pred_check
        %p1302 = pneg %p1301
      $region107: #{extra_layers_forward.8} parent=5 // pred_check_branch
        %1304 = sbr.rel (%p1302) target = $region109
      $region108: #{extra_layers_forward.8} parent=5 // pred_region
        %s1305 = ssub.s32 %s10, 2
        // Predicated region
        $region110: #{extra_layers_forward.8} parent=108 // pred_check
          %p1306 = pneg %p179
        $region111: #{extra_layers_forward.8} parent=108 // pred_check_branch
          %1308 = sbr.rel (%p1306) target = $region113
        $region112: #{extra_layers_forward.8} parent=108 // pred_region
          %s1309 = sand.u32 %s164, 1
          %s1310 = sand.u32 %s164, 1
          %s1311 = smul.addr %s1310, 256
          %s1312 = scalar_lea.vmem [#allocation4], %s1311
        $region113: #{extra_layers_forward.8} parent=108 // pred_fallthru
          _
      $region109: #{extra_layers_forward.8} parent=5 // pred_fallthru
        _
    $region6: #{extra_layers_forward.8} parent=1 // loop_footer
      %s14 = sadd.s32 1, %s10
    $region7: #{extra_layers_forward.8} parent=1 // loop_footer_branch
      %9 = sbr.rel target = $region3
    $region8: #{extra_layers_forward.8} parent=1 // loop_exit
      _

// kernel: extra_layers_forward.9
$region0: #{extra_layers_forward.9}
  #allocation0 [shape = 'u32[]', space=smem, size = 0x4, offset = 0x4, fixed_abs, tag = 'smem constant byte address 0x4 - core index']
  #allocation1 [shape = 'u32[144,128]{1,0:T(1,128)}', space=vmem, size = 0x12000, scoped, tag = 'internal scratch']
  #allocation2 [shape = 'f32[128,256]{1,0:T(8,128)}', space=vmem, size = 0x20000, scoped, tag = 'scratch operand']
  %s0 = inlined_call_operand.vmem [shape: bf16[1,128,512], index: 0, kind: input, shape index: {}]
  %s1 = inlined_call_operand.vmem [shape: bf16[1,512,256], index: 1, kind: input, shape index: {}]
  %s2 = inlined_call_operand.vmem [shape: f32[1,256], index: 2, kind: input, shape index: {}]
  %s3 = inlined_call_operand.vmem [shape: f32[1,256], index: 3, kind: input, shape index: {}]
  %s4 = inlined_call_operand.vmem [shape: f32[128,256], index: 4, kind: output, shape index: {}]
  %s5 = sld [smem:[#allocation0]]
  $region95: #{extra_layers_forward.9} parent=0
    _
  %s7 = ssub.s32 1, %s5
  %s8 = scalar_select 0, %s7, %s5
  $region1: #{extra_layers_forward.9} parent=0
    #allocation3 [shape = 'u8[131072]{0}', space=vmem, size = 0x20000, scoped, tag = 'input window, operand 0']
    loop: start=0, step=1, limit=4
    $region2: #{extra_layers_forward.9} parent=1 // loop_pre_header
      _
    $region3: #{extra_layers_forward.9} parent=1 // loop_header
      %s10 = sphi 0, %s14
      %p11 = scmp.ge.s32.totalorder %s10, 4
      %s17 = sphi 0, %s43
      %s18 = sphi 0, %s39
      %s19 = sphi 0, %s35
      %s20 = sphi 0, %s31
      %s21 = sphi 0, %s17
      %s22 = sphi 0, %s18
      %s23 = sphi 0, %s19
      %s24 = sphi 0, %s20
      %s25 = sphi 0, %s21
      %s26 = sphi 0, %s22
      %s27 = sphi 0, %s23
      %s28 = sphi 0, %s24
      %s50 = sphi 0, %s52
      %s53 = sphi 0, %s50
      %s54 = sphi 0, %s53
      %s70 = sphi 0, %s54
      %s80 = sphi 0, %s82
      %s83 = sphi 0, %s80
      %s84 = sphi 0, %s83
      %s100 = sphi 0, %s84
      %s106 = sphi 0, %s108
      %s109 = sphi 0, %s106
      %s110 = sphi 0, %s109
      %s126 = sphi 0, %s110
      %s132 = sphi 0, %s134
      %s135 = sphi 0, %s132
      %s136 = sphi 0, %s135
      %s152 = sphi 0, %s136
      %s160 = sphi 0, %s162
      %s163 = sphi 0, %s160
      %s164 = sphi 0, %s163
      %s180 = sphi 0, %s164
    $region4: #{extra_layers_forward.9} parent=1 // loop_header_branch
      %13 = sbr.rel (%p11) target = $region8
    $region5: #{extra_layers_forward.9} parent=1 // loop_body
      %s15 = ssub.s32 %s10, 1
      %s16 = ssub.s32 %s10, 2
      %s29 = sadd.s32 1, %s20
      %p30 = scmp.ge.s32.totalorder %s29, 2
      %s31 = scalar_select %p30, 0, %s29
      %s32 = sadd.s32 1, %s19
      %s33 = scalar_select %p30, %s32, %s19
      %p34 = scmp.ge.s32.totalorder %s33, 1
      %s35 = scalar_select %p34, 0, %s33
      %s36 = sadd.s32 1, %s18
      %s37 = scalar_select %p34, %s36, %s18
      %p38 = scmp.ge.s32.totalorder %s37, 1
      %s39 = scalar_select %p38, 0, %s37
      %s40 = sadd.s32 1, %s17
      %s41 = scalar_select %p38, %s40, %s17
      %p42 = scmp.ge.s32.totalorder %s41, 1
      %s43 = scalar_select %p42, 0, %s41
      %s44 = ssub.s32 %s19, %s35
      %s45 = ssub.s32 %s17, %s43
      %s46 = sor.u32 %s44, %s45
      %s47 = ssub.s32 %s20, %s31
      %s48 = sor.u32 %s46, %s47
      %p49 = scmp.eq.s32.totalorder %s48, 0
      %s51 = sadd.s32 %s50, 1
      %s52 = scalar_select %p49, %s50, %s51
      %p55 = pneg %p49
      %p56 = scmp.eq.s32.totalorder %s10, 1
      %p57 = por %p55, %p56
      %p58 = scmp.ne.s32.totalorder %s50, %s53
      %p59 = scmp.eq.s32.totalorder %s10, 0
      %p60 = por %p58, %p59
      %p61 = scmp.ne.s32.totalorder %s50, %s53
      %p62 = scmp.eq.s32.totalorder %s15, 1
      %p63 = por %p61, %p62
      %p64 = scmp.ne.s32.totalorder %s53, %s54
      %p65 = scmp.eq.s32.totalorder %s15, 0
      %p66 = por %p64, %p65
      %p67 = scmp.ne.s32.totalorder %s53, %s54
      %p68 = scmp.eq.s32.totalorder %s16, 1
      %p69 = por %p67, %p68
      %p71 = scmp.ne.s32.totalorder %s54, %s70
      %p72 = scmp.eq.s32.totalorder %s16, 0
      %p73 = por %p71, %p72
      %s74 = ssub.s32 %s19, %s35
      %s75 = ssub.s32 %s20, %s31
      %s76 = sor.u32 %s74, %s75
      %s77 = ssub.s32 %s18, %s39
      %s78 = sor.u32 %s76, %s77
      %p79 = scmp.eq.s32.totalorder %s78, 0
      %s81 = sadd.s32 %s80, 1
      %s82 = scalar_select %p79, %s80, %s81
      %p85 = pneg %p79
      %p86 = scmp.eq.s32.totalorder %s10, 1
      %p87 = por %p85, %p86
      %p88 = scmp.ne.s32.totalorder %s80, %s83
      %p89 = scmp.eq.s32.totalorder %s10, 0
      %p90 = por %p88, %p89
      %p91 = scmp.ne.s32.totalorder %s80, %s83
      %p92 = scmp.eq.s32.totalorder %s15, 1
      %p93 = por %p91, %p92
      %p94 = scmp.ne.s32.totalorder %s83, %s84
      %p95 = scmp.eq.s32.totalorder %s15, 0
      %p96 = por %p94, %p95
      %p97 = scmp.ne.s32.totalorder %s83, %s84
      %p98 = scmp.eq.s32.totalorder %s16, 1
      %p99 = por %p97, %p98
      %p101 = scmp.ne.s32.totalorder %s84, %s100
      %p102 = scmp.eq.s32.totalorder %s16, 0
      %p103 = por %p101, %p102
      %s104 = ssub.s32 %s18, %s39
      %p105 = scmp.eq.s32.totalorder %s104, 0
      %s107 = sadd.s32 %s106, 1
      %s108 = scalar_select %p105, %s106, %s107
      %p111 = pneg %p105
      %p112 = scmp.eq.s32.totalorder %s10, 1
      %p113 = por %p111, %p112
      %p114 = scmp.ne.s32.totalorder %s106, %s109
      %p115 = scmp.eq.s32.totalorder %s10, 0
      %p116 = por %p114, %p115
      %p117 = scmp.ne.s32.totalorder %s106, %s109
      %p118 = scmp.eq.s32.totalorder %s15, 1
      %p119 = por %p117, %p118
      %p120 = scmp.ne.s32.totalorder %s109, %s110
      %p121 = scmp.eq.s32.totalorder %s15, 0
      %p122 = por %p120, %p121
      %p123 = scmp.ne.s32.totalorder %s109, %s110
      %p124 = scmp.eq.s32.totalorder %s16, 1
      %p125 = por %p123, %p124
      %p127 = scmp.ne.s32.totalorder %s110, %s126
      %p128 = scmp.eq.s32.totalorder %s16, 0
      %p129 = por %p127, %p128
      %s130 = ssub.s32 %s18, %s39
      %p131 = scmp.eq.s32.totalorder %s130, 0
      %s133 = sadd.s32 %s132, 1
      %s134 = scalar_select %p131, %s132, %s133
      %p137 = pneg %p131
      %p138 = scmp.eq.s32.totalorder %s10, 1
      %p139 = por %p137, %p138
      %p140 = scmp.ne.s32.totalorder %s132, %s135
      %p141 = scmp.eq.s32.totalorder %s10, 0
      %p142 = por %p140, %p141
      %p143 = scmp.ne.s32.totalorder %s132, %s135
      %p144 = scmp.eq.s32.totalorder %s15, 1
      %p145 = por %p143, %p144
      %p146 = scmp.ne.s32.totalorder %s135, %s136
      %p147 = scmp.eq.s32.totalorder %s15, 0
      %p148 = por %p146, %p147
      %p149 = scmp.ne.s32.totalorder %s135, %s136
      %p150 = scmp.eq.s32.totalorder %s16, 1
      %p151 = por %p149, %p150
      %p153 = scmp.ne.s32.totalorder %s136, %s152
      %p154 = scmp.eq.s32.totalorder %s16, 0
      %p155 = por %p153, %p154
      %s156 = ssub.s32 %s17, %s43
      %s157 = ssub.s32 %s18, %s39
      %s158 = sor.u32 %s156, %s157
      %p159 = scmp.eq.s32.totalorder %s158, 0
      %s161 = sadd.s32 %s160, 1
      %s162 = scalar_select %p159, %s160, %s161
      %p165 = pneg %p159
      %p166 = scmp.eq.s32.totalorder %s10, 1
      %p167 = por %p165, %p166
      %p168 = scmp.ne.s32.totalorder %s160, %s163
      %p169 = scmp.eq.s32.totalorder %s10, 0
      %p170 = por %p168, %p169
      %p171 = scmp.ne.s32.totalorder %s160, %s163
      %p172 = scmp.eq.s32.totalorder %s15, 1
      %p173 = por %p171, %p172
      %p174 = scmp.ne.s32.totalorder %s163, %s164
      %p175 = scmp.eq.s32.totalorder %s15, 0
      %p176 = por %p174, %p175
      %p177 = scmp.ne.s32.totalorder %s163, %s164
      %p178 = scmp.eq.s32.totalorder %s16, 1
      %p179 = por %p177, %p178
      %p181 = scmp.ne.s32.totalorder %s164, %s180
      %p182 = scmp.eq.s32.totalorder %s16, 0
      %p183 = por %p181, %p182
      %p184 = scmp.le.s32.totalorder 1, %s10
      %p185 = scmp.lt.s32.totalorder %s10, 3
      %p186 = pnand %p184, %p185
      %p187 = pneg %p186
      // Predicated region
      $region9: #{extra_layers_forward.9} parent=5 // pred_check
        _
      $region10: #{extra_layers_forward.9} parent=5 // pred_check_branch
        %189 = sbr.rel (%p186) target = $region12
      $region11: #{extra_layers_forward.9} parent=5 // pred_region
        %s190 = ssub.s32 %s10, 1
        // Predicated region
        $region13: #{extra_layers_forward.9} parent=11 // pred_check
          %p191 = pneg %p122
        $region14: #{extra_layers_forward.9} parent=11 // pred_check_branch
          %193 = sbr.rel (%p191) target = $region16
        $region15: #{extra_layers_forward.9} parent=11 // pred_region
          %s194 = smul.u32 2, %s22
          %p195 = scmp.lt.s32.totalorder %s194, 1
          %s196 = scalar_select %p195, %s194, 1
          %s197 = scalar_lea.vmem %s2, %s196
          %s198 = smul.u32 2, %s22
        $region16: #{extra_layers_forward.9} parent=11 // pred_fallthru
          _
        // Predicated region
        $region17: #{extra_layers_forward.9} parent=11 // pred_check
          %p199 = pneg %p148
        $region18: #{extra_layers_forward.9} parent=11 // pred_check_branch
          %201 = sbr.rel (%p199) target = $region20
        $region19: #{extra_layers_forward.9} parent=11 // pred_region
          %s202 = smul.u32 2, %s22
          %p203 = scmp.lt.s32.totalorder %s202, 1
          %s204 = scalar_select %p203, %s202, 1
          %s205 = scalar_lea.vmem %s3, %s204
          %s206 = smul.u32 2, %s22
        $region20: #{extra_layers_forward.9} parent=11 // pred_fallthru
          _
      $region12: #{extra_layers_forward.9} parent=5 // pred_fallthru
        _
      %p207 = scmp.lt.s32.totalorder %s10, 2
      // Predicated region
      $region21: #{extra_layers_forward.9} parent=5 // pred_check
        %p208 = pneg %p207
      $region22: #{extra_layers_forward.9} parent=5 // pred_check_branch
        %210 = sbr.rel (%p208) target = $region24
      $region23: #{extra_layers_forward.9} parent=5 // pred_region
        // Predicated region
        $region25: #{extra_layers_forward.9} parent=23 // pred_check
          %p211 = pneg %p60
        $region26: #{extra_layers_forward.9} parent=23 // pred_check_branch
          %213 = sbr.rel (%p211) target = $region28
        $region27: #{extra_layers_forward.9} parent=23 // pred_region
          %s214 = sand.u32 %s50, 1
          %s215 = sand.u32 %s50, 1
          %s216 = smul.addr %s215, 128
          %s217 = scalar_lea.vmem [#allocation3], %s216
          %s218 = smul.u32 16, %s17
          %s219 = smul.u32 2, %s20
          %s220 = smul.addr %s218, 4
          %s221 = sadd.s32 %s219, %s220
          %s222 = smul.addr %s19, 64
          %s223 = sadd.s32 %s221, %s222
          %s224 = smul.addr %s223, 4
          %s225 = scalar_lea.vmem %s0, %s224
          // Predicated region
          $region29: #{extra_layers_forward.9} parent=27 // pred_check
            _
          $region30: #{extra_layers_forward.9} parent=27 // pred_check_branch
            %227 = sbr.rel (0) target = $region32
          $region31: #{extra_layers_forward.9} parent=27 // pred_region
            // Predicated region
            $region33: #{extra_layers_forward.9} parent=31 // pred_check
              _
            $region34: #{extra_layers_forward.9} parent=31 // pred_check_branch
              %229 = sbr.rel (0) target = $region36
            $region35: #{extra_layers_forward.9} parent=31 // pred_region
              // Predicated region
              $region48: #{extra_layers_forward.9} parent=35 // pred_check
                _
              $region49: #{extra_layers_forward.9} parent=35 // pred_check_branch
                %274 = sbr.rel (0) target = $region51
              $region50: #{extra_layers_forward.9} parent=35 // pred_region
                loop: start=0, step=1, limit=1
                $region52: #{extra_layers_forward.9} parent=50 // loop_pre_header
                  _
                $region53: #{extra_layers_forward.9} parent=50 // loop_header
                  %s276 = sphi 0, %s280
                  %p277 = scmp.ge.s32.totalorder %s276, 1
                  %s281 = sphi %s225, %s225
                  %s282 = sphi %s217, %s217
                $region54: #{extra_layers_forward.9} parent=50 // loop_header_branch
                  %279 = sbr.rel (%p277) target = $region58
                $region55: #{extra_layers_forward.9} parent=50 // loop_body
                  %v283 = vld [vmem:[%s281] sm:$0xff]
                  %284 = vst [vmem:[%s282] sm:$0xff] %v283
                  %v285 = vld [vmem:[%s281 + $0x10] sm:$0xff]
                  %286 = vst [vmem:[%s282 + $0x8] sm:$0xff] %v285
                  %v287 = vld [vmem:[%s281 + $0x20] sm:$0xff]
                  %288 = vst [vmem:[%s282 + $0x10] sm:$0xff] %v287
                  %v289 = vld [vmem:[%s281 + $0x30] sm:$0xff]
                  %290 = vst [vmem:[%s282 + $0x18] sm:$0xff] %v289
                  %v291 = vld [vmem:[%s281 + $0x40] sm:$0xff]
                  %292 = vst [vmem:[%s282 + $0x20] sm:$0xff] %v291
                  %v293 = vld [vmem:[%s281 + $0x50] sm:$0xff]
                  %294 = vst [vmem:[%s282 + $0x28] sm:$0xff] %v293
                  %v295 = vld [vmem:[%s281 + $0x60] sm:$0xff]
                  %296 = vst [vmem:[%s282 + $0x30] sm:$0xff] %v295
                  %v297 = vld [vmem:[%s281 + $0x70] sm:$0xff]
                  %298 = vst [vmem:[%s282 + $0x38] sm:$0xff] %v297
                  %v299 = vld [vmem:[%s281 + $0x80] sm:$0xff]
                  %300 = vst [vmem:[%s282 + $0x40] sm:$0xff] %v299
                  %v301 = vld [vmem:[%s281 + $0x90] sm:$0xff]
                  %302 = vst [vmem:[%s282 + $0x48] sm:$0xff] %v301
                  %v303 = vld [vmem:[%s281 + $0xa0] sm:$0xff]
                  %304 = vst [vmem:[%s282 + $0x50] sm:$0xff] %v303
                  %v305 = vld [vmem:[%s281 + $0xb0] sm:$0xff]
                  %306 = vst [vmem:[%s282 + $0x58] sm:$0xff] %v305
                  %v307 = vld [vmem:[%s281 + $0xc0] sm:$0xff]
                  %308 = vst [vmem:[%s282 + $0x60] sm:$0xff] %v307
                  %v309 = vld [vmem:[%s281 + $0xd0] sm:$0xff]
                  %310 = vst [vmem:[%s282 + $0x68] sm:$0xff] %v309
                  %v311 = vld [vmem:[%s281 + $0xe0] sm:$0xff]
                  %312 = vst [vmem:[%s282 + $0x70] sm:$0xff] %v311
                  %v313 = vld [vmem:[%s281 + $0xf0] sm:$0xff]
                  %314 = vst [vmem:[%s282 + $0x78] sm:$0xff] %v313
                $region56: #{extra_layers_forward.9} parent=50 // loop_footer
                  %s280 = sadd.s32 1, %s276
                $region57: #{extra_layers_forward.9} parent=50 // loop_footer_branch
                  %275 = sbr.rel target = $region53
                $region58: #{extra_layers_forward.9} parent=50 // loop_exit
                  _
              $region51: #{extra_layers_forward.9} parent=35 // pred_fallthru
                _
              // Predicated region
              $region59: #{extra_layers_forward.9} parent=35 // pred_check
                _
              $region60: #{extra_layers_forward.9} parent=35 // pred_check_branch
                %316 = sbr.rel target = $region62
              $region61: #{extra_layers_forward.9} parent=35 // pred_region
                _
              $region62: #{extra_layers_forward.9} parent=35 // pred_fallthru
                _
            $region36: #{extra_layers_forward.9} parent=31 // pred_fallthru
              _
            // Predicated region
            $region37: #{extra_layers_forward.9} parent=31 // pred_check
              _
            $region38: #{extra_layers_forward.9} parent=31 // pred_check_branch
              %231 = sbr.rel target = $region40
            $region39: #{extra_layers_forward.9} parent=31 // pred_region
              loop: start=0, step=1, limit=1
              $region41: #{extra_layers_forward.9} parent=39 // loop_pre_header
                _
              $region42: #{extra_layers_forward.9} parent=39 // loop_header
                %s234 = sphi 0, %s238
                %p235 = scmp.ge.s32.totalorder %s234, 1
                %s239 = sphi %s225, %s225
                %s240 = sphi %s217, %s217
              $region43: #{extra_layers_forward.9} parent=39 // loop_header_branch
                %237 = sbr.rel (%p235) target = $region47
              $region44: #{extra_layers_forward.9} parent=39 // loop_body
                %v241 = vld [vmem:[%s239] sm:$0xff]
                %242 = vst [vmem:[%s240] sm:$0xff] %v241
                %v243 = vld [vmem:[%s239 + $0x10] sm:$0xff]
                %244 = vst [vmem:[%s240 + $0x8] sm:$0xff] %v243
                %v245 = vld [vmem:[%s239 + $0x20] sm:$0xff]
                %246 = vst [vmem:[%s240 + $0x10] sm:$0xff] %v245
                %v247 = vld [vmem:[%s239 + $0x30] sm:$0xff]
                %248 = vst [vmem:[%s240 + $0x18] sm:$0xff] %v247
                %v249 = vld [vmem:[%s239 + $0x40] sm:$0xff]
                %250 = vst [vmem:[%s240 + $0x20] sm:$0xff] %v249
                %v251 = vld [vmem:[%s239 + $0x50] sm:$0xff]
                %252 = vst [vmem:[%s240 + $0x28] sm:$0xff] %v251
                %v253 = vld [vmem:[%s239 + $0x60] sm:$0xff]
                %254 = vst [vmem:[%s240 + $0x30] sm:$0xff] %v253
                %v255 = vld [vmem:[%s239 + $0x70] sm:$0xff]
                %256 = vst [vmem:[%s240 + $0x38] sm:$0xff] %v255
                %v257 = vld [vmem:[%s239 + $0x80] sm:$0xff]
                %258 = vst [vmem:[%s240 + $0x40] sm:$0xff] %v257
                %v259 = vld [vmem:[%s239 + $0x90] sm:$0xff]
                %260 = vst [vmem:[%s240 + $0x48] sm:$0xff] %v259
                %v261 = vld [vmem:[%s239 + $0xa0] sm:$0xff]
                %262 = vst [vmem:[%s240 + $0x50] sm:$0xff] %v261
                %v263 = vld [vmem:[%s239 + $0xb0] sm:$0xff]
                %264 = vst [vmem:[%s240 + $0x58] sm:$0xff] %v263
                %v265 = vld [vmem:[%s239 + $0xc0] sm:$0xff]
                %266 = vst [vmem:[%s240 + $0x60] sm:$0xff] %v265
                %v267 = vld [vmem:[%s239 + $0xd0] sm:$0xff]
                %268 = vst [vmem:[%s240 + $0x68] sm:$0xff] %v267
                %v269 = vld [vmem:[%s239 + $0xe0] sm:$0xff]
                %270 = vst [vmem:[%s240 + $0x70] sm:$0xff] %v269
                %v271 = vld [vmem:[%s239 + $0xf0] sm:$0xff]
                %272 = vst [vmem:[%s240 + $0x78] sm:$0xff] %v271
              $region45: #{extra_layers_forward.9} parent=39 // loop_footer
                %s238 = sadd.s32 1, %s234
              $region46: #{extra_layers_forward.9} parent=39 // loop_footer_branch
                %233 = sbr.rel target = $region42
              $region47: #{extra_layers_forward.9} parent=39 // loop_exit
                _
            $region40: #{extra_layers_forward.9} parent=31 // pred_fallthru
              _
          $region32: #{extra_layers_forward.9} parent=27 // pred_fallthru
            _
          %317 = vnop
        $region28: #{extra_layers_forward.9} parent=23 // pred_fallthru
          _
        // Predicated region
        $region63: #{extra_layers_forward.9} parent=23 // pred_check
          %p318 = pneg %p90
        $region64: #{extra_layers_forward.9} parent=23 // pred_check_branch
          %320 = sbr.rel (%p318) target = $region66
        $region65: #{extra_layers_forward.9} parent=23 // pred_region
          %s321 = smul.u32 32, %s20
          %s322 = smul.u32 2, %s18
          %p323 = scmp.lt.s32.totalorder %s19, 0
          %s324 = scalar_select %p323, %s19, 0
          %p325 = scmp.lt.s32.totalorder %s321, 63
          %s326 = scalar_select %p325, %s321, 63
          %p327 = scmp.lt.s32.totalorder %s322, 1
          %s328 = scalar_select %p327, %s322, 1
          %s329 = smul.addr %s326, 2
          %s330 = sadd.s32 %s328, %s329
          %s331 = smul.addr %s324, 128
          %s332 = sadd.s32 %s330, %s331
          %s333 = smul.addr %s332, 4
          %s334 = scalar_lea.vmem %s1, %s333
          %s335 = smul.u32 32, %s20
          %s336 = smul.u32 2, %s18
        $region66: #{extra_layers_forward.9} parent=23 // pred_fallthru
          _
      $region24: #{extra_layers_forward.9} parent=5 // pred_fallthru
        _
      %p337 = scmp.le.s32.totalorder 1, %s10
      %p338 = scmp.lt.s32.totalorder %s10, 3
      %p339 = pnand %p337, %p338
      %p340 = pneg %p339
      // Predicated region
      $region67: #{extra_layers_forward.9} parent=5 // pred_check
        _
      $region68: #{extra_layers_forward.9} parent=5 // pred_check_branch
        %342 = sbr.rel (%p339) target = $region70
      $region69: #{extra_layers_forward.9} parent=5 // pred_region
        %s343 = ssub.s32 %s10, 1
        %s344 = sand.u32 %s53, 1
        %s345 = sand.u32 %s53, 1
        %s346 = smul.addr %s345, 128
        %s347 = scalar_lea.vmem [#allocation3], %s346
        // Predicated region
        $region71: #{extra_layers_forward.9} parent=69 // pred_check
          %p348 = pneg %p66
        $region72: #{extra_layers_forward.9} parent=69 // pred_check_branch
          %350 = sbr.rel (%p348) target = $region74
        $region73: #{extra_layers_forward.9} parent=69 // pred_region
          _
        $region74: #{extra_layers_forward.9} parent=69 // pred_fallthru
          _
        %s351 = sand.u32 %s53, 1
        %s352 = sand.u32 %s53, 1
        %s353 = smul.addr %s352, 128
        %s354 = scalar_lea.vmem [#allocation3], %s353
        %p355 = pneg %p66
        %p356 = pneg %p63
        %s357 = smul.u32 32, %s24
        %s358 = smul.u32 2, %s22
        %p359 = scmp.lt.s32.totalorder %s23, 0
        %s360 = scalar_select %p359, %s23, 0
        %p361 = scmp.lt.s32.totalorder %s357, 63
        %s362 = scalar_select %p361, %s357, 63
        %p363 = scmp.lt.s32.totalorder %s358, 1
        %s364 = scalar_select %p363, %s358, 1
        %s365 = smul.addr %s362, 2
        %s366 = sadd.s32 %s364, %s365
        %s367 = smul.addr %s360, 128
        %s368 = sadd.s32 %s366, %s367
        %s369 = smul.addr %s368, 4
        %s370 = scalar_lea.vmem %s1, %s369
        %p371 = pneg %p96
        %p372 = pneg %p93
        %s373 = smul.u32 2, %s22
        %p374 = scmp.lt.s32.totalorder %s373, 1
        %s375 = scalar_select %p374, %s373, 1
        %s376 = scalar_lea.vmem %s2, %s375
        %p377 = pneg %p122
        %p378 = pneg %p119
        %s379 = smul.u32 2, %s22
        %p380 = scmp.lt.s32.totalorder %s379, 1
        %s381 = scalar_select %p380, %s379, 1
        %s382 = scalar_lea.vmem %s3, %s381
        %p383 = pneg %p148
        %p384 = pneg %p145
        %p385 = pneg %p176
        %p386 = pneg %p173
        %s387 = smul.u32 16, %s21
        %s388 = smul.u32 2, %s22
        %p389 = scmp.lt.s32.totalorder %s387, 15
        %s390 = scalar_select %p389, %s387, 15
        %p391 = scmp.lt.s32.totalorder %s388, 1
        %s392 = scalar_select %p391, %s388, 1
        %s393 = smul.addr %s390, 2
        %s394 = sadd.s32 %s392, %s393
        %s395 = smul.addr %s394, 8
        %s396 = scalar_lea.vmem %s4, %s395
        %s397 = smul.u32 16, %s21
        %s398 = smul.u32 2, %s24
        %s399 = smul.u32 32, %s24
        %s400 = smul.u32 2, %s22
        %p401 = scmp.lt.s32.totalorder %s23, 0
        %s402 = scalar_select %p401, %s23, 0
        %p403 = scmp.lt.s32.totalorder %s399, 63
        %s404 = scalar_select %p403, %s399, 63
        %p405 = scmp.lt.s32.totalorder %s400, 1
        %s406 = scalar_select %p405, %s400, 1
        %s407 = smul.addr %s404, 2
        %s408 = sadd.s32 %s406, %s407
        %s409 = smul.addr %s402, 128
        %s410 = sadd.s32 %s408, %s409
        %s411 = smul.addr %s410, 4
        %s412 = scalar_lea.vmem %s1, %s411
        %s413 = smul.u32 32, %s24
        %s414 = smul.u32 2, %s22
        %s415 = smul.u32 2, %s22
        %p416 = scmp.lt.s32.totalorder %s415, 1
        %s417 = scalar_select %p416, %s415, 1
        %s418 = scalar_lea.vmem %s2, %s417
        %s419 = smul.u32 2, %s22
        %s420 = smul.u32 2, %s22
        %p421 = scmp.lt.s32.totalorder %s420, 1
        %s422 = scalar_select %p421, %s420, 1
        %s423 = scalar_lea.vmem %s3, %s422
        %s424 = smul.u32 2, %s22
        %s425 = smul.u32 16, %s21
        %s426 = smul.u32 2, %s22
        %p427 = scmp.lt.s32.totalorder %s425, 15
        %s428 = scalar_select %p427, %s425, 15
        %p429 = scmp.lt.s32.totalorder %s426, 1
        %s430 = scalar_select %p429, %s426, 1
        %s431 = smul.addr %s428, 2
        %s432 = sadd.s32 %s430, %s431
        %s433 = smul.addr %s432, 8
        %s434 = scalar_lea.vmem %s4, %s433
        %s435 = smul.u32 16, %s21
        %s436 = smul.u32 2, %s22
        %p437 = scmp.eq.s32.totalorder %s23, 0
        %p438 = scmp.eq.s32.totalorder %s24, 0
        %p439 = pnand %p437, %p438
        %p440 = pneg %p439
        // Predicated region
        $region75: #{extra_layers_forward.9} parent=69 // pred_check
          _
        $region76: #{extra_layers_forward.9} parent=69 // pred_check_branch
          %442 = sbr.rel (%p439) target = $region78
        $region77: #{extra_layers_forward.9} parent=69 // pred_region
          %443 = vst [vmem:[#allocation2] sm:$0xff] 0.0
          %444 = vst [vmem:[#allocation2 + $0x8] sm:$0xff] 0.0
          %445 = vst [vmem:[#allocation2 + $0x10] sm:$0xff] 0.0
          %446 = vst [vmem:[#allocation2 + $0x18] sm:$0xff] 0.0
          %447 = vst [vmem:[#allocation2 + $0x20] sm:$0xff] 0.0
          %448 = vst [vmem:[#allocation2 + $0x28] sm:$0xff] 0.0
          %449 = vst [vmem:[#allocation2 + $0x30] sm:$0xff] 0.0
          %450 = vst [vmem:[#allocation2 + $0x38] sm:$0xff] 0.0
          %451 = vst [vmem:[#allocation2 + $0x40] sm:$0xff] 0.0
          %452 = vst [vmem:[#allocation2 + $0x48] sm:$0xff] 0.0
          %453 = vst [vmem:[#allocation2 + $0x50] sm:$0xff] 0.0
          %454 = vst [vmem:[#allocation2 + $0x58] sm:$0xff] 0.0
          %455 = vst [vmem:[#allocation2 + $0x60] sm:$0xff] 0.0
          %456 = vst [vmem:[#allocation2 + $0x68] sm:$0xff] 0.0
          %457 = vst [vmem:[#allocation2 + $0x70] sm:$0xff] 0.0
          %458 = vst [vmem:[#allocation2 + $0x78] sm:$0xff] 0.0
          %459 = vst [vmem:[#allocation2 + $0x80] sm:$0xff] 0.0
          %460 = vst [vmem:[#allocation2 + $0x88] sm:$0xff] 0.0
          %461 = vst [vmem:[#allocation2 + $0x90] sm:$0xff] 0.0
          %462 = vst [vmem:[#allocation2 + $0x98] sm:$0xff] 0.0
          %463 = vst [vmem:[#allocation2 + $0xa0] sm:$0xff] 0.0
          %464 = vst [vmem:[#allocation2 + $0xa8] sm:$0xff] 0.0
          %465 = vst [vmem:[#allocation2 + $0xb0] sm:$0xff] 0.0
          %466 = vst [vmem:[#allocation2 + $0xb8] sm:$0xff] 0.0
          %467 = vst [vmem:[#allocation2 + $0xc0] sm:$0xff] 0.0
          %468 = vst [vmem:[#allocation2 + $0xc8] sm:$0xff] 0.0
          %469 = vst [vmem:[#allocation2 + $0xd0] sm:$0xff] 0.0
          %470 = vst [vmem:[#allocation2 + $0xd8] sm:$0xff] 0.0
          %471 = vst [vmem:[#allocation2 + $0xe0] sm:$0xff] 0.0
          %472 = vst [vmem:[#allocation2 + $0xe8] sm:$0xff] 0.0
          %473 = vst [vmem:[#allocation2 + $0xf0] sm:$0xff] 0.0
          %474 = vst [vmem:[#allocation2 + $0xf8] sm:$0xff] 0.0
        $region78: #{extra_layers_forward.9} parent=69 // pred_fallthru
          _
        %v475 = vld [vmem:[#allocation2] sm:$0xff]
        %v476 = vld [vmem:[#allocation2 + $0x8] sm:$0xff]
        %v477 = vld [vmem:[#allocation2 + $0x10] sm:$0xff]
        %v478 = vld [vmem:[#allocation2 + $0x18] sm:$0xff]
        %v479 = vld [vmem:[#allocation2 + $0x20] sm:$0xff]
        %v480 = vld [vmem:[#allocation2 + $0x28] sm:$0xff]
        %v481 = vld [vmem:[#allocation2 + $0x30] sm:$0xff]
        %v482 = vld [vmem:[#allocation2 + $0x38] sm:$0xff]
        %v483 = vld [vmem:[#allocation2 + $0x40] sm:$0xff]
        %v484 = vld [vmem:[#allocation2 + $0x48] sm:$0xff]
        %v485 = vld [vmem:[#allocation2 + $0x50] sm:$0xff]
        %v486 = vld [vmem:[#allocation2 + $0x58] sm:$0xff]
        %v487 = vld [vmem:[#allocation2 + $0x60] sm:$0xff]
        %v488 = vld [vmem:[#allocation2 + $0x68] sm:$0xff]
        %v489 = vld [vmem:[#allocation2 + $0x70] sm:$0xff]
        %v490 = vld [vmem:[#allocation2 + $0x78] sm:$0xff]
        %v491 = vld [vmem:[#allocation2 + $0x80] sm:$0xff]
        %v492 = vld [vmem:[#allocation2 + $0x88] sm:$0xff]
        %v493 = vld [vmem:[#allocation2 + $0x90] sm:$0xff]
        %v494 = vld [vmem:[#allocation2 + $0x98] sm:$0xff]
        %v495 = vld [vmem:[#allocation2 + $0xa0] sm:$0xff]
        %v496 = vld [vmem:[#allocation2 + $0xa8] sm:$0xff]
        %v497 = vld [vmem:[#allocation2 + $0xb0] sm:$0xff]
        %v498 = vld [vmem:[#allocation2 + $0xb8] sm:$0xff]
        %v499 = vld [vmem:[#allocation2 + $0xc0] sm:$0xff]
        %v500 = vld [vmem:[#allocation2 + $0xc8] sm:$0xff]
        %v501 = vld [vmem:[#allocation2 + $0xd0] sm:$0xff]
        %v502 = vld [vmem:[#allocation2 + $0xd8] sm:$0xff]
        %v503 = vld [vmem:[#allocation2 + $0xe0] sm:$0xff]
        %v504 = vld [vmem:[#allocation2 + $0xe8] sm:$0xff]
        %v505 = vld [vmem:[#allocation2 + $0xf0] sm:$0xff]
        %v506 = vld [vmem:[#allocation2 + $0xf8] sm:$0xff]
        %v507 = vld [vmem:[%s347] sm:$0xff]
        %v508 = vld [vmem:[%s347 + $0x8] sm:$0xff]
        %v509 = vld [vmem:[%s347 + $0x10] sm:$0xff]
        %v510 = vld [vmem:[%s347 + $0x18] sm:$0xff]
        %v511 = vld [vmem:[%s347 + $0x20] sm:$0xff]
        %v512 = vld [vmem:[%s347 + $0x28] sm:$0xff]
        %v513 = vld [vmem:[%s347 + $0x30] sm:$0xff]
        %v514 = vld [vmem:[%s347 + $0x38] sm:$0xff]
        %v515 = vld [vmem:[%s347 + $0x40] sm:$0xff]
        %v516 = vld [vmem:[%s347 + $0x48] sm:$0xff]
        %v517 = vld [vmem:[%s347 + $0x50] sm:$0xff]
        %v518 = vld [vmem:[%s347 + $0x58] sm:$0xff]
        %v519 = vld [vmem:[%s347 + $0x60] sm:$0xff]
        %v520 = vld [vmem:[%s347 + $0x68] sm:$0xff]
        %v521 = vld [vmem:[%s347 + $0x70] sm:$0xff]
        %v522 = vld [vmem:[%s347 + $0x78] sm:$0xff]
        %v523 = vld [vmem:[%s412] sm:$0xff]
        %v524 = vld [vmem:[%s412 + $0x8] sm:$0xff]
        %v525 = vld [vmem:[%s412 + $0x10] sm:$0xff]
        %v526 = vld [vmem:[%s412 + $0x18] sm:$0xff]
        %v527 = vld [vmem:[%s412 + $0x20] sm:$0xff]
        %v528 = vld [vmem:[%s412 + $0x28] sm:$0xff]
        %v529 = vld [vmem:[%s412 + $0x30] sm:$0xff]
        %v530 = vld [vmem:[%s412 + $0x38] sm:$0xff]
        %v531 = vld [vmem:[%s412 + $0x40] sm:$0xff]
        %v532 = vld [vmem:[%s412 + $0x48] sm:$0xff]
        %v533 = vld [vmem:[%s412 + $0x50] sm:$0xff]
        %v534 = vld [vmem:[%s412 + $0x58] sm:$0xff]
        %v535 = vld [vmem:[%s412 + $0x60] sm:$0xff]
        %v536 = vld [vmem:[%s412 + $0x68] sm:$0xff]
        %v537 = vld [vmem:[%s412 + $0x70] sm:$0xff]
        %v538 = vld [vmem:[%s412 + $0x78] sm:$0xff]
        %v539 = vld [vmem:[%s412 + $0x80] sm:$0xff]
        %v540 = vld [vmem:[%s412 + $0x88] sm:$0xff]
        %v541 = vld [vmem:[%s412 + $0x90] sm:$0xff]
        %v542 = vld [vmem:[%s412 + $0x98] sm:$0xff]
        %v543 = vld [vmem:[%s412 + $0xa0] sm:$0xff]
        %v544 = vld [vmem:[%s412 + $0xa8] sm:$0xff]
        %v545 = vld [vmem:[%s412 + $0xb0] sm:$0xff]
        %v546 = vld [vmem:[%s412 + $0xb8] sm:$0xff]
        %v547 = vld [vmem:[%s412 + $0xc0] sm:$0xff]
        %v548 = vld [vmem:[%s412 + $0xc8] sm:$0xff]
        %v549 = vld [vmem:[%s412 + $0xd0] sm:$0xff]
        %v550 = vld [vmem:[%s412 + $0xd8] sm:$0xff]
        %v551 = vld [vmem:[%s412 + $0xe0] sm:$0xff]
        %v552 = vld [vmem:[%s412 + $0xe8] sm:$0xff]
        %v553 = vld [vmem:[%s412 + $0xf0] sm:$0xff]
        %v554 = vld [vmem:[%s412 + $0xf8] sm:$0xff]
        %v571 = vunpack.c.l.b16 %v507
        %v572 = vunpack.c.h.b16 %v507
        %v573 = vunpack.c.l.b16 %v508
        %v574 = vunpack.c.h.b16 %v508
        %v575 = vunpack.c.l.b16 %v509
        %v576 = vunpack.c.h.b16 %v509
        %v577 = vunpack.c.l.b16 %v510
        %v578 = vunpack.c.h.b16 %v510
        %v579 = vunpack.c.l.b16 %v511
        %v580 = vunpack.c.h.b16 %v511
        %v581 = vunpack.c.l.b16 %v512
        %v582 = vunpack.c.h.b16 %v512
        %v583 = vunpack.c.l.b16 %v513
        %v584 = vunpack.c.h.b16 %v513
        %v585 = vunpack.c.l.b16 %v514
        %v586 = vunpack.c.h.b16 %v514
        %v587 = vunpack.c.l.b16 %v515
        %v588 = vunpack.c.h.b16 %v515
        %v589 = vunpack.c.l.b16 %v516
        %v590 = vunpack.c.h.b16 %v516
        %v591 = vunpack.c.l.b16 %v517
        %v592 = vunpack.c.h.b16 %v517
        %v593 = vunpack.c.l.b16 %v518
        %v594 = vunpack.c.h.b16 %v518
        %v595 = vunpack.c.l.b16 %v519
        %v596 = vunpack.c.h.b16 %v519
        %v597 = vunpack.c.l.b16 %v520
        %v598 = vunpack.c.h.b16 %v520
        %v599 = vunpack.c.l.b16 %v521
        %v600 = vunpack.c.h.b16 %v521
        %v601 = vunpack.c.l.b16 %v522
        %v602 = vunpack.c.h.b16 %v522
        %v603 = vpack.c.b16 %v573, %v571
        %v604 = vpack.c.b16 %v574, %v572
        %v605 = vpack.c.b16 %v577, %v575
        %v606 = vpack.c.b16 %v578, %v576
        %v607 = vpack.c.b16 %v581, %v579
        %v608 = vpack.c.b16 %v582, %v580
        %v609 = vpack.c.b16 %v585, %v583
        %v610 = vpack.c.b16 %v586, %v584
        %v611 = vpack.c.b16 %v589, %v587
        %v612 = vpack.c.b16 %v590, %v588
        %v613 = vpack.c.b16 %v593, %v591
        %v614 = vpack.c.b16 %v594, %v592
        %v615 = vpack.c.b16 %v597, %v595
        %v616 = vpack.c.b16 %v598, %v596
        %v617 = vpack.c.b16 %v601, %v599
        %v618 = vpack.c.b16 %v602, %v600
        %v667 = vunpack.c.l.b16 %v523
        %v668 = vunpack.c.h.b16 %v523
        %v669 = vunpack.c.l.b16 %v524
        %v670 = vunpack.c.h.b16 %v524
        %v671 = vunpack.c.l.b16 %v525
        %v672 = vunpack.c.h.b16 %v525
        %v673 = vunpack.c.l.b16 %v526
        %v674 = vunpack.c.h.b16 %v526
        %v675 = vunpack.c.l.b16 %v527
        %v676 = vunpack.c.h.b16 %v527
        %v677 = vunpack.c.l.b16 %v528
        %v678 = vunpack.c.h.b16 %v528
        %v679 = vunpack.c.l.b16 %v529
        %v680 = vunpack.c.h.b16 %v529
        %v681 = vunpack.c.l.b16 %v530
        %v682 = vunpack.c.h.b16 %v530
        %v683 = vunpack.c.l.b16 %v531
        %v684 = vunpack.c.h.b16 %v531
        %v685 = vunpack.c.l.b16 %v532
        %v686 = vunpack.c.h.b16 %v532
        %v687 = vunpack.c.l.b16 %v533
        %v688 = vunpack.c.h.b16 %v533
        %v689 = vunpack.c.l.b16 %v534
        %v690 = vunpack.c.h.b16 %v534
        %v691 = vunpack.c.l.b16 %v535
        %v692 = vunpack.c.h.b16 %v535
        %v693 = vunpack.c.l.b16 %v536
        %v694 = vunpack.c.h.b16 %v536
        %v695 = vunpack.c.l.b16 %v537
        %v696 = vunpack.c.h.b16 %v537
        %v697 = vunpack.c.l.b16 %v538
        %v698 = vunpack.c.h.b16 %v538
        %v699 = vunpack.c.l.b16 %v539
        %v700 = vunpack.c.h.b16 %v539
        %v701 = vunpack.c.l.b16 %v540
        %v702 = vunpack.c.h.b16 %v540
        %v703 = vunpack.c.l.b16 %v541
        %v704 = vunpack.c.h.b16 %v541
        %v705 = vunpack.c.l.b16 %v542
        %v706 = vunpack.c.h.b16 %v542
        %v707 = vunpack.c.l.b16 %v543
        %v708 = vunpack.c.h.b16 %v543
        %v709 = vunpack.c.l.b16 %v544
        %v710 = vunpack.c.h.b16 %v544
        %v711 = vunpack.c.l.b16 %v545
        %v712 = vunpack.c.h.b16 %v545
        %v713 = vunpack.c.l.b16 %v546
        %v714 = vunpack.c.h.b16 %v546
        %v715 = vunpack.c.l.b16 %v547
        %v716 = vunpack.c.h.b16 %v547
        %v717 = vunpack.c.l.b16 %v548
        %v718 = vunpack.c.h.b16 %v548
        %v719 = vunpack.c.l.b16 %v549
        %v720 = vunpack.c.h.b16 %v549
        %v721 = vunpack.c.l.b16 %v550
        %v722 = vunpack.c.h.b16 %v550
        %v723 = vunpack.c.l.b16 %v551
        %v724 = vunpack.c.h.b16 %v551
        %v725 = vunpack.c.l.b16 %v552
        %v726 = vunpack.c.h.b16 %v552
        %v727 = vunpack.c.l.b16 %v553
        %v728 = vunpack.c.h.b16 %v553
        %v729 = vunpack.c.l.b16 %v554
        %v730 = vunpack.c.h.b16 %v554
        %v731 = vpack.c.b16 %v669, %v667
        %v732 = vpack.c.b16 %v670, %v668
        %v733 = vpack.c.b16 %v673, %v671
        %v734 = vpack.c.b16 %v674, %v672
        %v735 = vpack.c.b16 %v677, %v675
        %v736 = vpack.c.b16 %v678, %v676
        %v737 = vpack.c.b16 %v681, %v679
        %v738 = vpack.c.b16 %v682, %v680
        %v739 = vpack.c.b16 %v685, %v683
        %v740 = vpack.c.b16 %v686, %v684
        %v741 = vpack.c.b16 %v689, %v687
        %v742 = vpack.c.b16 %v690, %v688
        %v743 = vpack.c.b16 %v693, %v691
        %v744 = vpack.c.b16 %v694, %v692
        %v745 = vpack.c.b16 %v697, %v695
        %v746 = vpack.c.b16 %v698, %v696
        %v747 = vpack.c.b16 %v701, %v699
        %v748 = vpack.c.b16 %v702, %v700
        %v749 = vpack.c.b16 %v705, %v703
        %v750 = vpack.c.b16 %v706, %v704
        %v751 = vpack.c.b16 %v709, %v707
        %v752 = vpack.c.b16 %v710, %v708
        %v753 = vpack.c.b16 %v713, %v711
        %v754 = vpack.c.b16 %v714, %v712
        %v755 = vpack.c.b16 %v717, %v715
        %v756 = vpack.c.b16 %v718, %v716
        %v757 = vpack.c.b16 %v721, %v719
        %v758 = vpack.c.b16 %v722, %v720
        %v759 = vpack.c.b16 %v725, %v723
        %v760 = vpack.c.b16 %v726, %v724
        %v761 = vpack.c.b16 %v729, %v727
        %v762 = vpack.c.b16 %v730, %v728
        %795 = vmatprep.subr.bf16.mxu0 %v732
        %796 = vmatpush1.bf16.msra.mxu0 %v731
        %797 = vmatprep.subr.bf16.mxu0 %v734
        %798 = vmatpush1.bf16.msra.mxu0 %v733
        %799 = vmatprep.subr.bf16.mxu0 %v736
        %800 = vmatpush1.bf16.msra.mxu0 %v735
        %801 = vmatprep.subr.bf16.mxu0 %v738
        %802 = vmatpush1.bf16.msra.mxu0 %v737
        %803 = vmatprep.subr.bf16.mxu0 %v740
        %804 = vmatpush1.bf16.msra.mxu0 %v739
        %805 = vmatprep.subr.bf16.mxu0 %v742
        %806 = vmatpush1.bf16.msra.mxu0 %v741
        %807 = vmatprep.subr.bf16.mxu0 %v744
        %808 = vmatpush1.bf16.msra.mxu0 %v743
        %809 = vmatprep.subr.bf16.mxu0 %v746
        %810 = vmatpush1.bf16.msra.mxu0 %v745
        %811 = vmatprep.subr.bf16.mxu0 %v748
        %812 = vmatpush1.bf16.msra.mxu0 %v747
        %813 = vmatprep.subr.bf16.mxu0 %v750
        %814 = vmatpush1.bf16.msra.mxu0 %v749
        %815 = vmatprep.subr.bf16.mxu0 %v752
        %816 = vmatpush1.bf16.msra.mxu0 %v751
        %817 = vmatprep.subr.bf16.mxu0 %v754
        %818 = vmatpush1.bf16.msra.mxu0 %v753
        %819 = vmatprep.subr.bf16.mxu0 %v756
        %820 = vmatpush1.bf16.msra.mxu0 %v755
        %821 = vmatprep.subr.bf16.mxu0 %v758
        %822 = vmatpush1.bf16.msra.mxu0 %v757
        %823 = vmatprep.subr.bf16.mxu0 %v760
        %824 = vmatpush1.bf16.msra.mxu0 %v759
        %825 = vmatprep.subr.bf16.mxu0 %v762
        %826 = vmatpush1.bf16.msra.mxu0 %v761
        %827 = vmatprep.mubr.bf16.mxu0 %v604
        %828 = vmatmul.mubr.bf16.gmra.mrb[0].mxu0 %v603
        %v829 = vpop.f32.mrb[0].mxu0
        %v830 = vadd.f32 0.0, %v829
        %v831 = vpop.f32.mrb[0].mxu0
        %v832 = vadd.f32 0.0, %v831
        %v833 = vpop.f32.mrb[0].mxu0
        %v834 = vadd.f32 0.0, %v833
        %v835 = vpop.f32.mrb[0].mxu0
        %v836 = vadd.f32 0.0, %v835
        %837 = vmatprep.mubr.bf16.mxu0 %v606
        %838 = vmatmul.mubr.bf16.gmra.mrb[0].mxu0 %v605
        %v839 = vpop.f32.mrb[0].mxu0
        %v840 = vadd.f32 0.0, %v839
        %v841 = vpop.f32.mrb[0].mxu0
        %v842 = vadd.f32 0.0, %v841
        %v843 = vpop.f32.mrb[0].mxu0
        %v844 = vadd.f32 0.0, %v843
        %v845 = vpop.f32.mrb[0].mxu0
        %v846 = vadd.f32 0.0, %v845
        %847 = vmatprep.mubr.bf16.mxu0 %v608
        %848 = vmatmul.mubr.bf16.gmra.mrb[0].mxu0 %v607
        %v849 = vpop.f32.mrb[0].mxu0
        %v850 = vadd.f32 0.0, %v849
        %v851 = vpop.f32.mrb[0].mxu0
        %v852 = vadd.f32 0.0, %v851
        %v853 = vpop.f32.mrb[0].mxu0
        %v854 = vadd.f32 0.0, %v853
        %v855 = vpop.f32.mrb[0].mxu0
        %v856 = vadd.f32 0.0, %v855
        %857 = vmatprep.mubr.bf16.mxu0 %v610
        %858 = vmatmul.mubr.bf16.gmra.mrb[0].mxu0 %v609
        %v859 = vpop.f32.mrb[0].mxu0
        %v860 = vadd.f32 0.0, %v859
        %v861 = vpop.f32.mrb[0].mxu0
        %v862 = vadd.f32 0.0, %v861
        %v863 = vpop.f32.mrb[0].mxu0
        %v864 = vadd.f32 0.0, %v863
        %v865 = vpop.f32.mrb[0].mxu0
        %v866 = vadd.f32 0.0, %v865
        %867 = vmatprep.mubr.bf16.mxu0 %v612
        %868 = vmatmul.mubr.bf16.gmra.mrb[0].mxu0 %v611
        %v869 = vpop.f32.mrb[0].mxu0
        %v870 = vadd.f32 0.0, %v869
        %v871 = vpop.f32.mrb[0].mxu0
        %v872 = vadd.f32 0.0, %v871
        %v873 = vpop.f32.mrb[0].mxu0
        %v874 = vadd.f32 0.0, %v873
        %v875 = vpop.f32.mrb[0].mxu0
        %v876 = vadd.f32 0.0, %v875
        %877 = vmatprep.mubr.bf16.mxu0 %v614
        %878 = vmatmul.mubr.bf16.gmra.mrb[0].mxu0 %v613
        %v879 = vpop.f32.mrb[0].mxu0
        %v880 = vadd.f32 0.0, %v879
        %v881 = vpop.f32.mrb[0].mxu0
        %v882 = vadd.f32 0.0, %v881
        %v883 = vpop.f32.mrb[0].mxu0
        %v884 = vadd.f32 0.0, %v883
        %v885 = vpop.f32.mrb[0].mxu0
        %v886 = vadd.f32 0.0, %v885
        %887 = vmatprep.mubr.bf16.mxu0 %v616
        %888 = vmatmul.mubr.bf16.gmra.mrb[0].mxu0 %v615
        %v889 = vpop.f32.mrb[0].mxu0
        %v890 = vadd.f32 0.0, %v889
        %v891 = vpop.f32.mrb[0].mxu0
        %v892 = vadd.f32 0.0, %v891
        %v893 = vpop.f32.mrb[0].mxu0
        %v894 = vadd.f32 0.0, %v893
        %v895 = vpop.f32.mrb[0].mxu0
        %v896 = vadd.f32 0.0, %v895
        %897 = vmatprep.mubr.bf16.mxu0 %v618
        %898 = vmatmul.mubr.bf16.gmra.mrb[0].mxu0 %v617
        %v899 = vpop.f32.mrb[0].mxu0
        %v900 = vadd.f32 0.0, %v899
        %v901 = vpop.f32.mrb[0].mxu0
        %v902 = vadd.f32 0.0, %v901
        %v903 = vpop.f32.mrb[0].mxu0
        %v904 = vadd.f32 0.0, %v903
        %v905 = vpop.f32.mrb[0].mxu0
        %v906 = vadd.f32 0.0, %v905
        %907 = vdwg.mxu0
        %v908 = vadd.f32 %v475, %v830
        %v909 = vadd.f32 %v476, %v832
        %v910 = vadd.f32 %v477, %v834
        %v911 = vadd.f32 %v478, %v836
        %v912 = vadd.f32 %v479, %v840
        %v913 = vadd.f32 %v480, %v842
        %v914 = vadd.f32 %v481, %v844
        %v915 = vadd.f32 %v482, %v846
        %v916 = vadd.f32 %v483, %v850
        %v917 = vadd.f32 %v484, %v852
        %v918 = vadd.f32 %v485, %v854
        %v919 = vadd.f32 %v486, %v856
        %v920 = vadd.f32 %v487, %v860
        %v921 = vadd.f32 %v488, %v862
        %v922 = vadd.f32 %v489, %v864
        %v923 = vadd.f32 %v490, %v866
        %v924 = vadd.f32 %v491, %v870
        %v925 = vadd.f32 %v492, %v872
        %v926 = vadd.f32 %v493, %v874
        %v927 = vadd.f32 %v494, %v876
        %v928 = vadd.f32 %v495, %v880
        %v929 = vadd.f32 %v496, %v882
        %v930 = vadd.f32 %v497, %v884
        %v931 = vadd.f32 %v498, %v886
        %v932 = vadd.f32 %v499, %v890
        %v933 = vadd.f32 %v500, %v892
        %v934 = vadd.f32 %v501, %v894
        %v935 = vadd.f32 %v502, %v896
        %v936 = vadd.f32 %v503, %v900
        %v937 = vadd.f32 %v504, %v902
        %v938 = vadd.f32 %v505, %v904
        %v939 = vadd.f32 %v506, %v906
        %940 = vst [vmem:[#allocation2] sm:$0xff] %v908
        %941 = vst [vmem:[#allocation2 + $0x8] sm:$0xff] %v909
        %942 = vst [vmem:[#allocation2 + $0x10] sm:$0xff] %v910
        %943 = vst [vmem:[#allocation2 + $0x18] sm:$0xff] %v911
        %944 = vst [vmem:[#allocation2 + $0x20] sm:$0xff] %v912
        %945 = vst [vmem:[#allocation2 + $0x28] sm:$0xff] %v913
        %946 = vst [vmem:[#allocation2 + $0x30] sm:$0xff] %v914
        %947 = vst [vmem:[#allocation2 + $0x38] sm:$0xff] %v915
        %948 = vst [vmem:[#allocation2 + $0x40] sm:$0xff] %v916
        %949 = vst [vmem:[#allocation2 + $0x48] sm:$0xff] %v917
        %950 = vst [vmem:[#allocation2 + $0x50] sm:$0xff] %v918
        %951 = vst [vmem:[#allocation2 + $0x58] sm:$0xff] %v919
        %952 = vst [vmem:[#allocation2 + $0x60] sm:$0xff] %v920
        %953 = vst [vmem:[#allocation2 + $0x68] sm:$0xff] %v921
        %954 = vst [vmem:[#allocation2 + $0x70] sm:$0xff] %v922
        %955 = vst [vmem:[#allocation2 + $0x78] sm:$0xff] %v923
        %956 = vst [vmem:[#allocation2 + $0x80] sm:$0xff] %v924
        %957 = vst [vmem:[#allocation2 + $0x88] sm:$0xff] %v925
        %958 = vst [vmem:[#allocation2 + $0x90] sm:$0xff] %v926
        %959 = vst [vmem:[#allocation2 + $0x98] sm:$0xff] %v927
        %960 = vst [vmem:[#allocation2 + $0xa0] sm:$0xff] %v928
        %961 = vst [vmem:[#allocation2 + $0xa8] sm:$0xff] %v929
        %962 = vst [vmem:[#allocation2 + $0xb0] sm:$0xff] %v930
        %963 = vst [vmem:[#allocation2 + $0xb8] sm:$0xff] %v931
        %964 = vst [vmem:[#allocation2 + $0xc0] sm:$0xff] %v932
        %965 = vst [vmem:[#allocation2 + $0xc8] sm:$0xff] %v933
        %966 = vst [vmem:[#allocation2 + $0xd0] sm:$0xff] %v934
        %967 = vst [vmem:[#allocation2 + $0xd8] sm:$0xff] %v935
        %968 = vst [vmem:[#allocation2 + $0xe0] sm:$0xff] %v936
        %969 = vst [vmem:[#allocation2 + $0xe8] sm:$0xff] %v937
        %970 = vst [vmem:[#allocation2 + $0xf0] sm:$0xff] %v938
        %971 = vst [vmem:[#allocation2 + $0xf8] sm:$0xff] %v939
        %p972 = scmp.eq.s32.totalorder %s24, 1
        %p973 = pnand %p437, %p972
        %p974 = pneg %p973
        // Predicated region
        $region79: #{extra_layers_forward.9} parent=69 // pred_check
          _
        $region80: #{extra_layers_forward.9} parent=69 // pred_check_branch
          %976 = sbr.rel (%p973) target = $region82
        $region81: #{extra_layers_forward.9} parent=69 // pred_region
          %v977 = vld [vmem:[#allocation2] sm:$0xff]
          %v978 = vld [vmem:[#allocation2 + $0x8] sm:$0xff]
          %v979 = vld [vmem:[#allocation2 + $0x10] sm:$0xff]
          %v980 = vld [vmem:[#allocation2 + $0x18] sm:$0xff]
          %v981 = vld [vmem:[#allocation2 + $0x20] sm:$0xff]
          %v982 = vld [vmem:[#allocation2 + $0x28] sm:$0xff]
          %v983 = vld [vmem:[#allocation2 + $0x30] sm:$0xff]
          %v984 = vld [vmem:[#allocation2 + $0x38] sm:$0xff]
          %v985 = vld [vmem:[#allocation2 + $0x40] sm:$0xff]
          %v986 = vld [vmem:[#allocation2 + $0x48] sm:$0xff]
          %v987 = vld [vmem:[#allocation2 + $0x50] sm:$0xff]
          %v988 = vld [vmem:[#allocation2 + $0x58] sm:$0xff]
          %v989 = vld [vmem:[#allocation2 + $0x60] sm:$0xff]
          %v990 = vld [vmem:[#allocation2 + $0x68] sm:$0xff]
          %v991 = vld [vmem:[#allocation2 + $0x70] sm:$0xff]
          %v992 = vld [vmem:[#allocation2 + $0x78] sm:$0xff]
          %v993 = vld [vmem:[#allocation2 + $0x80] sm:$0xff]
          %v994 = vld [vmem:[#allocation2 + $0x88] sm:$0xff]
          %v995 = vld [vmem:[#allocation2 + $0x90] sm:$0xff]
          %v996 = vld [vmem:[#allocation2 + $0x98] sm:$0xff]
          %v997 = vld [vmem:[#allocation2 + $0xa0] sm:$0xff]
          %v998 = vld [vmem:[#allocation2 + $0xa8] sm:$0xff]
          %v999 = vld [vmem:[#allocation2 + $0xb0] sm:$0xff]
          %v1000 = vld [vmem:[#allocation2 + $0xb8] sm:$0xff]
          %v1001 = vld [vmem:[#allocation2 + $0xc0] sm:$0xff]
          %v1002 = vld [vmem:[#allocation2 + $0xc8] sm:$0xff]
          %v1003 = vld [vmem:[#allocation2 + $0xd0] sm:$0xff]
          %v1004 = vld [vmem:[#allocation2 + $0xd8] sm:$0xff]
          %v1005 = vld [vmem:[#allocation2 + $0xe0] sm:$0xff]
          %v1006 = vld [vmem:[#allocation2 + $0xe8] sm:$0xff]
          %v1007 = vld [vmem:[#allocation2 + $0xf0] sm:$0xff]
          %v1008 = vld [vmem:[#allocation2 + $0xf8] sm:$0xff]
          %v1009 = vld [vmem:[%s418] sm:$0x3]
          %v1011 = vlaneseq
          %v1012 = vshrl.u32 %v1011, 7
          %v1013 = vsub.s32 0, %v1012
          %v1014 = vrot.slane %v1009, %v1013
          %v1015 = vlaneseq
          %v1016 = vshrl.u32 %v1015, 7
          %v1017 = vsub.s32 1, %v1016
          %v1018 = vrot.slane %v1009, %v1017
          %v1021 = vmul.f32 %v977, %v1014
          %v1022 = vmul.f32 %v978, %v1018
          %v1023 = vmul.f32 %v979, %v1014
          %v1024 = vmul.f32 %v980, %v1018
          %v1025 = vmul.f32 %v981, %v1014
          %v1026 = vmul.f32 %v982, %v1018
          %v1027 = vmul.f32 %v983, %v1014
          %v1028 = vmul.f32 %v984, %v1018
          %v1029 = vmul.f32 %v985, %v1014
          %v1030 = vmul.f32 %v986, %v1018
          %v1031 = vmul.f32 %v987, %v1014
          %v1032 = vmul.f32 %v988, %v1018
          %v1033 = vmul.f32 %v989, %v1014
          %v1034 = vmul.f32 %v990, %v1018
          %v1035 = vmul.f32 %v991, %v1014
          %v1036 = vmul.f32 %v992, %v1018
          %v1037 = vmul.f32 %v993, %v1014
          %v1038 = vmul.f32 %v994, %v1018
          %v1039 = vmul.f32 %v995, %v1014
          %v1040 = vmul.f32 %v996, %v1018
          %v1041 = vmul.f32 %v997, %v1014
          %v1042 = vmul.f32 %v998, %v1018
          %v1043 = vmul.f32 %v999, %v1014
          %v1044 = vmul.f32 %v1000, %v1018
          %v1045 = vmul.f32 %v1001, %v1014
          %v1046 = vmul.f32 %v1002, %v1018
          %v1047 = vmul.f32 %v1003, %v1014
          %v1048 = vmul.f32 %v1004, %v1018
          %v1049 = vmul.f32 %v1005, %v1014
          %v1050 = vmul.f32 %v1006, %v1018
          %v1051 = vmul.f32 %v1007, %v1014
          %v1052 = vmul.f32 %v1008, %v1018
          %v1053 = vld [vmem:[%s423] sm:$0x3]
          %v1055 = vlaneseq
          %v1056 = vshrl.u32 %v1055, 7
          %v1057 = vsub.s32 0, %v1056
          %v1058 = vrot.slane %v1053, %v1057
          %v1059 = vlaneseq
          %v1060 = vshrl.u32 %v1059, 7
          %v1061 = vsub.s32 1, %v1060
          %v1062 = vrot.slane %v1053, %v1061
          %v1065 = vadd.f32 %v1021, %v1058
          %v1066 = vadd.f32 %v1022, %v1062
          %v1067 = vadd.f32 %v1023, %v1058
          %v1068 = vadd.f32 %v1024, %v1062
          %v1069 = vadd.f32 %v1025, %v1058
          %v1070 = vadd.f32 %v1026, %v1062
          %v1071 = vadd.f32 %v1027, %v1058
          %v1072 = vadd.f32 %v1028, %v1062
          %v1073 = vadd.f32 %v1029, %v1058
          %v1074 = vadd.f32 %v1030, %v1062
          %v1075 = vadd.f32 %v1031, %v1058
          %v1076 = vadd.f32 %v1032, %v1062
          %v1077 = vadd.f32 %v1033, %v1058
          %v1078 = vadd.f32 %v1034, %v1062
          %v1079 = vadd.f32 %v1035, %v1058
          %v1080 = vadd.f32 %v1036, %v1062
          %v1081 = vadd.f32 %v1037, %v1058
          %v1082 = vadd.f32 %v1038, %v1062
          %v1083 = vadd.f32 %v1039, %v1058
          %v1084 = vadd.f32 %v1040, %v1062
          %v1085 = vadd.f32 %v1041, %v1058
          %v1086 = vadd.f32 %v1042, %v1062
          %v1087 = vadd.f32 %v1043, %v1058
          %v1088 = vadd.f32 %v1044, %v1062
          %v1089 = vadd.f32 %v1045, %v1058
          %v1090 = vadd.f32 %v1046, %v1062
          %v1091 = vadd.f32 %v1047, %v1058
          %v1092 = vadd.f32 %v1048, %v1062
          %v1093 = vadd.f32 %v1049, %v1058
          %v1094 = vadd.f32 %v1050, %v1062
          %v1095 = vadd.f32 %v1051, %v1058
          %v1096 = vadd.f32 %v1052, %v1062
          %v1097 = vmax.f32 %v1065, 0.0
          %v1098 = vmax.f32 %v1066, 0.0
          %v1099 = vmax.f32 %v1067, 0.0
          %v1100 = vmax.f32 %v1068, 0.0
          %v1101 = vmax.f32 %v1069, 0.0
          %v1102 = vmax.f32 %v1070, 0.0
          %v1103 = vmax.f32 %v1071, 0.0
          %v1104 = vmax.f32 %v1072, 0.0
          %v1105 = vmax.f32 %v1073, 0.0
          %v1106 = vmax.f32 %v1074, 0.0
          %v1107 = vmax.f32 %v1075, 0.0
          %v1108 = vmax.f32 %v1076, 0.0
          %v1109 = vmax.f32 %v1077, 0.0
          %v1110 = vmax.f32 %v1078, 0.0
          %v1111 = vmax.f32 %v1079, 0.0
          %v1112 = vmax.f32 %v1080, 0.0
          %v1113 = vmax.f32 %v1081, 0.0
          %v1114 = vmax.f32 %v1082, 0.0
          %v1115 = vmax.f32 %v1083, 0.0
          %v1116 = vmax.f32 %v1084, 0.0
          %v1117 = vmax.f32 %v1085, 0.0
          %v1118 = vmax.f32 %v1086, 0.0
          %v1119 = vmax.f32 %v1087, 0.0
          %v1120 = vmax.f32 %v1088, 0.0
          %v1121 = vmax.f32 %v1089, 0.0
          %v1122 = vmax.f32 %v1090, 0.0
          %v1123 = vmax.f32 %v1091, 0.0
          %v1124 = vmax.f32 %v1092, 0.0
          %v1125 = vmax.f32 %v1093, 0.0
          %v1126 = vmax.f32 %v1094, 0.0
          %v1127 = vmax.f32 %v1095, 0.0
          %v1128 = vmax.f32 %v1096, 0.0
          %1129 = vst [vmem:[%s434] sm:$0xff] %v1097
          %1130 = vst [vmem:[%s434 + $0x8] sm:$0xff] %v1098
          %1131 = vst [vmem:[%s434 + $0x10] sm:$0xff] %v1099
          %1132 = vst [vmem:[%s434 + $0x18] sm:$0xff] %v1100
          %1133 = vst [vmem:[%s434 + $0x20] sm:$0xff] %v1101
          %1134 = vst [vmem:[%s434 + $0x28] sm:$0xff] %v1102
          %1135 = vst [vmem:[%s434 + $0x30] sm:$0xff] %v1103
          %1136 = vst [vmem:[%s434 + $0x38] sm:$0xff] %v1104
          %1137 = vst [vmem:[%s434 + $0x40] sm:$0xff] %v1105
          %1138 = vst [vmem:[%s434 + $0x48] sm:$0xff] %v1106
          %1139 = vst [vmem:[%s434 + $0x50] sm:$0xff] %v1107
          %1140 = vst [vmem:[%s434 + $0x58] sm:$0xff] %v1108
          %1141 = vst [vmem:[%s434 + $0x60] sm:$0xff] %v1109
          %1142 = vst [vmem:[%s434 + $0x68] sm:$0xff] %v1110
          %1143 = vst [vmem:[%s434 + $0x70] sm:$0xff] %v1111
          %1144 = vst [vmem:[%s434 + $0x78] sm:$0xff] %v1112
          %1145 = vst [vmem:[%s434 + $0x80] sm:$0xff] %v1113
          %1146 = vst [vmem:[%s434 + $0x88] sm:$0xff] %v1114
          %1147 = vst [vmem:[%s434 + $0x90] sm:$0xff] %v1115
          %1148 = vst [vmem:[%s434 + $0x98] sm:$0xff] %v1116
          %1149 = vst [vmem:[%s434 + $0xa0] sm:$0xff] %v1117
          %1150 = vst [vmem:[%s434 + $0xa8] sm:$0xff] %v1118
          %1151 = vst [vmem:[%s434 + $0xb0] sm:$0xff] %v1119
          %1152 = vst [vmem:[%s434 + $0xb8] sm:$0xff] %v1120
          %1153 = vst [vmem:[%s434 + $0xc0] sm:$0xff] %v1121
          %1154 = vst [vmem:[%s434 + $0xc8] sm:$0xff] %v1122
          %1155 = vst [vmem:[%s434 + $0xd0] sm:$0xff] %v1123
          %1156 = vst [vmem:[%s434 + $0xd8] sm:$0xff] %v1124
          %1157 = vst [vmem:[%s434 + $0xe0] sm:$0xff] %v1125
          %1158 = vst [vmem:[%s434 + $0xe8] sm:$0xff] %v1126
          %1159 = vst [vmem:[%s434 + $0xf0] sm:$0xff] %v1127
          %1160 = vst [vmem:[%s434 + $0xf8] sm:$0xff] %v1128
        $region82: #{extra_layers_forward.9} parent=69 // pred_fallthru
          _
        %s1161 = smul.u32 16, %s21
        %s1162 = smul.u32 2, %s22
        %p1163 = scmp.lt.s32.totalorder %s1161, 15
        %s1164 = scalar_select %p1163, %s1161, 15
        %p1165 = scmp.lt.s32.totalorder %s1162, 1
        %s1166 = scalar_select %p1165, %s1162, 1
        %s1167 = smul.addr %s1164, 2
        %s1168 = sadd.s32 %s1166, %s1167
        %s1169 = smul.addr %s1168, 8
        %s1170 = scalar_lea.vmem %s4, %s1169
        // Predicated region
        $region83: #{extra_layers_forward.9} parent=69 // pred_check
          %p1171 = pneg %p173
        $region84: #{extra_layers_forward.9} parent=69 // pred_check_branch
          %1173 = sbr.rel (%p1171) target = $region86
        $region85: #{extra_layers_forward.9} parent=69 // pred_region
          %s1174 = smul.u32 16, %s21
          %s1175 = smul.u32 2, %s22
        $region86: #{extra_layers_forward.9} parent=69 // pred_fallthru
          _
        // Predicated region
        $region87: #{extra_layers_forward.9} parent=69 // pred_check
          %p1176 = pneg %p173
        $region88: #{extra_layers_forward.9} parent=69 // pred_check_branch
          %1178 = sbr.rel (%p1176) target = $region90
        $region89: #{extra_layers_forward.9} parent=69 // pred_region
          %s1179 = smul.u32 16, %s21
          %s1180 = smul.u32 2, %s22
          %p1181 = scmp.lt.s32.totalorder %s1179, 15
          %s1182 = scalar_select %p1181, %s1179, 15
          %p1183 = scmp.lt.s32.totalorder %s1180, 1
          %s1184 = scalar_select %p1183, %s1180, 1
          %s1185 = smul.addr %s1182, 2
          %s1186 = sadd.s32 %s1184, %s1185
          %s1187 = smul.addr %s1186, 8
          %s1188 = scalar_lea.vmem %s4, %s1187
        $region90: #{extra_layers_forward.9} parent=69 // pred_fallthru
          _
      $region70: #{extra_layers_forward.9} parent=5 // pred_fallthru
        _
      %p1189 = scmp.le.s32.totalorder 2, %s10
      // Predicated region
      $region91: #{extra_layers_forward.9} parent=5 // pred_check
        %p1190 = pneg %p1189
      $region92: #{extra_layers_forward.9} parent=5 // pred_check_branch
        %1192 = sbr.rel (%p1190) target = $region94
      $region93: #{extra_layers_forward.9} parent=5 // pred_region
        %s1193 = ssub.s32 %s10, 2
      $region94: #{extra_layers_forward.9} parent=5 // pred_fallthru
        _
    $region6: #{extra_layers_forward.9} parent=1 // loop_footer
      %s14 = sadd.s32 1, %s10
    $region7: #{extra_layers_forward.9} parent=1 // loop_footer_branch
      %9 = sbr.rel target = $region3
    $region8: #{extra_layers_forward.9} parent=1 // loop_exit
      _

// kernel: extra_layers_forward.10
$region0: #{extra_layers_forward.10}
  #allocation0 [shape = 'u32[]', space=smem, size = 0x4, offset = 0x4, fixed_abs, tag = 'smem constant byte address 0x4 - core index']
  #allocation1 [shape = 'u32[144,128]{1,0:T(1,128)}', space=vmem, size = 0x12000, scoped, tag = 'internal scratch']
  #allocation2 [shape = 'f32[32,256]{1,0:T(8,128)}', space=vmem, size = 0x8000, scoped, tag = 'scratch operand']
  %s0 = inlined_call_operand.vmem [shape: bf16[9,32,256], index: 0, kind: input, shape index: {}]
  %s1 = inlined_call_operand.vmem [shape: bf16[9,256,512], index: 1, kind: input, shape index: {}]
  %s2 = inlined_call_operand.vmem [shape: f32[1,512], index: 2, kind: input, shape index: {}]
  %s3 = inlined_call_operand.vmem [shape: f32[1,512], index: 3, kind: input, shape index: {}]
  %s4 = inlined_call_operand.vmem [shape: f32[32,512], index: 4, kind: output, shape index: {}]
  %s5 = sld [smem:[#allocation0]]
  $region114: #{extra_layers_forward.10} parent=0
    _
  %s7 = ssub.s32 1, %s5
  %s8 = scalar_select 0, %s7, %s5
  $region1: #{extra_layers_forward.10} parent=0
    #allocation3 [shape = 'u8[262144]{0}', space=vmem, size = 0x40000, scoped, tag = 'input window, operand 1']
    #allocation4 [shape = 'u8[65536]{0}', space=vmem, size = 0x10000, scoped, tag = 'output window, operand 0']
    loop: start=0, step=1, limit=20
    $region2: #{extra_layers_forward.10} parent=1 // loop_pre_header
      _
    $region3: #{extra_layers_forward.10} parent=1 // loop_header
      %s10 = sphi 0, %s14
      %p11 = scmp.ge.s32.totalorder %s10, 20
      %s17 = sphi 0, %s43
      %s18 = sphi 0, %s39
      %s19 = sphi 0, %s35
      %s20 = sphi 0, %s31
      %s21 = sphi 0, %s17
      %s22 = sphi 0, %s18
      %s23 = sphi 0, %s19
      %s24 = sphi 0, %s20
      %s25 = sphi 0, %s21
      %s26 = sphi 0, %s22
      %s27 = sphi 0, %s23
      %s28 = sphi 0, %s24
      %s50 = sphi 0, %s52
      %s53 = sphi 0, %s50
      %s54 = sphi 0, %s53
      %s70 = sphi 0, %s54
      %s80 = sphi 0, %s82
      %s83 = sphi 0, %s80
      %s84 = sphi 0, %s83
      %s100 = sphi 0, %s84
      %s106 = sphi 0, %s108
      %s109 = sphi 0, %s106
      %s110 = sphi 0, %s109
      %s126 = sphi 0, %s110
      %s132 = sphi 0, %s134
      %s135 = sphi 0, %s132
      %s136 = sphi 0, %s135
      %s152 = sphi 0, %s136
      %s160 = sphi 0, %s162
      %s163 = sphi 0, %s160
      %s164 = sphi 0, %s163
      %s180 = sphi 0, %s164
    $region4: #{extra_layers_forward.10} parent=1 // loop_header_branch
      %13 = sbr.rel (%p11) target = $region8
    $region5: #{extra_layers_forward.10} parent=1 // loop_body
      %s15 = ssub.s32 %s10, 1
      %s16 = ssub.s32 %s10, 2
      %s29 = sadd.s32 1, %s20
      %p30 = scmp.ge.s32.totalorder %s29, 1
      %s31 = scalar_select %p30, 0, %s29
      %s32 = sadd.s32 1, %s19
      %s33 = scalar_select %p30, %s32, %s19
      %p34 = scmp.ge.s32.totalorder %s33, 9
      %s35 = scalar_select %p34, 0, %s33
      %s36 = sadd.s32 1, %s18
      %s37 = scalar_select %p34, %s36, %s18
      %p38 = scmp.ge.s32.totalorder %s37, 2
      %s39 = scalar_select %p38, 0, %s37
      %s40 = sadd.s32 1, %s17
      %s41 = scalar_select %p38, %s40, %s17
      %p42 = scmp.ge.s32.totalorder %s41, 1
      %s43 = scalar_select %p42, 0, %s41
      %s44 = ssub.s32 %s19, %s35
      %s45 = ssub.s32 %s17, %s43
      %s46 = sor.u32 %s44, %s45
      %s47 = ssub.s32 %s20, %s31
      %s48 = sor.u32 %s46, %s47
      %p49 = scmp.eq.s32.totalorder %s48, 0
      %s51 = sadd.s32 %s50, 1
      %s52 = scalar_select %p49, %s50, %s51
      %p55 = pneg %p49
      %p56 = scmp.eq.s32.totalorder %s10, 17
      %p57 = por %p55, %p56
      %p58 = scmp.ne.s32.totalorder %s50, %s53
      %p59 = scmp.eq.s32.totalorder %s10, 0
      %p60 = por %p58, %p59
      %p61 = scmp.ne.s32.totalorder %s50, %s53
      %p62 = scmp.eq.s32.totalorder %s15, 17
      %p63 = por %p61, %p62
      %p64 = scmp.ne.s32.totalorder %s53, %s54
      %p65 = scmp.eq.s32.totalorder %s15, 0
      %p66 = por %p64, %p65
      %p67 = scmp.ne.s32.totalorder %s53, %s54
      %p68 = scmp.eq.s32.totalorder %s16, 17
      %p69 = por %p67, %p68
      %p71 = scmp.ne.s32.totalorder %s54, %s70
      %p72 = scmp.eq.s32.totalorder %s16, 0
      %p73 = por %p71, %p72
      %s74 = ssub.s32 %s19, %s35
      %s75 = ssub.s32 %s20, %s31
      %s76 = sor.u32 %s74, %s75
      %s77 = ssub.s32 %s18, %s39
      %s78 = sor.u32 %s76, %s77
      %p79 = scmp.eq.s32.totalorder %s78, 0
      %s81 = sadd.s32 %s80, 1
      %s82 = scalar_select %p79, %s80, %s81
      %p85 = pneg %p79
      %p86 = scmp.eq.s32.totalorder %s10, 17
      %p87 = por %p85, %p86
      %p88 = scmp.ne.s32.totalorder %s80, %s83
      %p89 = scmp.eq.s32.totalorder %s10, 0
      %p90 = por %p88, %p89
      %p91 = scmp.ne.s32.totalorder %s80, %s83
      %p92 = scmp.eq.s32.totalorder %s15, 17
      %p93 = por %p91, %p92
      %p94 = scmp.ne.s32.totalorder %s83, %s84
      %p95 = scmp.eq.s32.totalorder %s15, 0
      %p96 = por %p94, %p95
      %p97 = scmp.ne.s32.totalorder %s83, %s84
      %p98 = scmp.eq.s32.totalorder %s16, 17
      %p99 = por %p97, %p98
      %p101 = scmp.ne.s32.totalorder %s84, %s100
      %p102 = scmp.eq.s32.totalorder %s16, 0
      %p103 = por %p101, %p102
      %s104 = ssub.s32 %s18, %s39
      %p105 = scmp.eq.s32.totalorder %s104, 0
      %s107 = sadd.s32 %s106, 1
      %s108 = scalar_select %p105, %s106, %s107
      %p111 = pneg %p105
      %p112 = scmp.eq.s32.totalorder %s10, 17
      %p113 = por %p111, %p112
      %p114 = scmp.ne.s32.totalorder %s106, %s109
      %p115 = scmp.eq.s32.totalorder %s10, 0
      %p116 = por %p114, %p115
      %p117 = scmp.ne.s32.totalorder %s106, %s109
      %p118 = scmp.eq.s32.totalorder %s15, 17
      %p119 = por %p117, %p118
      %p120 = scmp.ne.s32.totalorder %s109, %s110
      %p121 = scmp.eq.s32.totalorder %s15, 0
      %p122 = por %p120, %p121
      %p123 = scmp.ne.s32.totalorder %s109, %s110
      %p124 = scmp.eq.s32.totalorder %s16, 17
      %p125 = por %p123, %p124
      %p127 = scmp.ne.s32.totalorder %s110, %s126
      %p128 = scmp.eq.s32.totalorder %s16, 0
      %p129 = por %p127, %p128
      %s130 = ssub.s32 %s18, %s39
      %p131 = scmp.eq.s32.totalorder %s130, 0
      %s133 = sadd.s32 %s132, 1
      %s134 = scalar_select %p131, %s132, %s133
      %p137 = pneg %p131
      %p138 = scmp.eq.s32.totalorder %s10, 17
      %p139 = por %p137, %p138
      %p140 = scmp.ne.s32.totalorder %s132, %s135
      %p141 = scmp.eq.s32.totalorder %s10, 0
      %p142 = por %p140, %p141
      %p143 = scmp.ne.s32.totalorder %s132, %s135
      %p144 = scmp.eq.s32.totalorder %s15, 17
      %p145 = por %p143, %p144
      %p146 = scmp.ne.s32.totalorder %s135, %s136
      %p147 = scmp.eq.s32.totalorder %s15, 0
      %p148 = por %p146, %p147
      %p149 = scmp.ne.s32.totalorder %s135, %s136
      %p150 = scmp.eq.s32.totalorder %s16, 17
      %p151 = por %p149, %p150
      %p153 = scmp.ne.s32.totalorder %s136, %s152
      %p154 = scmp.eq.s32.totalorder %s16, 0
      %p155 = por %p153, %p154
      %s156 = ssub.s32 %s17, %s43
      %s157 = ssub.s32 %s18, %s39
      %s158 = sor.u32 %s156, %s157
      %p159 = scmp.eq.s32.totalorder %s158, 0
      %s161 = sadd.s32 %s160, 1
      %s162 = scalar_select %p159, %s160, %s161
      %p165 = pneg %p159
      %p166 = scmp.eq.s32.totalorder %s10, 17
      %p167 = por %p165, %p166
      %p168 = scmp.ne.s32.totalorder %s160, %s163
      %p169 = scmp.eq.s32.totalorder %s10, 0
      %p170 = por %p168, %p169
      %p171 = scmp.ne.s32.totalorder %s160, %s163
      %p172 = scmp.eq.s32.totalorder %s15, 17
      %p173 = por %p171, %p172
      %p174 = scmp.ne.s32.totalorder %s163, %s164
      %p175 = scmp.eq.s32.totalorder %s15, 0
      %p176 = por %p174, %p175
      %p177 = scmp.ne.s32.totalorder %s163, %s164
      %p178 = scmp.eq.s32.totalorder %s16, 17
      %p179 = por %p177, %p178
      %p181 = scmp.ne.s32.totalorder %s164, %s180
      %p182 = scmp.eq.s32.totalorder %s16, 0
      %p183 = por %p181, %p182
      %p184 = scmp.le.s32.totalorder 1, %s10
      %p185 = scmp.lt.s32.totalorder %s10, 19
      %p186 = pnand %p184, %p185
      %p187 = pneg %p186
      // Predicated region
      $region9: #{extra_layers_forward.10} parent=5 // pred_check
        _
      $region10: #{extra_layers_forward.10} parent=5 // pred_check_branch
        %189 = sbr.rel (%p186) target = $region12
      $region11: #{extra_layers_forward.10} parent=5 // pred_region
        %s190 = ssub.s32 %s10, 1
      $region12: #{extra_layers_forward.10} parent=5 // pred_fallthru
        _
      %p191 = scmp.lt.s32.totalorder %s10, 18
      // Predicated region
      $region13: #{extra_layers_forward.10} parent=5 // pred_check
        %p192 = pneg %p191
      $region14: #{extra_layers_forward.10} parent=5 // pred_check_branch
        %194 = sbr.rel (%p192) target = $region16
      $region15: #{extra_layers_forward.10} parent=5 // pred_region
        // Predicated region
        $region17: #{extra_layers_forward.10} parent=15 // pred_check
          %p195 = pneg %p60
        $region18: #{extra_layers_forward.10} parent=15 // pred_check_branch
          %197 = sbr.rel (%p195) target = $region20
        $region19: #{extra_layers_forward.10} parent=15 // pred_region
          %s198 = smul.u32 4, %s17
          %s199 = smul.u32 2, %s20
          %p200 = scmp.lt.s32.totalorder %s19, 8
          %s201 = scalar_select %p200, %s19, 8
          %p202 = scmp.lt.s32.totalorder %s198, 3
          %s203 = scalar_select %p202, %s198, 3
          %p204 = scmp.lt.s32.totalorder %s199, 1
          %s205 = scalar_select %p204, %s199, 1
          %s206 = smul.addr %s203, 2
          %s207 = sadd.s32 %s205, %s206
          %s208 = smul.addr %s201, 8
          %s209 = sadd.s32 %s207, %s208
          %s210 = smul.addr %s209, 4
          %s211 = scalar_lea.vmem %s0, %s210
          %s212 = smul.u32 4, %s17
          %s213 = smul.u32 2, %s20
        $region20: #{extra_layers_forward.10} parent=15 // pred_fallthru
          _
        // Predicated region
        $region21: #{extra_layers_forward.10} parent=15 // pred_check
          %p214 = pneg %p90
        $region22: #{extra_layers_forward.10} parent=15 // pred_check_branch
          %216 = sbr.rel (%p214) target = $region24
        $region23: #{extra_layers_forward.10} parent=15 // pred_region
          %s217 = sand.u32 %s80, 1
          %s218 = sand.u32 %s80, 1
          %s219 = smul.addr %s218, 256
          %s220 = scalar_lea.vmem [#allocation3], %s219
          %s221 = smul.u32 32, %s20
          %s222 = smul.u32 2, %s18
          %s223 = smul.addr %s221, 4
          %s224 = sadd.s32 %s222, %s223
          %s225 = smul.addr %s19, 128
          %s226 = sadd.s32 %s224, %s225
          %s227 = smul.addr %s226, 4
          %s228 = scalar_lea.vmem %s1, %s227
          // Predicated region
          $region25: #{extra_layers_forward.10} parent=23 // pred_check
            _
          $region26: #{extra_layers_forward.10} parent=23 // pred_check_branch
            %230 = sbr.rel (0) target = $region28
          $region27: #{extra_layers_forward.10} parent=23 // pred_region
            // Predicated region
            $region29: #{extra_layers_forward.10} parent=27 // pred_check
              _
            $region30: #{extra_layers_forward.10} parent=27 // pred_check_branch
              %232 = sbr.rel (0) target = $region32
            $region31: #{extra_layers_forward.10} parent=27 // pred_region
              // Predicated region
              $region44: #{extra_layers_forward.10} parent=31 // pred_check
                _
              $region45: #{extra_layers_forward.10} parent=31 // pred_check_branch
                %309 = sbr.rel (0) target = $region47
              $region46: #{extra_layers_forward.10} parent=31 // pred_region
                loop: start=0, step=1, limit=1
                $region48: #{extra_layers_forward.10} parent=46 // loop_pre_header
                  _
                $region49: #{extra_layers_forward.10} parent=46 // loop_header
                  %s311 = sphi 0, %s315
                  %p312 = scmp.ge.s32.totalorder %s311, 1
                  %s316 = sphi %s228, %s228
                  %s317 = sphi %s220, %s220
                $region50: #{extra_layers_forward.10} parent=46 // loop_header_branch
                  %314 = sbr.rel (%p312) target = $region54
                $region51: #{extra_layers_forward.10} parent=46 // loop_body
                  %v318 = vld [vmem:[%s316] sm:$0xff]
                  %319 = vst [vmem:[%s317] sm:$0xff] %v318
                  %v320 = vld [vmem:[%s316 + $0x10] sm:$0xff]
                  %321 = vst [vmem:[%s317 + $0x8] sm:$0xff] %v320
                  %v322 = vld [vmem:[%s316 + $0x20] sm:$0xff]
                  %323 = vst [vmem:[%s317 + $0x10] sm:$0xff] %v322
                  %v324 = vld [vmem:[%s316 + $0x30] sm:$0xff]
                  %325 = vst [vmem:[%s317 + $0x18] sm:$0xff] %v324
                  %v326 = vld [vmem:[%s316 + $0x40] sm:$0xff]
                  %327 = vst [vmem:[%s317 + $0x20] sm:$0xff] %v326
                  %v328 = vld [vmem:[%s316 + $0x50] sm:$0xff]
                  %329 = vst [vmem:[%s317 + $0x28] sm:$0xff] %v328
                  %v330 = vld [vmem:[%s316 + $0x60] sm:$0xff]
                  %331 = vst [vmem:[%s317 + $0x30] sm:$0xff] %v330
                  %v332 = vld [vmem:[%s316 + $0x70] sm:$0xff]
                  %333 = vst [vmem:[%s317 + $0x38] sm:$0xff] %v332
                  %v334 = vld [vmem:[%s316 + $0x80] sm:$0xff]
                  %335 = vst [vmem:[%s317 + $0x40] sm:$0xff] %v334
                  %v336 = vld [vmem:[%s316 + $0x90] sm:$0xff]
                  %337 = vst [vmem:[%s317 + $0x48] sm:$0xff] %v336
                  %v338 = vld [vmem:[%s316 + $0xa0] sm:$0xff]
                  %339 = vst [vmem:[%s317 + $0x50] sm:$0xff] %v338
                  %v340 = vld [vmem:[%s316 + $0xb0] sm:$0xff]
                  %341 = vst [vmem:[%s317 + $0x58] sm:$0xff] %v340
                  %v342 = vld [vmem:[%s316 + $0xc0] sm:$0xff]
                  %343 = vst [vmem:[%s317 + $0x60] sm:$0xff] %v342
                  %v344 = vld [vmem:[%s316 + $0xd0] sm:$0xff]
                  %345 = vst [vmem:[%s317 + $0x68] sm:$0xff] %v344
                  %v346 = vld [vmem:[%s316 + $0xe0] sm:$0xff]
                  %347 = vst [vmem:[%s317 + $0x70] sm:$0xff] %v346
                  %v348 = vld [vmem:[%s316 + $0xf0] sm:$0xff]
                  %349 = vst [vmem:[%s317 + $0x78] sm:$0xff] %v348
                  %v350 = vld [vmem:[%s316 + $0x100] sm:$0xff]
                  %351 = vst [vmem:[%s317 + $0x80] sm:$0xff] %v350
                  %v352 = vld [vmem:[%s316 + $0x110] sm:$0xff]
                  %353 = vst [vmem:[%s317 + $0x88] sm:$0xff] %v352
                  %v354 = vld [vmem:[%s316 + $0x120] sm:$0xff]
                  %355 = vst [vmem:[%s317 + $0x90] sm:$0xff] %v354
                  %v356 = vld [vmem:[%s316 + $0x130] sm:$0xff]
                  %357 = vst [vmem:[%s317 + $0x98] sm:$0xff] %v356
                  %v358 = vld [vmem:[%s316 + $0x140] sm:$0xff]
                  %359 = vst [vmem:[%s317 + $0xa0] sm:$0xff] %v358
                  %v360 = vld [vmem:[%s316 + $0x150] sm:$0xff]
                  %361 = vst [vmem:[%s317 + $0xa8] sm:$0xff] %v360
                  %v362 = vld [vmem:[%s316 + $0x160] sm:$0xff]
                  %363 = vst [vmem:[%s317 + $0xb0] sm:$0xff] %v362
                  %v364 = vld [vmem:[%s316 + $0x170] sm:$0xff]
                  %365 = vst [vmem:[%s317 + $0xb8] sm:$0xff] %v364
                  %v366 = vld [vmem:[%s316 + $0x180] sm:$0xff]
                  %367 = vst [vmem:[%s317 + $0xc0] sm:$0xff] %v366
                  %v368 = vld [vmem:[%s316 + $0x190] sm:$0xff]
                  %369 = vst [vmem:[%s317 + $0xc8] sm:$0xff] %v368
                  %v370 = vld [vmem:[%s316 + $0x1a0] sm:$0xff]
                  %371 = vst [vmem:[%s317 + $0xd0] sm:$0xff] %v370
                  %v372 = vld [vmem:[%s316 + $0x1b0] sm:$0xff]
                  %373 = vst [vmem:[%s317 + $0xd8] sm:$0xff] %v372
                  %v374 = vld [vmem:[%s316 + $0x1c0] sm:$0xff]
                  %375 = vst [vmem:[%s317 + $0xe0] sm:$0xff] %v374
                  %v376 = vld [vmem:[%s316 + $0x1d0] sm:$0xff]
                  %377 = vst [vmem:[%s317 + $0xe8] sm:$0xff] %v376
                  %v378 = vld [vmem:[%s316 + $0x1e0] sm:$0xff]
                  %379 = vst [vmem:[%s317 + $0xf0] sm:$0xff] %v378
                  %v380 = vld [vmem:[%s316 + $0x1f0] sm:$0xff]
                  %381 = vst [vmem:[%s317 + $0xf8] sm:$0xff] %v380
                $region52: #{extra_layers_forward.10} parent=46 // loop_footer
                  %s315 = sadd.s32 1, %s311
                $region53: #{extra_layers_forward.10} parent=46 // loop_footer_branch
                  %310 = sbr.rel target = $region49
                $region54: #{extra_layers_forward.10} parent=46 // loop_exit
                  _
              $region47: #{extra_layers_forward.10} parent=31 // pred_fallthru
                _
              // Predicated region
              $region55: #{extra_layers_forward.10} parent=31 // pred_check
                _
              $region56: #{extra_layers_forward.10} parent=31 // pred_check_branch
                %383 = sbr.rel target = $region58
              $region57: #{extra_layers_forward.10} parent=31 // pred_region
                _
              $region58: #{extra_layers_forward.10} parent=31 // pred_fallthru
                _
            $region32: #{extra_layers_forward.10} parent=27 // pred_fallthru
              _
            // Predicated region
            $region33: #{extra_layers_forward.10} parent=27 // pred_check
              _
            $region34: #{extra_layers_forward.10} parent=27 // pred_check_branch
              %234 = sbr.rel target = $region36
            $region35: #{extra_layers_forward.10} parent=27 // pred_region
              loop: start=0, step=1, limit=1
              $region37: #{extra_layers_forward.10} parent=35 // loop_pre_header
                _
              $region38: #{extra_layers_forward.10} parent=35 // loop_header
                %s237 = sphi 0, %s241
                %p238 = scmp.ge.s32.totalorder %s237, 1
                %s242 = sphi %s228, %s228
                %s243 = sphi %s220, %s220
              $region39: #{extra_layers_forward.10} parent=35 // loop_header_branch
                %240 = sbr.rel (%p238) target = $region43
              $region40: #{extra_layers_forward.10} parent=35 // loop_body
                %v244 = vld [vmem:[%s242] sm:$0xff]
                %245 = vst [vmem:[%s243] sm:$0xff] %v244
                %v246 = vld [vmem:[%s242 + $0x10] sm:$0xff]
                %247 = vst [vmem:[%s243 + $0x8] sm:$0xff] %v246
                %v248 = vld [vmem:[%s242 + $0x20] sm:$0xff]
                %249 = vst [vmem:[%s243 + $0x10] sm:$0xff] %v248
                %v250 = vld [vmem:[%s242 + $0x30] sm:$0xff]
                %251 = vst [vmem:[%s243 + $0x18] sm:$0xff] %v250
                %v252 = vld [vmem:[%s242 + $0x40] sm:$0xff]
                %253 = vst [vmem:[%s243 + $0x20] sm:$0xff] %v252
                %v254 = vld [vmem:[%s242 + $0x50] sm:$0xff]
                %255 = vst [vmem:[%s243 + $0x28] sm:$0xff] %v254
                %v256 = vld [vmem:[%s242 + $0x60] sm:$0xff]
                %257 = vst [vmem:[%s243 + $0x30] sm:$0xff] %v256
                %v258 = vld [vmem:[%s242 + $0x70] sm:$0xff]
                %259 = vst [vmem:[%s243 + $0x38] sm:$0xff] %v258
                %v260 = vld [vmem:[%s242 + $0x80] sm:$0xff]
                %261 = vst [vmem:[%s243 + $0x40] sm:$0xff] %v260
                %v262 = vld [vmem:[%s242 + $0x90] sm:$0xff]
                %263 = vst [vmem:[%s243 + $0x48] sm:$0xff] %v262
                %v264 = vld [vmem:[%s242 + $0xa0] sm:$0xff]
                %265 = vst [vmem:[%s243 + $0x50] sm:$0xff] %v264
                %v266 = vld [vmem:[%s242 + $0xb0] sm:$0xff]
                %267 = vst [vmem:[%s243 + $0x58] sm:$0xff] %v266
                %v268 = vld [vmem:[%s242 + $0xc0] sm:$0xff]
                %269 = vst [vmem:[%s243 + $0x60] sm:$0xff] %v268
                %v270 = vld [vmem:[%s242 + $0xd0] sm:$0xff]
                %271 = vst [vmem:[%s243 + $0x68] sm:$0xff] %v270
                %v272 = vld [vmem:[%s242 + $0xe0] sm:$0xff]
                %273 = vst [vmem:[%s243 + $0x70] sm:$0xff] %v272
                %v274 = vld [vmem:[%s242 + $0xf0] sm:$0xff]
                %275 = vst [vmem:[%s243 + $0x78] sm:$0xff] %v274
                %v276 = vld [vmem:[%s242 + $0x100] sm:$0xff]
                %277 = vst [vmem:[%s243 + $0x80] sm:$0xff] %v276
                %v278 = vld [vmem:[%s242 + $0x110] sm:$0xff]
                %279 = vst [vmem:[%s243 + $0x88] sm:$0xff] %v278
                %v280 = vld [vmem:[%s242 + $0x120] sm:$0xff]
                %281 = vst [vmem:[%s243 + $0x90] sm:$0xff] %v280
                %v282 = vld [vmem:[%s242 + $0x130] sm:$0xff]
                %283 = vst [vmem:[%s243 + $0x98] sm:$0xff] %v282
                %v284 = vld [vmem:[%s242 + $0x140] sm:$0xff]
                %285 = vst [vmem:[%s243 + $0xa0] sm:$0xff] %v284
                %v286 = vld [vmem:[%s242 + $0x150] sm:$0xff]
                %287 = vst [vmem:[%s243 + $0xa8] sm:$0xff] %v286
                %v288 = vld [vmem:[%s242 + $0x160] sm:$0xff]
                %289 = vst [vmem:[%s243 + $0xb0] sm:$0xff] %v288
                %v290 = vld [vmem:[%s242 + $0x170] sm:$0xff]
                %291 = vst [vmem:[%s243 + $0xb8] sm:$0xff] %v290
                %v292 = vld [vmem:[%s242 + $0x180] sm:$0xff]
                %293 = vst [vmem:[%s243 + $0xc0] sm:$0xff] %v292
                %v294 = vld [vmem:[%s242 + $0x190] sm:$0xff]
                %295 = vst [vmem:[%s243 + $0xc8] sm:$0xff] %v294
                %v296 = vld [vmem:[%s242 + $0x1a0] sm:$0xff]
                %297 = vst [vmem:[%s243 + $0xd0] sm:$0xff] %v296
                %v298 = vld [vmem:[%s242 + $0x1b0] sm:$0xff]
                %299 = vst [vmem:[%s243 + $0xd8] sm:$0xff] %v298
                %v300 = vld [vmem:[%s242 + $0x1c0] sm:$0xff]
                %301 = vst [vmem:[%s243 + $0xe0] sm:$0xff] %v300
                %v302 = vld [vmem:[%s242 + $0x1d0] sm:$0xff]
                %303 = vst [vmem:[%s243 + $0xe8] sm:$0xff] %v302
                %v304 = vld [vmem:[%s242 + $0x1e0] sm:$0xff]
                %305 = vst [vmem:[%s243 + $0xf0] sm:$0xff] %v304
                %v306 = vld [vmem:[%s242 + $0x1f0] sm:$0xff]
                %307 = vst [vmem:[%s243 + $0xf8] sm:$0xff] %v306
              $region41: #{extra_layers_forward.10} parent=35 // loop_footer
                %s241 = sadd.s32 1, %s237
              $region42: #{extra_layers_forward.10} parent=35 // loop_footer_branch
                %236 = sbr.rel target = $region38
              $region43: #{extra_layers_forward.10} parent=35 // loop_exit
                _
            $region36: #{extra_layers_forward.10} parent=27 // pred_fallthru
              _
          $region28: #{extra_layers_forward.10} parent=23 // pred_fallthru
            _
          %384 = vnop
        $region24: #{extra_layers_forward.10} parent=15 // pred_fallthru
          _
        // Predicated region
        $region59: #{extra_layers_forward.10} parent=15 // pred_check
          %p385 = pneg %p116
        $region60: #{extra_layers_forward.10} parent=15 // pred_check_branch
          %387 = sbr.rel (%p385) target = $region62
        $region61: #{extra_layers_forward.10} parent=15 // pred_region
          %s388 = smul.u32 2, %s18
          %p389 = scmp.lt.s32.totalorder %s388, 3
          %s390 = scalar_select %p389, %s388, 3
          %s391 = scalar_lea.vmem %s2, %s390
          %s392 = smul.u32 2, %s18
        $region62: #{extra_layers_forward.10} parent=15 // pred_fallthru
          _
        // Predicated region
        $region63: #{extra_layers_forward.10} parent=15 // pred_check
          %p393 = pneg %p142
        $region64: #{extra_layers_forward.10} parent=15 // pred_check_branch
          %395 = sbr.rel (%p393) target = $region66
        $region65: #{extra_layers_forward.10} parent=15 // pred_region
          %s396 = smul.u32 2, %s18
          %p397 = scmp.lt.s32.totalorder %s396, 3
          %s398 = scalar_select %p397, %s396, 3
          %s399 = scalar_lea.vmem %s3, %s398
          %s400 = smul.u32 2, %s18
        $region66: #{extra_layers_forward.10} parent=15 // pred_fallthru
          _
      $region16: #{extra_layers_forward.10} parent=5 // pred_fallthru
        _
      %p401 = scmp.le.s32.totalorder 1, %s10
      %p402 = scmp.lt.s32.totalorder %s10, 19
      %p403 = pnand %p401, %p402
      %p404 = pneg %p403
      // Predicated region
      $region67: #{extra_layers_forward.10} parent=5 // pred_check
        _
      $region68: #{extra_layers_forward.10} parent=5 // pred_check_branch
        %406 = sbr.rel (%p403) target = $region70
      $region69: #{extra_layers_forward.10} parent=5 // pred_region
        %s407 = ssub.s32 %s10, 1
        %s408 = sand.u32 %s83, 1
        %s409 = sand.u32 %s83, 1
        %s410 = smul.addr %s409, 256
        %s411 = scalar_lea.vmem [#allocation3], %s410
        // Predicated region
        $region71: #{extra_layers_forward.10} parent=69 // pred_check
          %p412 = pneg %p96
        $region72: #{extra_layers_forward.10} parent=69 // pred_check_branch
          %414 = sbr.rel (%p412) target = $region74
        $region73: #{extra_layers_forward.10} parent=69 // pred_region
          _
        $region74: #{extra_layers_forward.10} parent=69 // pred_fallthru
          _
        %s415 = smul.u32 4, %s21
        %s416 = smul.u32 2, %s24
        %p417 = scmp.lt.s32.totalorder %s23, 8
        %s418 = scalar_select %p417, %s23, 8
        %p419 = scmp.lt.s32.totalorder %s415, 3
        %s420 = scalar_select %p419, %s415, 3
        %p421 = scmp.lt.s32.totalorder %s416, 1
        %s422 = scalar_select %p421, %s416, 1
        %s423 = smul.addr %s420, 2
        %s424 = sadd.s32 %s422, %s423
        %s425 = smul.addr %s418, 8
        %s426 = sadd.s32 %s424, %s425
        %s427 = smul.addr %s426, 4
        %s428 = scalar_lea.vmem %s0, %s427
        %p429 = pneg %p66
        %p430 = pneg %p63
        %s431 = sand.u32 %s83, 1
        %s432 = sand.u32 %s83, 1
        %s433 = smul.addr %s432, 256
        %s434 = scalar_lea.vmem [#allocation3], %s433
        %p435 = pneg %p96
        %p436 = pneg %p93
        %s437 = smul.u32 2, %s22
        %p438 = scmp.lt.s32.totalorder %s437, 3
        %s439 = scalar_select %p438, %s437, 3
        %s440 = scalar_lea.vmem %s2, %s439
        %p441 = pneg %p122
        %p442 = pneg %p119
        %s443 = smul.u32 2, %s22
        %p444 = scmp.lt.s32.totalorder %s443, 3
        %s445 = scalar_select %p444, %s443, 3
        %s446 = scalar_lea.vmem %s3, %s445
        %p447 = pneg %p148
        %p448 = pneg %p145
        %p449 = pneg %p176
        %p450 = pneg %p173
        %s451 = sand.u32 %s163, 1
        %s452 = sand.u32 %s163, 1
        %s453 = smul.addr %s452, 64
        %s454 = scalar_lea.vmem [#allocation4], %s453
        %s455 = smul.u32 4, %s21
        %s456 = smul.u32 2, %s24
        %p457 = scmp.lt.s32.totalorder %s23, 8
        %s458 = scalar_select %p457, %s23, 8
        %p459 = scmp.lt.s32.totalorder %s455, 3
        %s460 = scalar_select %p459, %s455, 3
        %p461 = scmp.lt.s32.totalorder %s456, 1
        %s462 = scalar_select %p461, %s456, 1
        %s463 = smul.addr %s460, 2
        %s464 = sadd.s32 %s462, %s463
        %s465 = smul.addr %s458, 8
        %s466 = sadd.s32 %s464, %s465
        %s467 = smul.addr %s466, 4
        %s468 = scalar_lea.vmem %s0, %s467
        %s469 = smul.u32 4, %s21
        %s470 = smul.u32 2, %s24
        %s471 = smul.u32 32, %s24
        %s472 = smul.u32 2, %s22
        %s473 = smul.u32 2, %s22
        %p474 = scmp.lt.s32.totalorder %s473, 3
        %s475 = scalar_select %p474, %s473, 3
        %s476 = scalar_lea.vmem %s2, %s475
        %s477 = smul.u32 2, %s22
        %s478 = smul.u32 2, %s22
        %p479 = scmp.lt.s32.totalorder %s478, 3
        %s480 = scalar_select %p479, %s478, 3
        %s481 = scalar_lea.vmem %s3, %s480
        %s482 = smul.u32 2, %s22
        %s483 = smul.u32 4, %s21
        %s484 = smul.u32 2, %s22
        %p485 = scmp.eq.s32.totalorder %s23, 0
        %p486 = scmp.eq.s32.totalorder %s24, 0
        %p487 = pnand %p485, %p486
        %p488 = pneg %p487
        // Predicated region
        $region75: #{extra_layers_forward.10} parent=69 // pred_check
          _
        $region76: #{extra_layers_forward.10} parent=69 // pred_check_branch
          %490 = sbr.rel (%p487) target = $region78
        $region77: #{extra_layers_forward.10} parent=69 // pred_region
          %491 = vst [vmem:[#allocation2] sm:$0xff] 0.0
          %492 = vst [vmem:[#allocation2 + $0x8] sm:$0xff] 0.0
          %493 = vst [vmem:[#allocation2 + $0x10] sm:$0xff] 0.0
          %494 = vst [vmem:[#allocation2 + $0x18] sm:$0xff] 0.0
          %495 = vst [vmem:[#allocation2 + $0x20] sm:$0xff] 0.0
          %496 = vst [vmem:[#allocation2 + $0x28] sm:$0xff] 0.0
          %497 = vst [vmem:[#allocation2 + $0x30] sm:$0xff] 0.0
          %498 = vst [vmem:[#allocation2 + $0x38] sm:$0xff] 0.0
        $region78: #{extra_layers_forward.10} parent=69 // pred_fallthru
          _
        %v499 = vld [vmem:[#allocation2] sm:$0xff]
        %v500 = vld [vmem:[#allocation2 + $0x8] sm:$0xff]
        %v501 = vld [vmem:[#allocation2 + $0x10] sm:$0xff]
        %v502 = vld [vmem:[#allocation2 + $0x18] sm:$0xff]
        %v503 = vld [vmem:[#allocation2 + $0x20] sm:$0xff]
        %v504 = vld [vmem:[#allocation2 + $0x28] sm:$0xff]
        %v505 = vld [vmem:[#allocation2 + $0x30] sm:$0xff]
        %v506 = vld [vmem:[#allocation2 + $0x38] sm:$0xff]
        %v507 = vld [vmem:[%s468] sm:$0xff]
        %v508 = vld [vmem:[%s468 + $0x8] sm:$0xff]
        %v509 = vld [vmem:[%s468 + $0x10] sm:$0xff]
        %v510 = vld [vmem:[%s468 + $0x18] sm:$0xff]
        %v511 = vld [vmem:[%s411] sm:$0xff]
        %v512 = vld [vmem:[%s411 + $0x8] sm:$0xff]
        %v513 = vld [vmem:[%s411 + $0x10] sm:$0xff]
        %v514 = vld [vmem:[%s411 + $0x18] sm:$0xff]
        %v515 = vld [vmem:[%s411 + $0x20] sm:$0xff]
        %v516 = vld [vmem:[%s411 + $0x28] sm:$0xff]
        %v517 = vld [vmem:[%s411 + $0x30] sm:$0xff]
        %v518 = vld [vmem:[%s411 + $0x38] sm:$0xff]
        %v519 = vld [vmem:[%s411 + $0x40] sm:$0xff]
        %v520 = vld [vmem:[%s411 + $0x48] sm:$0xff]
        %v521 = vld [vmem:[%s411 + $0x50] sm:$0xff]
        %v522 = vld [vmem:[%s411 + $0x58] sm:$0xff]
        %v523 = vld [vmem:[%s411 + $0x60] sm:$0xff]
        %v524 = vld [vmem:[%s411 + $0x68] sm:$0xff]
        %v525 = vld [vmem:[%s411 + $0x70] sm:$0xff]
        %v526 = vld [vmem:[%s411 + $0x78] sm:$0xff]
        %v527 = vld [vmem:[%s411 + $0x80] sm:$0xff]
        %v528 = vld [vmem:[%s411 + $0x88] sm:$0xff]
        %v529 = vld [vmem:[%s411 + $0x90] sm:$0xff]
        %v530 = vld [vmem:[%s411 + $0x98] sm:$0xff]
        %v531 = vld [vmem:[%s411 + $0xa0] sm:$0xff]
        %v532 = vld [vmem:[%s411 + $0xa8] sm:$0xff]
        %v533 = vld [vmem:[%s411 + $0xb0] sm:$0xff]
        %v534 = vld [vmem:[%s411 + $0xb8] sm:$0xff]
        %v535 = vld [vmem:[%s411 + $0xc0] sm:$0xff]
        %v536 = vld [vmem:[%s411 + $0xc8] sm:$0xff]
        %v537 = vld [vmem:[%s411 + $0xd0] sm:$0xff]
        %v538 = vld [vmem:[%s411 + $0xd8] sm:$0xff]
        %v539 = vld [vmem:[%s411 + $0xe0] sm:$0xff]
        %v540 = vld [vmem:[%s411 + $0xe8] sm:$0xff]
        %v541 = vld [vmem:[%s411 + $0xf0] sm:$0xff]
        %v542 = vld [vmem:[%s411 + $0xf8] sm:$0xff]
        %v547 = vunpack.c.l.b16 %v507
        %v548 = vunpack.c.h.b16 %v507
        %v549 = vunpack.c.l.b16 %v508
        %v550 = vunpack.c.h.b16 %v508
        %v551 = vunpack.c.l.b16 %v509
        %v552 = vunpack.c.h.b16 %v509
        %v553 = vunpack.c.l.b16 %v510
        %v554 = vunpack.c.h.b16 %v510
        %v555 = vpack.c.b16 %v549, %v547
        %v556 = vpack.c.b16 %v550, %v548
        %v557 = vpack.c.b16 %v553, %v551
        %v558 = vpack.c.b16 %v554, %v552
        %v595 = vunpack.c.l.b16 %v511
        %v596 = vunpack.c.h.b16 %v511
        %v597 = vunpack.c.l.b16 %v512
        %v598 = vunpack.c.h.b16 %v512
        %v599 = vunpack.c.l.b16 %v513
        %v600 = vunpack.c.h.b16 %v513
        %v601 = vunpack.c.l.b16 %v514
        %v602 = vunpack.c.h.b16 %v514
        %v603 = vunpack.c.l.b16 %v515
        %v604 = vunpack.c.h.b16 %v515
        %v605 = vunpack.c.l.b16 %v516
        %v606 = vunpack.c.h.b16 %v516
        %v607 = vunpack.c.l.b16 %v517
        %v608 = vunpack.c.h.b16 %v517
        %v609 = vunpack.c.l.b16 %v518
        %v610 = vunpack.c.h.b16 %v518
        %v611 = vunpack.c.l.b16 %v519
        %v612 = vunpack.c.h.b16 %v519
        %v613 = vunpack.c.l.b16 %v520
        %v614 = vunpack.c.h.b16 %v520
        %v615 = vunpack.c.l.b16 %v521
        %v616 = vunpack.c.h.b16 %v521
        %v617 = vunpack.c.l.b16 %v522
        %v618 = vunpack.c.h.b16 %v522
        %v619 = vunpack.c.l.b16 %v523
        %v620 = vunpack.c.h.b16 %v523
        %v621 = vunpack.c.l.b16 %v524
        %v622 = vunpack.c.h.b16 %v524
        %v623 = vunpack.c.l.b16 %v525
        %v624 = vunpack.c.h.b16 %v525
        %v625 = vunpack.c.l.b16 %v526
        %v626 = vunpack.c.h.b16 %v526
        %v627 = vunpack.c.l.b16 %v527
        %v628 = vunpack.c.h.b16 %v527
        %v629 = vunpack.c.l.b16 %v528
        %v630 = vunpack.c.h.b16 %v528
        %v631 = vunpack.c.l.b16 %v529
        %v632 = vunpack.c.h.b16 %v529
        %v633 = vunpack.c.l.b16 %v530
        %v634 = vunpack.c.h.b16 %v530
        %v635 = vunpack.c.l.b16 %v531
        %v636 = vunpack.c.h.b16 %v531
        %v637 = vunpack.c.l.b16 %v532
        %v638 = vunpack.c.h.b16 %v532
        %v639 = vunpack.c.l.b16 %v533
        %v640 = vunpack.c.h.b16 %v533
        %v641 = vunpack.c.l.b16 %v534
        %v642 = vunpack.c.h.b16 %v534
        %v643 = vunpack.c.l.b16 %v535
        %v644 = vunpack.c.h.b16 %v535
        %v645 = vunpack.c.l.b16 %v536
        %v646 = vunpack.c.h.b16 %v536
        %v647 = vunpack.c.l.b16 %v537
        %v648 = vunpack.c.h.b16 %v537
        %v649 = vunpack.c.l.b16 %v538
        %v650 = vunpack.c.h.b16 %v538
        %v651 = vunpack.c.l.b16 %v539
        %v652 = vunpack.c.h.b16 %v539
        %v653 = vunpack.c.l.b16 %v540
        %v654 = vunpack.c.h.b16 %v540
        %v655 = vunpack.c.l.b16 %v541
        %v656 = vunpack.c.h.b16 %v541
        %v657 = vunpack.c.l.b16 %v542
        %v658 = vunpack.c.h.b16 %v542
        %v659 = vpack.c.b16 %v597, %v595
        %v660 = vpack.c.b16 %v598, %v596
        %v661 = vpack.c.b16 %v601, %v599
        %v662 = vpack.c.b16 %v602, %v600
        %v663 = vpack.c.b16 %v605, %v603
        %v664 = vpack.c.b16 %v606, %v604
        %v665 = vpack.c.b16 %v609, %v607
        %v666 = vpack.c.b16 %v610, %v608
        %v667 = vpack.c.b16 %v613, %v611
        %v668 = vpack.c.b16 %v614, %v612
        %v669 = vpack.c.b16 %v617, %v615
        %v670 = vpack.c.b16 %v618, %v616
        %v671 = vpack.c.b16 %v621, %v619
        %v672 = vpack.c.b16 %v622, %v620
        %v673 = vpack.c.b16 %v625, %v623
        %v674 = vpack.c.b16 %v626, %v624
        %v675 = vpack.c.b16 %v629, %v627
        %v676 = vpack.c.b16 %v630, %v628
        %v677 = vpack.c.b16 %v633, %v631
        %v678 = vpack.c.b16 %v634, %v632
        %v679 = vpack.c.b16 %v637, %v635
        %v680 = vpack.c.b16 %v638, %v636
        %v681 = vpack.c.b16 %v641, %v639
        %v682 = vpack.c.b16 %v642, %v640
        %v683 = vpack.c.b16 %v645, %v643
        %v684 = vpack.c.b16 %v646, %v644
        %v685 = vpack.c.b16 %v649, %v647
        %v686 = vpack.c.b16 %v650, %v648
        %v687 = vpack.c.b16 %v653, %v651
        %v688 = vpack.c.b16 %v654, %v652
        %v689 = vpack.c.b16 %v657, %v655
        %v690 = vpack.c.b16 %v658, %v656
        %723 = vmatprep.subr.bf16.mxu0 %v660
        %724 = vmatpush1.bf16.msra.mxu0 %v659
        %725 = vmatprep.subr.bf16.mxu0 %v662
        %726 = vmatpush1.bf16.msra.mxu0 %v661
        %727 = vmatprep.subr.bf16.mxu0 %v664
        %728 = vmatpush1.bf16.msra.mxu0 %v663
        %729 = vmatprep.subr.bf16.mxu0 %v666
        %730 = vmatpush1.bf16.msra.mxu0 %v665
        %731 = vmatprep.subr.bf16.mxu0 %v668
        %732 = vmatpush1.bf16.msra.mxu0 %v667
        %733 = vmatprep.subr.bf16.mxu0 %v670
        %734 = vmatpush1.bf16.msra.mxu0 %v669
        %735 = vmatprep.subr.bf16.mxu0 %v672
        %736 = vmatpush1.bf16.msra.mxu0 %v671
        %737 = vmatprep.subr.bf16.mxu0 %v674
        %738 = vmatpush1.bf16.msra.mxu0 %v673
        %739 = vmatprep.subr.bf16.mxu0 %v676
        %740 = vmatpush1.bf16.msra.mxu0 %v675
        %741 = vmatprep.subr.bf16.mxu0 %v678
        %742 = vmatpush1.bf16.msra.mxu0 %v677
        %743 = vmatprep.subr.bf16.mxu0 %v680
        %744 = vmatpush1.bf16.msra.mxu0 %v679
        %745 = vmatprep.subr.bf16.mxu0 %v682
        %746 = vmatpush1.bf16.msra.mxu0 %v681
        %747 = vmatprep.subr.bf16.mxu0 %v684
        %748 = vmatpush1.bf16.msra.mxu0 %v683
        %749 = vmatprep.subr.bf16.mxu0 %v686
        %750 = vmatpush1.bf16.msra.mxu0 %v685
        %751 = vmatprep.subr.bf16.mxu0 %v688
        %752 = vmatpush1.bf16.msra.mxu0 %v687
        %753 = vmatprep.subr.bf16.mxu0 %v690
        %754 = vmatpush1.bf16.msra.mxu0 %v689
        %755 = vmatprep.mubr.bf16.mxu0 %v556
        %756 = vmatmul.mubr.bf16.gmra.mrb[0].mxu0 %v555
        %v757 = vpop.f32.mrb[0].mxu0
        %v758 = vadd.f32 0.0, %v757
        %v759 = vpop.f32.mrb[0].mxu0
        %v760 = vadd.f32 0.0, %v759
        %v761 = vpop.f32.mrb[0].mxu0
        %v762 = vadd.f32 0.0, %v761
        %v763 = vpop.f32.mrb[0].mxu0
        %v764 = vadd.f32 0.0, %v763
        %765 = vmatprep.mubr.bf16.mxu0 %v558
        %766 = vmatmul.mubr.bf16.gmra.mrb[0].mxu0 %v557
        %v767 = vpop.f32.mrb[0].mxu0
        %v768 = vadd.f32 0.0, %v767
        %v769 = vpop.f32.mrb[0].mxu0
        %v770 = vadd.f32 0.0, %v769
        %v771 = vpop.f32.mrb[0].mxu0
        %v772 = vadd.f32 0.0, %v771
        %v773 = vpop.f32.mrb[0].mxu0
        %v774 = vadd.f32 0.0, %v773
        %775 = vdwg.mxu0
        %v776 = vadd.f32 %v499, %v758
        %v777 = vadd.f32 %v500, %v760
        %v778 = vadd.f32 %v501, %v762
        %v779 = vadd.f32 %v502, %v764
        %v780 = vadd.f32 %v503, %v768
        %v781 = vadd.f32 %v504, %v770
        %v782 = vadd.f32 %v505, %v772
        %v783 = vadd.f32 %v506, %v774
        %784 = vst [vmem:[#allocation2] sm:$0xff] %v776
        %785 = vst [vmem:[#allocation2 + $0x8] sm:$0xff] %v777
        %786 = vst [vmem:[#allocation2 + $0x10] sm:$0xff] %v778
        %787 = vst [vmem:[#allocation2 + $0x18] sm:$0xff] %v779
        %788 = vst [vmem:[#allocation2 + $0x20] sm:$0xff] %v780
        %789 = vst [vmem:[#allocation2 + $0x28] sm:$0xff] %v781
        %790 = vst [vmem:[#allocation2 + $0x30] sm:$0xff] %v782
        %791 = vst [vmem:[#allocation2 + $0x38] sm:$0xff] %v783
        %p792 = scmp.eq.s32.totalorder %s23, 8
        %p793 = pnand %p792, %p486
        %p794 = pneg %p793
        // Predicated region
        $region79: #{extra_layers_forward.10} parent=69 // pred_check
          _
        $region80: #{extra_layers_forward.10} parent=69 // pred_check_branch
          %796 = sbr.rel (%p793) target = $region82
        $region81: #{extra_layers_forward.10} parent=69 // pred_region
          %v797 = vld [vmem:[#allocation2] sm:$0xff]
          %v798 = vld [vmem:[#allocation2 + $0x8] sm:$0xff]
          %v799 = vld [vmem:[#allocation2 + $0x10] sm:$0xff]
          %v800 = vld [vmem:[#allocation2 + $0x18] sm:$0xff]
          %v801 = vld [vmem:[#allocation2 + $0x20] sm:$0xff]
          %v802 = vld [vmem:[#allocation2 + $0x28] sm:$0xff]
          %v803 = vld [vmem:[#allocation2 + $0x30] sm:$0xff]
          %v804 = vld [vmem:[#allocation2 + $0x38] sm:$0xff]
          %v805 = vld [vmem:[%s476] sm:$0x3]
          %v807 = vlaneseq
          %v808 = vshrl.u32 %v807, 7
          %v809 = vsub.s32 0, %v808
          %v810 = vrot.slane %v805, %v809
          %v811 = vlaneseq
          %v812 = vshrl.u32 %v811, 7
          %v813 = vsub.s32 1, %v812
          %v814 = vrot.slane %v805, %v813
          %v817 = vmul.f32 %v797, %v810
          %v818 = vmul.f32 %v798, %v814
          %v819 = vmul.f32 %v799, %v810
          %v820 = vmul.f32 %v800, %v814
          %v821 = vmul.f32 %v801, %v810
          %v822 = vmul.f32 %v802, %v814
          %v823 = vmul.f32 %v803, %v810
          %v824 = vmul.f32 %v804, %v814
          %v825 = vld [vmem:[%s481] sm:$0x3]
          %v827 = vlaneseq
          %v828 = vshrl.u32 %v827, 7
          %v829 = vsub.s32 0, %v828
          %v830 = vrot.slane %v825, %v829
          %v831 = vlaneseq
          %v832 = vshrl.u32 %v831, 7
          %v833 = vsub.s32 1, %v832
          %v834 = vrot.slane %v825, %v833
          %v837 = vadd.f32 %v817, %v830
          %v838 = vadd.f32 %v818, %v834
          %v839 = vadd.f32 %v819, %v830
          %v840 = vadd.f32 %v820, %v834
          %v841 = vadd.f32 %v821, %v830
          %v842 = vadd.f32 %v822, %v834
          %v843 = vadd.f32 %v823, %v830
          %v844 = vadd.f32 %v824, %v834
          %v845 = vmax.f32 %v837, 0.0
          %v846 = vmax.f32 %v838, 0.0
          %v847 = vmax.f32 %v839, 0.0
          %v848 = vmax.f32 %v840, 0.0
          %v849 = vmax.f32 %v841, 0.0
          %v850 = vmax.f32 %v842, 0.0
          %v851 = vmax.f32 %v843, 0.0
          %v852 = vmax.f32 %v844, 0.0
          %853 = vst [vmem:[%s454] sm:$0xff] %v845
          %854 = vst [vmem:[%s454 + $0x8] sm:$0xff] %v846
          %855 = vst [vmem:[%s454 + $0x10] sm:$0xff] %v847
          %856 = vst [vmem:[%s454 + $0x18] sm:$0xff] %v848
          %857 = vst [vmem:[%s454 + $0x20] sm:$0xff] %v849
          %858 = vst [vmem:[%s454 + $0x28] sm:$0xff] %v850
          %859 = vst [vmem:[%s454 + $0x30] sm:$0xff] %v851
          %860 = vst [vmem:[%s454 + $0x38] sm:$0xff] %v852
        $region82: #{extra_layers_forward.10} parent=69 // pred_fallthru
          _
        %s861 = sand.u32 %s163, 1
        %s862 = sand.u32 %s163, 1
        %s863 = smul.addr %s862, 64
        %s864 = scalar_lea.vmem [#allocation4], %s863
        // Predicated region
        $region83: #{extra_layers_forward.10} parent=69 // pred_check
          %p865 = pneg %p173
        $region84: #{extra_layers_forward.10} parent=69 // pred_check_branch
          %867 = sbr.rel (%p865) target = $region86
        $region85: #{extra_layers_forward.10} parent=69 // pred_region
          %s868 = smul.u32 4, %s21
          %s869 = smul.u32 2, %s22
          %s870 = smul.addr %s868, 4
          %s871 = sadd.s32 %s869, %s870
          %s872 = smul.addr %s871, 8
          %s873 = scalar_lea.vmem %s4, %s872
          // Predicated region
          $region87: #{extra_layers_forward.10} parent=85 // pred_check
            _
          $region88: #{extra_layers_forward.10} parent=85 // pred_check_branch
            %875 = sbr.rel (0) target = $region90
          $region89: #{extra_layers_forward.10} parent=85 // pred_region
            // Predicated region
            $region91: #{extra_layers_forward.10} parent=89 // pred_check
              _
            $region92: #{extra_layers_forward.10} parent=89 // pred_check_branch
              %877 = sbr.rel (0) target = $region94
            $region93: #{extra_layers_forward.10} parent=89 // pred_region
              loop: start=0, step=1, limit=1
              $region95: #{extra_layers_forward.10} parent=93 // loop_pre_header
                _
              $region96: #{extra_layers_forward.10} parent=93 // loop_header
                %s879 = sphi 0, %s883
                %p880 = scmp.ge.s32.totalorder %s879, 1
                %s884 = sphi %s864, %s864
                %s885 = sphi %s873, %s873
              $region97: #{extra_layers_forward.10} parent=93 // loop_header_branch
                %882 = sbr.rel (%p880) target = $region101
              $region98: #{extra_layers_forward.10} parent=93 // loop_body
                %v886 = vld [vmem:[%s884] sm:$0xff]
                %887 = vst [vmem:[%s885] sm:$0xff] %v886
                %v888 = vld [vmem:[%s884 + $0x8] sm:$0xff]
                %889 = vst [vmem:[%s885 + $0x8] sm:$0xff] %v888
                %v890 = vld [vmem:[%s884 + $0x10] sm:$0xff]
                %891 = vst [vmem:[%s885 + $0x20] sm:$0xff] %v890
                %v892 = vld [vmem:[%s884 + $0x18] sm:$0xff]
                %893 = vst [vmem:[%s885 + $0x28] sm:$0xff] %v892
                %v894 = vld [vmem:[%s884 + $0x20] sm:$0xff]
                %895 = vst [vmem:[%s885 + $0x40] sm:$0xff] %v894
                %v896 = vld [vmem:[%s884 + $0x28] sm:$0xff]
                %897 = vst [vmem:[%s885 + $0x48] sm:$0xff] %v896
                %v898 = vld [vmem:[%s884 + $0x30] sm:$0xff]
                %899 = vst [vmem:[%s885 + $0x60] sm:$0xff] %v898
                %v900 = vld [vmem:[%s884 + $0x38] sm:$0xff]
                %901 = vst [vmem:[%s885 + $0x68] sm:$0xff] %v900
              $region99: #{extra_layers_forward.10} parent=93 // loop_footer
                %s883 = sadd.s32 1, %s879
              $region100: #{extra_layers_forward.10} parent=93 // loop_footer_branch
                %878 = sbr.rel target = $region96
              $region101: #{extra_layers_forward.10} parent=93 // loop_exit
                _
            $region94: #{extra_layers_forward.10} parent=89 // pred_fallthru
              _
            // Predicated region
            $region102: #{extra_layers_forward.10} parent=89 // pred_check
              _
            $region103: #{extra_layers_forward.10} parent=89 // pred_check_branch
              %903 = sbr.rel target = $region105
            $region104: #{extra_layers_forward.10} parent=89 // pred_region
              _
            $region105: #{extra_layers_forward.10} parent=89 // pred_fallthru
              _
          $region90: #{extra_layers_forward.10} parent=85 // pred_fallthru
            _
          %904 = vnop
        $region86: #{extra_layers_forward.10} parent=69 // pred_fallthru
          _
      $region70: #{extra_layers_forward.10} parent=5 // pred_fallthru
        _
      %p905 = scmp.le.s32.totalorder 2, %s10
      // Predicated region
      $region106: #{extra_layers_forward.10} parent=5 // pred_check
        %p906 = pneg %p905
      $region107: #{extra_layers_forward.10} parent=5 // pred_check_branch
        %908 = sbr.rel (%p906) target = $region109
      $region108: #{extra_layers_forward.10} parent=5 // pred_region
        %s909 = ssub.s32 %s10, 2
        // Predicated region
        $region110: #{extra_layers_forward.10} parent=108 // pred_check
          %p910 = pneg %p179
        $region111: #{extra_layers_forward.10} parent=108 // pred_check_branch
          %912 = sbr.rel (%p910) target = $region113
        $region112: #{extra_layers_forward.10} parent=108 // pred_region
          %s913 = sand.u32 %s164, 1
          %s914 = sand.u32 %s164, 1
          %s915 = smul.addr %s914, 64
          %s916 = scalar_lea.vmem [#allocation4], %s915
        $region113: #{extra_layers_forward.10} parent=108 // pred_fallthru
          _
      $region109: #{extra_layers_forward.10} parent=5 // pred_fallthru
        _
    $region6: #{extra_layers_forward.10} parent=1 // loop_footer
      %s14 = sadd.s32 1, %s10
    $region7: #{extra_layers_forward.10} parent=1 // loop_footer_branch
      %9 = sbr.rel target = $region3
    $region8: #{extra_layers_forward.10} parent=1 // loop_exit
      _

// kernel: extra_layers_forward.11
$region0: #{extra_layers_forward.11}
  #allocation0 [shape = 'u32[]', space=smem, size = 0x4, offset = 0x4, fixed_abs, tag = 'smem constant byte address 0x4 - core index']
  #allocation1 [shape = 'u32[144,128]{1,0:T(1,128)}', space=vmem, size = 0x12000, scoped, tag = 'internal scratch']
  #allocation2 [shape = 'f32[32,256]{1,0:T(8,128)}', space=vmem, size = 0x8000, scoped, tag = 'scratch operand']
  %s0 = inlined_call_operand.vmem [shape: bf16[1,32,512], index: 0, kind: input, shape index: {}]
  %s1 = inlined_call_operand.vmem [shape: bf16[1,512,256], index: 1, kind: input, shape index: {}]
  %s2 = inlined_call_operand.vmem [shape: f32[1,256], index: 2, kind: input, shape index: {}]
  %s3 = inlined_call_operand.vmem [shape: f32[1,256], index: 3, kind: input, shape index: {}]
  %s4 = inlined_call_operand.vmem [shape: f32[32,256], index: 4, kind: output, shape index: {}]
  %s5 = sld [smem:[#allocation0]]
  $region95: #{extra_layers_forward.11} parent=0
    _
  %s7 = ssub.s32 1, %s5
  %s8 = scalar_select 0, %s7, %s5
  $region1: #{extra_layers_forward.11} parent=0
    #allocation3 [shape = 'u8[32768]{0}', space=vmem, size = 0x8000, scoped, tag = 'input window, operand 0']
    loop: start=0, step=1, limit=4
    $region2: #{extra_layers_forward.11} parent=1 // loop_pre_header
      _
    $region3: #{extra_layers_forward.11} parent=1 // loop_header
      %s10 = sphi 0, %s14
      %p11 = scmp.ge.s32.totalorder %s10, 4
      %s17 = sphi 0, %s43
      %s18 = sphi 0, %s39
      %s19 = sphi 0, %s35
      %s20 = sphi 0, %s31
      %s21 = sphi 0, %s17
      %s22 = sphi 0, %s18
      %s23 = sphi 0, %s19
      %s24 = sphi 0, %s20
      %s25 = sphi 0, %s21
      %s26 = sphi 0, %s22
      %s27 = sphi 0, %s23
      %s28 = sphi 0, %s24
      %s50 = sphi 0, %s52
      %s53 = sphi 0, %s50
      %s54 = sphi 0, %s53
      %s70 = sphi 0, %s54
      %s80 = sphi 0, %s82
      %s83 = sphi 0, %s80
      %s84 = sphi 0, %s83
      %s100 = sphi 0, %s84
      %s106 = sphi 0, %s108
      %s109 = sphi 0, %s106
      %s110 = sphi 0, %s109
      %s126 = sphi 0, %s110
      %s132 = sphi 0, %s134
      %s135 = sphi 0, %s132
      %s136 = sphi 0, %s135
      %s152 = sphi 0, %s136
      %s160 = sphi 0, %s162
      %s163 = sphi 0, %s160
      %s164 = sphi 0, %s163
      %s180 = sphi 0, %s164
    $region4: #{extra_layers_forward.11} parent=1 // loop_header_branch
      %13 = sbr.rel (%p11) target = $region8
    $region5: #{extra_layers_forward.11} parent=1 // loop_body
      %s15 = ssub.s32 %s10, 1
      %s16 = ssub.s32 %s10, 2
      %s29 = sadd.s32 1, %s20
      %p30 = scmp.ge.s32.totalorder %s29, 2
      %s31 = scalar_select %p30, 0, %s29
      %s32 = sadd.s32 1, %s19
      %s33 = scalar_select %p30, %s32, %s19
      %p34 = scmp.ge.s32.totalorder %s33, 1
      %s35 = scalar_select %p34, 0, %s33
      %s36 = sadd.s32 1, %s18
      %s37 = scalar_select %p34, %s36, %s18
      %p38 = scmp.ge.s32.totalorder %s37, 1
      %s39 = scalar_select %p38, 0, %s37
      %s40 = sadd.s32 1, %s17
      %s41 = scalar_select %p38, %s40, %s17
      %p42 = scmp.ge.s32.totalorder %s41, 1
      %s43 = scalar_select %p42, 0, %s41
      %s44 = ssub.s32 %s19, %s35
      %s45 = ssub.s32 %s17, %s43
      %s46 = sor.u32 %s44, %s45
      %s47 = ssub.s32 %s20, %s31
      %s48 = sor.u32 %s46, %s47
      %p49 = scmp.eq.s32.totalorder %s48, 0
      %s51 = sadd.s32 %s50, 1
      %s52 = scalar_select %p49, %s50, %s51
      %p55 = pneg %p49
      %p56 = scmp.eq.s32.totalorder %s10, 1
      %p57 = por %p55, %p56
      %p58 = scmp.ne.s32.totalorder %s50, %s53
      %p59 = scmp.eq.s32.totalorder %s10, 0
      %p60 = por %p58, %p59
      %p61 = scmp.ne.s32.totalorder %s50, %s53
      %p62 = scmp.eq.s32.totalorder %s15, 1
      %p63 = por %p61, %p62
      %p64 = scmp.ne.s32.totalorder %s53, %s54
      %p65 = scmp.eq.s32.totalorder %s15, 0
      %p66 = por %p64, %p65
      %p67 = scmp.ne.s32.totalorder %s53, %s54
      %p68 = scmp.eq.s32.totalorder %s16, 1
      %p69 = por %p67, %p68
      %p71 = scmp.ne.s32.totalorder %s54, %s70
      %p72 = scmp.eq.s32.totalorder %s16, 0
      %p73 = por %p71, %p72
      %s74 = ssub.s32 %s19, %s35
      %s75 = ssub.s32 %s20, %s31
      %s76 = sor.u32 %s74, %s75
      %s77 = ssub.s32 %s18, %s39
      %s78 = sor.u32 %s76, %s77
      %p79 = scmp.eq.s32.totalorder %s78, 0
      %s81 = sadd.s32 %s80, 1
      %s82 = scalar_select %p79, %s80, %s81
      %p85 = pneg %p79
      %p86 = scmp.eq.s32.totalorder %s10, 1
      %p87 = por %p85, %p86
      %p88 = scmp.ne.s32.totalorder %s80, %s83
      %p89 = scmp.eq.s32.totalorder %s10, 0
      %p90 = por %p88, %p89
      %p91 = scmp.ne.s32.totalorder %s80, %s83
      %p92 = scmp.eq.s32.totalorder %s15, 1
      %p93 = por %p91, %p92
      %p94 = scmp.ne.s32.totalorder %s83, %s84
      %p95 = scmp.eq.s32.totalorder %s15, 0
      %p96 = por %p94, %p95
      %p97 = scmp.ne.s32.totalorder %s83, %s84
      %p98 = scmp.eq.s32.totalorder %s16, 1
      %p99 = por %p97, %p98
      %p101 = scmp.ne.s32.totalorder %s84, %s100
      %p102 = scmp.eq.s32.totalorder %s16, 0
      %p103 = por %p101, %p102
      %s104 = ssub.s32 %s18, %s39
      %p105 = scmp.eq.s32.totalorder %s104, 0
      %s107 = sadd.s32 %s106, 1
      %s108 = scalar_select %p105, %s106, %s107
      %p111 = pneg %p105
      %p112 = scmp.eq.s32.totalorder %s10, 1
      %p113 = por %p111, %p112
      %p114 = scmp.ne.s32.totalorder %s106, %s109
      %p115 = scmp.eq.s32.totalorder %s10, 0
      %p116 = por %p114, %p115
      %p117 = scmp.ne.s32.totalorder %s106, %s109
      %p118 = scmp.eq.s32.totalorder %s15, 1
      %p119 = por %p117, %p118
      %p120 = scmp.ne.s32.totalorder %s109, %s110
      %p121 = scmp.eq.s32.totalorder %s15, 0
      %p122 = por %p120, %p121
      %p123 = scmp.ne.s32.totalorder %s109, %s110
      %p124 = scmp.eq.s32.totalorder %s16, 1
      %p125 = por %p123, %p124
      %p127 = scmp.ne.s32.totalorder %s110, %s126
      %p128 = scmp.eq.s32.totalorder %s16, 0
      %p129 = por %p127, %p128
      %s130 = ssub.s32 %s18, %s39
      %p131 = scmp.eq.s32.totalorder %s130, 0
      %s133 = sadd.s32 %s132, 1
      %s134 = scalar_select %p131, %s132, %s133
      %p137 = pneg %p131
      %p138 = scmp.eq.s32.totalorder %s10, 1
      %p139 = por %p137, %p138
      %p140 = scmp.ne.s32.totalorder %s132, %s135
      %p141 = scmp.eq.s32.totalorder %s10, 0
      %p142 = por %p140, %p141
      %p143 = scmp.ne.s32.totalorder %s132, %s135
      %p144 = scmp.eq.s32.totalorder %s15, 1
      %p145 = por %p143, %p144
      %p146 = scmp.ne.s32.totalorder %s135, %s136
      %p147 = scmp.eq.s32.totalorder %s15, 0
      %p148 = por %p146, %p147
      %p149 = scmp.ne.s32.totalorder %s135, %s136
      %p150 = scmp.eq.s32.totalorder %s16, 1
      %p151 = por %p149, %p150
      %p153 = scmp.ne.s32.totalorder %s136, %s152
      %p154 = scmp.eq.s32.totalorder %s16, 0
      %p155 = por %p153, %p154
      %s156 = ssub.s32 %s17, %s43
      %s157 = ssub.s32 %s18, %s39
      %s158 = sor.u32 %s156, %s157
      %p159 = scmp.eq.s32.totalorder %s158, 0
      %s161 = sadd.s32 %s160, 1
      %s162 = scalar_select %p159, %s160, %s161
      %p165 = pneg %p159
      %p166 = scmp.eq.s32.totalorder %s10, 1
      %p167 = por %p165, %p166
      %p168 = scmp.ne.s32.totalorder %s160, %s163
      %p169 = scmp.eq.s32.totalorder %s10, 0
      %p170 = por %p168, %p169
      %p171 = scmp.ne.s32.totalorder %s160, %s163
      %p172 = scmp.eq.s32.totalorder %s15, 1
      %p173 = por %p171, %p172
      %p174 = scmp.ne.s32.totalorder %s163, %s164
      %p175 = scmp.eq.s32.totalorder %s15, 0
      %p176 = por %p174, %p175
      %p177 = scmp.ne.s32.totalorder %s163, %s164
      %p178 = scmp.eq.s32.totalorder %s16, 1
      %p179 = por %p177, %p178
      %p181 = scmp.ne.s32.totalorder %s164, %s180
      %p182 = scmp.eq.s32.totalorder %s16, 0
      %p183 = por %p181, %p182
      %p184 = scmp.le.s32.totalorder 1, %s10
      %p185 = scmp.lt.s32.totalorder %s10, 3
      %p186 = pnand %p184, %p185
      %p187 = pneg %p186
      // Predicated region
      $region9: #{extra_layers_forward.11} parent=5 // pred_check
        _
      $region10: #{extra_layers_forward.11} parent=5 // pred_check_branch
        %189 = sbr.rel (%p186) target = $region12
      $region11: #{extra_layers_forward.11} parent=5 // pred_region
        %s190 = ssub.s32 %s10, 1
        // Predicated region
        $region13: #{extra_layers_forward.11} parent=11 // pred_check
          %p191 = pneg %p122
        $region14: #{extra_layers_forward.11} parent=11 // pred_check_branch
          %193 = sbr.rel (%p191) target = $region16
        $region15: #{extra_layers_forward.11} parent=11 // pred_region
          %s194 = smul.u32 2, %s22
          %p195 = scmp.lt.s32.totalorder %s194, 1
          %s196 = scalar_select %p195, %s194, 1
          %s197 = scalar_lea.vmem %s2, %s196
          %s198 = smul.u32 2, %s22
        $region16: #{extra_layers_forward.11} parent=11 // pred_fallthru
          _
        // Predicated region
        $region17: #{extra_layers_forward.11} parent=11 // pred_check
          %p199 = pneg %p148
        $region18: #{extra_layers_forward.11} parent=11 // pred_check_branch
          %201 = sbr.rel (%p199) target = $region20
        $region19: #{extra_layers_forward.11} parent=11 // pred_region
          %s202 = smul.u32 2, %s22
          %p203 = scmp.lt.s32.totalorder %s202, 1
          %s204 = scalar_select %p203, %s202, 1
          %s205 = scalar_lea.vmem %s3, %s204
          %s206 = smul.u32 2, %s22
        $region20: #{extra_layers_forward.11} parent=11 // pred_fallthru
          _
      $region12: #{extra_layers_forward.11} parent=5 // pred_fallthru
        _
      %p207 = scmp.lt.s32.totalorder %s10, 2
      // Predicated region
      $region21: #{extra_layers_forward.11} parent=5 // pred_check
        %p208 = pneg %p207
      $region22: #{extra_layers_forward.11} parent=5 // pred_check_branch
        %210 = sbr.rel (%p208) target = $region24
      $region23: #{extra_layers_forward.11} parent=5 // pred_region
        // Predicated region
        $region25: #{extra_layers_forward.11} parent=23 // pred_check
          %p211 = pneg %p60
        $region26: #{extra_layers_forward.11} parent=23 // pred_check_branch
          %213 = sbr.rel (%p211) target = $region28
        $region27: #{extra_layers_forward.11} parent=23 // pred_region
          %s214 = sand.u32 %s50, 1
          %s215 = sand.u32 %s50, 1
          %s216 = smul.addr %s215, 32
          %s217 = scalar_lea.vmem [#allocation3], %s216
          %s218 = smul.u32 4, %s17
          %s219 = smul.u32 2, %s20
          %s220 = smul.addr %s218, 4
          %s221 = sadd.s32 %s219, %s220
          %s222 = smul.addr %s19, 16
          %s223 = sadd.s32 %s221, %s222
          %s224 = smul.addr %s223, 4
          %s225 = scalar_lea.vmem %s0, %s224
          // Predicated region
          $region29: #{extra_layers_forward.11} parent=27 // pred_check
            _
          $region30: #{extra_layers_forward.11} parent=27 // pred_check_branch
            %227 = sbr.rel (0) target = $region32
          $region31: #{extra_layers_forward.11} parent=27 // pred_region
            // Predicated region
            $region33: #{extra_layers_forward.11} parent=31 // pred_check
              _
            $region34: #{extra_layers_forward.11} parent=31 // pred_check_branch
              %229 = sbr.rel (0) target = $region36
            $region35: #{extra_layers_forward.11} parent=31 // pred_region
              // Predicated region
              $region48: #{extra_layers_forward.11} parent=35 // pred_check
                _
              $region49: #{extra_layers_forward.11} parent=35 // pred_check_branch
                %250 = sbr.rel (0) target = $region51
              $region50: #{extra_layers_forward.11} parent=35 // pred_region
                loop: start=0, step=1, limit=1
                $region52: #{extra_layers_forward.11} parent=50 // loop_pre_header
                  _
                $region53: #{extra_layers_forward.11} parent=50 // loop_header
                  %s252 = sphi 0, %s256
                  %p253 = scmp.ge.s32.totalorder %s252, 1
                  %s257 = sphi %s225, %s225
                  %s258 = sphi %s217, %s217
                $region54: #{extra_layers_forward.11} parent=50 // loop_header_branch
                  %255 = sbr.rel (%p253) target = $region58
                $region55: #{extra_layers_forward.11} parent=50 // loop_body
                  %v259 = vld [vmem:[%s257] sm:$0xff]
                  %260 = vst [vmem:[%s258] sm:$0xff] %v259
                  %v261 = vld [vmem:[%s257 + $0x10] sm:$0xff]
                  %262 = vst [vmem:[%s258 + $0x8] sm:$0xff] %v261
                  %v263 = vld [vmem:[%s257 + $0x20] sm:$0xff]
                  %264 = vst [vmem:[%s258 + $0x10] sm:$0xff] %v263
                  %v265 = vld [vmem:[%s257 + $0x30] sm:$0xff]
                  %266 = vst [vmem:[%s258 + $0x18] sm:$0xff] %v265
                $region56: #{extra_layers_forward.11} parent=50 // loop_footer
                  %s256 = sadd.s32 1, %s252
                $region57: #{extra_layers_forward.11} parent=50 // loop_footer_branch
                  %251 = sbr.rel target = $region53
                $region58: #{extra_layers_forward.11} parent=50 // loop_exit
                  _
              $region51: #{extra_layers_forward.11} parent=35 // pred_fallthru
                _
              // Predicated region
              $region59: #{extra_layers_forward.11} parent=35 // pred_check
                _
              $region60: #{extra_layers_forward.11} parent=35 // pred_check_branch
                %268 = sbr.rel target = $region62
              $region61: #{extra_layers_forward.11} parent=35 // pred_region
                _
              $region62: #{extra_layers_forward.11} parent=35 // pred_fallthru
                _
            $region36: #{extra_layers_forward.11} parent=31 // pred_fallthru
              _
            // Predicated region
            $region37: #{extra_layers_forward.11} parent=31 // pred_check
              _
            $region38: #{extra_layers_forward.11} parent=31 // pred_check_branch
              %231 = sbr.rel target = $region40
            $region39: #{extra_layers_forward.11} parent=31 // pred_region
              loop: start=0, step=1, limit=1
              $region41: #{extra_layers_forward.11} parent=39 // loop_pre_header
                _
              $region42: #{extra_layers_forward.11} parent=39 // loop_header
                %s234 = sphi 0, %s238
                %p235 = scmp.ge.s32.totalorder %s234, 1
                %s239 = sphi %s225, %s225
                %s240 = sphi %s217, %s217
              $region43: #{extra_layers_forward.11} parent=39 // loop_header_branch
                %237 = sbr.rel (%p235) target = $region47
              $region44: #{extra_layers_forward.11} parent=39 // loop_body
                %v241 = vld [vmem:[%s239] sm:$0xff]
                %242 = vst [vmem:[%s240] sm:$0xff] %v241
                %v243 = vld [vmem:[%s239 + $0x10] sm:$0xff]
                %244 = vst [vmem:[%s240 + $0x8] sm:$0xff] %v243
                %v245 = vld [vmem:[%s239 + $0x20] sm:$0xff]
                %246 = vst [vmem:[%s240 + $0x10] sm:$0xff] %v245
                %v247 = vld [vmem:[%s239 + $0x30] sm:$0xff]
                %248 = vst [vmem:[%s240 + $0x18] sm:$0xff] %v247
              $region45: #{extra_layers_forward.11} parent=39 // loop_footer
                %s238 = sadd.s32 1, %s234
              $region46: #{extra_layers_forward.11} parent=39 // loop_footer_branch
                %233 = sbr.rel target = $region42
              $region47: #{extra_layers_forward.11} parent=39 // loop_exit
                _
            $region40: #{extra_layers_forward.11} parent=31 // pred_fallthru
              _
          $region32: #{extra_layers_forward.11} parent=27 // pred_fallthru
            _
          %269 = vnop
        $region28: #{extra_layers_forward.11} parent=23 // pred_fallthru
          _
        // Predicated region
        $region63: #{extra_layers_forward.11} parent=23 // pred_check
          %p270 = pneg %p90
        $region64: #{extra_layers_forward.11} parent=23 // pred_check_branch
          %272 = sbr.rel (%p270) target = $region66
        $region65: #{extra_layers_forward.11} parent=23 // pred_region
          %s273 = smul.u32 32, %s20
          %s274 = smul.u32 2, %s18
          %p275 = scmp.lt.s32.totalorder %s19, 0
          %s276 = scalar_select %p275, %s19, 0
          %p277 = scmp.lt.s32.totalorder %s273, 63
          %s278 = scalar_select %p277, %s273, 63
          %p279 = scmp.lt.s32.totalorder %s274, 1
          %s280 = scalar_select %p279, %s274, 1
          %s281 = smul.addr %s278, 2
          %s282 = sadd.s32 %s280, %s281
          %s283 = smul.addr %s276, 128
          %s284 = sadd.s32 %s282, %s283
          %s285 = smul.addr %s284, 4
          %s286 = scalar_lea.vmem %s1, %s285
          %s287 = smul.u32 32, %s20
          %s288 = smul.u32 2, %s18
        $region66: #{extra_layers_forward.11} parent=23 // pred_fallthru
          _
      $region24: #{extra_layers_forward.11} parent=5 // pred_fallthru
        _
      %p289 = scmp.le.s32.totalorder 1, %s10
      %p290 = scmp.lt.s32.totalorder %s10, 3
      %p291 = pnand %p289, %p290
      %p292 = pneg %p291
      // Predicated region
      $region67: #{extra_layers_forward.11} parent=5 // pred_check
        _
      $region68: #{extra_layers_forward.11} parent=5 // pred_check_branch
        %294 = sbr.rel (%p291) target = $region70
      $region69: #{extra_layers_forward.11} parent=5 // pred_region
        %s295 = ssub.s32 %s10, 1
        %s296 = sand.u32 %s53, 1
        %s297 = sand.u32 %s53, 1
        %s298 = smul.addr %s297, 32
        %s299 = scalar_lea.vmem [#allocation3], %s298
        // Predicated region
        $region71: #{extra_layers_forward.11} parent=69 // pred_check
          %p300 = pneg %p66
        $region72: #{extra_layers_forward.11} parent=69 // pred_check_branch
          %302 = sbr.rel (%p300) target = $region74
        $region73: #{extra_layers_forward.11} parent=69 // pred_region
          _
        $region74: #{extra_layers_forward.11} parent=69 // pred_fallthru
          _
        %s303 = sand.u32 %s53, 1
        %s304 = sand.u32 %s53, 1
        %s305 = smul.addr %s304, 32
        %s306 = scalar_lea.vmem [#allocation3], %s305
        %p307 = pneg %p66
        %p308 = pneg %p63
        %s309 = smul.u32 32, %s24
        %s310 = smul.u32 2, %s22
        %p311 = scmp.lt.s32.totalorder %s23, 0
        %s312 = scalar_select %p311, %s23, 0
        %p313 = scmp.lt.s32.totalorder %s309, 63
        %s314 = scalar_select %p313, %s309, 63
        %p315 = scmp.lt.s32.totalorder %s310, 1
        %s316 = scalar_select %p315, %s310, 1
        %s317 = smul.addr %s314, 2
        %s318 = sadd.s32 %s316, %s317
        %s319 = smul.addr %s312, 128
        %s320 = sadd.s32 %s318, %s319
        %s321 = smul.addr %s320, 4
        %s322 = scalar_lea.vmem %s1, %s321
        %p323 = pneg %p96
        %p324 = pneg %p93
        %s325 = smul.u32 2, %s22
        %p326 = scmp.lt.s32.totalorder %s325, 1
        %s327 = scalar_select %p326, %s325, 1
        %s328 = scalar_lea.vmem %s2, %s327
        %p329 = pneg %p122
        %p330 = pneg %p119
        %s331 = smul.u32 2, %s22
        %p332 = scmp.lt.s32.totalorder %s331, 1
        %s333 = scalar_select %p332, %s331, 1
        %s334 = scalar_lea.vmem %s3, %s333
        %p335 = pneg %p148
        %p336 = pneg %p145
        %p337 = pneg %p176
        %p338 = pneg %p173
        %s339 = smul.u32 4, %s21
        %s340 = smul.u32 2, %s22
        %p341 = scmp.lt.s32.totalorder %s339, 3
        %s342 = scalar_select %p341, %s339, 3
        %p343 = scmp.lt.s32.totalorder %s340, 1
        %s344 = scalar_select %p343, %s340, 1
        %s345 = smul.addr %s342, 2
        %s346 = sadd.s32 %s344, %s345
        %s347 = smul.addr %s346, 8
        %s348 = scalar_lea.vmem %s4, %s347
        %s349 = smul.u32 4, %s21
        %s350 = smul.u32 2, %s24
        %s351 = smul.u32 32, %s24
        %s352 = smul.u32 2, %s22
        %p353 = scmp.lt.s32.totalorder %s23, 0
        %s354 = scalar_select %p353, %s23, 0
        %p355 = scmp.lt.s32.totalorder %s351, 63
        %s356 = scalar_select %p355, %s351, 63
        %p357 = scmp.lt.s32.totalorder %s352, 1
        %s358 = scalar_select %p357, %s352, 1
        %s359 = smul.addr %s356, 2
        %s360 = sadd.s32 %s358, %s359
        %s361 = smul.addr %s354, 128
        %s362 = sadd.s32 %s360, %s361
        %s363 = smul.addr %s362, 4
        %s364 = scalar_lea.vmem %s1, %s363
        %s365 = smul.u32 32, %s24
        %s366 = smul.u32 2, %s22
        %s367 = smul.u32 2, %s22
        %p368 = scmp.lt.s32.totalorder %s367, 1
        %s369 = scalar_select %p368, %s367, 1
        %s370 = scalar_lea.vmem %s2, %s369
        %s371 = smul.u32 2, %s22
        %s372 = smul.u32 2, %s22
        %p373 = scmp.lt.s32.totalorder %s372, 1
        %s374 = scalar_select %p373, %s372, 1
        %s375 = scalar_lea.vmem %s3, %s374
        %s376 = smul.u32 2, %s22
        %s377 = smul.u32 4, %s21
        %s378 = smul.u32 2, %s22
        %p379 = scmp.lt.s32.totalorder %s377, 3
        %s380 = scalar_select %p379, %s377, 3
        %p381 = scmp.lt.s32.totalorder %s378, 1
        %s382 = scalar_select %p381, %s378, 1
        %s383 = smul.addr %s380, 2
        %s384 = sadd.s32 %s382, %s383
        %s385 = smul.addr %s384, 8
        %s386 = scalar_lea.vmem %s4, %s385
        %s387 = smul.u32 4, %s21
        %s388 = smul.u32 2, %s22
        %p389 = scmp.eq.s32.totalorder %s23, 0
        %p390 = scmp.eq.s32.totalorder %s24, 0
        %p391 = pnand %p389, %p390
        %p392 = pneg %p391
        // Predicated region
        $region75: #{extra_layers_forward.11} parent=69 // pred_check
          _
        $region76: #{extra_layers_forward.11} parent=69 // pred_check_branch
          %394 = sbr.rel (%p391) target = $region78
        $region77: #{extra_layers_forward.11} parent=69 // pred_region
          %395 = vst [vmem:[#allocation2] sm:$0xff] 0.0
          %396 = vst [vmem:[#allocation2 + $0x8] sm:$0xff] 0.0
          %397 = vst [vmem:[#allocation2 + $0x10] sm:$0xff] 0.0
          %398 = vst [vmem:[#allocation2 + $0x18] sm:$0xff] 0.0
          %399 = vst [vmem:[#allocation2 + $0x20] sm:$0xff] 0.0
          %400 = vst [vmem:[#allocation2 + $0x28] sm:$0xff] 0.0
          %401 = vst [vmem:[#allocation2 + $0x30] sm:$0xff] 0.0
          %402 = vst [vmem:[#allocation2 + $0x38] sm:$0xff] 0.0
        $region78: #{extra_layers_forward.11} parent=69 // pred_fallthru
          _
        %v403 = vld [vmem:[#allocation2] sm:$0xff]
        %v404 = vld [vmem:[#allocation2 + $0x8] sm:$0xff]
        %v405 = vld [vmem:[#allocation2 + $0x10] sm:$0xff]
        %v406 = vld [vmem:[#allocation2 + $0x18] sm:$0xff]
        %v407 = vld [vmem:[#allocation2 + $0x20] sm:$0xff]
        %v408 = vld [vmem:[#allocation2 + $0x28] sm:$0xff]
        %v409 = vld [vmem:[#allocation2 + $0x30] sm:$0xff]
        %v410 = vld [vmem:[#allocation2 + $0x38] sm:$0xff]
        %v411 = vld [vmem:[%s299] sm:$0xff]
        %v412 = vld [vmem:[%s299 + $0x8] sm:$0xff]
        %v413 = vld [vmem:[%s299 + $0x10] sm:$0xff]
        %v414 = vld [vmem:[%s299 + $0x18] sm:$0xff]
        %v415 = vld [vmem:[%s364] sm:$0xff]
        %v416 = vld [vmem:[%s364 + $0x8] sm:$0xff]
        %v417 = vld [vmem:[%s364 + $0x10] sm:$0xff]
        %v418 = vld [vmem:[%s364 + $0x18] sm:$0xff]
        %v419 = vld [vmem:[%s364 + $0x20] sm:$0xff]
        %v420 = vld [vmem:[%s364 + $0x28] sm:$0xff]
        %v421 = vld [vmem:[%s364 + $0x30] sm:$0xff]
        %v422 = vld [vmem:[%s364 + $0x38] sm:$0xff]
        %v423 = vld [vmem:[%s364 + $0x40] sm:$0xff]
        %v424 = vld [vmem:[%s364 + $0x48] sm:$0xff]
        %v425 = vld [vmem:[%s364 + $0x50] sm:$0xff]
        %v426 = vld [vmem:[%s364 + $0x58] sm:$0xff]
        %v427 = vld [vmem:[%s364 + $0x60] sm:$0xff]
        %v428 = vld [vmem:[%s364 + $0x68] sm:$0xff]
        %v429 = vld [vmem:[%s364 + $0x70] sm:$0xff]
        %v430 = vld [vmem:[%s364 + $0x78] sm:$0xff]
        %v431 = vld [vmem:[%s364 + $0x80] sm:$0xff]
        %v432 = vld [vmem:[%s364 + $0x88] sm:$0xff]
        %v433 = vld [vmem:[%s364 + $0x90] sm:$0xff]
        %v434 = vld [vmem:[%s364 + $0x98] sm:$0xff]
        %v435 = vld [vmem:[%s364 + $0xa0] sm:$0xff]
        %v436 = vld [vmem:[%s364 + $0xa8] sm:$0xff]
        %v437 = vld [vmem:[%s364 + $0xb0] sm:$0xff]
        %v438 = vld [vmem:[%s364 + $0xb8] sm:$0xff]
        %v439 = vld [vmem:[%s364 + $0xc0] sm:$0xff]
        %v440 = vld [vmem:[%s364 + $0xc8] sm:$0xff]
        %v441 = vld [vmem:[%s364 + $0xd0] sm:$0xff]
        %v442 = vld [vmem:[%s364 + $0xd8] sm:$0xff]
        %v443 = vld [vmem:[%s364 + $0xe0] sm:$0xff]
        %v444 = vld [vmem:[%s364 + $0xe8] sm:$0xff]
        %v445 = vld [vmem:[%s364 + $0xf0] sm:$0xff]
        %v446 = vld [vmem:[%s364 + $0xf8] sm:$0xff]
        %v451 = vunpack.c.l.b16 %v411
        %v452 = vunpack.c.h.b16 %v411
        %v453 = vunpack.c.l.b16 %v412
        %v454 = vunpack.c.h.b16 %v412
        %v455 = vunpack.c.l.b16 %v413
        %v456 = vunpack.c.h.b16 %v413
        %v457 = vunpack.c.l.b16 %v414
        %v458 = vunpack.c.h.b16 %v414
        %v459 = vpack.c.b16 %v453, %v451
        %v460 = vpack.c.b16 %v454, %v452
        %v461 = vpack.c.b16 %v457, %v455
        %v462 = vpack.c.b16 %v458, %v456
        %v499 = vunpack.c.l.b16 %v415
        %v500 = vunpack.c.h.b16 %v415
        %v501 = vunpack.c.l.b16 %v416
        %v502 = vunpack.c.h.b16 %v416
        %v503 = vunpack.c.l.b16 %v417
        %v504 = vunpack.c.h.b16 %v417
        %v505 = vunpack.c.l.b16 %v418
        %v506 = vunpack.c.h.b16 %v418
        %v507 = vunpack.c.l.b16 %v419
        %v508 = vunpack.c.h.b16 %v419
        %v509 = vunpack.c.l.b16 %v420
        %v510 = vunpack.c.h.b16 %v420
        %v511 = vunpack.c.l.b16 %v421
        %v512 = vunpack.c.h.b16 %v421
        %v513 = vunpack.c.l.b16 %v422
        %v514 = vunpack.c.h.b16 %v422
        %v515 = vunpack.c.l.b16 %v423
        %v516 = vunpack.c.h.b16 %v423
        %v517 = vunpack.c.l.b16 %v424
        %v518 = vunpack.c.h.b16 %v424
        %v519 = vunpack.c.l.b16 %v425
        %v520 = vunpack.c.h.b16 %v425
        %v521 = vunpack.c.l.b16 %v426
        %v522 = vunpack.c.h.b16 %v426
        %v523 = vunpack.c.l.b16 %v427
        %v524 = vunpack.c.h.b16 %v427
        %v525 = vunpack.c.l.b16 %v428
        %v526 = vunpack.c.h.b16 %v428
        %v527 = vunpack.c.l.b16 %v429
        %v528 = vunpack.c.h.b16 %v429
        %v529 = vunpack.c.l.b16 %v430
        %v530 = vunpack.c.h.b16 %v430
        %v531 = vunpack.c.l.b16 %v431
        %v532 = vunpack.c.h.b16 %v431
        %v533 = vunpack.c.l.b16 %v432
        %v534 = vunpack.c.h.b16 %v432
        %v535 = vunpack.c.l.b16 %v433
        %v536 = vunpack.c.h.b16 %v433
        %v537 = vunpack.c.l.b16 %v434
        %v538 = vunpack.c.h.b16 %v434
        %v539 = vunpack.c.l.b16 %v435
        %v540 = vunpack.c.h.b16 %v435
        %v541 = vunpack.c.l.b16 %v436
        %v542 = vunpack.c.h.b16 %v436
        %v543 = vunpack.c.l.b16 %v437
        %v544 = vunpack.c.h.b16 %v437
        %v545 = vunpack.c.l.b16 %v438
        %v546 = vunpack.c.h.b16 %v438
        %v547 = vunpack.c.l.b16 %v439
        %v548 = vunpack.c.h.b16 %v439
        %v549 = vunpack.c.l.b16 %v440
        %v550 = vunpack.c.h.b16 %v440
        %v551 = vunpack.c.l.b16 %v441
        %v552 = vunpack.c.h.b16 %v441
        %v553 = vunpack.c.l.b16 %v442
        %v554 = vunpack.c.h.b16 %v442
        %v555 = vunpack.c.l.b16 %v443
        %v556 = vunpack.c.h.b16 %v443
        %v557 = vunpack.c.l.b16 %v444
        %v558 = vunpack.c.h.b16 %v444
        %v559 = vunpack.c.l.b16 %v445
        %v560 = vunpack.c.h.b16 %v445
        %v561 = vunpack.c.l.b16 %v446
        %v562 = vunpack.c.h.b16 %v446
        %v563 = vpack.c.b16 %v501, %v499
        %v564 = vpack.c.b16 %v502, %v500
        %v565 = vpack.c.b16 %v505, %v503
        %v566 = vpack.c.b16 %v506, %v504
        %v567 = vpack.c.b16 %v509, %v507
        %v568 = vpack.c.b16 %v510, %v508
        %v569 = vpack.c.b16 %v513, %v511
        %v570 = vpack.c.b16 %v514, %v512
        %v571 = vpack.c.b16 %v517, %v515
        %v572 = vpack.c.b16 %v518, %v516
        %v573 = vpack.c.b16 %v521, %v519
        %v574 = vpack.c.b16 %v522, %v520
        %v575 = vpack.c.b16 %v525, %v523
        %v576 = vpack.c.b16 %v526, %v524
        %v577 = vpack.c.b16 %v529, %v527
        %v578 = vpack.c.b16 %v530, %v528
        %v579 = vpack.c.b16 %v533, %v531
        %v580 = vpack.c.b16 %v534, %v532
        %v581 = vpack.c.b16 %v537, %v535
        %v582 = vpack.c.b16 %v538, %v536
        %v583 = vpack.c.b16 %v541, %v539
        %v584 = vpack.c.b16 %v542, %v540
        %v585 = vpack.c.b16 %v545, %v543
        %v586 = vpack.c.b16 %v546, %v544
        %v587 = vpack.c.b16 %v549, %v547
        %v588 = vpack.c.b16 %v550, %v548
        %v589 = vpack.c.b16 %v553, %v551
        %v590 = vpack.c.b16 %v554, %v552
        %v591 = vpack.c.b16 %v557, %v555
        %v592 = vpack.c.b16 %v558, %v556
        %v593 = vpack.c.b16 %v561, %v559
        %v594 = vpack.c.b16 %v562, %v560
        %627 = vmatprep.subr.bf16.mxu0 %v564
        %628 = vmatpush1.bf16.msra.mxu0 %v563
        %629 = vmatprep.subr.bf16.mxu0 %v566
        %630 = vmatpush1.bf16.msra.mxu0 %v565
        %631 = vmatprep.subr.bf16.mxu0 %v568
        %632 = vmatpush1.bf16.msra.mxu0 %v567
        %633 = vmatprep.subr.bf16.mxu0 %v570
        %634 = vmatpush1.bf16.msra.mxu0 %v569
        %635 = vmatprep.subr.bf16.mxu0 %v572
        %636 = vmatpush1.bf16.msra.mxu0 %v571
        %637 = vmatprep.subr.bf16.mxu0 %v574
        %638 = vmatpush1.bf16.msra.mxu0 %v573
        %639 = vmatprep.subr.bf16.mxu0 %v576
        %640 = vmatpush1.bf16.msra.mxu0 %v575
        %641 = vmatprep.subr.bf16.mxu0 %v578
        %642 = vmatpush1.bf16.msra.mxu0 %v577
        %643 = vmatprep.subr.bf16.mxu0 %v580
        %644 = vmatpush1.bf16.msra.mxu0 %v579
        %645 = vmatprep.subr.bf16.mxu0 %v582
        %646 = vmatpush1.bf16.msra.mxu0 %v581
        %647 = vmatprep.subr.bf16.mxu0 %v584
        %648 = vmatpush1.bf16.msra.mxu0 %v583
        %649 = vmatprep.subr.bf16.mxu0 %v586
        %650 = vmatpush1.bf16.msra.mxu0 %v585
        %651 = vmatprep.subr.bf16.mxu0 %v588
        %652 = vmatpush1.bf16.msra.mxu0 %v587
        %653 = vmatprep.subr.bf16.mxu0 %v590
        %654 = vmatpush1.bf16.msra.mxu0 %v589
        %655 = vmatprep.subr.bf16.mxu0 %v592
        %656 = vmatpush1.bf16.msra.mxu0 %v591
        %657 = vmatprep.subr.bf16.mxu0 %v594
        %658 = vmatpush1.bf16.msra.mxu0 %v593
        %659 = vmatprep.mubr.bf16.mxu0 %v460
        %660 = vmatmul.mubr.bf16.gmra.mrb[0].mxu0 %v459
        %v661 = vpop.f32.mrb[0].mxu0
        %v662 = vadd.f32 0.0, %v661
        %v663 = vpop.f32.mrb[0].mxu0
        %v664 = vadd.f32 0.0, %v663
        %v665 = vpop.f32.mrb[0].mxu0
        %v666 = vadd.f32 0.0, %v665
        %v667 = vpop.f32.mrb[0].mxu0
        %v668 = vadd.f32 0.0, %v667
        %669 = vmatprep.mubr.bf16.mxu0 %v462
        %670 = vmatmul.mubr.bf16.gmra.mrb[0].mxu0 %v461
        %v671 = vpop.f32.mrb[0].mxu0
        %v672 = vadd.f32 0.0, %v671
        %v673 = vpop.f32.mrb[0].mxu0
        %v674 = vadd.f32 0.0, %v673
        %v675 = vpop.f32.mrb[0].mxu0
        %v676 = vadd.f32 0.0, %v675
        %v677 = vpop.f32.mrb[0].mxu0
        %v678 = vadd.f32 0.0, %v677
        %679 = vdwg.mxu0
        %v680 = vadd.f32 %v403, %v662
        %v681 = vadd.f32 %v404, %v664
        %v682 = vadd.f32 %v405, %v666
        %v683 = vadd.f32 %v406, %v668
        %v684 = vadd.f32 %v407, %v672
        %v685 = vadd.f32 %v408, %v674
        %v686 = vadd.f32 %v409, %v676
        %v687 = vadd.f32 %v410, %v678
        %688 = vst [vmem:[#allocation2] sm:$0xff] %v680
        %689 = vst [vmem:[#allocation2 + $0x8] sm:$0xff] %v681
        %690 = vst [vmem:[#allocation2 + $0x10] sm:$0xff] %v682
        %691 = vst [vmem:[#allocation2 + $0x18] sm:$0xff] %v683
        %692 = vst [vmem:[#allocation2 + $0x20] sm:$0xff] %v684
        %693 = vst [vmem:[#allocation2 + $0x28] sm:$0xff] %v685
        %694 = vst [vmem:[#allocation2 + $0x30] sm:$0xff] %v686
        %695 = vst [vmem:[#allocation2 + $0x38] sm:$0xff] %v687
        %p696 = scmp.eq.s32.totalorder %s24, 1
        %p697 = pnand %p389, %p696
        %p698 = pneg %p697
        // Predicated region
        $region79: #{extra_layers_forward.11} parent=69 // pred_check
          _
        $region80: #{extra_layers_forward.11} parent=69 // pred_check_branch
          %700 = sbr.rel (%p697) target = $region82
        $region81: #{extra_layers_forward.11} parent=69 // pred_region
          %v701 = vld [vmem:[#allocation2] sm:$0xff]
          %v702 = vld [vmem:[#allocation2 + $0x8] sm:$0xff]
          %v703 = vld [vmem:[#allocation2 + $0x10] sm:$0xff]
          %v704 = vld [vmem:[#allocation2 + $0x18] sm:$0xff]
          %v705 = vld [vmem:[#allocation2 + $0x20] sm:$0xff]
          %v706 = vld [vmem:[#allocation2 + $0x28] sm:$0xff]
          %v707 = vld [vmem:[#allocation2 + $0x30] sm:$0xff]
          %v708 = vld [vmem:[#allocation2 + $0x38] sm:$0xff]
          %v709 = vld [vmem:[%s370] sm:$0x3]
          %v711 = vlaneseq
          %v712 = vshrl.u32 %v711, 7
          %v713 = vsub.s32 0, %v712
          %v714 = vrot.slane %v709, %v713
          %v715 = vlaneseq
          %v716 = vshrl.u32 %v715, 7
          %v717 = vsub.s32 1, %v716
          %v718 = vrot.slane %v709, %v717
          %v721 = vmul.f32 %v701, %v714
          %v722 = vmul.f32 %v702, %v718
          %v723 = vmul.f32 %v703, %v714
          %v724 = vmul.f32 %v704, %v718
          %v725 = vmul.f32 %v705, %v714
          %v726 = vmul.f32 %v706, %v718
          %v727 = vmul.f32 %v707, %v714
          %v728 = vmul.f32 %v708, %v718
          %v729 = vld [vmem:[%s375] sm:$0x3]
          %v731 = vlaneseq
          %v732 = vshrl.u32 %v731, 7
          %v733 = vsub.s32 0, %v732
          %v734 = vrot.slane %v729, %v733
          %v735 = vlaneseq
          %v736 = vshrl.u32 %v735, 7
          %v737 = vsub.s32 1, %v736
          %v738 = vrot.slane %v729, %v737
          %v741 = vadd.f32 %v721, %v734
          %v742 = vadd.f32 %v722, %v738
          %v743 = vadd.f32 %v723, %v734
          %v744 = vadd.f32 %v724, %v738
          %v745 = vadd.f32 %v725, %v734
          %v746 = vadd.f32 %v726, %v738
          %v747 = vadd.f32 %v727, %v734
          %v748 = vadd.f32 %v728, %v738
          %v749 = vmax.f32 %v741, 0.0
          %v750 = vmax.f32 %v742, 0.0
          %v751 = vmax.f32 %v743, 0.0
          %v752 = vmax.f32 %v744, 0.0
          %v753 = vmax.f32 %v745, 0.0
          %v754 = vmax.f32 %v746, 0.0
          %v755 = vmax.f32 %v747, 0.0
          %v756 = vmax.f32 %v748, 0.0
          %757 = vst [vmem:[%s386] sm:$0xff] %v749
          %758 = vst [vmem:[%s386 + $0x8] sm:$0xff] %v750
          %759 = vst [vmem:[%s386 + $0x10] sm:$0xff] %v751
          %760 = vst [vmem:[%s386 + $0x18] sm:$0xff] %v752
          %761 = vst [vmem:[%s386 + $0x20] sm:$0xff] %v753
          %762 = vst [vmem:[%s386 + $0x28] sm:$0xff] %v754
          %763 = vst [vmem:[%s386 + $0x30] sm:$0xff] %v755
          %764 = vst [vmem:[%s386 + $0x38] sm:$0xff] %v756
        $region82: #{extra_layers_forward.11} parent=69 // pred_fallthru
          _
        %s765 = smul.u32 4, %s21
        %s766 = smul.u32 2, %s22
        %p767 = scmp.lt.s32.totalorder %s765, 3
        %s768 = scalar_select %p767, %s765, 3
        %p769 = scmp.lt.s32.totalorder %s766, 1
        %s770 = scalar_select %p769, %s766, 1
        %s771 = smul.addr %s768, 2
        %s772 = sadd.s32 %s770, %s771
        %s773 = smul.addr %s772, 8
        %s774 = scalar_lea.vmem %s4, %s773
        // Predicated region
        $region83: #{extra_layers_forward.11} parent=69 // pred_check
          %p775 = pneg %p173
        $region84: #{extra_layers_forward.11} parent=69 // pred_check_branch
          %777 = sbr.rel (%p775) target = $region86
        $region85: #{extra_layers_forward.11} parent=69 // pred_region
          %s778 = smul.u32 4, %s21
          %s779 = smul.u32 2, %s22
        $region86: #{extra_layers_forward.11} parent=69 // pred_fallthru
          _
        // Predicated region
        $region87: #{extra_layers_forward.11} parent=69 // pred_check
          %p780 = pneg %p173
        $region88: #{extra_layers_forward.11} parent=69 // pred_check_branch
          %782 = sbr.rel (%p780) target = $region90
        $region89: #{extra_layers_forward.11} parent=69 // pred_region
          %s783 = smul.u32 4, %s21
          %s784 = smul.u32 2, %s22
          %p785 = scmp.lt.s32.totalorder %s783, 3
          %s786 = scalar_select %p785, %s783, 3
          %p787 = scmp.lt.s32.totalorder %s784, 1
          %s788 = scalar_select %p787, %s784, 1
          %s789 = smul.addr %s786, 2
          %s790 = sadd.s32 %s788, %s789
          %s791 = smul.addr %s790, 8
          %s792 = scalar_lea.vmem %s4, %s791
        $region90: #{extra_layers_forward.11} parent=69 // pred_fallthru
          _
      $region70: #{extra_layers_forward.11} parent=5 // pred_fallthru
        _
      %p793 = scmp.le.s32.totalorder 2, %s10
      // Predicated region
      $region91: #{extra_layers_forward.11} parent=5 // pred_check
        %p794 = pneg %p793
      $region92: #{extra_layers_forward.11} parent=5 // pred_check_branch
        %796 = sbr.rel (%p794) target = $region94
      $region93: #{extra_layers_forward.11} parent=5 // pred_region
        %s797 = ssub.s32 %s10, 2
      $region94: #{extra_layers_forward.11} parent=5 // pred_fallthru
        _
    $region6: #{extra_layers_forward.11} parent=1 // loop_footer
      %s14 = sadd.s32 1, %s10
    $region7: #{extra_layers_forward.11} parent=1 // loop_footer_branch
      %9 = sbr.rel target = $region3
    $region8: #{extra_layers_forward.11} parent=1 // loop_exit
      _

// kernel: extra_layers_forward.13
$region0: #{extra_layers_forward.13}
  #allocation0 [shape = 'u32[]', space=smem, size = 0x4, offset = 0x4, fixed_abs, tag = 'smem constant byte address 0x4 - core index']
  #allocation1 [shape = 'u32[144,128]{1,0:T(1,128)}', space=vmem, size = 0x12000, scoped, tag = 'internal scratch']
  %s0 = inlined_call_operand.vmem [shape: f32[2,4,512], index: 0, kind: input, shape index: {}]
  %s1 = inlined_call_operand.hbm [shape: f32[2,1,512], index: 1, kind: output, shape index: {}]
  %s2 = sld [smem:[#allocation0]]
  $region14: #{extra_layers_forward.13} parent=0
    _
  %s4 = ssub.s32 1, %s2
  %s5 = scalar_select 0, %s4, %s2
  $region1: #{extra_layers_forward.13} parent=0
    #allocation2 [shape = 'u8[4096]{0}', space=vmem, size = 0x1000, scoped, tag = 'output window, operand 0, single buffered']
    #allocation3 [shape = 's32[1]{0}', space=sflag, size = 0x4, scoped, tag = 'scoped memory for extra_layers_forward.13']
    %6 = vsyncpa [#allocation3], 0
    // Predicated region
    $region2: #{extra_layers_forward.13} parent=1 // pred_check
      _
    $region3: #{extra_layers_forward.13} parent=1 // pred_check_branch
      %8 = sbr.rel (0) target = $region5
    $region4: #{extra_layers_forward.13} parent=1 // pred_region
      _
    $region5: #{extra_layers_forward.13} parent=1 // pred_fallthru
      _
    %v9 = vld [vmem:[%s0] sm:$0xff]
    %v10 = vld [vmem:[%s0 + $0x8] sm:$0xff]
    %v11 = vld [vmem:[%s0 + $0x10] sm:$0xff]
    %v12 = vld [vmem:[%s0 + $0x18] sm:$0xff]
    %v17 = vcombine.high %v9, %v9
    %v18 = vcombine.high %v10, %v10
    %v19 = vcombine.high %v11, %v11
    %v20 = vcombine.high %v12, %v12
    %vm25 = vcmask 1043456
    %v26 = vsel %vm25, %v9, 0.0
    %v27 = vrot.slane %v26, 4
    %v28 = vadd.f32 %v26, %v27
    %v29 = vrot.slane %v28, 2
    %v30 = vadd.f32 %v28, %v29
    %v31 = vrot.slane %v30, 1
    %v32 = vadd.f32 %v30, %v31
    %v33 = vsel %vm25, %v17, 0.0
    %v34 = vrot.slane %v33, 4
    %v35 = vadd.f32 %v33, %v34
    %v36 = vrot.slane %v35, 2
    %v37 = vadd.f32 %v35, %v36
    %v38 = vrot.slane %v37, 1
    %v39 = vadd.f32 %v37, %v38
    %v40 = vsel %vm25, %v10, 0.0
    %v41 = vrot.slane %v40, 4
    %v42 = vadd.f32 %v40, %v41
    %v43 = vrot.slane %v42, 2
    %v44 = vadd.f32 %v42, %v43
    %v45 = vrot.slane %v44, 1
    %v46 = vadd.f32 %v44, %v45
    %v47 = vsel %vm25, %v18, 0.0
    %v48 = vrot.slane %v47, 4
    %v49 = vadd.f32 %v47, %v48
    %v50 = vrot.slane %v49, 2
    %v51 = vadd.f32 %v49, %v50
    %v52 = vrot.slane %v51, 1
    %v53 = vadd.f32 %v51, %v52
    %v54 = vsel %vm25, %v11, 0.0
    %v55 = vrot.slane %v54, 4
    %v56 = vadd.f32 %v54, %v55
    %v57 = vrot.slane %v56, 2
    %v58 = vadd.f32 %v56, %v57
    %v59 = vrot.slane %v58, 1
    %v60 = vadd.f32 %v58, %v59
    %v61 = vsel %vm25, %v19, 0.0
    %v62 = vrot.slane %v61, 4
    %v63 = vadd.f32 %v61, %v62
    %v64 = vrot.slane %v63, 2
    %v65 = vadd.f32 %v63, %v64
    %v66 = vrot.slane %v65, 1
    %v67 = vadd.f32 %v65, %v66
    %v68 = vsel %vm25, %v12, 0.0
    %v69 = vrot.slane %v68, 4
    %v70 = vadd.f32 %v68, %v69
    %v71 = vrot.slane %v70, 2
    %v72 = vadd.f32 %v70, %v71
    %v73 = vrot.slane %v72, 1
    %v74 = vadd.f32 %v72, %v73
    %v75 = vsel %vm25, %v20, 0.0
    %v76 = vrot.slane %v75, 4
    %v77 = vadd.f32 %v75, %v76
    %v78 = vrot.slane %v77, 2
    %v79 = vadd.f32 %v77, %v78
    %v80 = vrot.slane %v79, 1
    %v81 = vadd.f32 %v79, %v80
    %v82 = vrcp.pop 4.0
    %v83 = vmul.f32 %v32, %v82
    %v84 = vmul.f32 %v39, %v82
    %v85 = vmul.f32 %v46, %v82
    %v86 = vmul.f32 %v53, %v82
    %v87 = vmul.f32 %v60, %v82
    %v88 = vmul.f32 %v67, %v82
    %v89 = vmul.f32 %v74, %v82
    %v90 = vmul.f32 %v81, %v82
    %v99 = vcombine.low %v83, %v84
    %v100 = vcombine.low %v85, %v86
    %v102 = vunpack.c.l.s4 1966171168
    %v103 = vunpack.c.0.s8 %v102
    %v104 = vlaneseq
    %v105 = vshrl.u32 %v104, 7
    %v106 = vsub.s32 %v103, %v105
    %v107 = vrot.slane %v99, %v106
    %v109 = vunpack.c.l.s4 1966171168
    %v110 = vunpack.c.0.s8 %v109
    %v111 = vlaneseq
    %v112 = vshrl.u32 %v111, 7
    %v113 = vsub.s32 %v110, %v112
    %v114 = vrot.slane %v100, %v113
    %v115 = vcombine.low %v107, %v114
    %v117 = vunpack.c.l.s4 1966171168
    %v118 = vunpack.c.0.s8 %v117
    %v119 = vlaneseq
    %v120 = vshrl.u32 %v119, 7
    %v121 = vsub.s32 %v118, %v120
    %v122 = vrot.slane %v115, %v121
    %v123 = vcombine.low %v87, %v88
    %v124 = vcombine.low %v89, %v90
    %v126 = vunpack.c.l.s4 1966171168
    %v127 = vunpack.c.0.s8 %v126
    %v128 = vlaneseq
    %v129 = vshrl.u32 %v128, 7
    %v130 = vsub.s32 %v127, %v129
    %v131 = vrot.slane %v123, %v130
    %v133 = vunpack.c.l.s4 1966171168
    %v134 = vunpack.c.0.s8 %v133
    %v135 = vlaneseq
    %v136 = vshrl.u32 %v135, 7
    %v137 = vsub.s32 %v134, %v136
    %v138 = vrot.slane %v124, %v137
    %v139 = vcombine.low %v131, %v138
    %v141 = vunpack.c.l.s4 1966171168
    %v142 = vunpack.c.0.s8 %v141
    %v143 = vlaneseq
    %v144 = vshrl.u32 %v143, 7
    %v145 = vsub.s32 %v142, %v144
    %v146 = vrot.slane %v139, %v145
    %v149 = vlaneseq
    %vm150 = vcmp.ge.s32.totalorder %v149, 0
    %vm151 = vcmp.lt.s32.totalorder %v149, 512
    %vm152 = vmand %vm150, %vm151
    %153 = vst.msk [vmem:[#allocation2] sm:$0xf] %vm152, %v122
    %154 = vst.msk [vmem:[#allocation2 + $0x4] sm:$0xf] %vm152, %v146
    // Predicated region
    $region6: #{extra_layers_forward.13} parent=1 // pred_check
      _
    $region7: #{extra_layers_forward.13} parent=1 // pred_check_branch
      %156 = sbr.rel (0) target = $region9
    $region8: #{extra_layers_forward.13} parent=1 // pred_region
      %s158 = ssub.s32 128, 128
      %159 = vsyncadd [#allocation3], %s158
      %s160 = sshll.u32 [#allocation2], 4
      %s161 = int_to_ptr.vmem [resolvable:$true] %s160
      %166 = dma.vmem_to_hbm [thread:$0]  %s161, 128, %s1, [#allocation3], 64, 64, 4
    $region9: #{extra_layers_forward.13} parent=1 // pred_fallthru
      _
    // Predicated region
    $region10: #{extra_layers_forward.13} parent=1 // pred_check
      _
    $region11: #{extra_layers_forward.13} parent=1 // pred_check_branch
      %168 = sbr.rel (0) target = $region13
    $region12: #{extra_layers_forward.13} parent=1 // pred_region
      %169 = dma.done [#allocation3], 128
    $region13: #{extra_layers_forward.13} parent=1 // pred_fallthru
      _
    %170 = vsyncpa [#allocation3], 1

// kernel: extra_layers_forward.12
$region0: #{extra_layers_forward.12}
  #allocation0 [shape = 'u32[]', space=smem, size = 0x4, offset = 0x4, fixed_abs, tag = 'smem constant byte address 0x4 - core index']
  #allocation1 [shape = 'u32[144,128]{1,0:T(1,128)}', space=vmem, size = 0x12000, scoped, tag = 'internal scratch']
  #allocation2 [shape = 'f32[8,256]{1,0:T(8,128)}', space=vmem, size = 0x2000, scoped, tag = 'scratch operand']
  %s0 = inlined_call_operand.vmem [shape: bf16[9,8,256], index: 0, kind: input, shape index: {}]
  %s1 = inlined_call_operand.vmem [shape: bf16[9,256,512], index: 1, kind: input, shape index: {}]
  %s2 = inlined_call_operand.vmem [shape: f32[1,512], index: 2, kind: input, shape index: {}]
  %s3 = inlined_call_operand.vmem [shape: f32[1,512], index: 3, kind: input, shape index: {}]
  %s4 = inlined_call_operand.vmem [shape: f32[8,512], index: 4, kind: output, shape index: {}]
  %s5 = sld [smem:[#allocation0]]
  $region95: #{extra_layers_forward.12} parent=0
    _
  %s7 = ssub.s32 1, %s5
  %s8 = scalar_select 0, %s7, %s5
  $region1: #{extra_layers_forward.12} parent=0
    #allocation3 [shape = 'u8[262144]{0}', space=vmem, size = 0x40000, scoped, tag = 'input window, operand 1']
    loop: start=0, step=1, limit=20
    $region2: #{extra_layers_forward.12} parent=1 // loop_pre_header
      _
    $region3: #{extra_layers_forward.12} parent=1 // loop_header
      %s10 = sphi 0, %s14
      %p11 = scmp.ge.s32.totalorder %s10, 20
      %s17 = sphi 0, %s43
      %s18 = sphi 0, %s39
      %s19 = sphi 0, %s35
      %s20 = sphi 0, %s31
      %s21 = sphi 0, %s17
      %s22 = sphi 0, %s18
      %s23 = sphi 0, %s19
      %s24 = sphi 0, %s20
      %s25 = sphi 0, %s21
      %s26 = sphi 0, %s22
      %s27 = sphi 0, %s23
      %s28 = sphi 0, %s24
      %s50 = sphi 0, %s52
      %s53 = sphi 0, %s50
      %s54 = sphi 0, %s53
      %s70 = sphi 0, %s54
      %s80 = sphi 0, %s82
      %s83 = sphi 0, %s80
      %s84 = sphi 0, %s83
      %s100 = sphi 0, %s84
      %s106 = sphi 0, %s108
      %s109 = sphi 0, %s106
      %s110 = sphi 0, %s109
      %s126 = sphi 0, %s110
      %s132 = sphi 0, %s134
      %s135 = sphi 0, %s132
      %s136 = sphi 0, %s135
      %s152 = sphi 0, %s136
      %s160 = sphi 0, %s162
      %s163 = sphi 0, %s160
      %s164 = sphi 0, %s163
      %s180 = sphi 0, %s164
    $region4: #{extra_layers_forward.12} parent=1 // loop_header_branch
      %13 = sbr.rel (%p11) target = $region8
    $region5: #{extra_layers_forward.12} parent=1 // loop_body
      %s15 = ssub.s32 %s10, 1
      %s16 = ssub.s32 %s10, 2
      %s29 = sadd.s32 1, %s20
      %p30 = scmp.ge.s32.totalorder %s29, 1
      %s31 = scalar_select %p30, 0, %s29
      %s32 = sadd.s32 1, %s19
      %s33 = scalar_select %p30, %s32, %s19
      %p34 = scmp.ge.s32.totalorder %s33, 9
      %s35 = scalar_select %p34, 0, %s33
      %s36 = sadd.s32 1, %s18
      %s37 = scalar_select %p34, %s36, %s18
      %p38 = scmp.ge.s32.totalorder %s37, 2
      %s39 = scalar_select %p38, 0, %s37
      %s40 = sadd.s32 1, %s17
      %s41 = scalar_select %p38, %s40, %s17
      %p42 = scmp.ge.s32.totalorder %s41, 1
      %s43 = scalar_select %p42, 0, %s41
      %s44 = ssub.s32 %s19, %s35
      %s45 = ssub.s32 %s17, %s43
      %s46 = sor.u32 %s44, %s45
      %s47 = ssub.s32 %s20, %s31
      %s48 = sor.u32 %s46, %s47
      %p49 = scmp.eq.s32.totalorder %s48, 0
      %s51 = sadd.s32 %s50, 1
      %s52 = scalar_select %p49, %s50, %s51
      %p55 = pneg %p49
      %p56 = scmp.eq.s32.totalorder %s10, 17
      %p57 = por %p55, %p56
      %p58 = scmp.ne.s32.totalorder %s50, %s53
      %p59 = scmp.eq.s32.totalorder %s10, 0
      %p60 = por %p58, %p59
      %p61 = scmp.ne.s32.totalorder %s50, %s53
      %p62 = scmp.eq.s32.totalorder %s15, 17
      %p63 = por %p61, %p62
      %p64 = scmp.ne.s32.totalorder %s53, %s54
      %p65 = scmp.eq.s32.totalorder %s15, 0
      %p66 = por %p64, %p65
      %p67 = scmp.ne.s32.totalorder %s53, %s54
      %p68 = scmp.eq.s32.totalorder %s16, 17
      %p69 = por %p67, %p68
      %p71 = scmp.ne.s32.totalorder %s54, %s70
      %p72 = scmp.eq.s32.totalorder %s16, 0
      %p73 = por %p71, %p72
      %s74 = ssub.s32 %s19, %s35
      %s75 = ssub.s32 %s20, %s31
      %s76 = sor.u32 %s74, %s75
      %s77 = ssub.s32 %s18, %s39
      %s78 = sor.u32 %s76, %s77
      %p79 = scmp.eq.s32.totalorder %s78, 0
      %s81 = sadd.s32 %s80, 1
      %s82 = scalar_select %p79, %s80, %s81
      %p85 = pneg %p79
      %p86 = scmp.eq.s32.totalorder %s10, 17
      %p87 = por %p85, %p86
      %p88 = scmp.ne.s32.totalorder %s80, %s83
      %p89 = scmp.eq.s32.totalorder %s10, 0
      %p90 = por %p88, %p89
      %p91 = scmp.ne.s32.totalorder %s80, %s83
      %p92 = scmp.eq.s32.totalorder %s15, 17
      %p93 = por %p91, %p92
      %p94 = scmp.ne.s32.totalorder %s83, %s84
      %p95 = scmp.eq.s32.totalorder %s15, 0
      %p96 = por %p94, %p95
      %p97 = scmp.ne.s32.totalorder %s83, %s84
      %p98 = scmp.eq.s32.totalorder %s16, 17
      %p99 = por %p97, %p98
      %p101 = scmp.ne.s32.totalorder %s84, %s100
      %p102 = scmp.eq.s32.totalorder %s16, 0
      %p103 = por %p101, %p102
      %s104 = ssub.s32 %s18, %s39
      %p105 = scmp.eq.s32.totalorder %s104, 0
      %s107 = sadd.s32 %s106, 1
      %s108 = scalar_select %p105, %s106, %s107
      %p111 = pneg %p105
      %p112 = scmp.eq.s32.totalorder %s10, 17
      %p113 = por %p111, %p112
      %p114 = scmp.ne.s32.totalorder %s106, %s109
      %p115 = scmp.eq.s32.totalorder %s10, 0
      %p116 = por %p114, %p115
      %p117 = scmp.ne.s32.totalorder %s106, %s109
      %p118 = scmp.eq.s32.totalorder %s15, 17
      %p119 = por %p117, %p118
      %p120 = scmp.ne.s32.totalorder %s109, %s110
      %p121 = scmp.eq.s32.totalorder %s15, 0
      %p122 = por %p120, %p121
      %p123 = scmp.ne.s32.totalorder %s109, %s110
      %p124 = scmp.eq.s32.totalorder %s16, 17
      %p125 = por %p123, %p124
      %p127 = scmp.ne.s32.totalorder %s110, %s126
      %p128 = scmp.eq.s32.totalorder %s16, 0
      %p129 = por %p127, %p128
      %s130 = ssub.s32 %s18, %s39
      %p131 = scmp.eq.s32.totalorder %s130, 0
      %s133 = sadd.s32 %s132, 1
      %s134 = scalar_select %p131, %s132, %s133
      %p137 = pneg %p131
      %p138 = scmp.eq.s32.totalorder %s10, 17
      %p139 = por %p137, %p138
      %p140 = scmp.ne.s32.totalorder %s132, %s135
      %p141 = scmp.eq.s32.totalorder %s10, 0
      %p142 = por %p140, %p141
      %p143 = scmp.ne.s32.totalorder %s132, %s135
      %p144 = scmp.eq.s32.totalorder %s15, 17
      %p145 = por %p143, %p144
      %p146 = scmp.ne.s32.totalorder %s135, %s136
      %p147 = scmp.eq.s32.totalorder %s15, 0
      %p148 = por %p146, %p147
      %p149 = scmp.ne.s32.totalorder %s135, %s136
      %p150 = scmp.eq.s32.totalorder %s16, 17
      %p151 = por %p149, %p150
      %p153 = scmp.ne.s32.totalorder %s136, %s152
      %p154 = scmp.eq.s32.totalorder %s16, 0
      %p155 = por %p153, %p154
      %s156 = ssub.s32 %s17, %s43
      %s157 = ssub.s32 %s18, %s39
      %s158 = sor.u32 %s156, %s157
      %p159 = scmp.eq.s32.totalorder %s158, 0
      %s161 = sadd.s32 %s160, 1
      %s162 = scalar_select %p159, %s160, %s161
      %p165 = pneg %p159
      %p166 = scmp.eq.s32.totalorder %s10, 17
      %p167 = por %p165, %p166
      %p168 = scmp.ne.s32.totalorder %s160, %s163
      %p169 = scmp.eq.s32.totalorder %s10, 0
      %p170 = por %p168, %p169
      %p171 = scmp.ne.s32.totalorder %s160, %s163
      %p172 = scmp.eq.s32.totalorder %s15, 17
      %p173 = por %p171, %p172
      %p174 = scmp.ne.s32.totalorder %s163, %s164
      %p175 = scmp.eq.s32.totalorder %s15, 0
      %p176 = por %p174, %p175
      %p177 = scmp.ne.s32.totalorder %s163, %s164
      %p178 = scmp.eq.s32.totalorder %s16, 17
      %p179 = por %p177, %p178
      %p181 = scmp.ne.s32.totalorder %s164, %s180
      %p182 = scmp.eq.s32.totalorder %s16, 0
      %p183 = por %p181, %p182
      %p184 = scmp.le.s32.totalorder 1, %s10
      %p185 = scmp.lt.s32.totalorder %s10, 19
      %p186 = pnand %p184, %p185
      %p187 = pneg %p186
      // Predicated region
      $region9: #{extra_layers_forward.12} parent=5 // pred_check
        _
      $region10: #{extra_layers_forward.12} parent=5 // pred_check_branch
        %189 = sbr.rel (%p186) target = $region12
      $region11: #{extra_layers_forward.12} parent=5 // pred_region
        %s190 = ssub.s32 %s10, 1
      $region12: #{extra_layers_forward.12} parent=5 // pred_fallthru
        _
      %p191 = scmp.lt.s32.totalorder %s10, 18
      // Predicated region
      $region13: #{extra_layers_forward.12} parent=5 // pred_check
        %p192 = pneg %p191
      $region14: #{extra_layers_forward.12} parent=5 // pred_check_branch
        %194 = sbr.rel (%p192) target = $region16
      $region15: #{extra_layers_forward.12} parent=5 // pred_region
        // Predicated region
        $region17: #{extra_layers_forward.12} parent=15 // pred_check
          %p195 = pneg %p60
        $region18: #{extra_layers_forward.12} parent=15 // pred_check_branch
          %197 = sbr.rel (%p195) target = $region20
        $region19: #{extra_layers_forward.12} parent=15 // pred_region
          %s198 = smul.u32 2, %s20
          %p199 = scmp.lt.s32.totalorder %s19, 8
          %s200 = scalar_select %p199, %s19, 8
          %p201 = scmp.lt.s32.totalorder %s17, 0
          %s202 = scalar_select %p201, %s17, 0
          %p203 = scmp.lt.s32.totalorder %s198, 1
          %s204 = scalar_select %p203, %s198, 1
          %s205 = smul.addr %s202, 2
          %s206 = sadd.s32 %s204, %s205
          %s207 = smul.addr %s200, 2
          %s208 = sadd.s32 %s206, %s207
          %s209 = smul.addr %s208, 4
          %s210 = scalar_lea.vmem %s0, %s209
          %s211 = smul.u32 2, %s20
        $region20: #{extra_layers_forward.12} parent=15 // pred_fallthru
          _
        // Predicated region
        $region21: #{extra_layers_forward.12} parent=15 // pred_check
          %p212 = pneg %p90
        $region22: #{extra_layers_forward.12} parent=15 // pred_check_branch
          %214 = sbr.rel (%p212) target = $region24
        $region23: #{extra_layers_forward.12} parent=15 // pred_region
          %s215 = sand.u32 %s80, 1
          %s216 = sand.u32 %s80, 1
          %s217 = smul.addr %s216, 256
          %s218 = scalar_lea.vmem [#allocation3], %s217
          %s219 = smul.u32 32, %s20
          %s220 = smul.u32 2, %s18
          %s221 = smul.addr %s219, 4
          %s222 = sadd.s32 %s220, %s221
          %s223 = smul.addr %s19, 128
          %s224 = sadd.s32 %s222, %s223
          %s225 = smul.addr %s224, 4
          %s226 = scalar_lea.vmem %s1, %s225
          // Predicated region
          $region25: #{extra_layers_forward.12} parent=23 // pred_check
            _
          $region26: #{extra_layers_forward.12} parent=23 // pred_check_branch
            %228 = sbr.rel (0) target = $region28
          $region27: #{extra_layers_forward.12} parent=23 // pred_region
            // Predicated region
            $region29: #{extra_layers_forward.12} parent=27 // pred_check
              _
            $region30: #{extra_layers_forward.12} parent=27 // pred_check_branch
              %230 = sbr.rel (0) target = $region32
            $region31: #{extra_layers_forward.12} parent=27 // pred_region
              // Predicated region
              $region44: #{extra_layers_forward.12} parent=31 // pred_check
                _
              $region45: #{extra_layers_forward.12} parent=31 // pred_check_branch
                %307 = sbr.rel (0) target = $region47
              $region46: #{extra_layers_forward.12} parent=31 // pred_region
                loop: start=0, step=1, limit=1
                $region48: #{extra_layers_forward.12} parent=46 // loop_pre_header
                  _
                $region49: #{extra_layers_forward.12} parent=46 // loop_header
                  %s309 = sphi 0, %s313
                  %p310 = scmp.ge.s32.totalorder %s309, 1
                  %s314 = sphi %s226, %s226
                  %s315 = sphi %s218, %s218
                $region50: #{extra_layers_forward.12} parent=46 // loop_header_branch
                  %312 = sbr.rel (%p310) target = $region54
                $region51: #{extra_layers_forward.12} parent=46 // loop_body
                  %v316 = vld [vmem:[%s314] sm:$0xff]
                  %317 = vst [vmem:[%s315] sm:$0xff] %v316
                  %v318 = vld [vmem:[%s314 + $0x10] sm:$0xff]
                  %319 = vst [vmem:[%s315 + $0x8] sm:$0xff] %v318
                  %v320 = vld [vmem:[%s314 + $0x20] sm:$0xff]
                  %321 = vst [vmem:[%s315 + $0x10] sm:$0xff] %v320
                  %v322 = vld [vmem:[%s314 + $0x30] sm:$0xff]
                  %323 = vst [vmem:[%s315 + $0x18] sm:$0xff] %v322
                  %v324 = vld [vmem:[%s314 + $0x40] sm:$0xff]
                  %325 = vst [vmem:[%s315 + $0x20] sm:$0xff] %v324
                  %v326 = vld [vmem:[%s314 + $0x50] sm:$0xff]
                  %327 = vst [vmem:[%s315 + $0x28] sm:$0xff] %v326
                  %v328 = vld [vmem:[%s314 + $0x60] sm:$0xff]
                  %329 = vst [vmem:[%s315 + $0x30] sm:$0xff] %v328
                  %v330 = vld [vmem:[%s314 + $0x70] sm:$0xff]
                  %331 = vst [vmem:[%s315 + $0x38] sm:$0xff] %v330
                  %v332 = vld [vmem:[%s314 + $0x80] sm:$0xff]
                  %333 = vst [vmem:[%s315 + $0x40] sm:$0xff] %v332
                  %v334 = vld [vmem:[%s314 + $0x90] sm:$0xff]
                  %335 = vst [vmem:[%s315 + $0x48] sm:$0xff] %v334
                  %v336 = vld [vmem:[%s314 + $0xa0] sm:$0xff]
                  %337 = vst [vmem:[%s315 + $0x50] sm:$0xff] %v336
                  %v338 = vld [vmem:[%s314 + $0xb0] sm:$0xff]
                  %339 = vst [vmem:[%s315 + $0x58] sm:$0xff] %v338
                  %v340 = vld [vmem:[%s314 + $0xc0] sm:$0xff]
                  %341 = vst [vmem:[%s315 + $0x60] sm:$0xff] %v340
                  %v342 = vld [vmem:[%s314 + $0xd0] sm:$0xff]
                  %343 = vst [vmem:[%s315 + $0x68] sm:$0xff] %v342
                  %v344 = vld [vmem:[%s314 + $0xe0] sm:$0xff]
                  %345 = vst [vmem:[%s315 + $0x70] sm:$0xff] %v344
                  %v346 = vld [vmem:[%s314 + $0xf0] sm:$0xff]
                  %347 = vst [vmem:[%s315 + $0x78] sm:$0xff] %v346
                  %v348 = vld [vmem:[%s314 + $0x100] sm:$0xff]
                  %349 = vst [vmem:[%s315 + $0x80] sm:$0xff] %v348
                  %v350 = vld [vmem:[%s314 + $0x110] sm:$0xff]
                  %351 = vst [vmem:[%s315 + $0x88] sm:$0xff] %v350
                  %v352 = vld [vmem:[%s314 + $0x120] sm:$0xff]
                  %353 = vst [vmem:[%s315 + $0x90] sm:$0xff] %v352
                  %v354 = vld [vmem:[%s314 + $0x130] sm:$0xff]
                  %355 = vst [vmem:[%s315 + $0x98] sm:$0xff] %v354
                  %v356 = vld [vmem:[%s314 + $0x140] sm:$0xff]
                  %357 = vst [vmem:[%s315 + $0xa0] sm:$0xff] %v356
                  %v358 = vld [vmem:[%s314 + $0x150] sm:$0xff]
                  %359 = vst [vmem:[%s315 + $0xa8] sm:$0xff] %v358
                  %v360 = vld [vmem:[%s314 + $0x160] sm:$0xff]
                  %361 = vst [vmem:[%s315 + $0xb0] sm:$0xff] %v360
                  %v362 = vld [vmem:[%s314 + $0x170] sm:$0xff]
                  %363 = vst [vmem:[%s315 + $0xb8] sm:$0xff] %v362
                  %v364 = vld [vmem:[%s314 + $0x180] sm:$0xff]
                  %365 = vst [vmem:[%s315 + $0xc0] sm:$0xff] %v364
                  %v366 = vld [vmem:[%s314 + $0x190] sm:$0xff]
                  %367 = vst [vmem:[%s315 + $0xc8] sm:$0xff] %v366
                  %v368 = vld [vmem:[%s314 + $0x1a0] sm:$0xff]
                  %369 = vst [vmem:[%s315 + $0xd0] sm:$0xff] %v368
                  %v370 = vld [vmem:[%s314 + $0x1b0] sm:$0xff]
                  %371 = vst [vmem:[%s315 + $0xd8] sm:$0xff] %v370
                  %v372 = vld [vmem:[%s314 + $0x1c0] sm:$0xff]
                  %373 = vst [vmem:[%s315 + $0xe0] sm:$0xff] %v372
                  %v374 = vld [vmem:[%s314 + $0x1d0] sm:$0xff]
                  %375 = vst [vmem:[%s315 + $0xe8] sm:$0xff] %v374
                  %v376 = vld [vmem:[%s314 + $0x1e0] sm:$0xff]
                  %377 = vst [vmem:[%s315 + $0xf0] sm:$0xff] %v376
                  %v378 = vld [vmem:[%s314 + $0x1f0] sm:$0xff]
                  %379 = vst [vmem:[%s315 + $0xf8] sm:$0xff] %v378
                $region52: #{extra_layers_forward.12} parent=46 // loop_footer
                  %s313 = sadd.s32 1, %s309
                $region53: #{extra_layers_forward.12} parent=46 // loop_footer_branch
                  %308 = sbr.rel target = $region49
                $region54: #{extra_layers_forward.12} parent=46 // loop_exit
                  _
              $region47: #{extra_layers_forward.12} parent=31 // pred_fallthru
                _
              // Predicated region
              $region55: #{extra_layers_forward.12} parent=31 // pred_check
                _
              $region56: #{extra_layers_forward.12} parent=31 // pred_check_branch
                %381 = sbr.rel target = $region58
              $region57: #{extra_layers_forward.12} parent=31 // pred_region
                _
              $region58: #{extra_layers_forward.12} parent=31 // pred_fallthru
                _
            $region32: #{extra_layers_forward.12} parent=27 // pred_fallthru
              _
            // Predicated region
            $region33: #{extra_layers_forward.12} parent=27 // pred_check
              _
            $region34: #{extra_layers_forward.12} parent=27 // pred_check_branch
              %232 = sbr.rel target = $region36
            $region35: #{extra_layers_forward.12} parent=27 // pred_region
              loop: start=0, step=1, limit=1
              $region37: #{extra_layers_forward.12} parent=35 // loop_pre_header
                _
              $region38: #{extra_layers_forward.12} parent=35 // loop_header
                %s235 = sphi 0, %s239
                %p236 = scmp.ge.s32.totalorder %s235, 1
                %s240 = sphi %s226, %s226
                %s241 = sphi %s218, %s218
              $region39: #{extra_layers_forward.12} parent=35 // loop_header_branch
                %238 = sbr.rel (%p236) target = $region43
              $region40: #{extra_layers_forward.12} parent=35 // loop_body
                %v242 = vld [vmem:[%s240] sm:$0xff]
                %243 = vst [vmem:[%s241] sm:$0xff] %v242
                %v244 = vld [vmem:[%s240 + $0x10] sm:$0xff]
                %245 = vst [vmem:[%s241 + $0x8] sm:$0xff] %v244
                %v246 = vld [vmem:[%s240 + $0x20] sm:$0xff]
                %247 = vst [vmem:[%s241 + $0x10] sm:$0xff] %v246
                %v248 = vld [vmem:[%s240 + $0x30] sm:$0xff]
                %249 = vst [vmem:[%s241 + $0x18] sm:$0xff] %v248
                %v250 = vld [vmem:[%s240 + $0x40] sm:$0xff]
                %251 = vst [vmem:[%s241 + $0x20] sm:$0xff] %v250
                %v252 = vld [vmem:[%s240 + $0x50] sm:$0xff]
                %253 = vst [vmem:[%s241 + $0x28] sm:$0xff] %v252
                %v254 = vld [vmem:[%s240 + $0x60] sm:$0xff]
                %255 = vst [vmem:[%s241 + $0x30] sm:$0xff] %v254
                %v256 = vld [vmem:[%s240 + $0x70] sm:$0xff]
                %257 = vst [vmem:[%s241 + $0x38] sm:$0xff] %v256
                %v258 = vld [vmem:[%s240 + $0x80] sm:$0xff]
                %259 = vst [vmem:[%s241 + $0x40] sm:$0xff] %v258
                %v260 = vld [vmem:[%s240 + $0x90] sm:$0xff]
                %261 = vst [vmem:[%s241 + $0x48] sm:$0xff] %v260
                %v262 = vld [vmem:[%s240 + $0xa0] sm:$0xff]
                %263 = vst [vmem:[%s241 + $0x50] sm:$0xff] %v262
                %v264 = vld [vmem:[%s240 + $0xb0] sm:$0xff]
                %265 = vst [vmem:[%s241 + $0x58] sm:$0xff] %v264
                %v266 = vld [vmem:[%s240 + $0xc0] sm:$0xff]
                %267 = vst [vmem:[%s241 + $0x60] sm:$0xff] %v266
                %v268 = vld [vmem:[%s240 + $0xd0] sm:$0xff]
                %269 = vst [vmem:[%s241 + $0x68] sm:$0xff] %v268
                %v270 = vld [vmem:[%s240 + $0xe0] sm:$0xff]
                %271 = vst [vmem:[%s241 + $0x70] sm:$0xff] %v270
                %v272 = vld [vmem:[%s240 + $0xf0] sm:$0xff]
                %273 = vst [vmem:[%s241 + $0x78] sm:$0xff] %v272
                %v274 = vld [vmem:[%s240 + $0x100] sm:$0xff]
                %275 = vst [vmem:[%s241 + $0x80] sm:$0xff] %v274
                %v276 = vld [vmem:[%s240 + $0x110] sm:$0xff]
                %277 = vst [vmem:[%s241 + $0x88] sm:$0xff] %v276
                %v278 = vld [vmem:[%s240 + $0x120] sm:$0xff]
                %279 = vst [vmem:[%s241 + $0x90] sm:$0xff] %v278
                %v280 = vld [vmem:[%s240 + $0x130] sm:$0xff]
                %281 = vst [vmem:[%s241 + $0x98] sm:$0xff] %v280
                %v282 = vld [vmem:[%s240 + $0x140] sm:$0xff]
                %283 = vst [vmem:[%s241 + $0xa0] sm:$0xff] %v282
                %v284 = vld [vmem:[%s240 + $0x150] sm:$0xff]
                %285 = vst [vmem:[%s241 + $0xa8] sm:$0xff] %v284
                %v286 = vld [vmem:[%s240 + $0x160] sm:$0xff]
                %287 = vst [vmem:[%s241 + $0xb0] sm:$0xff] %v286
                %v288 = vld [vmem:[%s240 + $0x170] sm:$0xff]
                %289 = vst [vmem:[%s241 + $0xb8] sm:$0xff] %v288
                %v290 = vld [vmem:[%s240 + $0x180] sm:$0xff]
                %291 = vst [vmem:[%s241 + $0xc0] sm:$0xff] %v290
                %v292 = vld [vmem:[%s240 + $0x190] sm:$0xff]
                %293 = vst [vmem:[%s241 + $0xc8] sm:$0xff] %v292
                %v294 = vld [vmem:[%s240 + $0x1a0] sm:$0xff]
                %295 = vst [vmem:[%s241 + $0xd0] sm:$0xff] %v294
                %v296 = vld [vmem:[%s240 + $0x1b0] sm:$0xff]
                %297 = vst [vmem:[%s241 + $0xd8] sm:$0xff] %v296
                %v298 = vld [vmem:[%s240 + $0x1c0] sm:$0xff]
                %299 = vst [vmem:[%s241 + $0xe0] sm:$0xff] %v298
                %v300 = vld [vmem:[%s240 + $0x1d0] sm:$0xff]
                %301 = vst [vmem:[%s241 + $0xe8] sm:$0xff] %v300
                %v302 = vld [vmem:[%s240 + $0x1e0] sm:$0xff]
                %303 = vst [vmem:[%s241 + $0xf0] sm:$0xff] %v302
                %v304 = vld [vmem:[%s240 + $0x1f0] sm:$0xff]
                %305 = vst [vmem:[%s241 + $0xf8] sm:$0xff] %v304
              $region41: #{extra_layers_forward.12} parent=35 // loop_footer
                %s239 = sadd.s32 1, %s235
              $region42: #{extra_layers_forward.12} parent=35 // loop_footer_branch
                %234 = sbr.rel target = $region38
              $region43: #{extra_layers_forward.12} parent=35 // loop_exit
                _
            $region36: #{extra_layers_forward.12} parent=27 // pred_fallthru
              _
          $region28: #{extra_layers_forward.12} parent=23 // pred_fallthru
            _
          %382 = vnop
        $region24: #{extra_layers_forward.12} parent=15 // pred_fallthru
          _
        // Predicated region
        $region59: #{extra_layers_forward.12} parent=15 // pred_check
          %p383 = pneg %p116
        $region60: #{extra_layers_forward.12} parent=15 // pred_check_branch
          %385 = sbr.rel (%p383) target = $region62
        $region61: #{extra_layers_forward.12} parent=15 // pred_region
          %s386 = smul.u32 2, %s18
          %p387 = scmp.lt.s32.totalorder %s386, 3
          %s388 = scalar_select %p387, %s386, 3
          %s389 = scalar_lea.vmem %s2, %s388
          %s390 = smul.u32 2, %s18
        $region62: #{extra_layers_forward.12} parent=15 // pred_fallthru
          _
        // Predicated region
        $region63: #{extra_layers_forward.12} parent=15 // pred_check
          %p391 = pneg %p142
        $region64: #{extra_layers_forward.12} parent=15 // pred_check_branch
          %393 = sbr.rel (%p391) target = $region66
        $region65: #{extra_layers_forward.12} parent=15 // pred_region
          %s394 = smul.u32 2, %s18
          %p395 = scmp.lt.s32.totalorder %s394, 3
          %s396 = scalar_select %p395, %s394, 3
          %s397 = scalar_lea.vmem %s3, %s396
          %s398 = smul.u32 2, %s18
        $region66: #{extra_layers_forward.12} parent=15 // pred_fallthru
          _
      $region16: #{extra_layers_forward.12} parent=5 // pred_fallthru
        _
      %p399 = scmp.le.s32.totalorder 1, %s10
      %p400 = scmp.lt.s32.totalorder %s10, 19
      %p401 = pnand %p399, %p400
      %p402 = pneg %p401
      // Predicated region
      $region67: #{extra_layers_forward.12} parent=5 // pred_check
        _
      $region68: #{extra_layers_forward.12} parent=5 // pred_check_branch
        %404 = sbr.rel (%p401) target = $region70
      $region69: #{extra_layers_forward.12} parent=5 // pred_region
        %s405 = ssub.s32 %s10, 1
        %s406 = sand.u32 %s83, 1
        %s407 = sand.u32 %s83, 1
        %s408 = smul.addr %s407, 256
        %s409 = scalar_lea.vmem [#allocation3], %s408
        // Predicated region
        $region71: #{extra_layers_forward.12} parent=69 // pred_check
          %p410 = pneg %p96
        $region72: #{extra_layers_forward.12} parent=69 // pred_check_branch
          %412 = sbr.rel (%p410) target = $region74
        $region73: #{extra_layers_forward.12} parent=69 // pred_region
          _
        $region74: #{extra_layers_forward.12} parent=69 // pred_fallthru
          _
        %s413 = smul.u32 2, %s24
        %p414 = scmp.lt.s32.totalorder %s23, 8
        %s415 = scalar_select %p414, %s23, 8
        %p416 = scmp.lt.s32.totalorder %s21, 0
        %s417 = scalar_select %p416, %s21, 0
        %p418 = scmp.lt.s32.totalorder %s413, 1
        %s419 = scalar_select %p418, %s413, 1
        %s420 = smul.addr %s417, 2
        %s421 = sadd.s32 %s419, %s420
        %s422 = smul.addr %s415, 2
        %s423 = sadd.s32 %s421, %s422
        %s424 = smul.addr %s423, 4
        %s425 = scalar_lea.vmem %s0, %s424
        %p426 = pneg %p66
        %p427 = pneg %p63
        %s428 = sand.u32 %s83, 1
        %s429 = sand.u32 %s83, 1
        %s430 = smul.addr %s429, 256
        %s431 = scalar_lea.vmem [#allocation3], %s430
        %p432 = pneg %p96
        %p433 = pneg %p93
        %s434 = smul.u32 2, %s22
        %p435 = scmp.lt.s32.totalorder %s434, 3
        %s436 = scalar_select %p435, %s434, 3
        %s437 = scalar_lea.vmem %s2, %s436
        %p438 = pneg %p122
        %p439 = pneg %p119
        %s440 = smul.u32 2, %s22
        %p441 = scmp.lt.s32.totalorder %s440, 3
        %s442 = scalar_select %p441, %s440, 3
        %s443 = scalar_lea.vmem %s3, %s442
        %p444 = pneg %p148
        %p445 = pneg %p145
        %p446 = pneg %p176
        %p447 = pneg %p173
        %s448 = smul.u32 2, %s22
        %p449 = scmp.lt.s32.totalorder %s21, 0
        %s450 = scalar_select %p449, %s21, 0
        %p451 = scmp.lt.s32.totalorder %s448, 3
        %s452 = scalar_select %p451, %s448, 3
        %s453 = smul.addr %s450, 4
        %s454 = sadd.s32 %s452, %s453
        %s455 = smul.addr %s454, 8
        %s456 = scalar_lea.vmem %s4, %s455
        %s457 = smul.u32 2, %s24
        %p458 = scmp.lt.s32.totalorder %s23, 8
        %s459 = scalar_select %p458, %s23, 8
        %p460 = scmp.lt.s32.totalorder %s21, 0
        %s461 = scalar_select %p460, %s21, 0
        %p462 = scmp.lt.s32.totalorder %s457, 1
        %s463 = scalar_select %p462, %s457, 1
        %s464 = smul.addr %s461, 2
        %s465 = sadd.s32 %s463, %s464
        %s466 = smul.addr %s459, 2
        %s467 = sadd.s32 %s465, %s466
        %s468 = smul.addr %s467, 4
        %s469 = scalar_lea.vmem %s0, %s468
        %s470 = smul.u32 2, %s24
        %s471 = smul.u32 32, %s24
        %s472 = smul.u32 2, %s22
        %s473 = smul.u32 2, %s22
        %p474 = scmp.lt.s32.totalorder %s473, 3
        %s475 = scalar_select %p474, %s473, 3
        %s476 = scalar_lea.vmem %s2, %s475
        %s477 = smul.u32 2, %s22
        %s478 = smul.u32 2, %s22
        %p479 = scmp.lt.s32.totalorder %s478, 3
        %s480 = scalar_select %p479, %s478, 3
        %s481 = scalar_lea.vmem %s3, %s480
        %s482 = smul.u32 2, %s22
        %s483 = smul.u32 2, %s22
        %p484 = scmp.lt.s32.totalorder %s21, 0
        %s485 = scalar_select %p484, %s21, 0
        %p486 = scmp.lt.s32.totalorder %s483, 3
        %s487 = scalar_select %p486, %s483, 3
        %s488 = smul.addr %s485, 4
        %s489 = sadd.s32 %s487, %s488
        %s490 = smul.addr %s489, 8
        %s491 = scalar_lea.vmem %s4, %s490
        %s492 = smul.u32 2, %s22
        %p493 = scmp.eq.s32.totalorder %s23, 0
        %p494 = scmp.eq.s32.totalorder %s24, 0
        %p495 = pnand %p493, %p494
        %p496 = pneg %p495
        // Predicated region
        $region75: #{extra_layers_forward.12} parent=69 // pred_check
          _
        $region76: #{extra_layers_forward.12} parent=69 // pred_check_branch
          %498 = sbr.rel (%p495) target = $region78
        $region77: #{extra_layers_forward.12} parent=69 // pred_region
          %499 = vst [vmem:[#allocation2] sm:$0xff] 0.0
          %500 = vst [vmem:[#allocation2 + $0x8] sm:$0xff] 0.0
        $region78: #{extra_layers_forward.12} parent=69 // pred_fallthru
          _
        %v501 = vld [vmem:[#allocation2] sm:$0xff]
        %v502 = vld [vmem:[#allocation2 + $0x8] sm:$0xff]
        %v503 = vld [vmem:[%s469] sm:$0xff]
        %v504 = vld [vmem:[%s409] sm:$0xff]
        %v505 = vld [vmem:[%s409 + $0x8] sm:$0xff]
        %v506 = vld [vmem:[%s409 + $0x10] sm:$0xff]
        %v507 = vld [vmem:[%s409 + $0x18] sm:$0xff]
        %v508 = vld [vmem:[%s409 + $0x20] sm:$0xff]
        %v509 = vld [vmem:[%s409 + $0x28] sm:$0xff]
        %v510 = vld [vmem:[%s409 + $0x30] sm:$0xff]
        %v511 = vld [vmem:[%s409 + $0x38] sm:$0xff]
        %v512 = vld [vmem:[%s409 + $0x40] sm:$0xff]
        %v513 = vld [vmem:[%s409 + $0x48] sm:$0xff]
        %v514 = vld [vmem:[%s409 + $0x50] sm:$0xff]
        %v515 = vld [vmem:[%s409 + $0x58] sm:$0xff]
        %v516 = vld [vmem:[%s409 + $0x60] sm:$0xff]
        %v517 = vld [vmem:[%s409 + $0x68] sm:$0xff]
        %v518 = vld [vmem:[%s409 + $0x70] sm:$0xff]
        %v519 = vld [vmem:[%s409 + $0x78] sm:$0xff]
        %v520 = vld [vmem:[%s409 + $0x80] sm:$0xff]
        %v521 = vld [vmem:[%s409 + $0x88] sm:$0xff]
        %v522 = vld [vmem:[%s409 + $0x90] sm:$0xff]
        %v523 = vld [vmem:[%s409 + $0x98] sm:$0xff]
        %v524 = vld [vmem:[%s409 + $0xa0] sm:$0xff]
        %v525 = vld [vmem:[%s409 + $0xa8] sm:$0xff]
        %v526 = vld [vmem:[%s409 + $0xb0] sm:$0xff]
        %v527 = vld [vmem:[%s409 + $0xb8] sm:$0xff]
        %v528 = vld [vmem:[%s409 + $0xc0] sm:$0xff]
        %v529 = vld [vmem:[%s409 + $0xc8] sm:$0xff]
        %v530 = vld [vmem:[%s409 + $0xd0] sm:$0xff]
        %v531 = vld [vmem:[%s409 + $0xd8] sm:$0xff]
        %v532 = vld [vmem:[%s409 + $0xe0] sm:$0xff]
        %v533 = vld [vmem:[%s409 + $0xe8] sm:$0xff]
        %v534 = vld [vmem:[%s409 + $0xf0] sm:$0xff]
        %v535 = vld [vmem:[%s409 + $0xf8] sm:$0xff]
        %v537 = vunpack.c.l.b16 %v503
        %v538 = vunpack.c.h.b16 %v503
        %v539 = vpack.c.b16 %v537, %v537
        %v540 = vpack.c.b16 %v538, %v538
        %v575 = vunpack.c.l.b16 %v504
        %v576 = vunpack.c.h.b16 %v504
        %v577 = vunpack.c.l.b16 %v505
        %v578 = vunpack.c.h.b16 %v505
        %v579 = vunpack.c.l.b16 %v506
        %v580 = vunpack.c.h.b16 %v506
        %v581 = vunpack.c.l.b16 %v507
        %v582 = vunpack.c.h.b16 %v507
        %v583 = vunpack.c.l.b16 %v508
        %v584 = vunpack.c.h.b16 %v508
        %v585 = vunpack.c.l.b16 %v509
        %v586 = vunpack.c.h.b16 %v509
        %v587 = vunpack.c.l.b16 %v510
        %v588 = vunpack.c.h.b16 %v510
        %v589 = vunpack.c.l.b16 %v511
        %v590 = vunpack.c.h.b16 %v511
        %v591 = vunpack.c.l.b16 %v512
        %v592 = vunpack.c.h.b16 %v512
        %v593 = vunpack.c.l.b16 %v513
        %v594 = vunpack.c.h.b16 %v513
        %v595 = vunpack.c.l.b16 %v514
        %v596 = vunpack.c.h.b16 %v514
        %v597 = vunpack.c.l.b16 %v515
        %v598 = vunpack.c.h.b16 %v515
        %v599 = vunpack.c.l.b16 %v516
        %v600 = vunpack.c.h.b16 %v516
        %v601 = vunpack.c.l.b16 %v517
        %v602 = vunpack.c.h.b16 %v517
        %v603 = vunpack.c.l.b16 %v518
        %v604 = vunpack.c.h.b16 %v518
        %v605 = vunpack.c.l.b16 %v519
        %v606 = vunpack.c.h.b16 %v519
        %v607 = vunpack.c.l.b16 %v520
        %v608 = vunpack.c.h.b16 %v520
        %v609 = vunpack.c.l.b16 %v521
        %v610 = vunpack.c.h.b16 %v521
        %v611 = vunpack.c.l.b16 %v522
        %v612 = vunpack.c.h.b16 %v522
        %v613 = vunpack.c.l.b16 %v523
        %v614 = vunpack.c.h.b16 %v523
        %v615 = vunpack.c.l.b16 %v524
        %v616 = vunpack.c.h.b16 %v524
        %v617 = vunpack.c.l.b16 %v525
        %v618 = vunpack.c.h.b16 %v525
        %v619 = vunpack.c.l.b16 %v526
        %v620 = vunpack.c.h.b16 %v526
        %v621 = vunpack.c.l.b16 %v527
        %v622 = vunpack.c.h.b16 %v527
        %v623 = vunpack.c.l.b16 %v528
        %v624 = vunpack.c.h.b16 %v528
        %v625 = vunpack.c.l.b16 %v529
        %v626 = vunpack.c.h.b16 %v529
        %v627 = vunpack.c.l.b16 %v530
        %v628 = vunpack.c.h.b16 %v530
        %v629 = vunpack.c.l.b16 %v531
        %v630 = vunpack.c.h.b16 %v531
        %v631 = vunpack.c.l.b16 %v532
        %v632 = vunpack.c.h.b16 %v532
        %v633 = vunpack.c.l.b16 %v533
        %v634 = vunpack.c.h.b16 %v533
        %v635 = vunpack.c.l.b16 %v534
        %v636 = vunpack.c.h.b16 %v534
        %v637 = vunpack.c.l.b16 %v535
        %v638 = vunpack.c.h.b16 %v535
        %v639 = vpack.c.b16 %v577, %v575
        %v640 = vpack.c.b16 %v578, %v576
        %v641 = vpack.c.b16 %v581, %v579
        %v642 = vpack.c.b16 %v582, %v580
        %v643 = vpack.c.b16 %v585, %v583
        %v644 = vpack.c.b16 %v586, %v584
        %v645 = vpack.c.b16 %v589, %v587
        %v646 = vpack.c.b16 %v590, %v588
        %v647 = vpack.c.b16 %v593, %v591
        %v648 = vpack.c.b16 %v594, %v592
        %v649 = vpack.c.b16 %v597, %v595
        %v650 = vpack.c.b16 %v598, %v596
        %v651 = vpack.c.b16 %v601, %v599
        %v652 = vpack.c.b16 %v602, %v600
        %v653 = vpack.c.b16 %v605, %v603
        %v654 = vpack.c.b16 %v606, %v604
        %v655 = vpack.c.b16 %v609, %v607
        %v656 = vpack.c.b16 %v610, %v608
        %v657 = vpack.c.b16 %v613, %v611
        %v658 = vpack.c.b16 %v614, %v612
        %v659 = vpack.c.b16 %v617, %v615
        %v660 = vpack.c.b16 %v618, %v616
        %v661 = vpack.c.b16 %v621, %v619
        %v662 = vpack.c.b16 %v622, %v620
        %v663 = vpack.c.b16 %v625, %v623
        %v664 = vpack.c.b16 %v626, %v624
        %v665 = vpack.c.b16 %v629, %v627
        %v666 = vpack.c.b16 %v630, %v628
        %v667 = vpack.c.b16 %v633, %v631
        %v668 = vpack.c.b16 %v634, %v632
        %v669 = vpack.c.b16 %v637, %v635
        %v670 = vpack.c.b16 %v638, %v636
        %703 = vmatprep.subr.bf16.mxu0 %v640
        %704 = vmatpush1.bf16.msra.mxu0 %v639
        %705 = vmatprep.subr.bf16.mxu0 %v642
        %706 = vmatpush1.bf16.msra.mxu0 %v641
        %707 = vmatprep.subr.bf16.mxu0 %v644
        %708 = vmatpush1.bf16.msra.mxu0 %v643
        %709 = vmatprep.subr.bf16.mxu0 %v646
        %710 = vmatpush1.bf16.msra.mxu0 %v645
        %711 = vmatprep.subr.bf16.mxu0 %v648
        %712 = vmatpush1.bf16.msra.mxu0 %v647
        %713 = vmatprep.subr.bf16.mxu0 %v650
        %714 = vmatpush1.bf16.msra.mxu0 %v649
        %715 = vmatprep.subr.bf16.mxu0 %v652
        %716 = vmatpush1.bf16.msra.mxu0 %v651
        %717 = vmatprep.subr.bf16.mxu0 %v654
        %718 = vmatpush1.bf16.msra.mxu0 %v653
        %719 = vmatprep.subr.bf16.mxu0 %v656
        %720 = vmatpush1.bf16.msra.mxu0 %v655
        %721 = vmatprep.subr.bf16.mxu0 %v658
        %722 = vmatpush1.bf16.msra.mxu0 %v657
        %723 = vmatprep.subr.bf16.mxu0 %v660
        %724 = vmatpush1.bf16.msra.mxu0 %v659
        %725 = vmatprep.subr.bf16.mxu0 %v662
        %726 = vmatpush1.bf16.msra.mxu0 %v661
        %727 = vmatprep.subr.bf16.mxu0 %v664
        %728 = vmatpush1.bf16.msra.mxu0 %v663
        %729 = vmatprep.subr.bf16.mxu0 %v666
        %730 = vmatpush1.bf16.msra.mxu0 %v665
        %731 = vmatprep.subr.bf16.mxu0 %v668
        %732 = vmatpush1.bf16.msra.mxu0 %v667
        %733 = vmatprep.subr.bf16.mxu0 %v670
        %734 = vmatpush1.bf16.msra.mxu0 %v669
        %735 = vmatprep.mubr.bf16.mxu0 %v540
        %736 = vmatmul.mubr.bf16.gmra.mrb[0].mxu0 %v539
        %v737 = vpop.f32.mrb[0].mxu0
        %v738 = vadd.f32 0.0, %v737
        %v739 = vpop.f32.mrb[0].mxu0
        %v740 = vadd.f32 0.0, %v739
        %v741 = vpop.f32.mrb[0].mxu0
        %v742 = vpop.f32.mrb[0].mxu0
        %743 = vdwg.mxu0
        %v744 = vadd.f32 %v501, %v738
        %v745 = vadd.f32 %v502, %v740
        %746 = vst [vmem:[#allocation2] sm:$0xff] %v744
        %747 = vst [vmem:[#allocation2 + $0x8] sm:$0xff] %v745
        %p748 = scmp.eq.s32.totalorder %s23, 8
        %p749 = pnand %p748, %p494
        %p750 = pneg %p749
        // Predicated region
        $region79: #{extra_layers_forward.12} parent=69 // pred_check
          _
        $region80: #{extra_layers_forward.12} parent=69 // pred_check_branch
          %752 = sbr.rel (%p749) target = $region82
        $region81: #{extra_layers_forward.12} parent=69 // pred_region
          %v753 = vld [vmem:[#allocation2] sm:$0xff]
          %v754 = vld [vmem:[#allocation2 + $0x8] sm:$0xff]
          %v755 = vld [vmem:[%s476] sm:$0x3]
          %v757 = vlaneseq
          %v758 = vshrl.u32 %v757, 7
          %v759 = vsub.s32 0, %v758
          %v760 = vrot.slane %v755, %v759
          %v761 = vlaneseq
          %v762 = vshrl.u32 %v761, 7
          %v763 = vsub.s32 1, %v762
          %v764 = vrot.slane %v755, %v763
          %v767 = vmul.f32 %v753, %v760
          %v768 = vmul.f32 %v754, %v764
          %v769 = vld [vmem:[%s481] sm:$0x3]
          %v771 = vlaneseq
          %v772 = vshrl.u32 %v771, 7
          %v773 = vsub.s32 0, %v772
          %v774 = vrot.slane %v769, %v773
          %v775 = vlaneseq
          %v776 = vshrl.u32 %v775, 7
          %v777 = vsub.s32 1, %v776
          %v778 = vrot.slane %v769, %v777
          %v781 = vadd.f32 %v767, %v774
          %v782 = vadd.f32 %v768, %v778
          %v783 = vmax.f32 %v781, 0.0
          %v784 = vmax.f32 %v782, 0.0
          %785 = vst [vmem:[%s491] sm:$0xff] %v783
          %786 = vst [vmem:[%s491 + $0x8] sm:$0xff] %v784
        $region82: #{extra_layers_forward.12} parent=69 // pred_fallthru
          _
        %s787 = smul.u32 2, %s22
        %p788 = scmp.lt.s32.totalorder %s21, 0
        %s789 = scalar_select %p788, %s21, 0
        %p790 = scmp.lt.s32.totalorder %s787, 3
        %s791 = scalar_select %p790, %s787, 3
        %s792 = smul.addr %s789, 4
        %s793 = sadd.s32 %s791, %s792
        %s794 = smul.addr %s793, 8
        %s795 = scalar_lea.vmem %s4, %s794
        // Predicated region
        $region83: #{extra_layers_forward.12} parent=69 // pred_check
          %p796 = pneg %p173
        $region84: #{extra_layers_forward.12} parent=69 // pred_check_branch
          %798 = sbr.rel (%p796) target = $region86
        $region85: #{extra_layers_forward.12} parent=69 // pred_region
          %s799 = smul.u32 2, %s22
        $region86: #{extra_layers_forward.12} parent=69 // pred_fallthru
          _
      $region70: #{extra_layers_forward.12} parent=5 // pred_fallthru
        _
      %p800 = scmp.le.s32.totalorder 2, %s10
      // Predicated region
      $region87: #{extra_layers_forward.12} parent=5 // pred_check
        %p801 = pneg %p800
      $region88: #{extra_layers_forward.12} parent=5 // pred_check_branch
        %803 = sbr.rel (%p801) target = $region90
      $region89: #{extra_layers_forward.12} parent=5 // pred_region
        %s804 = ssub.s32 %s10, 2
        // Predicated region
        $region91: #{extra_layers_forward.12} parent=89 // pred_check
          %p805 = pneg %p179
        $region92: #{extra_layers_forward.12} parent=89 // pred_check_branch
          %807 = sbr.rel (%p805) target = $region94
        $region93: #{extra_layers_forward.12} parent=89 // pred_region
          %s808 = smul.u32 2, %s26
          %p809 = scmp.lt.s32.totalorder %s25, 0
          %s810 = scalar_select %p809, %s25, 0
          %p811 = scmp.lt.s32.totalorder %s808, 3
          %s812 = scalar_select %p811, %s808, 3
          %s813 = smul.addr %s810, 4
          %s814 = sadd.s32 %s812, %s813
          %s815 = smul.addr %s814, 8
          %s816 = scalar_lea.vmem %s4, %s815
        $region94: #{extra_layers_forward.12} parent=89 // pred_fallthru
          _
      $region90: #{extra_layers_forward.12} parent=5 // pred_fallthru
        _
    $region6: #{extra_layers_forward.12} parent=1 // loop_footer
      %s14 = sadd.s32 1, %s10
    $region7: #{extra_layers_forward.12} parent=1 // loop_footer_branch
      %9 = sbr.rel target = $region3
    $region8: #{extra_layers_forward.12} parent=1 // loop_exit
      _

</llo_original>
